<compile_context>
chip_gen: v7x
topology: tpu7x:2x2x1
jax: 0.10.0
libtpu: 0.0.40
codegen_flags: <defaults>
</compile_context>

<pallas_src>
import jax
import jax.numpy as jnp
from jax import lax
from jax.experimental import pallas as pl
from jax.experimental.pallas import tpu as pltpu


# Explicit scoped-VMEM budget: >= every kernel's working set (< 9 MB), below
# physical VMEM on all generations (v5e/v6e 128 MiB, v7x 64 MiB), and raises
# v5e's 16 MiB default so nothing silently shrinks there.
_VMEM_LIMIT_BYTES = 32 * 1024 * 1024


def _num_tensorcores():
    """2 TensorCores per chip on v7x, 1 on v5e/v6e (best-effort detection)."""
    try:
        kind = jax.devices()[0].device_kind.lower()
    except Exception:
        return 1
    return 2 if "v7" in kind else 1


# ---------------------------------------------------------------------------
# Pallas kernel 1: conv-as-matmul (single K block) fused with BN shift + ReLU
#   out = relu(x @ w_scaled + shift)        (BN scale pre-folded into w)
# ---------------------------------------------------------------------------
def _conv_mm_shift_relu_kernel(x_ref, w_ref, shift_ref, o_ref):
    y = jnp.dot(x_ref[...], w_ref[...], preferred_element_type=jnp.float32)
    o_ref[...] = jnp.maximum(y + shift_ref[...], 0.0).astype(o_ref.dtype)


def _largest_row_tile(m, cap):
    """Largest multiple of 8 that divides m and is <= cap (None if none)."""
    cap = min(cap, m)
    cap -= cap % 8
    for t in range(cap, 0, -8):
        if m % t == 0:
            return t
    return None


def conv_matmul_shift_relu(patches, w2d, shift, *, row_tiles=2):
    """relu(patches @ w2d + shift); bf16 operands, f32 MXU accumulation.

    `row_tiles` is the target number of grid steps along M (>=2 keeps both
    v7x TensorCores busy); falls back to the largest dividing tile otherwise.
    """
    M, K = patches.shape
    N = w2d.shape[1]

    cap = max((M // max(row_tiles, 1)) // 8 * 8, 8)
    cap = min(cap, 8192)                      # VMEM safety ceiling
    tm = _largest_row_tile(M, cap)
    Mp = M
    if tm is None:  # M not a multiple of 8: pad rows (not hit by this model).
        Mp = ((M + 7) // 8) * 8
        patches = jnp.pad(patches, ((0, Mp - M), (0, 0)))
        tm = _largest_row_tile(Mp, max(cap, 8))

    out = pl.pallas_call(
        _conv_mm_shift_relu_kernel,
        out_shape=jax.ShapeDtypeStruct((Mp, N), jnp.bfloat16),
        grid_spec=pltpu.PrefetchScalarGridSpec(
            num_scalar_prefetch=0,
            grid=(Mp // tm,),
            in_specs=[
                # K / N are full-extent block dims -> no HBM padding needed.
                pl.BlockSpec((tm, K), lambda i: (i, 0)),
                pl.BlockSpec((K, N), lambda i: (0, 0)),
                pl.BlockSpec((1, N), lambda i: (0, 0)),
            ],
            out_specs=pl.BlockSpec((tm, N), lambda i: (i, 0)),
        ),
        compiler_params=pltpu.CompilerParams(
            dimension_semantics=("parallel",),
            vmem_limit_bytes=_VMEM_LIMIT_BYTES),
    )(patches, w2d, shift)
    return out[:M]


# ---------------------------------------------------------------------------
# Pallas kernel 2: fc1 with K-accumulation into the resident f32 output
# block, fused bias + ReLU epilogue.  Grid = (n_groups, K_steps); the group
# axis is "parallel" (G=2 only on v7x so each TensorCore streams a disjoint
# half of the fc1 weight; G=1 on single-TC chips for a lane-dense output).
# ---------------------------------------------------------------------------
def _fc1_bias_relu_kernel(x_ref, w_ref, b_ref, o_ref):
    k = pl.program_id(1)

    @pl.when(k == 0)
    def _():
        o_ref[...] = jnp.zeros_like(o_ref)

    o_ref[...] += jnp.dot(x_ref[...], w_ref[...],
                          preferred_element_type=jnp.float32)

    @pl.when(k == pl.num_programs(1) - 1)
    def _():
        o_ref[...] = jnp.maximum(o_ref[...] + b_ref[...], 0.0)


def _pick_tk(K, cap=12544):
    """Largest multiple of 128 that divides K and is <= cap (fallback: K)."""
    cap = min(cap, K)
    cap -= cap % 128
    if cap >= 128:
        for t in range(cap, 0, -128):
            if K % t == 0:
                return t
    return K


def fc1_relu(x, w_split, b_split):
    """relu(x @ fc1_w + fc1_b); fc1_w pre-split along output columns into
    G groups: w_split is (G, K, 128//G) bf16, b_split is (G, 1, 128//G)."""
    M, K = x.shape
    G, Kw, Ng = w_split.shape
    assert K == Kw
    tk = _pick_tk(K)
    assert K % tk == 0

    out = pl.pallas_call(
        _fc1_bias_relu_kernel,
        out_shape=jax.ShapeDtypeStruct((G, M, Ng), jnp.float32),
        grid_spec=pltpu.PrefetchScalarGridSpec(
            num_scalar_prefetch=0,
            grid=(G, K // tk),
            in_specs=[
                pl.BlockSpec((M, tk), lambda g, k: (0, k)),
                pl.BlockSpec((None, tk, Ng), lambda g, k: (g, k, 0)),
                pl.BlockSpec((None, 1, Ng), lambda g, k: (g, 0, 0)),
            ],
            out_specs=pl.BlockSpec((None, M, Ng), lambda g, k: (g, 0, 0)),
        ),
        compiler_params=pltpu.CompilerParams(
            dimension_semantics=("parallel", "arbitrary"),
            vmem_limit_bytes=_VMEM_LIMIT_BYTES),
    )(x, w_split, b_split)
    if G == 1:
        return out[0]
    # (G, M, Ng) -> (M, G*Ng): column g*Ng + j belongs to group g.
    return jnp.transpose(out, (1, 0, 2)).reshape(M, G * Ng)


# ---------------------------------------------------------------------------
# Glue: im2col patch extraction (NHWC) and conv+bn+relu layer
# ---------------------------------------------------------------------------
def im2col(x_nhwc, kh, kw, stride, pad):
    N, H, W, C = x_nhwc.shape
    Ho = (H + 2 * pad - kh) // stride + 1
    Wo = (W + 2 * pad - kw) // stride + 1
    xp = jnp.pad(x_nhwc, ((0, 0), (pad, pad), (pad, pad), (0, 0)))
    cols = []
    for i in range(kh):
        for j in range(kw):
            sl = lax.slice(
                xp,
                (0, i, j, 0),
                (N, i + (Ho - 1) * stride + 1, j + (Wo - 1) * stride + 1, C),
                (1, stride, stride, 1))
            cols.append(sl)
    patches = jnp.stack(cols, axis=3)           # (N, Ho, Wo, kh*kw, C)
    return patches.reshape(N * Ho * Wo, kh * kw * C), (N, Ho, Wo)


def conv_bn_relu(x_nhwc, cp):
    patches, (N, Ho, Wo) = im2col(x_nhwc, cp["kh"], cp["kw"],
                                  cp["stride"], cp["pad"])
    out = conv_matmul_shift_relu(patches, cp["w2d"], cp["shift"],
                                 row_tiles=cp["row_tiles"])
    return out.reshape(N, Ho, Wo, cp["w2d"].shape[1])


# ---------------------------------------------------------------------------
# One-time parameter preparation (weight reshapes / BN folding / bf16 casts).
# ---------------------------------------------------------------------------
def prepare_params(p, eps=1e-5, fc1_groups=None):
    if fc1_groups is None:
        fc1_groups = _num_tensorcores()        # G=2 only on v7x

    def conv_entry(w, b, bn, stride, pad, row_tiles):
        gamma, beta, mean, var = bn
        scale = gamma / jnp.sqrt(var + eps)
        shift = beta - mean * scale + b * scale          # fold conv bias in
        cout, cin, KH, KW = w.shape
        # row index = (i*KW + j)*Cin + c  -> matches im2col ordering
        w2d = jnp.transpose(w, (2, 3, 1, 0)).reshape(KH * KW * cin, cout)
        w2d = w2d * scale[None, :]                       # fold BN scale in
        return dict(w2d=w2d.astype(jnp.bfloat16),
                    shift=shift.reshape(1, cout).astype(jnp.float32),
                    kh=KH, kw=KW, stride=stride, pad=pad,
                    row_tiles=row_tiles)

    prep = {
        "conv1": conv_entry(p["w1"], p["b1"], p["bn1"], 2, 2, 4),
        "conv2": conv_entry(p["w2"], p["b2"], p["bn2"], 2, 2, 2),
        "conv3": conv_entry(p["w3"], p["b3"], p["bn3"], 2, 1, 2),
    }

    # fc1: permute rows from torch's (C,H,W)-flatten order to (H,W,C)-flatten
    # (NHWC) so the forward never needs to transpose activations, then split
    # the output columns into `fc1_groups` groups for the parallel grid axis.
    C = p["w3"].shape[0]
    HW = p["fc1_w"].shape[0] // C
    H = W = int(round(HW ** 0.5))
    nh = p["fc1_w"].shape[1]
    G = fc1_groups if (fc1_groups >= 1 and nh % fc1_groups == 0) else 1
    fc1_w = p["fc1_w"].reshape(C, H, W, nh).transpose(1, 2, 0, 3)
    fc1_w = fc1_w.reshape(C * H * W, nh)
    prep["fc1_w"] = (fc1_w.reshape(C * H * W, G, nh // G)
                     .transpose(1, 0, 2).astype(jnp.bfloat16))   # (G, K, nh/G)
    prep["fc1_b"] = p["fc1_b"].reshape(G, 1, nh // G).astype(jnp.float32)
    prep["fc2_w"] = p["fc2_w"].astype(jnp.float32)
    prep["fc2_b"] = p["fc2_b"].astype(jnp.float32)
    return prep


# ---------------------------------------------------------------------------
# Full forward
# ---------------------------------------------------------------------------
def turtle_forward(x_nchw, prep):
    x = jnp.transpose(x_nchw, (0, 2, 3, 1)).astype(jnp.bfloat16)   # NHWC bf16
    x = conv_bn_relu(x, prep["conv1"])
    x = conv_bn_relu(x, prep["conv2"])
    x = conv_bn_relu(x, prep["conv3"])
    B = x.shape[0]
    # NHWC flatten; fc1 weight rows were pre-permuted to match this ordering.
    x = x.reshape(B, -1)
    h = fc1_relu(x, prep["fc1_w"], prep["fc1_b"])        # (B, 128) f32
    # Dropout(0.5): identity in eval mode.
    # fc2 is a tiny (B,128)@(128,num_classes) matmul -> plain XLA, no kernel.
    return h @ prep["fc2_w"] + prep["fc2_b"]


# ---------------------------------------------------------------------------
# Pure-JAX reference (NCHW, f32, mirrors PyTorch forward in eval mode)
# ---------------------------------------------------------------------------
def reference_forward(x, p, eps=1e-5):
    def conv(x, w, b, stride, pad):
        y = lax.conv_general_dilated(
            x, w, (stride, stride), ((pad, pad), (pad, pad)),
            dimension_numbers=("NCHW", "OIHW", "NCHW"))
        return y + b[None, :, None, None]

    def bn(x, gamma, beta, mean, var):
        return ((x - mean[None, :, None, None])
                / jnp.sqrt(var[None, :, None, None] + eps)
                * gamma[None, :, None, None] + beta[None, :, None, None])

    x = jax.nn.relu(bn(conv(x, p["w1"], p["b1"], 2, 2), *p["bn1"]))
    x = jax.nn.relu(bn(conv(x, p["w2"], p["b2"], 2, 2), *p["bn2"]))
    x = jax.nn.relu(bn(conv(x, p["w3"], p["b3"], 2, 1), *p["bn3"]))
    x = x.reshape(x.shape[0], -1)
    x = jax.nn.relu(x @ p["fc1_w"] + p["fc1_b"])
    x = x @ p["fc2_w"] + p["fc2_b"]
    return x


# ---------------------------------------------------------------------------
def init_params(key, num_classes=8, input_channels=3):
    ks = jax.random.split(key, 24)
    f32 = jnp.float32

    def bn_params(k, c):
        k1, k2, k3, k4 = jax.random.split(k, 4)
        gamma = 1.0 + 0.1 * jax.random.normal(k1, (c,), f32)
        beta = 0.1 * jax.random.normal(k2, (c,), f32)
        mean = 0.1 * jax.random.normal(k3, (c,), f32)
        var = jax.random.uniform(k4, (c,), f32, 0.5, 1.5)
        return (gamma, beta, mean, var)

    p = {}
    p["w1"] = 0.1 * jax.random.normal(ks[0], (16, input_channels, 5, 5), f32)
    p["b1"] = 0.1 * jax.random.normal(ks[1], (16,), f32)
    p["bn1"] = bn_params(ks[2], 16)
    p["w2"] = 0.1 * jax.random.normal(ks[3], (32, 16, 5, 5), f32)
    p["b2"] = 0.1 * jax.random.normal(ks[4], (32,), f32)
    p["bn2"] = bn_params(ks[5], 32)
    p["w3"] = 0.1 * jax.random.normal(ks[6], (64, 32, 3, 3), f32)
    p["b3"] = 0.1 * jax.random.normal(ks[7], (64,), f32)
    p["bn3"] = bn_params(ks[8], 64)
    p["fc1_w"] = 0.01 * jax.random.normal(ks[9], (64 * 28 * 28, 128), f32)
    p["fc1_b"] = 0.1 * jax.random.normal(ks[10], (128,), f32)
    p["fc2_w"] = 0.1 * jax.random.normal(ks[11], (128, num_classes), f32)
    p["fc2_b"] = 0.1 * jax.random.normal(ks[12], (num_classes,), f32)
    return p


if __name__ == "__main__":
    num_classes = 8
    key = jax.random.PRNGKey(0)
    kx, kp = jax.random.split(key)
    # fc1 is hard-wired to 64*28*28 features -> the module implies 224x224
    # spatial input (224 -> 112 -> 56 -> 28); batch kept small (2).
    x = jax.random.normal(kx, (2, 3, 224, 224), jnp.float32)
    params = init_params(kp, num_classes=num_classes)
    prep = prepare_params(params)

    out = jax.block_until_ready(turtle_forward(x, prep))
    assert out.shape == (2, num_classes), out.shape

    ref = jax.block_until_ready(reference_forward(x, params))
    if not jnp.allclose(out, ref, rtol=1e-1, atol=1e-1):
        raise AssertionError(
            f"mismatch: max abs diff {float(jnp.max(jnp.abs(out - ref)))}")

    print("KERNEL_OK")
</pallas_src>

<mosaic_0001>
module attributes {stable_mosaic.version = 11 : i64} {
  func.func @_conv_mm_shift_relu_kernel(%arg0: i32, %arg1: memref<6272x75xbf16, #tpu.memory_space<vmem>>, %arg2: memref<75x16xbf16, #tpu.memory_space<vmem>>, %arg3: memref<1x16xf32, #tpu.memory_space<vmem>>, %arg4: memref<6272x16xbf16, #tpu.memory_space<vmem>>) attributes {dimension_semantics = [#tpu.dimension_semantics<parallel>], iteration_bounds = array<i64: 4>, scalar_prefetch = 0 : i64, scratch_operands = 0 : i64, tpu.core_type = #tpu.core_type<tc>, window_params = [{transform_indices = @transform_0, window_bounds = array<i64: 6272, 75>}, {pipeline_mode = #tpu.pipeline_mode<synchronous>, transform_indices = @transform_1, window_bounds = array<i64: 75, 16>}, {pipeline_mode = #tpu.pipeline_mode<synchronous>, transform_indices = @transform_2, window_bounds = array<i64: 1, 16>}, {transform_indices = @transform_3, window_bounds = array<i64: 6272, 16>}]} {
    %c0 = arith.constant 0 : index
    %c0_0 = arith.constant 0 : index
    %0 = vector.load %arg1[%c0, %c0_0] : memref<6272x75xbf16, #tpu.memory_space<vmem>>, vector<6272x75xbf16>
    %c0_1 = arith.constant 0 : index
    %c0_2 = arith.constant 0 : index
    %1 = vector.load %arg2[%c0_1, %c0_2] : memref<75x16xbf16, #tpu.memory_space<vmem>>, vector<75x16xbf16>
    %cst = arith.constant dense<0.000000e+00> : vector<6272x16xf32>
    %2 = tpu.matmul %0, %1, %cst {dimension_numbers = #tpu.dot_dimension_numbers<[1], [0], [0], [1], [0, 0, 1, 1], [], []>} : vector<6272x75xbf16>, vector<75x16xbf16>, vector<6272x16xf32> -> vector<6272x16xf32>
    %c0_3 = arith.constant 0 : index
    %c0_4 = arith.constant 0 : index
    %3 = vector.load %arg3[%c0_3, %c0_4] : memref<1x16xf32, #tpu.memory_space<vmem>>, vector<1x16xf32>
    %4 = vector.broadcast %3 : vector<1x16xf32> to vector<6272x16xf32>
    %5 = arith.addf %2, %4 : vector<6272x16xf32>
    %cst_5 = arith.constant 0.000000e+00 : f32
    %6 = vector.broadcast %cst_5 : f32 to vector<6272x16xf32>
    %7 = arith.maximumf %5, %6 : vector<6272x16xf32>
    %8 = arith.truncf %7 : vector<6272x16xf32> to vector<6272x16xbf16>
    %c0_6 = arith.constant 0 : index
    %c0_7 = arith.constant 0 : index
    %9 = vector.load %arg4[%c0_6, %c0_7] : memref<6272x16xbf16, #tpu.memory_space<vmem>>, vector<6272x16xbf16>
    tpu.vector_store %arg4[%c0_6, %c0_7], %8 {strides = array<i32>} : memref<6272x16xbf16, #tpu.memory_space<vmem>>, vector<6272x16xbf16>,
    return
  }
  func.func @transform_0(%arg0: i32) -> (i32, i32) {
    %c0_i32 = arith.constant 0 : i32
    %c0_i32_0 = arith.constant 0 : i32
    return %arg0, %c0_i32 : i32, i32
  }
  func.func @transform_1(%arg0: i32) -> (i32, i32) {
    %c0_i32 = arith.constant 0 : i32
    %c0_i32_0 = arith.constant 0 : i32
    %c0_i32_1 = arith.constant 0 : i32
    return %c0_i32, %c0_i32_0 : i32, i32
  }
  func.func @transform_2(%arg0: i32) -> (i32, i32) {
    %c0_i32 = arith.constant 0 : i32
    %c0_i32_0 = arith.constant 0 : i32
    %c0_i32_1 = arith.constant 0 : i32
    return %c0_i32, %c0_i32_0 : i32, i32
  }
  func.func @transform_3(%arg0: i32) -> (i32, i32) {
    %c0_i32 = arith.constant 0 : i32
    %c0_i32_0 = arith.constant 0 : i32
    return %arg0, %c0_i32 : i32, i32
  }
}

</mosaic_0001>

<llo_original>
// kernel: tpu_custom_call.1
$region0: #{tpu_custom_call.1}
  #allocation0 [shape = 'u32[]', space=smem, size = 0x4, offset = 0x4, fixed_abs, tag = 'smem constant byte address 0x4 - core index']
  #allocation1 [shape = 'u32[144,128]{1,0:T(1,128)}', space=vmem, size = 0x12000, scoped, tag = 'internal scratch']
  %s0 = inlined_call_operand.vmem [shape: bf16[25088,75], index: 0, kind: input, shape index: {}]
  %s1 = inlined_call_operand.vmem [shape: bf16[75,16], index: 1, kind: input, shape index: {}]
  %s2 = inlined_call_operand.vmem [shape: f32[1,16], index: 2, kind: input, shape index: {}]
  %s3 = inlined_call_operand.vmem [shape: bf16[25088,16], index: 3, kind: output, shape index: {}]
  %s4 = sld [smem:[#allocation0]]
  $region45: #{tpu_custom_call.1} parent=0
    _
  %s6 = ssub.s32 1, %s4
  %s7 = scalar_select 0, %s6, %s4
  loop: start=0, step=1, limit=6
  $region2: #{tpu_custom_call.1} parent=0 // loop_pre_header
    _
  $region3: #{tpu_custom_call.1} parent=0 // loop_header
    %s9 = sphi 0, %s13
    %p10 = scmp.ge.s32.totalorder %s9, 6
    %s19 = sphi 0, %s21
    %s22 = sphi 0, %s19
    %s23 = sphi 0, %s22
    %s39 = sphi 0, %s23
    %s43 = sphi 0, %s43
    %s45 = sphi 0, %s43
    %s46 = sphi 0, %s45
    %s60 = sphi 0, %s46
    %s64 = sphi 0, %s64
    %s66 = sphi 0, %s64
    %s67 = sphi 0, %s66
    %s81 = sphi 0, %s67
    %s87 = sphi 0, %s89
    %s90 = sphi 0, %s87
    %s91 = sphi 0, %s90
    %s107 = sphi 0, %s91
  $region4: #{tpu_custom_call.1} parent=0 // loop_header_branch
    %12 = sbr.rel (%p10) target = $region8
  $region5: #{tpu_custom_call.1} parent=0 // loop_body
    %s14 = ssub.s32 %s9, 1
    %s15 = ssub.s32 %s9, 2
    %s16 = sadd.s32 %s9, 1
    %s17 = ssub.s32 %s9, %s16
    %p18 = scmp.eq.s32.totalorder %s17, 0
    %s20 = sadd.s32 %s19, 1
    %s21 = scalar_select %p18, %s19, %s20
    %p24 = pneg %p18
    %p25 = scmp.eq.s32.totalorder %s9, 3
    %p26 = por %p24, %p25
    %p27 = scmp.ne.s32.totalorder %s19, %s22
    %p28 = scmp.eq.s32.totalorder %s9, 0
    %p29 = por %p27, %p28
    %p30 = scmp.ne.s32.totalorder %s19, %s22
    %p31 = scmp.eq.s32.totalorder %s14, 3
    %p32 = por %p30, %p31
    %p33 = scmp.ne.s32.totalorder %s22, %s23
    %p34 = scmp.eq.s32.totalorder %s14, 0
    %p35 = por %p33, %p34
    %p36 = scmp.ne.s32.totalorder %s22, %s23
    %p37 = scmp.eq.s32.totalorder %s15, 3
    %p38 = por %p36, %p37
    %p40 = scmp.ne.s32.totalorder %s23, %s39
    %p41 = scmp.eq.s32.totalorder %s15, 0
    %p42 = por %p40, %p41
    %s44 = sadd.s32 %s43, 1
    %p47 = scmp.eq.s32.totalorder %s9, 3
    %p48 = scmp.ne.s32.totalorder %s43, %s45
    %p49 = scmp.eq.s32.totalorder %s9, 0
    %p50 = por %p48, %p49
    %p51 = scmp.ne.s32.totalorder %s43, %s45
    %p52 = scmp.eq.s32.totalorder %s14, 3
    %p53 = por %p51, %p52
    %p54 = scmp.ne.s32.totalorder %s45, %s46
    %p55 = scmp.eq.s32.totalorder %s14, 0
    %p56 = por %p54, %p55
    %p57 = scmp.ne.s32.totalorder %s45, %s46
    %p58 = scmp.eq.s32.totalorder %s15, 3
    %p59 = por %p57, %p58
    %p61 = scmp.ne.s32.totalorder %s46, %s60
    %p62 = scmp.eq.s32.totalorder %s15, 0
    %p63 = por %p61, %p62
    %s65 = sadd.s32 %s64, 1
    %p68 = scmp.eq.s32.totalorder %s9, 3
    %p69 = scmp.ne.s32.totalorder %s64, %s66
    %p70 = scmp.eq.s32.totalorder %s9, 0
    %p71 = por %p69, %p70
    %p72 = scmp.ne.s32.totalorder %s64, %s66
    %p73 = scmp.eq.s32.totalorder %s14, 3
    %p74 = por %p72, %p73
    %p75 = scmp.ne.s32.totalorder %s66, %s67
    %p76 = scmp.eq.s32.totalorder %s14, 0
    %p77 = por %p75, %p76
    %p78 = scmp.ne.s32.totalorder %s66, %s67
    %p79 = scmp.eq.s32.totalorder %s15, 3
    %p80 = por %p78, %p79
    %p82 = scmp.ne.s32.totalorder %s67, %s81
    %p83 = scmp.eq.s32.totalorder %s15, 0
    %p84 = por %p82, %p83
    %s85 = ssub.s32 %s9, %s16
    %p86 = scmp.eq.s32.totalorder %s85, 0
    %s88 = sadd.s32 %s87, 1
    %s89 = scalar_select %p86, %s87, %s88
    %p92 = pneg %p86
    %p93 = scmp.eq.s32.totalorder %s9, 3
    %p94 = por %p92, %p93
    %p95 = scmp.ne.s32.totalorder %s87, %s90
    %p96 = scmp.eq.s32.totalorder %s9, 0
    %p97 = por %p95, %p96
    %p98 = scmp.ne.s32.totalorder %s87, %s90
    %p99 = scmp.eq.s32.totalorder %s14, 3
    %p100 = por %p98, %p99
    %p101 = scmp.ne.s32.totalorder %s90, %s91
    %p102 = scmp.eq.s32.totalorder %s14, 0
    %p103 = por %p101, %p102
    %p104 = scmp.ne.s32.totalorder %s90, %s91
    %p105 = scmp.eq.s32.totalorder %s15, 3
    %p106 = por %p104, %p105
    %p108 = scmp.ne.s32.totalorder %s91, %s107
    %p109 = scmp.eq.s32.totalorder %s15, 0
    %p110 = por %p108, %p109
    %p111 = scmp.le.s32.totalorder 1, %s9
    %p112 = scmp.lt.s32.totalorder %s9, 5
    %p113 = pnand %p111, %p112
    %p114 = pneg %p113
    // Predicated region
    $region9: #{tpu_custom_call.1} parent=5 // pred_check
      _
    $region10: #{tpu_custom_call.1} parent=5 // pred_check_branch
      %116 = sbr.rel (%p113) target = $region12
    $region11: #{tpu_custom_call.1} parent=5 // pred_region
      %s117 = ssub.s32 %s9, 1
      // Predicated region
      $region13: #{tpu_custom_call.1} parent=11 // pred_check
        %p118 = pneg %p56
      $region14: #{tpu_custom_call.1} parent=11 // pred_check_branch
        %120 = sbr.rel (%p118) target = $region16
      $region15: #{tpu_custom_call.1} parent=11 // pred_region
        _
      $region16: #{tpu_custom_call.1} parent=11 // pred_fallthru
        _
      // Predicated region
      $region17: #{tpu_custom_call.1} parent=11 // pred_check
        %p121 = pneg %p77
      $region18: #{tpu_custom_call.1} parent=11 // pred_check_branch
        %123 = sbr.rel (%p121) target = $region20
      $region19: #{tpu_custom_call.1} parent=11 // pred_region
        _
      $region20: #{tpu_custom_call.1} parent=11 // pred_fallthru
        _
    $region12: #{tpu_custom_call.1} parent=5 // pred_fallthru
      _
    %p124 = scmp.lt.s32.totalorder %s9, 4
    // Predicated region
    $region21: #{tpu_custom_call.1} parent=5 // pred_check
      %p125 = pneg %p124
    $region22: #{tpu_custom_call.1} parent=5 // pred_check_branch
      %127 = sbr.rel (%p125) target = $region24
    $region23: #{tpu_custom_call.1} parent=5 // pred_region
      // Predicated region
      $region25: #{tpu_custom_call.1} parent=23 // pred_check
        %p128 = pneg %p29
      $region26: #{tpu_custom_call.1} parent=23 // pred_check_branch
        %130 = sbr.rel (%p128) target = $region28
      $region27: #{tpu_custom_call.1} parent=23 // pred_region
        %s131 = smul.u32 784, %s9
        %p132 = scmp.lt.s32.totalorder %s131, 3135
        %s133 = scalar_select %p132, %s131, 3135
        %s134 = smul.addr %s133, 4
        %s135 = scalar_lea.vmem %s0, %s134
        %s136 = smul.u32 784, %s9
      $region28: #{tpu_custom_call.1} parent=23 // pred_fallthru
        _
    $region24: #{tpu_custom_call.1} parent=5 // pred_fallthru
      _
    %p137 = scmp.le.s32.totalorder 1, %s9
    %p138 = scmp.lt.s32.totalorder %s9, 5
    %p139 = pnand %p137, %p138
    %p140 = pneg %p139
    // Predicated region
    $region29: #{tpu_custom_call.1} parent=5 // pred_check
      _
    $region30: #{tpu_custom_call.1} parent=5 // pred_check_branch
      %142 = sbr.rel (%p139) target = $region32
    $region31: #{tpu_custom_call.1} parent=5 // pred_region
      %s143 = ssub.s32 %s9, 1
      %s144 = smul.u32 784, %s14
      %p145 = scmp.lt.s32.totalorder %s144, 3135
      %s146 = scalar_select %p145, %s144, 3135
      %s147 = smul.addr %s146, 4
      %s148 = scalar_lea.vmem %s0, %s147
      %p149 = pneg %p35
      %p150 = pneg %p32
      %p151 = pneg %p56
      %p152 = pneg %p53
      %p153 = pneg %p77
      %p154 = pneg %p74
      %p155 = pneg %p103
      %p156 = pneg %p100
      %s157 = smul.u32 784, %s14
      %p158 = scmp.lt.s32.totalorder %s157, 3135
      %s159 = scalar_select %p158, %s157, 3135
      %s160 = smul.addr %s159, 4
      %s161 = scalar_lea.vmem %s3, %s160
      %s162 = smul.u32 784, %s14
      %p163 = scmp.lt.s32.totalorder %s162, 3135
      %s164 = scalar_select %p163, %s162, 3135
      %s165 = smul.addr %s164, 4
      %s166 = scalar_lea.vmem %s0, %s165
      %s167 = smul.u32 784, %s14
      %s168 = smul.u32 784, %s14
      %p169 = scmp.lt.s32.totalorder %s168, 3135
      %s170 = scalar_select %p169, %s168, 3135
      %s171 = smul.addr %s170, 4
      %s172 = scalar_lea.vmem %s3, %s171
      %s173 = smul.u32 784, %s14
      %v175 = vld [vmem:[%s166] sm:$0xf]
      %v176 = vld [vmem:[%s166 + $0x4] sm:$0xf]
      %v177 = vld [vmem:[%s166 + $0x8] sm:$0xf]
      %v178 = vld [vmem:[%s166 + $0xc] sm:$0xf]
      %v179 = vld [vmem:[%s166 + $0x10] sm:$0xf]
      %v180 = vld [vmem:[%s166 + $0x14] sm:$0xf]
      %v181 = vld [vmem:[%s166 + $0x18] sm:$0xf]
      %v182 = vld [vmem:[%s166 + $0x1c] sm:$0xf]
      %v183 = vld [vmem:[%s166 + $0x20] sm:$0xf]
      %v184 = vld [vmem:[%s166 + $0x24] sm:$0xf]
      %v185 = vld [vmem:[%s166 + $0x28] sm:$0xf]
      %v186 = vld [vmem:[%s166 + $0x2c] sm:$0xf]
      %v187 = vld [vmem:[%s166 + $0x30] sm:$0xf]
      %v188 = vld [vmem:[%s166 + $0x34] sm:$0xf]
      %v189 = vld [vmem:[%s166 + $0x38] sm:$0xf]
      %v190 = vld [vmem:[%s166 + $0x3c] sm:$0xf]
      %v191 = vld [vmem:[%s166 + $0x40] sm:$0xf]
      %v192 = vld [vmem:[%s166 + $0x44] sm:$0xf]
      %v193 = vld [vmem:[%s166 + $0x48] sm:$0xf]
      %v194 = vld [vmem:[%s166 + $0x4c] sm:$0xf]
      %v195 = vld [vmem:[%s166 + $0x50] sm:$0xf]
      %v196 = vld [vmem:[%s166 + $0x54] sm:$0xf]
      %v197 = vld [vmem:[%s166 + $0x58] sm:$0xf]
      %v198 = vld [vmem:[%s166 + $0x5c] sm:$0xf]
      %v199 = vld [vmem:[%s166 + $0x60] sm:$0xf]
      %v200 = vld [vmem:[%s166 + $0x64] sm:$0xf]
      %v201 = vld [vmem:[%s166 + $0x68] sm:$0xf]
      %v202 = vld [vmem:[%s166 + $0x6c] sm:$0xf]
      %v203 = vld [vmem:[%s166 + $0x70] sm:$0xf]
      %v204 = vld [vmem:[%s166 + $0x74] sm:$0xf]
      %v205 = vld [vmem:[%s166 + $0x78] sm:$0xf]
      %v206 = vld [vmem:[%s166 + $0x7c] sm:$0xf]
      %v207 = vld [vmem:[%s166 + $0x80] sm:$0xf]
      %v208 = vld [vmem:[%s166 + $0x84] sm:$0xf]
      %v209 = vld [vmem:[%s166 + $0x88] sm:$0xf]
      %v210 = vld [vmem:[%s166 + $0x8c] sm:$0xf]
      %v211 = vld [vmem:[%s166 + $0x90] sm:$0xf]
      %v212 = vld [vmem:[%s166 + $0x94] sm:$0xf]
      %v213 = vld [vmem:[%s166 + $0x98] sm:$0xf]
      %v214 = vld [vmem:[%s166 + $0x9c] sm:$0xf]
      %v215 = vld [vmem:[%s166 + $0xa0] sm:$0xf]
      %v216 = vld [vmem:[%s166 + $0xa4] sm:$0xf]
      %v217 = vld [vmem:[%s166 + $0xa8] sm:$0xf]
      %v218 = vld [vmem:[%s166 + $0xac] sm:$0xf]
      %v219 = vld [vmem:[%s166 + $0xb0] sm:$0xf]
      %v220 = vld [vmem:[%s166 + $0xb4] sm:$0xf]
      %v221 = vld [vmem:[%s166 + $0xb8] sm:$0xf]
      %v222 = vld [vmem:[%s166 + $0xbc] sm:$0xf]
      %v223 = vld [vmem:[%s166 + $0xc0] sm:$0xf]
      %v224 = vld [vmem:[%s166 + $0xc4] sm:$0xf]
      %v225 = vld [vmem:[%s166 + $0xc8] sm:$0xf]
      %v226 = vld [vmem:[%s166 + $0xcc] sm:$0xf]
      %v227 = vld [vmem:[%s166 + $0xd0] sm:$0xf]
      %v228 = vld [vmem:[%s166 + $0xd4] sm:$0xf]
      %v229 = vld [vmem:[%s166 + $0xd8] sm:$0xf]
      %v230 = vld [vmem:[%s166 + $0xdc] sm:$0xf]
      %v231 = vld [vmem:[%s166 + $0xe0] sm:$0xf]
      %v232 = vld [vmem:[%s166 + $0xe4] sm:$0xf]
      %v233 = vld [vmem:[%s166 + $0xe8] sm:$0xf]
      %v234 = vld [vmem:[%s166 + $0xec] sm:$0xf]
      %v235 = vld [vmem:[%s166 + $0xf0] sm:$0xf]
      %v236 = vld [vmem:[%s166 + $0xf4] sm:$0xf]
      %v237 = vld [vmem:[%s166 + $0xf8] sm:$0xf]
      %v238 = vld [vmem:[%s166 + $0xfc] sm:$0xf]
      %v239 = vld [vmem:[%s166 + $0x100] sm:$0xf]
      %v240 = vld [vmem:[%s166 + $0x104] sm:$0xf]
      %v241 = vld [vmem:[%s166 + $0x108] sm:$0xf]
      %v242 = vld [vmem:[%s166 + $0x10c] sm:$0xf]
      %v243 = vld [vmem:[%s166 + $0x110] sm:$0xf]
      %v244 = vld [vmem:[%s166 + $0x114] sm:$0xf]
      %v245 = vld [vmem:[%s166 + $0x118] sm:$0xf]
      %v246 = vld [vmem:[%s166 + $0x11c] sm:$0xf]
      %v247 = vld [vmem:[%s166 + $0x120] sm:$0xf]
      %v248 = vld [vmem:[%s166 + $0x124] sm:$0xf]
      %v249 = vld [vmem:[%s166 + $0x128] sm:$0xf]
      %v250 = vld [vmem:[%s166 + $0x12c] sm:$0xf]
      %v251 = vld [vmem:[%s166 + $0x130] sm:$0xf]
      %v252 = vld [vmem:[%s166 + $0x134] sm:$0xf]
      %v253 = vld [vmem:[%s166 + $0x138] sm:$0xf]
      %v254 = vld [vmem:[%s166 + $0x13c] sm:$0xf]
      %v255 = vld [vmem:[%s166 + $0x140] sm:$0xf]
      %v256 = vld [vmem:[%s166 + $0x144] sm:$0xf]
      %v257 = vld [vmem:[%s166 + $0x148] sm:$0xf]
      %v258 = vld [vmem:[%s166 + $0x14c] sm:$0xf]
      %v259 = vld [vmem:[%s166 + $0x150] sm:$0xf]
      %v260 = vld [vmem:[%s166 + $0x154] sm:$0xf]
      %v261 = vld [vmem:[%s166 + $0x158] sm:$0xf]
      %v262 = vld [vmem:[%s166 + $0x15c] sm:$0xf]
      %v263 = vld [vmem:[%s166 + $0x160] sm:$0xf]
      %v264 = vld [vmem:[%s166 + $0x164] sm:$0xf]
      %v265 = vld [vmem:[%s166 + $0x168] sm:$0xf]
      %v266 = vld [vmem:[%s166 + $0x16c] sm:$0xf]
      %v267 = vld [vmem:[%s166 + $0x170] sm:$0xf]
      %v268 = vld [vmem:[%s166 + $0x174] sm:$0xf]
      %v269 = vld [vmem:[%s166 + $0x178] sm:$0xf]
      %v270 = vld [vmem:[%s166 + $0x17c] sm:$0xf]
      %v271 = vld [vmem:[%s166 + $0x180] sm:$0xf]
      %v272 = vld [vmem:[%s166 + $0x184] sm:$0xf]
      %v273 = vld [vmem:[%s166 + $0x188] sm:$0xf]
      %v274 = vld [vmem:[%s166 + $0x18c] sm:$0xf]
      %v275 = vld [vmem:[%s166 + $0x190] sm:$0xf]
      %v276 = vld [vmem:[%s166 + $0x194] sm:$0xf]
      %v277 = vld [vmem:[%s166 + $0x198] sm:$0xf]
      %v278 = vld [vmem:[%s166 + $0x19c] sm:$0xf]
      %v279 = vld [vmem:[%s166 + $0x1a0] sm:$0xf]
      %v280 = vld [vmem:[%s166 + $0x1a4] sm:$0xf]
      %v281 = vld [vmem:[%s166 + $0x1a8] sm:$0xf]
      %v282 = vld [vmem:[%s166 + $0x1ac] sm:$0xf]
      %v283 = vld [vmem:[%s166 + $0x1b0] sm:$0xf]
      %v284 = vld [vmem:[%s166 + $0x1b4] sm:$0xf]
      %v285 = vld [vmem:[%s166 + $0x1b8] sm:$0xf]
      %v286 = vld [vmem:[%s166 + $0x1bc] sm:$0xf]
      %v287 = vld [vmem:[%s166 + $0x1c0] sm:$0xf]
      %v288 = vld [vmem:[%s166 + $0x1c4] sm:$0xf]
      %v289 = vld [vmem:[%s166 + $0x1c8] sm:$0xf]
      %v290 = vld [vmem:[%s166 + $0x1cc] sm:$0xf]
      %v291 = vld [vmem:[%s166 + $0x1d0] sm:$0xf]
      %v292 = vld [vmem:[%s166 + $0x1d4] sm:$0xf]
      %v293 = vld [vmem:[%s166 + $0x1d8] sm:$0xf]
      %v294 = vld [vmem:[%s166 + $0x1dc] sm:$0xf]
      %v295 = vld [vmem:[%s166 + $0x1e0] sm:$0xf]
      %v296 = vld [vmem:[%s166 + $0x1e4] sm:$0xf]
      %v297 = vld [vmem:[%s166 + $0x1e8] sm:$0xf]
      %v298 = vld [vmem:[%s166 + $0x1ec] sm:$0xf]
      %v299 = vld [vmem:[%s166 + $0x1f0] sm:$0xf]
      %v300 = vld [vmem:[%s166 + $0x1f4] sm:$0xf]
      %v301 = vld [vmem:[%s166 + $0x1f8] sm:$0xf]
      %v302 = vld [vmem:[%s166 + $0x1fc] sm:$0xf]
      %v303 = vld [vmem:[%s166 + $0x200] sm:$0xf]
      %v304 = vld [vmem:[%s166 + $0x204] sm:$0xf]
      %v305 = vld [vmem:[%s166 + $0x208] sm:$0xf]
      %v306 = vld [vmem:[%s166 + $0x20c] sm:$0xf]
      %v307 = vld [vmem:[%s166 + $0x210] sm:$0xf]
      %v308 = vld [vmem:[%s166 + $0x214] sm:$0xf]
      %v309 = vld [vmem:[%s166 + $0x218] sm:$0xf]
      %v310 = vld [vmem:[%s166 + $0x21c] sm:$0xf]
      %v311 = vld [vmem:[%s166 + $0x220] sm:$0xf]
      %v312 = vld [vmem:[%s166 + $0x224] sm:$0xf]
      %v313 = vld [vmem:[%s166 + $0x228] sm:$0xf]
      %v314 = vld [vmem:[%s166 + $0x22c] sm:$0xf]
      %v315 = vld [vmem:[%s166 + $0x230] sm:$0xf]
      %v316 = vld [vmem:[%s166 + $0x234] sm:$0xf]
      %v317 = vld [vmem:[%s166 + $0x238] sm:$0xf]
      %v318 = vld [vmem:[%s166 + $0x23c] sm:$0xf]
      %v319 = vld [vmem:[%s166 + $0x240] sm:$0xf]
      %v320 = vld [vmem:[%s166 + $0x244] sm:$0xf]
      %v321 = vld [vmem:[%s166 + $0x248] sm:$0xf]
      %v322 = vld [vmem:[%s166 + $0x24c] sm:$0xf]
      %v323 = vld [vmem:[%s166 + $0x250] sm:$0xf]
      %v324 = vld [vmem:[%s166 + $0x254] sm:$0xf]
      %v325 = vld [vmem:[%s166 + $0x258] sm:$0xf]
      %v326 = vld [vmem:[%s166 + $0x25c] sm:$0xf]
      %v327 = vld [vmem:[%s166 + $0x260] sm:$0xf]
      %v328 = vld [vmem:[%s166 + $0x264] sm:$0xf]
      %v329 = vld [vmem:[%s166 + $0x268] sm:$0xf]
      %v330 = vld [vmem:[%s166 + $0x26c] sm:$0xf]
      %v331 = vld [vmem:[%s166 + $0x270] sm:$0xf]
      %v332 = vld [vmem:[%s166 + $0x274] sm:$0xf]
      %v333 = vld [vmem:[%s166 + $0x278] sm:$0xf]
      %v334 = vld [vmem:[%s166 + $0x27c] sm:$0xf]
      %v335 = vld [vmem:[%s166 + $0x280] sm:$0xf]
      %v336 = vld [vmem:[%s166 + $0x284] sm:$0xf]
      %v337 = vld [vmem:[%s166 + $0x288] sm:$0xf]
      %v338 = vld [vmem:[%s166 + $0x28c] sm:$0xf]
      %v339 = vld [vmem:[%s166 + $0x290] sm:$0xf]
      %v340 = vld [vmem:[%s166 + $0x294] sm:$0xf]
      %v341 = vld [vmem:[%s166 + $0x298] sm:$0xf]
      %v342 = vld [vmem:[%s166 + $0x29c] sm:$0xf]
      %v343 = vld [vmem:[%s166 + $0x2a0] sm:$0xf]
      %v344 = vld [vmem:[%s166 + $0x2a4] sm:$0xf]
      %v345 = vld [vmem:[%s166 + $0x2a8] sm:$0xf]
      %v346 = vld [vmem:[%s166 + $0x2ac] sm:$0xf]
      %v347 = vld [vmem:[%s166 + $0x2b0] sm:$0xf]
      %v348 = vld [vmem:[%s166 + $0x2b4] sm:$0xf]
      %v349 = vld [vmem:[%s166 + $0x2b8] sm:$0xf]
      %v350 = vld [vmem:[%s166 + $0x2bc] sm:$0xf]
      %v351 = vld [vmem:[%s166 + $0x2c0] sm:$0xf]
      %v352 = vld [vmem:[%s166 + $0x2c4] sm:$0xf]
      %v353 = vld [vmem:[%s166 + $0x2c8] sm:$0xf]
      %v354 = vld [vmem:[%s166 + $0x2cc] sm:$0xf]
      %v355 = vld [vmem:[%s166 + $0x2d0] sm:$0xf]
      %v356 = vld [vmem:[%s166 + $0x2d4] sm:$0xf]
      %v357 = vld [vmem:[%s166 + $0x2d8] sm:$0xf]
      %v358 = vld [vmem:[%s166 + $0x2dc] sm:$0xf]
      %v359 = vld [vmem:[%s166 + $0x2e0] sm:$0xf]
      %v360 = vld [vmem:[%s166 + $0x2e4] sm:$0xf]
      %v361 = vld [vmem:[%s166 + $0x2e8] sm:$0xf]
      %v362 = vld [vmem:[%s166 + $0x2ec] sm:$0xf]
      %v363 = vld [vmem:[%s166 + $0x2f0] sm:$0xf]
      %v364 = vld [vmem:[%s166 + $0x2f4] sm:$0xf]
      %v365 = vld [vmem:[%s166 + $0x2f8] sm:$0xf]
      %v366 = vld [vmem:[%s166 + $0x2fc] sm:$0xf]
      %v367 = vld [vmem:[%s166 + $0x300] sm:$0xf]
      %v368 = vld [vmem:[%s166 + $0x304] sm:$0xf]
      %v369 = vld [vmem:[%s166 + $0x308] sm:$0xf]
      %v370 = vld [vmem:[%s166 + $0x30c] sm:$0xf]
      %v371 = vld [vmem:[%s166 + $0x310] sm:$0xf]
      %v372 = vld [vmem:[%s166 + $0x314] sm:$0xf]
      %v373 = vld [vmem:[%s166 + $0x318] sm:$0xf]
      %v374 = vld [vmem:[%s166 + $0x31c] sm:$0xf]
      %v375 = vld [vmem:[%s166 + $0x320] sm:$0xf]
      %v376 = vld [vmem:[%s166 + $0x324] sm:$0xf]
      %v377 = vld [vmem:[%s166 + $0x328] sm:$0xf]
      %v378 = vld [vmem:[%s166 + $0x32c] sm:$0xf]
      %v379 = vld [vmem:[%s166 + $0x330] sm:$0xf]
      %v380 = vld [vmem:[%s166 + $0x334] sm:$0xf]
      %v381 = vld [vmem:[%s166 + $0x338] sm:$0xf]
      %v382 = vld [vmem:[%s166 + $0x33c] sm:$0xf]
      %v383 = vld [vmem:[%s166 + $0x340] sm:$0xf]
      %v384 = vld [vmem:[%s166 + $0x344] sm:$0xf]
      %v385 = vld [vmem:[%s166 + $0x348] sm:$0xf]
      %v386 = vld [vmem:[%s166 + $0x34c] sm:$0xf]
      %v387 = vld [vmem:[%s166 + $0x350] sm:$0xf]
      %v388 = vld [vmem:[%s166 + $0x354] sm:$0xf]
      %v389 = vld [vmem:[%s166 + $0x358] sm:$0xf]
      %v390 = vld [vmem:[%s166 + $0x35c] sm:$0xf]
      %v391 = vld [vmem:[%s166 + $0x360] sm:$0xf]
      %v392 = vld [vmem:[%s166 + $0x364] sm:$0xf]
      %v393 = vld [vmem:[%s166 + $0x368] sm:$0xf]
      %v394 = vld [vmem:[%s166 + $0x36c] sm:$0xf]
      %v395 = vld [vmem:[%s166 + $0x370] sm:$0xf]
      %v396 = vld [vmem:[%s166 + $0x374] sm:$0xf]
      %v397 = vld [vmem:[%s166 + $0x378] sm:$0xf]
      %v398 = vld [vmem:[%s166 + $0x37c] sm:$0xf]
      %v399 = vld [vmem:[%s166 + $0x380] sm:$0xf]
      %v400 = vld [vmem:[%s166 + $0x384] sm:$0xf]
      %v401 = vld [vmem:[%s166 + $0x388] sm:$0xf]
      %v402 = vld [vmem:[%s166 + $0x38c] sm:$0xf]
      %v403 = vld [vmem:[%s166 + $0x390] sm:$0xf]
      %v404 = vld [vmem:[%s166 + $0x394] sm:$0xf]
      %v405 = vld [vmem:[%s166 + $0x398] sm:$0xf]
      %v406 = vld [vmem:[%s166 + $0x39c] sm:$0xf]
      %v407 = vld [vmem:[%s166 + $0x3a0] sm:$0xf]
      %v408 = vld [vmem:[%s166 + $0x3a4] sm:$0xf]
      %v409 = vld [vmem:[%s166 + $0x3a8] sm:$0xf]
      %v410 = vld [vmem:[%s166 + $0x3ac] sm:$0xf]
      %v411 = vld [vmem:[%s166 + $0x3b0] sm:$0xf]
      %v412 = vld [vmem:[%s166 + $0x3b4] sm:$0xf]
      %v413 = vld [vmem:[%s166 + $0x3b8] sm:$0xf]
      %v414 = vld [vmem:[%s166 + $0x3bc] sm:$0xf]
      %v415 = vld [vmem:[%s166 + $0x3c0] sm:$0xf]
      %v416 = vld [vmem:[%s166 + $0x3c4] sm:$0xf]
      %v417 = vld [vmem:[%s166 + $0x3c8] sm:$0xf]
      %v418 = vld [vmem:[%s166 + $0x3cc] sm:$0xf]
      %v419 = vld [vmem:[%s166 + $0x3d0] sm:$0xf]
      %v420 = vld [vmem:[%s166 + $0x3d4] sm:$0xf]
      %v421 = vld [vmem:[%s166 + $0x3d8] sm:$0xf]
      %v422 = vld [vmem:[%s166 + $0x3dc] sm:$0xf]
      %v423 = vld [vmem:[%s166 + $0x3e0] sm:$0xf]
      %v424 = vld [vmem:[%s166 + $0x3e4] sm:$0xf]
      %v425 = vld [vmem:[%s166 + $0x3e8] sm:$0xf]
      %v426 = vld [vmem:[%s166 + $0x3ec] sm:$0xf]
      %v427 = vld [vmem:[%s166 + $0x3f0] sm:$0xf]
      %v428 = vld [vmem:[%s166 + $0x3f4] sm:$0xf]
      %v429 = vld [vmem:[%s166 + $0x3f8] sm:$0xf]
      %v430 = vld [vmem:[%s166 + $0x3fc] sm:$0xf]
      %v431 = vld [vmem:[%s166 + $0x400] sm:$0xf]
      %v432 = vld [vmem:[%s166 + $0x404] sm:$0xf]
      %v433 = vld [vmem:[%s166 + $0x408] sm:$0xf]
      %v434 = vld [vmem:[%s166 + $0x40c] sm:$0xf]
      %v435 = vld [vmem:[%s166 + $0x410] sm:$0xf]
      %v436 = vld [vmem:[%s166 + $0x414] sm:$0xf]
      %v437 = vld [vmem:[%s166 + $0x418] sm:$0xf]
      %v438 = vld [vmem:[%s166 + $0x41c] sm:$0xf]
      %v439 = vld [vmem:[%s166 + $0x420] sm:$0xf]
      %v440 = vld [vmem:[%s166 + $0x424] sm:$0xf]
      %v441 = vld [vmem:[%s166 + $0x428] sm:$0xf]
      %v442 = vld [vmem:[%s166 + $0x42c] sm:$0xf]
      %v443 = vld [vmem:[%s166 + $0x430] sm:$0xf]
      %v444 = vld [vmem:[%s166 + $0x434] sm:$0xf]
      %v445 = vld [vmem:[%s166 + $0x438] sm:$0xf]
      %v446 = vld [vmem:[%s166 + $0x43c] sm:$0xf]
      %v447 = vld [vmem:[%s166 + $0x440] sm:$0xf]
      %v448 = vld [vmem:[%s166 + $0x444] sm:$0xf]
      %v449 = vld [vmem:[%s166 + $0x448] sm:$0xf]
      %v450 = vld [vmem:[%s166 + $0x44c] sm:$0xf]
      %v451 = vld [vmem:[%s166 + $0x450] sm:$0xf]
      %v452 = vld [vmem:[%s166 + $0x454] sm:$0xf]
      %v453 = vld [vmem:[%s166 + $0x458] sm:$0xf]
      %v454 = vld [vmem:[%s166 + $0x45c] sm:$0xf]
      %v455 = vld [vmem:[%s166 + $0x460] sm:$0xf]
      %v456 = vld [vmem:[%s166 + $0x464] sm:$0xf]
      %v457 = vld [vmem:[%s166 + $0x468] sm:$0xf]
      %v458 = vld [vmem:[%s166 + $0x46c] sm:$0xf]
      %v459 = vld [vmem:[%s166 + $0x470] sm:$0xf]
      %v460 = vld [vmem:[%s166 + $0x474] sm:$0xf]
      %v461 = vld [vmem:[%s166 + $0x478] sm:$0xf]
      %v462 = vld [vmem:[%s166 + $0x47c] sm:$0xf]
      %v463 = vld [vmem:[%s166 + $0x480] sm:$0xf]
      %v464 = vld [vmem:[%s166 + $0x484] sm:$0xf]
      %v465 = vld [vmem:[%s166 + $0x488] sm:$0xf]
      %v466 = vld [vmem:[%s166 + $0x48c] sm:$0xf]
      %v467 = vld [vmem:[%s166 + $0x490] sm:$0xf]
      %v468 = vld [vmem:[%s166 + $0x494] sm:$0xf]
      %v469 = vld [vmem:[%s166 + $0x498] sm:$0xf]
      %v470 = vld [vmem:[%s166 + $0x49c] sm:$0xf]
      %v471 = vld [vmem:[%s166 + $0x4a0] sm:$0xf]
      %v472 = vld [vmem:[%s166 + $0x4a4] sm:$0xf]
      %v473 = vld [vmem:[%s166 + $0x4a8] sm:$0xf]
      %v474 = vld [vmem:[%s166 + $0x4ac] sm:$0xf]
      %v475 = vld [vmem:[%s166 + $0x4b0] sm:$0xf]
      %v476 = vld [vmem:[%s166 + $0x4b4] sm:$0xf]
      %v477 = vld [vmem:[%s166 + $0x4b8] sm:$0xf]
      %v478 = vld [vmem:[%s166 + $0x4bc] sm:$0xf]
      %v479 = vld [vmem:[%s166 + $0x4c0] sm:$0xf]
      %v480 = vld [vmem:[%s166 + $0x4c4] sm:$0xf]
      %v481 = vld [vmem:[%s166 + $0x4c8] sm:$0xf]
      %v482 = vld [vmem:[%s166 + $0x4cc] sm:$0xf]
      %v483 = vld [vmem:[%s166 + $0x4d0] sm:$0xf]
      %v484 = vld [vmem:[%s166 + $0x4d4] sm:$0xf]
      %v485 = vld [vmem:[%s166 + $0x4d8] sm:$0xf]
      %v486 = vld [vmem:[%s166 + $0x4dc] sm:$0xf]
      %v487 = vld [vmem:[%s166 + $0x4e0] sm:$0xf]
      %v488 = vld [vmem:[%s166 + $0x4e4] sm:$0xf]
      %v489 = vld [vmem:[%s166 + $0x4e8] sm:$0xf]
      %v490 = vld [vmem:[%s166 + $0x4ec] sm:$0xf]
      %v491 = vld [vmem:[%s166 + $0x4f0] sm:$0xf]
      %v492 = vld [vmem:[%s166 + $0x4f4] sm:$0xf]
      %v493 = vld [vmem:[%s166 + $0x4f8] sm:$0xf]
      %v494 = vld [vmem:[%s166 + $0x4fc] sm:$0xf]
      %v495 = vld [vmem:[%s166 + $0x500] sm:$0xf]
      %v496 = vld [vmem:[%s166 + $0x504] sm:$0xf]
      %v497 = vld [vmem:[%s166 + $0x508] sm:$0xf]
      %v498 = vld [vmem:[%s166 + $0x50c] sm:$0xf]
      %v499 = vld [vmem:[%s166 + $0x510] sm:$0xf]
      %v500 = vld [vmem:[%s166 + $0x514] sm:$0xf]
      %v501 = vld [vmem:[%s166 + $0x518] sm:$0xf]
      %v502 = vld [vmem:[%s166 + $0x51c] sm:$0xf]
      %v503 = vld [vmem:[%s166 + $0x520] sm:$0xf]
      %v504 = vld [vmem:[%s166 + $0x524] sm:$0xf]
      %v505 = vld [vmem:[%s166 + $0x528] sm:$0xf]
      %v506 = vld [vmem:[%s166 + $0x52c] sm:$0xf]
      %v507 = vld [vmem:[%s166 + $0x530] sm:$0xf]
      %v508 = vld [vmem:[%s166 + $0x534] sm:$0xf]
      %v509 = vld [vmem:[%s166 + $0x538] sm:$0xf]
      %v510 = vld [vmem:[%s166 + $0x53c] sm:$0xf]
      %v511 = vld [vmem:[%s166 + $0x540] sm:$0xf]
      %v512 = vld [vmem:[%s166 + $0x544] sm:$0xf]
      %v513 = vld [vmem:[%s166 + $0x548] sm:$0xf]
      %v514 = vld [vmem:[%s166 + $0x54c] sm:$0xf]
      %v515 = vld [vmem:[%s166 + $0x550] sm:$0xf]
      %v516 = vld [vmem:[%s166 + $0x554] sm:$0xf]
      %v517 = vld [vmem:[%s166 + $0x558] sm:$0xf]
      %v518 = vld [vmem:[%s166 + $0x55c] sm:$0xf]
      %v519 = vld [vmem:[%s166 + $0x560] sm:$0xf]
      %v520 = vld [vmem:[%s166 + $0x564] sm:$0xf]
      %v521 = vld [vmem:[%s166 + $0x568] sm:$0xf]
      %v522 = vld [vmem:[%s166 + $0x56c] sm:$0xf]
      %v523 = vld [vmem:[%s166 + $0x570] sm:$0xf]
      %v524 = vld [vmem:[%s166 + $0x574] sm:$0xf]
      %v525 = vld [vmem:[%s166 + $0x578] sm:$0xf]
      %v526 = vld [vmem:[%s166 + $0x57c] sm:$0xf]
      %v527 = vld [vmem:[%s166 + $0x580] sm:$0xf]
      %v528 = vld [vmem:[%s166 + $0x584] sm:$0xf]
      %v529 = vld [vmem:[%s166 + $0x588] sm:$0xf]
      %v530 = vld [vmem:[%s166 + $0x58c] sm:$0xf]
      %v531 = vld [vmem:[%s166 + $0x590] sm:$0xf]
      %v532 = vld [vmem:[%s166 + $0x594] sm:$0xf]
      %v533 = vld [vmem:[%s166 + $0x598] sm:$0xf]
      %v534 = vld [vmem:[%s166 + $0x59c] sm:$0xf]
      %v535 = vld [vmem:[%s166 + $0x5a0] sm:$0xf]
      %v536 = vld [vmem:[%s166 + $0x5a4] sm:$0xf]
      %v537 = vld [vmem:[%s166 + $0x5a8] sm:$0xf]
      %v538 = vld [vmem:[%s166 + $0x5ac] sm:$0xf]
      %v539 = vld [vmem:[%s166 + $0x5b0] sm:$0xf]
      %v540 = vld [vmem:[%s166 + $0x5b4] sm:$0xf]
      %v541 = vld [vmem:[%s166 + $0x5b8] sm:$0xf]
      %v542 = vld [vmem:[%s166 + $0x5bc] sm:$0xf]
      %v543 = vld [vmem:[%s166 + $0x5c0] sm:$0xf]
      %v544 = vld [vmem:[%s166 + $0x5c4] sm:$0xf]
      %v545 = vld [vmem:[%s166 + $0x5c8] sm:$0xf]
      %v546 = vld [vmem:[%s166 + $0x5cc] sm:$0xf]
      %v547 = vld [vmem:[%s166 + $0x5d0] sm:$0xf]
      %v548 = vld [vmem:[%s166 + $0x5d4] sm:$0xf]
      %v549 = vld [vmem:[%s166 + $0x5d8] sm:$0xf]
      %v550 = vld [vmem:[%s166 + $0x5dc] sm:$0xf]
      %v551 = vld [vmem:[%s166 + $0x5e0] sm:$0xf]
      %v552 = vld [vmem:[%s166 + $0x5e4] sm:$0xf]
      %v553 = vld [vmem:[%s166 + $0x5e8] sm:$0xf]
      %v554 = vld [vmem:[%s166 + $0x5ec] sm:$0xf]
      %v555 = vld [vmem:[%s166 + $0x5f0] sm:$0xf]
      %v556 = vld [vmem:[%s166 + $0x5f4] sm:$0xf]
      %v557 = vld [vmem:[%s166 + $0x5f8] sm:$0xf]
      %v558 = vld [vmem:[%s166 + $0x5fc] sm:$0xf]
      %v559 = vld [vmem:[%s166 + $0x600] sm:$0xf]
      %v560 = vld [vmem:[%s166 + $0x604] sm:$0xf]
      %v561 = vld [vmem:[%s166 + $0x608] sm:$0xf]
      %v562 = vld [vmem:[%s166 + $0x60c] sm:$0xf]
      %v563 = vld [vmem:[%s166 + $0x610] sm:$0xf]
      %v564 = vld [vmem:[%s166 + $0x614] sm:$0xf]
      %v565 = vld [vmem:[%s166 + $0x618] sm:$0xf]
      %v566 = vld [vmem:[%s166 + $0x61c] sm:$0xf]
      %v567 = vld [vmem:[%s166 + $0x620] sm:$0xf]
      %v568 = vld [vmem:[%s166 + $0x624] sm:$0xf]
      %v569 = vld [vmem:[%s166 + $0x628] sm:$0xf]
      %v570 = vld [vmem:[%s166 + $0x62c] sm:$0xf]
      %v571 = vld [vmem:[%s166 + $0x630] sm:$0xf]
      %v572 = vld [vmem:[%s166 + $0x634] sm:$0xf]
      %v573 = vld [vmem:[%s166 + $0x638] sm:$0xf]
      %v574 = vld [vmem:[%s166 + $0x63c] sm:$0xf]
      %v575 = vld [vmem:[%s166 + $0x640] sm:$0xf]
      %v576 = vld [vmem:[%s166 + $0x644] sm:$0xf]
      %v577 = vld [vmem:[%s166 + $0x648] sm:$0xf]
      %v578 = vld [vmem:[%s166 + $0x64c] sm:$0xf]
      %v579 = vld [vmem:[%s166 + $0x650] sm:$0xf]
      %v580 = vld [vmem:[%s166 + $0x654] sm:$0xf]
      %v581 = vld [vmem:[%s166 + $0x658] sm:$0xf]
      %v582 = vld [vmem:[%s166 + $0x65c] sm:$0xf]
      %v583 = vld [vmem:[%s166 + $0x660] sm:$0xf]
      %v584 = vld [vmem:[%s166 + $0x664] sm:$0xf]
      %v585 = vld [vmem:[%s166 + $0x668] sm:$0xf]
      %v586 = vld [vmem:[%s166 + $0x66c] sm:$0xf]
      %v587 = vld [vmem:[%s166 + $0x670] sm:$0xf]
      %v588 = vld [vmem:[%s166 + $0x674] sm:$0xf]
      %v589 = vld [vmem:[%s166 + $0x678] sm:$0xf]
      %v590 = vld [vmem:[%s166 + $0x67c] sm:$0xf]
      %v591 = vld [vmem:[%s166 + $0x680] sm:$0xf]
      %v592 = vld [vmem:[%s166 + $0x684] sm:$0xf]
      %v593 = vld [vmem:[%s166 + $0x688] sm:$0xf]
      %v594 = vld [vmem:[%s166 + $0x68c] sm:$0xf]
      %v595 = vld [vmem:[%s166 + $0x690] sm:$0xf]
      %v596 = vld [vmem:[%s166 + $0x694] sm:$0xf]
      %v597 = vld [vmem:[%s166 + $0x698] sm:$0xf]
      %v598 = vld [vmem:[%s166 + $0x69c] sm:$0xf]
      %v599 = vld [vmem:[%s166 + $0x6a0] sm:$0xf]
      %v600 = vld [vmem:[%s166 + $0x6a4] sm:$0xf]
      %v601 = vld [vmem:[%s166 + $0x6a8] sm:$0xf]
      %v602 = vld [vmem:[%s166 + $0x6ac] sm:$0xf]
      %v603 = vld [vmem:[%s166 + $0x6b0] sm:$0xf]
      %v604 = vld [vmem:[%s166 + $0x6b4] sm:$0xf]
      %v605 = vld [vmem:[%s166 + $0x6b8] sm:$0xf]
      %v606 = vld [vmem:[%s166 + $0x6bc] sm:$0xf]
      %v607 = vld [vmem:[%s166 + $0x6c0] sm:$0xf]
      %v608 = vld [vmem:[%s166 + $0x6c4] sm:$0xf]
      %v609 = vld [vmem:[%s166 + $0x6c8] sm:$0xf]
      %v610 = vld [vmem:[%s166 + $0x6cc] sm:$0xf]
      %v611 = vld [vmem:[%s166 + $0x6d0] sm:$0xf]
      %v612 = vld [vmem:[%s166 + $0x6d4] sm:$0xf]
      %v613 = vld [vmem:[%s166 + $0x6d8] sm:$0xf]
      %v614 = vld [vmem:[%s166 + $0x6dc] sm:$0xf]
      %v615 = vld [vmem:[%s166 + $0x6e0] sm:$0xf]
      %v616 = vld [vmem:[%s166 + $0x6e4] sm:$0xf]
      %v617 = vld [vmem:[%s166 + $0x6e8] sm:$0xf]
      %v618 = vld [vmem:[%s166 + $0x6ec] sm:$0xf]
      %v619 = vld [vmem:[%s166 + $0x6f0] sm:$0xf]
      %v620 = vld [vmem:[%s166 + $0x6f4] sm:$0xf]
      %v621 = vld [vmem:[%s166 + $0x6f8] sm:$0xf]
      %v622 = vld [vmem:[%s166 + $0x6fc] sm:$0xf]
      %v623 = vld [vmem:[%s166 + $0x700] sm:$0xf]
      %v624 = vld [vmem:[%s166 + $0x704] sm:$0xf]
      %v625 = vld [vmem:[%s166 + $0x708] sm:$0xf]
      %v626 = vld [vmem:[%s166 + $0x70c] sm:$0xf]
      %v627 = vld [vmem:[%s166 + $0x710] sm:$0xf]
      %v628 = vld [vmem:[%s166 + $0x714] sm:$0xf]
      %v629 = vld [vmem:[%s166 + $0x718] sm:$0xf]
      %v630 = vld [vmem:[%s166 + $0x71c] sm:$0xf]
      %v631 = vld [vmem:[%s166 + $0x720] sm:$0xf]
      %v632 = vld [vmem:[%s166 + $0x724] sm:$0xf]
      %v633 = vld [vmem:[%s166 + $0x728] sm:$0xf]
      %v634 = vld [vmem:[%s166 + $0x72c] sm:$0xf]
      %v635 = vld [vmem:[%s166 + $0x730] sm:$0xf]
      %v636 = vld [vmem:[%s166 + $0x734] sm:$0xf]
      %v637 = vld [vmem:[%s166 + $0x738] sm:$0xf]
      %v638 = vld [vmem:[%s166 + $0x73c] sm:$0xf]
      %v639 = vld [vmem:[%s166 + $0x740] sm:$0xf]
      %v640 = vld [vmem:[%s166 + $0x744] sm:$0xf]
      %v641 = vld [vmem:[%s166 + $0x748] sm:$0xf]
      %v642 = vld [vmem:[%s166 + $0x74c] sm:$0xf]
      %v643 = vld [vmem:[%s166 + $0x750] sm:$0xf]
      %v644 = vld [vmem:[%s166 + $0x754] sm:$0xf]
      %v645 = vld [vmem:[%s166 + $0x758] sm:$0xf]
      %v646 = vld [vmem:[%s166 + $0x75c] sm:$0xf]
      %v647 = vld [vmem:[%s166 + $0x760] sm:$0xf]
      %v648 = vld [vmem:[%s166 + $0x764] sm:$0xf]
      %v649 = vld [vmem:[%s166 + $0x768] sm:$0xf]
      %v650 = vld [vmem:[%s166 + $0x76c] sm:$0xf]
      %v651 = vld [vmem:[%s166 + $0x770] sm:$0xf]
      %v652 = vld [vmem:[%s166 + $0x774] sm:$0xf]
      %v653 = vld [vmem:[%s166 + $0x778] sm:$0xf]
      %v654 = vld [vmem:[%s166 + $0x77c] sm:$0xf]
      %v655 = vld [vmem:[%s166 + $0x780] sm:$0xf]
      %v656 = vld [vmem:[%s166 + $0x784] sm:$0xf]
      %v657 = vld [vmem:[%s166 + $0x788] sm:$0xf]
      %v658 = vld [vmem:[%s166 + $0x78c] sm:$0xf]
      %v659 = vld [vmem:[%s166 + $0x790] sm:$0xf]
      %v660 = vld [vmem:[%s166 + $0x794] sm:$0xf]
      %v661 = vld [vmem:[%s166 + $0x798] sm:$0xf]
      %v662 = vld [vmem:[%s166 + $0x79c] sm:$0xf]
      %v663 = vld [vmem:[%s166 + $0x7a0] sm:$0xf]
      %v664 = vld [vmem:[%s166 + $0x7a4] sm:$0xf]
      %v665 = vld [vmem:[%s166 + $0x7a8] sm:$0xf]
      %v666 = vld [vmem:[%s166 + $0x7ac] sm:$0xf]
      %v667 = vld [vmem:[%s166 + $0x7b0] sm:$0xf]
      %v668 = vld [vmem:[%s166 + $0x7b4] sm:$0xf]
      %v669 = vld [vmem:[%s166 + $0x7b8] sm:$0xf]
      %v670 = vld [vmem:[%s166 + $0x7bc] sm:$0xf]
      %v671 = vld [vmem:[%s166 + $0x7c0] sm:$0xf]
      %v672 = vld [vmem:[%s166 + $0x7c4] sm:$0xf]
      %v673 = vld [vmem:[%s166 + $0x7c8] sm:$0xf]
      %v674 = vld [vmem:[%s166 + $0x7cc] sm:$0xf]
      %v675 = vld [vmem:[%s166 + $0x7d0] sm:$0xf]
      %v676 = vld [vmem:[%s166 + $0x7d4] sm:$0xf]
      %v677 = vld [vmem:[%s166 + $0x7d8] sm:$0xf]
      %v678 = vld [vmem:[%s166 + $0x7dc] sm:$0xf]
      %v679 = vld [vmem:[%s166 + $0x7e0] sm:$0xf]
      %v680 = vld [vmem:[%s166 + $0x7e4] sm:$0xf]
      %v681 = vld [vmem:[%s166 + $0x7e8] sm:$0xf]
      %v682 = vld [vmem:[%s166 + $0x7ec] sm:$0xf]
      %v683 = vld [vmem:[%s166 + $0x7f0] sm:$0xf]
      %v684 = vld [vmem:[%s166 + $0x7f4] sm:$0xf]
      %v685 = vld [vmem:[%s166 + $0x7f8] sm:$0xf]
      %v686 = vld [vmem:[%s166 + $0x7fc] sm:$0xf]
      %v687 = vld [vmem:[%s166 + $0x800] sm:$0xf]
      %v688 = vld [vmem:[%s166 + $0x804] sm:$0xf]
      %v689 = vld [vmem:[%s166 + $0x808] sm:$0xf]
      %v690 = vld [vmem:[%s166 + $0x80c] sm:$0xf]
      %v691 = vld [vmem:[%s166 + $0x810] sm:$0xf]
      %v692 = vld [vmem:[%s166 + $0x814] sm:$0xf]
      %v693 = vld [vmem:[%s166 + $0x818] sm:$0xf]
      %v694 = vld [vmem:[%s166 + $0x81c] sm:$0xf]
      %v695 = vld [vmem:[%s166 + $0x820] sm:$0xf]
      %v696 = vld [vmem:[%s166 + $0x824] sm:$0xf]
      %v697 = vld [vmem:[%s166 + $0x828] sm:$0xf]
      %v698 = vld [vmem:[%s166 + $0x82c] sm:$0xf]
      %v699 = vld [vmem:[%s166 + $0x830] sm:$0xf]
      %v700 = vld [vmem:[%s166 + $0x834] sm:$0xf]
      %v701 = vld [vmem:[%s166 + $0x838] sm:$0xf]
      %v702 = vld [vmem:[%s166 + $0x83c] sm:$0xf]
      %v703 = vld [vmem:[%s166 + $0x840] sm:$0xf]
      %v704 = vld [vmem:[%s166 + $0x844] sm:$0xf]
      %v705 = vld [vmem:[%s166 + $0x848] sm:$0xf]
      %v706 = vld [vmem:[%s166 + $0x84c] sm:$0xf]
      %v707 = vld [vmem:[%s166 + $0x850] sm:$0xf]
      %v708 = vld [vmem:[%s166 + $0x854] sm:$0xf]
      %v709 = vld [vmem:[%s166 + $0x858] sm:$0xf]
      %v710 = vld [vmem:[%s166 + $0x85c] sm:$0xf]
      %v711 = vld [vmem:[%s166 + $0x860] sm:$0xf]
      %v712 = vld [vmem:[%s166 + $0x864] sm:$0xf]
      %v713 = vld [vmem:[%s166 + $0x868] sm:$0xf]
      %v714 = vld [vmem:[%s166 + $0x86c] sm:$0xf]
      %v715 = vld [vmem:[%s166 + $0x870] sm:$0xf]
      %v716 = vld [vmem:[%s166 + $0x874] sm:$0xf]
      %v717 = vld [vmem:[%s166 + $0x878] sm:$0xf]
      %v718 = vld [vmem:[%s166 + $0x87c] sm:$0xf]
      %v719 = vld [vmem:[%s166 + $0x880] sm:$0xf]
      %v720 = vld [vmem:[%s166 + $0x884] sm:$0xf]
      %v721 = vld [vmem:[%s166 + $0x888] sm:$0xf]
      %v722 = vld [vmem:[%s166 + $0x88c] sm:$0xf]
      %v723 = vld [vmem:[%s166 + $0x890] sm:$0xf]
      %v724 = vld [vmem:[%s166 + $0x894] sm:$0xf]
      %v725 = vld [vmem:[%s166 + $0x898] sm:$0xf]
      %v726 = vld [vmem:[%s166 + $0x89c] sm:$0xf]
      %v727 = vld [vmem:[%s166 + $0x8a0] sm:$0xf]
      %v728 = vld [vmem:[%s166 + $0x8a4] sm:$0xf]
      %v729 = vld [vmem:[%s166 + $0x8a8] sm:$0xf]
      %v730 = vld [vmem:[%s166 + $0x8ac] sm:$0xf]
      %v731 = vld [vmem:[%s166 + $0x8b0] sm:$0xf]
      %v732 = vld [vmem:[%s166 + $0x8b4] sm:$0xf]
      %v733 = vld [vmem:[%s166 + $0x8b8] sm:$0xf]
      %v734 = vld [vmem:[%s166 + $0x8bc] sm:$0xf]
      %v735 = vld [vmem:[%s166 + $0x8c0] sm:$0xf]
      %v736 = vld [vmem:[%s166 + $0x8c4] sm:$0xf]
      %v737 = vld [vmem:[%s166 + $0x8c8] sm:$0xf]
      %v738 = vld [vmem:[%s166 + $0x8cc] sm:$0xf]
      %v739 = vld [vmem:[%s166 + $0x8d0] sm:$0xf]
      %v740 = vld [vmem:[%s166 + $0x8d4] sm:$0xf]
      %v741 = vld [vmem:[%s166 + $0x8d8] sm:$0xf]
      %v742 = vld [vmem:[%s166 + $0x8dc] sm:$0xf]
      %v743 = vld [vmem:[%s166 + $0x8e0] sm:$0xf]
      %v744 = vld [vmem:[%s166 + $0x8e4] sm:$0xf]
      %v745 = vld [vmem:[%s166 + $0x8e8] sm:$0xf]
      %v746 = vld [vmem:[%s166 + $0x8ec] sm:$0xf]
      %v747 = vld [vmem:[%s166 + $0x8f0] sm:$0xf]
      %v748 = vld [vmem:[%s166 + $0x8f4] sm:$0xf]
      %v749 = vld [vmem:[%s166 + $0x8f8] sm:$0xf]
      %v750 = vld [vmem:[%s166 + $0x8fc] sm:$0xf]
      %v751 = vld [vmem:[%s166 + $0x900] sm:$0xf]
      %v752 = vld [vmem:[%s166 + $0x904] sm:$0xf]
      %v753 = vld [vmem:[%s166 + $0x908] sm:$0xf]
      %v754 = vld [vmem:[%s166 + $0x90c] sm:$0xf]
      %v755 = vld [vmem:[%s166 + $0x910] sm:$0xf]
      %v756 = vld [vmem:[%s166 + $0x914] sm:$0xf]
      %v757 = vld [vmem:[%s166 + $0x918] sm:$0xf]
      %v758 = vld [vmem:[%s166 + $0x91c] sm:$0xf]
      %v759 = vld [vmem:[%s166 + $0x920] sm:$0xf]
      %v760 = vld [vmem:[%s166 + $0x924] sm:$0xf]
      %v761 = vld [vmem:[%s166 + $0x928] sm:$0xf]
      %v762 = vld [vmem:[%s166 + $0x92c] sm:$0xf]
      %v763 = vld [vmem:[%s166 + $0x930] sm:$0xf]
      %v764 = vld [vmem:[%s166 + $0x934] sm:$0xf]
      %v765 = vld [vmem:[%s166 + $0x938] sm:$0xf]
      %v766 = vld [vmem:[%s166 + $0x93c] sm:$0xf]
      %v767 = vld [vmem:[%s166 + $0x940] sm:$0xf]
      %v768 = vld [vmem:[%s166 + $0x944] sm:$0xf]
      %v769 = vld [vmem:[%s166 + $0x948] sm:$0xf]
      %v770 = vld [vmem:[%s166 + $0x94c] sm:$0xf]
      %v771 = vld [vmem:[%s166 + $0x950] sm:$0xf]
      %v772 = vld [vmem:[%s166 + $0x954] sm:$0xf]
      %v773 = vld [vmem:[%s166 + $0x958] sm:$0xf]
      %v774 = vld [vmem:[%s166 + $0x95c] sm:$0xf]
      %v775 = vld [vmem:[%s166 + $0x960] sm:$0xf]
      %v776 = vld [vmem:[%s166 + $0x964] sm:$0xf]
      %v777 = vld [vmem:[%s166 + $0x968] sm:$0xf]
      %v778 = vld [vmem:[%s166 + $0x96c] sm:$0xf]
      %v779 = vld [vmem:[%s166 + $0x970] sm:$0xf]
      %v780 = vld [vmem:[%s166 + $0x974] sm:$0xf]
      %v781 = vld [vmem:[%s166 + $0x978] sm:$0xf]
      %v782 = vld [vmem:[%s166 + $0x97c] sm:$0xf]
      %v783 = vld [vmem:[%s166 + $0x980] sm:$0xf]
      %v784 = vld [vmem:[%s166 + $0x984] sm:$0xf]
      %v785 = vld [vmem:[%s166 + $0x988] sm:$0xf]
      %v786 = vld [vmem:[%s166 + $0x98c] sm:$0xf]
      %v787 = vld [vmem:[%s166 + $0x990] sm:$0xf]
      %v788 = vld [vmem:[%s166 + $0x994] sm:$0xf]
      %v789 = vld [vmem:[%s166 + $0x998] sm:$0xf]
      %v790 = vld [vmem:[%s166 + $0x99c] sm:$0xf]
      %v791 = vld [vmem:[%s166 + $0x9a0] sm:$0xf]
      %v792 = vld [vmem:[%s166 + $0x9a4] sm:$0xf]
      %v793 = vld [vmem:[%s166 + $0x9a8] sm:$0xf]
      %v794 = vld [vmem:[%s166 + $0x9ac] sm:$0xf]
      %v795 = vld [vmem:[%s166 + $0x9b0] sm:$0xf]
      %v796 = vld [vmem:[%s166 + $0x9b4] sm:$0xf]
      %v797 = vld [vmem:[%s166 + $0x9b8] sm:$0xf]
      %v798 = vld [vmem:[%s166 + $0x9bc] sm:$0xf]
      %v799 = vld [vmem:[%s166 + $0x9c0] sm:$0xf]
      %v800 = vld [vmem:[%s166 + $0x9c4] sm:$0xf]
      %v801 = vld [vmem:[%s166 + $0x9c8] sm:$0xf]
      %v802 = vld [vmem:[%s166 + $0x9cc] sm:$0xf]
      %v803 = vld [vmem:[%s166 + $0x9d0] sm:$0xf]
      %v804 = vld [vmem:[%s166 + $0x9d4] sm:$0xf]
      %v805 = vld [vmem:[%s166 + $0x9d8] sm:$0xf]
      %v806 = vld [vmem:[%s166 + $0x9dc] sm:$0xf]
      %v807 = vld [vmem:[%s166 + $0x9e0] sm:$0xf]
      %v808 = vld [vmem:[%s166 + $0x9e4] sm:$0xf]
      %v809 = vld [vmem:[%s166 + $0x9e8] sm:$0xf]
      %v810 = vld [vmem:[%s166 + $0x9ec] sm:$0xf]
      %v811 = vld [vmem:[%s166 + $0x9f0] sm:$0xf]
      %v812 = vld [vmem:[%s166 + $0x9f4] sm:$0xf]
      %v813 = vld [vmem:[%s166 + $0x9f8] sm:$0xf]
      %v814 = vld [vmem:[%s166 + $0x9fc] sm:$0xf]
      %v815 = vld [vmem:[%s166 + $0xa00] sm:$0xf]
      %v816 = vld [vmem:[%s166 + $0xa04] sm:$0xf]
      %v817 = vld [vmem:[%s166 + $0xa08] sm:$0xf]
      %v818 = vld [vmem:[%s166 + $0xa0c] sm:$0xf]
      %v819 = vld [vmem:[%s166 + $0xa10] sm:$0xf]
      %v820 = vld [vmem:[%s166 + $0xa14] sm:$0xf]
      %v821 = vld [vmem:[%s166 + $0xa18] sm:$0xf]
      %v822 = vld [vmem:[%s166 + $0xa1c] sm:$0xf]
      %v823 = vld [vmem:[%s166 + $0xa20] sm:$0xf]
      %v824 = vld [vmem:[%s166 + $0xa24] sm:$0xf]
      %v825 = vld [vmem:[%s166 + $0xa28] sm:$0xf]
      %v826 = vld [vmem:[%s166 + $0xa2c] sm:$0xf]
      %v827 = vld [vmem:[%s166 + $0xa30] sm:$0xf]
      %v828 = vld [vmem:[%s166 + $0xa34] sm:$0xf]
      %v829 = vld [vmem:[%s166 + $0xa38] sm:$0xf]
      %v830 = vld [vmem:[%s166 + $0xa3c] sm:$0xf]
      %v831 = vld [vmem:[%s166 + $0xa40] sm:$0xf]
      %v832 = vld [vmem:[%s166 + $0xa44] sm:$0xf]
      %v833 = vld [vmem:[%s166 + $0xa48] sm:$0xf]
      %v834 = vld [vmem:[%s166 + $0xa4c] sm:$0xf]
      %v835 = vld [vmem:[%s166 + $0xa50] sm:$0xf]
      %v836 = vld [vmem:[%s166 + $0xa54] sm:$0xf]
      %v837 = vld [vmem:[%s166 + $0xa58] sm:$0xf]
      %v838 = vld [vmem:[%s166 + $0xa5c] sm:$0xf]
      %v839 = vld [vmem:[%s166 + $0xa60] sm:$0xf]
      %v840 = vld [vmem:[%s166 + $0xa64] sm:$0xf]
      %v841 = vld [vmem:[%s166 + $0xa68] sm:$0xf]
      %v842 = vld [vmem:[%s166 + $0xa6c] sm:$0xf]
      %v843 = vld [vmem:[%s166 + $0xa70] sm:$0xf]
      %v844 = vld [vmem:[%s166 + $0xa74] sm:$0xf]
      %v845 = vld [vmem:[%s166 + $0xa78] sm:$0xf]
      %v846 = vld [vmem:[%s166 + $0xa7c] sm:$0xf]
      %v847 = vld [vmem:[%s166 + $0xa80] sm:$0xf]
      %v848 = vld [vmem:[%s166 + $0xa84] sm:$0xf]
      %v849 = vld [vmem:[%s166 + $0xa88] sm:$0xf]
      %v850 = vld [vmem:[%s166 + $0xa8c] sm:$0xf]
      %v851 = vld [vmem:[%s166 + $0xa90] sm:$0xf]
      %v852 = vld [vmem:[%s166 + $0xa94] sm:$0xf]
      %v853 = vld [vmem:[%s166 + $0xa98] sm:$0xf]
      %v854 = vld [vmem:[%s166 + $0xa9c] sm:$0xf]
      %v855 = vld [vmem:[%s166 + $0xaa0] sm:$0xf]
      %v856 = vld [vmem:[%s166 + $0xaa4] sm:$0xf]
      %v857 = vld [vmem:[%s166 + $0xaa8] sm:$0xf]
      %v858 = vld [vmem:[%s166 + $0xaac] sm:$0xf]
      %v859 = vld [vmem:[%s166 + $0xab0] sm:$0xf]
      %v860 = vld [vmem:[%s166 + $0xab4] sm:$0xf]
      %v861 = vld [vmem:[%s166 + $0xab8] sm:$0xf]
      %v862 = vld [vmem:[%s166 + $0xabc] sm:$0xf]
      %v863 = vld [vmem:[%s166 + $0xac0] sm:$0xf]
      %v864 = vld [vmem:[%s166 + $0xac4] sm:$0xf]
      %v865 = vld [vmem:[%s166 + $0xac8] sm:$0xf]
      %v866 = vld [vmem:[%s166 + $0xacc] sm:$0xf]
      %v867 = vld [vmem:[%s166 + $0xad0] sm:$0xf]
      %v868 = vld [vmem:[%s166 + $0xad4] sm:$0xf]
      %v869 = vld [vmem:[%s166 + $0xad8] sm:$0xf]
      %v870 = vld [vmem:[%s166 + $0xadc] sm:$0xf]
      %v871 = vld [vmem:[%s166 + $0xae0] sm:$0xf]
      %v872 = vld [vmem:[%s166 + $0xae4] sm:$0xf]
      %v873 = vld [vmem:[%s166 + $0xae8] sm:$0xf]
      %v874 = vld [vmem:[%s166 + $0xaec] sm:$0xf]
      %v875 = vld [vmem:[%s166 + $0xaf0] sm:$0xf]
      %v876 = vld [vmem:[%s166 + $0xaf4] sm:$0xf]
      %v877 = vld [vmem:[%s166 + $0xaf8] sm:$0xf]
      %v878 = vld [vmem:[%s166 + $0xafc] sm:$0xf]
      %v879 = vld [vmem:[%s166 + $0xb00] sm:$0xf]
      %v880 = vld [vmem:[%s166 + $0xb04] sm:$0xf]
      %v881 = vld [vmem:[%s166 + $0xb08] sm:$0xf]
      %v882 = vld [vmem:[%s166 + $0xb0c] sm:$0xf]
      %v883 = vld [vmem:[%s166 + $0xb10] sm:$0xf]
      %v884 = vld [vmem:[%s166 + $0xb14] sm:$0xf]
      %v885 = vld [vmem:[%s166 + $0xb18] sm:$0xf]
      %v886 = vld [vmem:[%s166 + $0xb1c] sm:$0xf]
      %v887 = vld [vmem:[%s166 + $0xb20] sm:$0xf]
      %v888 = vld [vmem:[%s166 + $0xb24] sm:$0xf]
      %v889 = vld [vmem:[%s166 + $0xb28] sm:$0xf]
      %v890 = vld [vmem:[%s166 + $0xb2c] sm:$0xf]
      %v891 = vld [vmem:[%s166 + $0xb30] sm:$0xf]
      %v892 = vld [vmem:[%s166 + $0xb34] sm:$0xf]
      %v893 = vld [vmem:[%s166 + $0xb38] sm:$0xf]
      %v894 = vld [vmem:[%s166 + $0xb3c] sm:$0xf]
      %v895 = vld [vmem:[%s166 + $0xb40] sm:$0xf]
      %v896 = vld [vmem:[%s166 + $0xb44] sm:$0xf]
      %v897 = vld [vmem:[%s166 + $0xb48] sm:$0xf]
      %v898 = vld [vmem:[%s166 + $0xb4c] sm:$0xf]
      %v899 = vld [vmem:[%s166 + $0xb50] sm:$0xf]
      %v900 = vld [vmem:[%s166 + $0xb54] sm:$0xf]
      %v901 = vld [vmem:[%s166 + $0xb58] sm:$0xf]
      %v902 = vld [vmem:[%s166 + $0xb5c] sm:$0xf]
      %v903 = vld [vmem:[%s166 + $0xb60] sm:$0xf]
      %v904 = vld [vmem:[%s166 + $0xb64] sm:$0xf]
      %v905 = vld [vmem:[%s166 + $0xb68] sm:$0xf]
      %v906 = vld [vmem:[%s166 + $0xb6c] sm:$0xf]
      %v907 = vld [vmem:[%s166 + $0xb70] sm:$0xf]
      %v908 = vld [vmem:[%s166 + $0xb74] sm:$0xf]
      %v909 = vld [vmem:[%s166 + $0xb78] sm:$0xf]
      %v910 = vld [vmem:[%s166 + $0xb7c] sm:$0xf]
      %v911 = vld [vmem:[%s166 + $0xb80] sm:$0xf]
      %v912 = vld [vmem:[%s166 + $0xb84] sm:$0xf]
      %v913 = vld [vmem:[%s166 + $0xb88] sm:$0xf]
      %v914 = vld [vmem:[%s166 + $0xb8c] sm:$0xf]
      %v915 = vld [vmem:[%s166 + $0xb90] sm:$0xf]
      %v916 = vld [vmem:[%s166 + $0xb94] sm:$0xf]
      %v917 = vld [vmem:[%s166 + $0xb98] sm:$0xf]
      %v918 = vld [vmem:[%s166 + $0xb9c] sm:$0xf]
      %v919 = vld [vmem:[%s166 + $0xba0] sm:$0xf]
      %v920 = vld [vmem:[%s166 + $0xba4] sm:$0xf]
      %v921 = vld [vmem:[%s166 + $0xba8] sm:$0xf]
      %v922 = vld [vmem:[%s166 + $0xbac] sm:$0xf]
      %v923 = vld [vmem:[%s166 + $0xbb0] sm:$0xf]
      %v924 = vld [vmem:[%s166 + $0xbb4] sm:$0xf]
      %v925 = vld [vmem:[%s166 + $0xbb8] sm:$0xf]
      %v926 = vld [vmem:[%s166 + $0xbbc] sm:$0xf]
      %v927 = vld [vmem:[%s166 + $0xbc0] sm:$0xf]
      %v928 = vld [vmem:[%s166 + $0xbc4] sm:$0xf]
      %v929 = vld [vmem:[%s166 + $0xbc8] sm:$0xf]
      %v930 = vld [vmem:[%s166 + $0xbcc] sm:$0xf]
      %v931 = vld [vmem:[%s166 + $0xbd0] sm:$0xf]
      %v932 = vld [vmem:[%s166 + $0xbd4] sm:$0xf]
      %v933 = vld [vmem:[%s166 + $0xbd8] sm:$0xf]
      %v934 = vld [vmem:[%s166 + $0xbdc] sm:$0xf]
      %v935 = vld [vmem:[%s166 + $0xbe0] sm:$0xf]
      %v936 = vld [vmem:[%s166 + $0xbe4] sm:$0xf]
      %v937 = vld [vmem:[%s166 + $0xbe8] sm:$0xf]
      %v938 = vld [vmem:[%s166 + $0xbec] sm:$0xf]
      %v939 = vld [vmem:[%s166 + $0xbf0] sm:$0xf]
      %v940 = vld [vmem:[%s166 + $0xbf4] sm:$0xf]
      %v941 = vld [vmem:[%s166 + $0xbf8] sm:$0xf]
      %v942 = vld [vmem:[%s166 + $0xbfc] sm:$0xf]
      %v943 = vld [vmem:[%s166 + $0xc00] sm:$0xf]
      %v944 = vld [vmem:[%s166 + $0xc04] sm:$0xf]
      %v945 = vld [vmem:[%s166 + $0xc08] sm:$0xf]
      %v946 = vld [vmem:[%s166 + $0xc0c] sm:$0xf]
      %v947 = vld [vmem:[%s166 + $0xc10] sm:$0xf]
      %v948 = vld [vmem:[%s166 + $0xc14] sm:$0xf]
      %v949 = vld [vmem:[%s166 + $0xc18] sm:$0xf]
      %v950 = vld [vmem:[%s166 + $0xc1c] sm:$0xf]
      %v951 = vld [vmem:[%s166 + $0xc20] sm:$0xf]
      %v952 = vld [vmem:[%s166 + $0xc24] sm:$0xf]
      %v953 = vld [vmem:[%s166 + $0xc28] sm:$0xf]
      %v954 = vld [vmem:[%s166 + $0xc2c] sm:$0xf]
      %v955 = vld [vmem:[%s166 + $0xc30] sm:$0xf]
      %v956 = vld [vmem:[%s166 + $0xc34] sm:$0xf]
      %v957 = vld [vmem:[%s166 + $0xc38] sm:$0xf]
      %v958 = vld [vmem:[%s166 + $0xc3c] sm:$0xf]
      %v959 = vld [vmem:[%s1] sm:$0xf]
      %v960 = vld [vmem:[%s1 + $0x4] sm:$0xf]
      %v961 = vld [vmem:[%s1 + $0x8] sm:$0xf]
      %v962 = vld [vmem:[%s1 + $0xc] sm:$0xf]
      %v963 = vld [vmem:[%s1 + $0x10] sm:$0xf]
      %v964 = vld [vmem:[%s1 + $0x14] sm:$0xf]
      %v965 = vld [vmem:[%s1 + $0x18] sm:$0xf]
      %v966 = vld [vmem:[%s1 + $0x1c] sm:$0xf]
      %v967 = vld [vmem:[%s1 + $0x20] sm:$0xf]
      %v968 = vld [vmem:[%s1 + $0x24] sm:$0x3]
      %v969 = vld [vmem:[%s2] sm:$0x1]
      %v971 = vlaneseq
      %v972 = vshrl.u32 %v971, 7
      %v973 = vsub.s32 0, %v972
      %v974 = vrot.slane %v969, %v973
      %v1760 = vunpack.c.l.b16 %v175
      %v1761 = vunpack.c.l.b16 %v176
      %v1762 = vunpack.c.l.b16 %v177
      %v1763 = vunpack.c.l.b16 %v178
      %v1764 = vunpack.c.l.b16 %v179
      %v1765 = vunpack.c.l.b16 %v180
      %v1766 = vunpack.c.l.b16 %v181
      %v1767 = vunpack.c.l.b16 %v182
      %v1768 = vunpack.c.l.b16 %v183
      %v1769 = vunpack.c.l.b16 %v184
      %v1770 = vunpack.c.l.b16 %v185
      %v1771 = vunpack.c.l.b16 %v186
      %v1772 = vunpack.c.l.b16 %v187
      %v1773 = vunpack.c.l.b16 %v188
      %v1774 = vunpack.c.l.b16 %v189
      %v1775 = vunpack.c.l.b16 %v190
      %v1776 = vunpack.c.l.b16 %v191
      %v1777 = vunpack.c.l.b16 %v192
      %v1778 = vunpack.c.l.b16 %v193
      %v1779 = vunpack.c.l.b16 %v194
      %v1780 = vunpack.c.l.b16 %v195
      %v1781 = vunpack.c.l.b16 %v196
      %v1782 = vunpack.c.l.b16 %v197
      %v1783 = vunpack.c.l.b16 %v198
      %v1784 = vunpack.c.l.b16 %v199
      %v1785 = vunpack.c.l.b16 %v200
      %v1786 = vunpack.c.l.b16 %v201
      %v1787 = vunpack.c.l.b16 %v202
      %v1788 = vunpack.c.l.b16 %v203
      %v1789 = vunpack.c.l.b16 %v204
      %v1790 = vunpack.c.l.b16 %v205
      %v1791 = vunpack.c.l.b16 %v206
      %v1792 = vunpack.c.l.b16 %v207
      %v1793 = vunpack.c.l.b16 %v208
      %v1794 = vunpack.c.l.b16 %v209
      %v1795 = vunpack.c.l.b16 %v210
      %v1796 = vunpack.c.l.b16 %v211
      %v1797 = vunpack.c.l.b16 %v212
      %v1798 = vunpack.c.l.b16 %v213
      %v1799 = vunpack.c.l.b16 %v214
      %v1800 = vunpack.c.l.b16 %v215
      %v1801 = vunpack.c.l.b16 %v216
      %v1802 = vunpack.c.l.b16 %v217
      %v1803 = vunpack.c.l.b16 %v218
      %v1804 = vunpack.c.l.b16 %v219
      %v1805 = vunpack.c.l.b16 %v220
      %v1806 = vunpack.c.l.b16 %v221
      %v1807 = vunpack.c.l.b16 %v222
      %v1808 = vunpack.c.l.b16 %v223
      %v1809 = vunpack.c.l.b16 %v224
      %v1810 = vunpack.c.l.b16 %v225
      %v1811 = vunpack.c.l.b16 %v226
      %v1812 = vunpack.c.l.b16 %v227
      %v1813 = vunpack.c.l.b16 %v228
      %v1814 = vunpack.c.l.b16 %v229
      %v1815 = vunpack.c.l.b16 %v230
      %v1816 = vunpack.c.l.b16 %v231
      %v1817 = vunpack.c.l.b16 %v232
      %v1818 = vunpack.c.l.b16 %v233
      %v1819 = vunpack.c.l.b16 %v234
      %v1820 = vunpack.c.l.b16 %v235
      %v1821 = vunpack.c.l.b16 %v236
      %v1822 = vunpack.c.l.b16 %v237
      %v1823 = vunpack.c.l.b16 %v238
      %v1824 = vunpack.c.l.b16 %v239
      %v1825 = vunpack.c.l.b16 %v240
      %v1826 = vunpack.c.l.b16 %v241
      %v1827 = vunpack.c.l.b16 %v242
      %v1828 = vunpack.c.l.b16 %v243
      %v1829 = vunpack.c.l.b16 %v244
      %v1830 = vunpack.c.l.b16 %v245
      %v1831 = vunpack.c.l.b16 %v246
      %v1832 = vunpack.c.l.b16 %v247
      %v1833 = vunpack.c.l.b16 %v248
      %v1834 = vunpack.c.l.b16 %v249
      %v1835 = vunpack.c.l.b16 %v250
      %v1836 = vunpack.c.l.b16 %v251
      %v1837 = vunpack.c.l.b16 %v252
      %v1838 = vunpack.c.l.b16 %v253
      %v1839 = vunpack.c.l.b16 %v254
      %v1840 = vunpack.c.l.b16 %v255
      %v1841 = vunpack.c.l.b16 %v256
      %v1842 = vunpack.c.l.b16 %v257
      %v1843 = vunpack.c.l.b16 %v258
      %v1844 = vunpack.c.l.b16 %v259
      %v1845 = vunpack.c.l.b16 %v260
      %v1846 = vunpack.c.l.b16 %v261
      %v1847 = vunpack.c.l.b16 %v262
      %v1848 = vunpack.c.l.b16 %v263
      %v1849 = vunpack.c.l.b16 %v264
      %v1850 = vunpack.c.l.b16 %v265
      %v1851 = vunpack.c.l.b16 %v266
      %v1852 = vunpack.c.l.b16 %v267
      %v1853 = vunpack.c.l.b16 %v268
      %v1854 = vunpack.c.l.b16 %v269
      %v1855 = vunpack.c.l.b16 %v270
      %v1856 = vunpack.c.l.b16 %v271
      %v1857 = vunpack.c.l.b16 %v272
      %v1858 = vunpack.c.l.b16 %v273
      %v1859 = vunpack.c.l.b16 %v274
      %v1860 = vunpack.c.l.b16 %v275
      %v1861 = vunpack.c.l.b16 %v276
      %v1862 = vunpack.c.l.b16 %v277
      %v1863 = vunpack.c.l.b16 %v278
      %v1864 = vunpack.c.l.b16 %v279
      %v1865 = vunpack.c.l.b16 %v280
      %v1866 = vunpack.c.l.b16 %v281
      %v1867 = vunpack.c.l.b16 %v282
      %v1868 = vunpack.c.l.b16 %v283
      %v1869 = vunpack.c.l.b16 %v284
      %v1870 = vunpack.c.l.b16 %v285
      %v1871 = vunpack.c.l.b16 %v286
      %v1872 = vunpack.c.l.b16 %v287
      %v1873 = vunpack.c.l.b16 %v288
      %v1874 = vunpack.c.l.b16 %v289
      %v1875 = vunpack.c.l.b16 %v290
      %v1876 = vunpack.c.l.b16 %v291
      %v1877 = vunpack.c.l.b16 %v292
      %v1878 = vunpack.c.l.b16 %v293
      %v1879 = vunpack.c.l.b16 %v294
      %v1880 = vunpack.c.l.b16 %v295
      %v1881 = vunpack.c.l.b16 %v296
      %v1882 = vunpack.c.l.b16 %v297
      %v1883 = vunpack.c.l.b16 %v298
      %v1884 = vunpack.c.l.b16 %v299
      %v1885 = vunpack.c.l.b16 %v300
      %v1886 = vunpack.c.l.b16 %v301
      %v1887 = vunpack.c.l.b16 %v302
      %v1888 = vunpack.c.l.b16 %v303
      %v1889 = vunpack.c.l.b16 %v304
      %v1890 = vunpack.c.l.b16 %v305
      %v1891 = vunpack.c.l.b16 %v306
      %v1892 = vunpack.c.l.b16 %v307
      %v1893 = vunpack.c.l.b16 %v308
      %v1894 = vunpack.c.l.b16 %v309
      %v1895 = vunpack.c.l.b16 %v310
      %v1896 = vunpack.c.l.b16 %v311
      %v1897 = vunpack.c.l.b16 %v312
      %v1898 = vunpack.c.l.b16 %v313
      %v1899 = vunpack.c.l.b16 %v314
      %v1900 = vunpack.c.l.b16 %v315
      %v1901 = vunpack.c.l.b16 %v316
      %v1902 = vunpack.c.l.b16 %v317
      %v1903 = vunpack.c.l.b16 %v318
      %v1904 = vunpack.c.l.b16 %v319
      %v1905 = vunpack.c.l.b16 %v320
      %v1906 = vunpack.c.l.b16 %v321
      %v1907 = vunpack.c.l.b16 %v322
      %v1908 = vunpack.c.l.b16 %v323
      %v1909 = vunpack.c.l.b16 %v324
      %v1910 = vunpack.c.l.b16 %v325
      %v1911 = vunpack.c.l.b16 %v326
      %v1912 = vunpack.c.l.b16 %v327
      %v1913 = vunpack.c.l.b16 %v328
      %v1914 = vunpack.c.l.b16 %v329
      %v1915 = vunpack.c.l.b16 %v330
      %v1916 = vunpack.c.l.b16 %v331
      %v1917 = vunpack.c.l.b16 %v332
      %v1918 = vunpack.c.l.b16 %v333
      %v1919 = vunpack.c.l.b16 %v334
      %v1920 = vunpack.c.l.b16 %v335
      %v1921 = vunpack.c.l.b16 %v336
      %v1922 = vunpack.c.l.b16 %v337
      %v1923 = vunpack.c.l.b16 %v338
      %v1924 = vunpack.c.l.b16 %v339
      %v1925 = vunpack.c.l.b16 %v340
      %v1926 = vunpack.c.l.b16 %v341
      %v1927 = vunpack.c.l.b16 %v342
      %v1928 = vunpack.c.l.b16 %v343
      %v1929 = vunpack.c.l.b16 %v344
      %v1930 = vunpack.c.l.b16 %v345
      %v1931 = vunpack.c.l.b16 %v346
      %v1932 = vunpack.c.l.b16 %v347
      %v1933 = vunpack.c.l.b16 %v348
      %v1934 = vunpack.c.l.b16 %v349
      %v1935 = vunpack.c.l.b16 %v350
      %v1936 = vunpack.c.l.b16 %v351
      %v1937 = vunpack.c.l.b16 %v352
      %v1938 = vunpack.c.l.b16 %v353
      %v1939 = vunpack.c.l.b16 %v354
      %v1940 = vunpack.c.l.b16 %v355
      %v1941 = vunpack.c.l.b16 %v356
      %v1942 = vunpack.c.l.b16 %v357
      %v1943 = vunpack.c.l.b16 %v358
      %v1944 = vunpack.c.l.b16 %v359
      %v1945 = vunpack.c.l.b16 %v360
      %v1946 = vunpack.c.l.b16 %v361
      %v1947 = vunpack.c.l.b16 %v362
      %v1948 = vunpack.c.l.b16 %v363
      %v1949 = vunpack.c.l.b16 %v364
      %v1950 = vunpack.c.l.b16 %v365
      %v1951 = vunpack.c.l.b16 %v366
      %v1952 = vunpack.c.l.b16 %v367
      %v1953 = vunpack.c.l.b16 %v368
      %v1954 = vunpack.c.l.b16 %v369
      %v1955 = vunpack.c.l.b16 %v370
      %v1956 = vunpack.c.l.b16 %v371
      %v1957 = vunpack.c.l.b16 %v372
      %v1958 = vunpack.c.l.b16 %v373
      %v1959 = vunpack.c.l.b16 %v374
      %v1960 = vunpack.c.l.b16 %v375
      %v1961 = vunpack.c.l.b16 %v376
      %v1962 = vunpack.c.l.b16 %v377
      %v1963 = vunpack.c.l.b16 %v378
      %v1964 = vunpack.c.l.b16 %v379
      %v1965 = vunpack.c.l.b16 %v380
      %v1966 = vunpack.c.l.b16 %v381
      %v1967 = vunpack.c.l.b16 %v382
      %v1968 = vunpack.c.l.b16 %v383
      %v1969 = vunpack.c.l.b16 %v384
      %v1970 = vunpack.c.l.b16 %v385
      %v1971 = vunpack.c.l.b16 %v386
      %v1972 = vunpack.c.l.b16 %v387
      %v1973 = vunpack.c.l.b16 %v388
      %v1974 = vunpack.c.l.b16 %v389
      %v1975 = vunpack.c.l.b16 %v390
      %v1976 = vunpack.c.l.b16 %v391
      %v1977 = vunpack.c.l.b16 %v392
      %v1978 = vunpack.c.l.b16 %v393
      %v1979 = vunpack.c.l.b16 %v394
      %v1980 = vunpack.c.l.b16 %v395
      %v1981 = vunpack.c.l.b16 %v396
      %v1982 = vunpack.c.l.b16 %v397
      %v1983 = vunpack.c.l.b16 %v398
      %v1984 = vunpack.c.l.b16 %v399
      %v1985 = vunpack.c.l.b16 %v400
      %v1986 = vunpack.c.l.b16 %v401
      %v1987 = vunpack.c.l.b16 %v402
      %v1988 = vunpack.c.l.b16 %v403
      %v1989 = vunpack.c.l.b16 %v404
      %v1990 = vunpack.c.l.b16 %v405
      %v1991 = vunpack.c.l.b16 %v406
      %v1992 = vunpack.c.l.b16 %v407
      %v1993 = vunpack.c.l.b16 %v408
      %v1994 = vunpack.c.l.b16 %v409
      %v1995 = vunpack.c.l.b16 %v410
      %v1996 = vunpack.c.l.b16 %v411
      %v1997 = vunpack.c.l.b16 %v412
      %v1998 = vunpack.c.l.b16 %v413
      %v1999 = vunpack.c.l.b16 %v414
      %v2000 = vunpack.c.l.b16 %v415
      %v2001 = vunpack.c.l.b16 %v416
      %v2002 = vunpack.c.l.b16 %v417
      %v2003 = vunpack.c.l.b16 %v418
      %v2004 = vunpack.c.l.b16 %v419
      %v2005 = vunpack.c.l.b16 %v420
      %v2006 = vunpack.c.l.b16 %v421
      %v2007 = vunpack.c.l.b16 %v422
      %v2008 = vunpack.c.l.b16 %v423
      %v2009 = vunpack.c.l.b16 %v424
      %v2010 = vunpack.c.l.b16 %v425
      %v2011 = vunpack.c.l.b16 %v426
      %v2012 = vunpack.c.l.b16 %v427
      %v2013 = vunpack.c.l.b16 %v428
      %v2014 = vunpack.c.l.b16 %v429
      %v2015 = vunpack.c.l.b16 %v430
      %v2016 = vunpack.c.l.b16 %v431
      %v2017 = vunpack.c.l.b16 %v432
      %v2018 = vunpack.c.l.b16 %v433
      %v2019 = vunpack.c.l.b16 %v434
      %v2020 = vunpack.c.l.b16 %v435
      %v2021 = vunpack.c.l.b16 %v436
      %v2022 = vunpack.c.l.b16 %v437
      %v2023 = vunpack.c.l.b16 %v438
      %v2024 = vunpack.c.l.b16 %v439
      %v2025 = vunpack.c.l.b16 %v440
      %v2026 = vunpack.c.l.b16 %v441
      %v2027 = vunpack.c.l.b16 %v442
      %v2028 = vunpack.c.l.b16 %v443
      %v2029 = vunpack.c.l.b16 %v444
      %v2030 = vunpack.c.l.b16 %v445
      %v2031 = vunpack.c.l.b16 %v446
      %v2032 = vunpack.c.l.b16 %v447
      %v2033 = vunpack.c.l.b16 %v448
      %v2034 = vunpack.c.l.b16 %v449
      %v2035 = vunpack.c.l.b16 %v450
      %v2036 = vunpack.c.l.b16 %v451
      %v2037 = vunpack.c.l.b16 %v452
      %v2038 = vunpack.c.l.b16 %v453
      %v2039 = vunpack.c.l.b16 %v454
      %v2040 = vunpack.c.l.b16 %v455
      %v2041 = vunpack.c.l.b16 %v456
      %v2042 = vunpack.c.l.b16 %v457
      %v2043 = vunpack.c.l.b16 %v458
      %v2044 = vunpack.c.l.b16 %v459
      %v2045 = vunpack.c.l.b16 %v460
      %v2046 = vunpack.c.l.b16 %v461
      %v2047 = vunpack.c.l.b16 %v462
      %v2048 = vunpack.c.l.b16 %v463
      %v2049 = vunpack.c.l.b16 %v464
      %v2050 = vunpack.c.l.b16 %v465
      %v2051 = vunpack.c.l.b16 %v466
      %v2052 = vunpack.c.l.b16 %v467
      %v2053 = vunpack.c.l.b16 %v468
      %v2054 = vunpack.c.l.b16 %v469
      %v2055 = vunpack.c.l.b16 %v470
      %v2056 = vunpack.c.l.b16 %v471
      %v2057 = vunpack.c.l.b16 %v472
      %v2058 = vunpack.c.l.b16 %v473
      %v2059 = vunpack.c.l.b16 %v474
      %v2060 = vunpack.c.l.b16 %v475
      %v2061 = vunpack.c.l.b16 %v476
      %v2062 = vunpack.c.l.b16 %v477
      %v2063 = vunpack.c.l.b16 %v478
      %v2064 = vunpack.c.l.b16 %v479
      %v2065 = vunpack.c.l.b16 %v480
      %v2066 = vunpack.c.l.b16 %v481
      %v2067 = vunpack.c.l.b16 %v482
      %v2068 = vunpack.c.l.b16 %v483
      %v2069 = vunpack.c.l.b16 %v484
      %v2070 = vunpack.c.l.b16 %v485
      %v2071 = vunpack.c.l.b16 %v486
      %v2072 = vunpack.c.l.b16 %v487
      %v2073 = vunpack.c.l.b16 %v488
      %v2074 = vunpack.c.l.b16 %v489
      %v2075 = vunpack.c.l.b16 %v490
      %v2076 = vunpack.c.l.b16 %v491
      %v2077 = vunpack.c.l.b16 %v492
      %v2078 = vunpack.c.l.b16 %v493
      %v2079 = vunpack.c.l.b16 %v494
      %v2080 = vunpack.c.l.b16 %v495
      %v2081 = vunpack.c.l.b16 %v496
      %v2082 = vunpack.c.l.b16 %v497
      %v2083 = vunpack.c.l.b16 %v498
      %v2084 = vunpack.c.l.b16 %v499
      %v2085 = vunpack.c.l.b16 %v500
      %v2086 = vunpack.c.l.b16 %v501
      %v2087 = vunpack.c.l.b16 %v502
      %v2088 = vunpack.c.l.b16 %v503
      %v2089 = vunpack.c.l.b16 %v504
      %v2090 = vunpack.c.l.b16 %v505
      %v2091 = vunpack.c.l.b16 %v506
      %v2092 = vunpack.c.l.b16 %v507
      %v2093 = vunpack.c.l.b16 %v508
      %v2094 = vunpack.c.l.b16 %v509
      %v2095 = vunpack.c.l.b16 %v510
      %v2096 = vunpack.c.l.b16 %v511
      %v2097 = vunpack.c.l.b16 %v512
      %v2098 = vunpack.c.l.b16 %v513
      %v2099 = vunpack.c.l.b16 %v514
      %v2100 = vunpack.c.l.b16 %v515
      %v2101 = vunpack.c.l.b16 %v516
      %v2102 = vunpack.c.l.b16 %v517
      %v2103 = vunpack.c.l.b16 %v518
      %v2104 = vunpack.c.l.b16 %v519
      %v2105 = vunpack.c.l.b16 %v520
      %v2106 = vunpack.c.l.b16 %v521
      %v2107 = vunpack.c.l.b16 %v522
      %v2108 = vunpack.c.l.b16 %v523
      %v2109 = vunpack.c.l.b16 %v524
      %v2110 = vunpack.c.l.b16 %v525
      %v2111 = vunpack.c.l.b16 %v526
      %v2112 = vunpack.c.l.b16 %v527
      %v2113 = vunpack.c.l.b16 %v528
      %v2114 = vunpack.c.l.b16 %v529
      %v2115 = vunpack.c.l.b16 %v530
      %v2116 = vunpack.c.l.b16 %v531
      %v2117 = vunpack.c.l.b16 %v532
      %v2118 = vunpack.c.l.b16 %v533
      %v2119 = vunpack.c.l.b16 %v534
      %v2120 = vunpack.c.l.b16 %v535
      %v2121 = vunpack.c.l.b16 %v536
      %v2122 = vunpack.c.l.b16 %v537
      %v2123 = vunpack.c.l.b16 %v538
      %v2124 = vunpack.c.l.b16 %v539
      %v2125 = vunpack.c.l.b16 %v540
      %v2126 = vunpack.c.l.b16 %v541
      %v2127 = vunpack.c.l.b16 %v542
      %v2128 = vunpack.c.l.b16 %v543
      %v2129 = vunpack.c.l.b16 %v544
      %v2130 = vunpack.c.l.b16 %v545
      %v2131 = vunpack.c.l.b16 %v546
      %v2132 = vunpack.c.l.b16 %v547
      %v2133 = vunpack.c.l.b16 %v548
      %v2134 = vunpack.c.l.b16 %v549
      %v2135 = vunpack.c.l.b16 %v550
      %v2136 = vunpack.c.l.b16 %v551
      %v2137 = vunpack.c.l.b16 %v552
      %v2138 = vunpack.c.l.b16 %v553
      %v2139 = vunpack.c.l.b16 %v554
      %v2140 = vunpack.c.l.b16 %v555
      %v2141 = vunpack.c.l.b16 %v556
      %v2142 = vunpack.c.l.b16 %v557
      %v2143 = vunpack.c.l.b16 %v558
      %v2144 = vunpack.c.l.b16 %v559
      %v2145 = vunpack.c.l.b16 %v560
      %v2146 = vunpack.c.l.b16 %v561
      %v2147 = vunpack.c.l.b16 %v562
      %v2148 = vunpack.c.l.b16 %v563
      %v2149 = vunpack.c.l.b16 %v564
      %v2150 = vunpack.c.l.b16 %v565
      %v2151 = vunpack.c.l.b16 %v566
      %v2152 = vunpack.c.l.b16 %v567
      %v2153 = vunpack.c.l.b16 %v568
      %v2154 = vunpack.c.l.b16 %v569
      %v2155 = vunpack.c.l.b16 %v570
      %v2156 = vunpack.c.l.b16 %v571
      %v2157 = vunpack.c.l.b16 %v572
      %v2158 = vunpack.c.l.b16 %v573
      %v2159 = vunpack.c.l.b16 %v574
      %v2160 = vunpack.c.l.b16 %v575
      %v2161 = vunpack.c.l.b16 %v576
      %v2162 = vunpack.c.l.b16 %v577
      %v2163 = vunpack.c.l.b16 %v578
      %v2164 = vunpack.c.l.b16 %v579
      %v2165 = vunpack.c.l.b16 %v580
      %v2166 = vunpack.c.l.b16 %v581
      %v2167 = vunpack.c.l.b16 %v582
      %v2168 = vunpack.c.l.b16 %v583
      %v2169 = vunpack.c.l.b16 %v584
      %v2170 = vunpack.c.l.b16 %v585
      %v2171 = vunpack.c.l.b16 %v586
      %v2172 = vunpack.c.l.b16 %v587
      %v2173 = vunpack.c.l.b16 %v588
      %v2174 = vunpack.c.l.b16 %v589
      %v2175 = vunpack.c.l.b16 %v590
      %v2176 = vunpack.c.l.b16 %v591
      %v2177 = vunpack.c.l.b16 %v592
      %v2178 = vunpack.c.l.b16 %v593
      %v2179 = vunpack.c.l.b16 %v594
      %v2180 = vunpack.c.l.b16 %v595
      %v2181 = vunpack.c.l.b16 %v596
      %v2182 = vunpack.c.l.b16 %v597
      %v2183 = vunpack.c.l.b16 %v598
      %v2184 = vunpack.c.l.b16 %v599
      %v2185 = vunpack.c.l.b16 %v600
      %v2186 = vunpack.c.l.b16 %v601
      %v2187 = vunpack.c.l.b16 %v602
      %v2188 = vunpack.c.l.b16 %v603
      %v2189 = vunpack.c.l.b16 %v604
      %v2190 = vunpack.c.l.b16 %v605
      %v2191 = vunpack.c.l.b16 %v606
      %v2192 = vunpack.c.l.b16 %v607
      %v2193 = vunpack.c.l.b16 %v608
      %v2194 = vunpack.c.l.b16 %v609
      %v2195 = vunpack.c.l.b16 %v610
      %v2196 = vunpack.c.l.b16 %v611
      %v2197 = vunpack.c.l.b16 %v612
      %v2198 = vunpack.c.l.b16 %v613
      %v2199 = vunpack.c.l.b16 %v614
      %v2200 = vunpack.c.l.b16 %v615
      %v2201 = vunpack.c.l.b16 %v616
      %v2202 = vunpack.c.l.b16 %v617
      %v2203 = vunpack.c.l.b16 %v618
      %v2204 = vunpack.c.l.b16 %v619
      %v2205 = vunpack.c.l.b16 %v620
      %v2206 = vunpack.c.l.b16 %v621
      %v2207 = vunpack.c.l.b16 %v622
      %v2208 = vunpack.c.l.b16 %v623
      %v2209 = vunpack.c.l.b16 %v624
      %v2210 = vunpack.c.l.b16 %v625
      %v2211 = vunpack.c.l.b16 %v626
      %v2212 = vunpack.c.l.b16 %v627
      %v2213 = vunpack.c.l.b16 %v628
      %v2214 = vunpack.c.l.b16 %v629
      %v2215 = vunpack.c.l.b16 %v630
      %v2216 = vunpack.c.l.b16 %v631
      %v2217 = vunpack.c.l.b16 %v632
      %v2218 = vunpack.c.l.b16 %v633
      %v2219 = vunpack.c.l.b16 %v634
      %v2220 = vunpack.c.l.b16 %v635
      %v2221 = vunpack.c.l.b16 %v636
      %v2222 = vunpack.c.l.b16 %v637
      %v2223 = vunpack.c.l.b16 %v638
      %v2224 = vunpack.c.l.b16 %v639
      %v2225 = vunpack.c.l.b16 %v640
      %v2226 = vunpack.c.l.b16 %v641
      %v2227 = vunpack.c.l.b16 %v642
      %v2228 = vunpack.c.l.b16 %v643
      %v2229 = vunpack.c.l.b16 %v644
      %v2230 = vunpack.c.l.b16 %v645
      %v2231 = vunpack.c.l.b16 %v646
      %v2232 = vunpack.c.l.b16 %v647
      %v2233 = vunpack.c.l.b16 %v648
      %v2234 = vunpack.c.l.b16 %v649
      %v2235 = vunpack.c.l.b16 %v650
      %v2236 = vunpack.c.l.b16 %v651
      %v2237 = vunpack.c.l.b16 %v652
      %v2238 = vunpack.c.l.b16 %v653
      %v2239 = vunpack.c.l.b16 %v654
      %v2240 = vunpack.c.l.b16 %v655
      %v2241 = vunpack.c.l.b16 %v656
      %v2242 = vunpack.c.l.b16 %v657
      %v2243 = vunpack.c.l.b16 %v658
      %v2244 = vunpack.c.l.b16 %v659
      %v2245 = vunpack.c.l.b16 %v660
      %v2246 = vunpack.c.l.b16 %v661
      %v2247 = vunpack.c.l.b16 %v662
      %v2248 = vunpack.c.l.b16 %v663
      %v2249 = vunpack.c.l.b16 %v664
      %v2250 = vunpack.c.l.b16 %v665
      %v2251 = vunpack.c.l.b16 %v666
      %v2252 = vunpack.c.l.b16 %v667
      %v2253 = vunpack.c.l.b16 %v668
      %v2254 = vunpack.c.l.b16 %v669
      %v2255 = vunpack.c.l.b16 %v670
      %v2256 = vunpack.c.l.b16 %v671
      %v2257 = vunpack.c.l.b16 %v672
      %v2258 = vunpack.c.l.b16 %v673
      %v2259 = vunpack.c.l.b16 %v674
      %v2260 = vunpack.c.l.b16 %v675
      %v2261 = vunpack.c.l.b16 %v676
      %v2262 = vunpack.c.l.b16 %v677
      %v2263 = vunpack.c.l.b16 %v678
      %v2264 = vunpack.c.l.b16 %v679
      %v2265 = vunpack.c.l.b16 %v680
      %v2266 = vunpack.c.l.b16 %v681
      %v2267 = vunpack.c.l.b16 %v682
      %v2268 = vunpack.c.l.b16 %v683
      %v2269 = vunpack.c.l.b16 %v684
      %v2270 = vunpack.c.l.b16 %v685
      %v2271 = vunpack.c.l.b16 %v686
      %v2272 = vunpack.c.l.b16 %v687
      %v2273 = vunpack.c.l.b16 %v688
      %v2274 = vunpack.c.l.b16 %v689
      %v2275 = vunpack.c.l.b16 %v690
      %v2276 = vunpack.c.l.b16 %v691
      %v2277 = vunpack.c.l.b16 %v692
      %v2278 = vunpack.c.l.b16 %v693
      %v2279 = vunpack.c.l.b16 %v694
      %v2280 = vunpack.c.l.b16 %v695
      %v2281 = vunpack.c.l.b16 %v696
      %v2282 = vunpack.c.l.b16 %v697
      %v2283 = vunpack.c.l.b16 %v698
      %v2284 = vunpack.c.l.b16 %v699
      %v2285 = vunpack.c.l.b16 %v700
      %v2286 = vunpack.c.l.b16 %v701
      %v2287 = vunpack.c.l.b16 %v702
      %v2288 = vunpack.c.l.b16 %v703
      %v2289 = vunpack.c.l.b16 %v704
      %v2290 = vunpack.c.l.b16 %v705
      %v2291 = vunpack.c.l.b16 %v706
      %v2292 = vunpack.c.l.b16 %v707
      %v2293 = vunpack.c.l.b16 %v708
      %v2294 = vunpack.c.l.b16 %v709
      %v2295 = vunpack.c.l.b16 %v710
      %v2296 = vunpack.c.l.b16 %v711
      %v2297 = vunpack.c.l.b16 %v712
      %v2298 = vunpack.c.l.b16 %v713
      %v2299 = vunpack.c.l.b16 %v714
      %v2300 = vunpack.c.l.b16 %v715
      %v2301 = vunpack.c.l.b16 %v716
      %v2302 = vunpack.c.l.b16 %v717
      %v2303 = vunpack.c.l.b16 %v718
      %v2304 = vunpack.c.l.b16 %v719
      %v2305 = vunpack.c.l.b16 %v720
      %v2306 = vunpack.c.l.b16 %v721
      %v2307 = vunpack.c.l.b16 %v722
      %v2308 = vunpack.c.l.b16 %v723
      %v2309 = vunpack.c.l.b16 %v724
      %v2310 = vunpack.c.l.b16 %v725
      %v2311 = vunpack.c.l.b16 %v726
      %v2312 = vunpack.c.l.b16 %v727
      %v2313 = vunpack.c.l.b16 %v728
      %v2314 = vunpack.c.l.b16 %v729
      %v2315 = vunpack.c.l.b16 %v730
      %v2316 = vunpack.c.l.b16 %v731
      %v2317 = vunpack.c.l.b16 %v732
      %v2318 = vunpack.c.l.b16 %v733
      %v2319 = vunpack.c.l.b16 %v734
      %v2320 = vunpack.c.l.b16 %v735
      %v2321 = vunpack.c.l.b16 %v736
      %v2322 = vunpack.c.l.b16 %v737
      %v2323 = vunpack.c.l.b16 %v738
      %v2324 = vunpack.c.l.b16 %v739
      %v2325 = vunpack.c.l.b16 %v740
      %v2326 = vunpack.c.l.b16 %v741
      %v2327 = vunpack.c.l.b16 %v742
      %v2328 = vunpack.c.l.b16 %v743
      %v2329 = vunpack.c.l.b16 %v744
      %v2330 = vunpack.c.l.b16 %v745
      %v2331 = vunpack.c.l.b16 %v746
      %v2332 = vunpack.c.l.b16 %v747
      %v2333 = vunpack.c.l.b16 %v748
      %v2334 = vunpack.c.l.b16 %v749
      %v2335 = vunpack.c.l.b16 %v750
      %v2336 = vunpack.c.l.b16 %v751
      %v2337 = vunpack.c.l.b16 %v752
      %v2338 = vunpack.c.l.b16 %v753
      %v2339 = vunpack.c.l.b16 %v754
      %v2340 = vunpack.c.l.b16 %v755
      %v2341 = vunpack.c.l.b16 %v756
      %v2342 = vunpack.c.l.b16 %v757
      %v2343 = vunpack.c.l.b16 %v758
      %v2344 = vunpack.c.l.b16 %v759
      %v2345 = vunpack.c.l.b16 %v760
      %v2346 = vunpack.c.l.b16 %v761
      %v2347 = vunpack.c.l.b16 %v762
      %v2348 = vunpack.c.l.b16 %v763
      %v2349 = vunpack.c.l.b16 %v764
      %v2350 = vunpack.c.l.b16 %v765
      %v2351 = vunpack.c.l.b16 %v766
      %v2352 = vunpack.c.l.b16 %v767
      %v2353 = vunpack.c.l.b16 %v768
      %v2354 = vunpack.c.l.b16 %v769
      %v2355 = vunpack.c.l.b16 %v770
      %v2356 = vunpack.c.l.b16 %v771
      %v2357 = vunpack.c.l.b16 %v772
      %v2358 = vunpack.c.l.b16 %v773
      %v2359 = vunpack.c.l.b16 %v774
      %v2360 = vunpack.c.l.b16 %v775
      %v2361 = vunpack.c.l.b16 %v776
      %v2362 = vunpack.c.l.b16 %v777
      %v2363 = vunpack.c.l.b16 %v778
      %v2364 = vunpack.c.l.b16 %v779
      %v2365 = vunpack.c.l.b16 %v780
      %v2366 = vunpack.c.l.b16 %v781
      %v2367 = vunpack.c.l.b16 %v782
      %v2368 = vunpack.c.l.b16 %v783
      %v2369 = vunpack.c.l.b16 %v784
      %v2370 = vunpack.c.l.b16 %v785
      %v2371 = vunpack.c.l.b16 %v786
      %v2372 = vunpack.c.l.b16 %v787
      %v2373 = vunpack.c.l.b16 %v788
      %v2374 = vunpack.c.l.b16 %v789
      %v2375 = vunpack.c.l.b16 %v790
      %v2376 = vunpack.c.l.b16 %v791
      %v2377 = vunpack.c.l.b16 %v792
      %v2378 = vunpack.c.l.b16 %v793
      %v2379 = vunpack.c.l.b16 %v794
      %v2380 = vunpack.c.l.b16 %v795
      %v2381 = vunpack.c.l.b16 %v796
      %v2382 = vunpack.c.l.b16 %v797
      %v2383 = vunpack.c.l.b16 %v798
      %v2384 = vunpack.c.l.b16 %v799
      %v2385 = vunpack.c.l.b16 %v800
      %v2386 = vunpack.c.l.b16 %v801
      %v2387 = vunpack.c.l.b16 %v802
      %v2388 = vunpack.c.l.b16 %v803
      %v2389 = vunpack.c.l.b16 %v804
      %v2390 = vunpack.c.l.b16 %v805
      %v2391 = vunpack.c.l.b16 %v806
      %v2392 = vunpack.c.l.b16 %v807
      %v2393 = vunpack.c.l.b16 %v808
      %v2394 = vunpack.c.l.b16 %v809
      %v2395 = vunpack.c.l.b16 %v810
      %v2396 = vunpack.c.l.b16 %v811
      %v2397 = vunpack.c.l.b16 %v812
      %v2398 = vunpack.c.l.b16 %v813
      %v2399 = vunpack.c.l.b16 %v814
      %v2400 = vunpack.c.l.b16 %v815
      %v2401 = vunpack.c.l.b16 %v816
      %v2402 = vunpack.c.l.b16 %v817
      %v2403 = vunpack.c.l.b16 %v818
      %v2404 = vunpack.c.l.b16 %v819
      %v2405 = vunpack.c.l.b16 %v820
      %v2406 = vunpack.c.l.b16 %v821
      %v2407 = vunpack.c.l.b16 %v822
      %v2408 = vunpack.c.l.b16 %v823
      %v2409 = vunpack.c.l.b16 %v824
      %v2410 = vunpack.c.l.b16 %v825
      %v2411 = vunpack.c.l.b16 %v826
      %v2412 = vunpack.c.l.b16 %v827
      %v2413 = vunpack.c.l.b16 %v828
      %v2414 = vunpack.c.l.b16 %v829
      %v2415 = vunpack.c.l.b16 %v830
      %v2416 = vunpack.c.l.b16 %v831
      %v2417 = vunpack.c.l.b16 %v832
      %v2418 = vunpack.c.l.b16 %v833
      %v2419 = vunpack.c.l.b16 %v834
      %v2420 = vunpack.c.l.b16 %v835
      %v2421 = vunpack.c.l.b16 %v836
      %v2422 = vunpack.c.l.b16 %v837
      %v2423 = vunpack.c.l.b16 %v838
      %v2424 = vunpack.c.l.b16 %v839
      %v2425 = vunpack.c.l.b16 %v840
      %v2426 = vunpack.c.l.b16 %v841
      %v2427 = vunpack.c.l.b16 %v842
      %v2428 = vunpack.c.l.b16 %v843
      %v2429 = vunpack.c.l.b16 %v844
      %v2430 = vunpack.c.l.b16 %v845
      %v2431 = vunpack.c.l.b16 %v846
      %v2432 = vunpack.c.l.b16 %v847
      %v2433 = vunpack.c.l.b16 %v848
      %v2434 = vunpack.c.l.b16 %v849
      %v2435 = vunpack.c.l.b16 %v850
      %v2436 = vunpack.c.l.b16 %v851
      %v2437 = vunpack.c.l.b16 %v852
      %v2438 = vunpack.c.l.b16 %v853
      %v2439 = vunpack.c.l.b16 %v854
      %v2440 = vunpack.c.l.b16 %v855
      %v2441 = vunpack.c.l.b16 %v856
      %v2442 = vunpack.c.l.b16 %v857
      %v2443 = vunpack.c.l.b16 %v858
      %v2444 = vunpack.c.l.b16 %v859
      %v2445 = vunpack.c.l.b16 %v860
      %v2446 = vunpack.c.l.b16 %v861
      %v2447 = vunpack.c.l.b16 %v862
      %v2448 = vunpack.c.l.b16 %v863
      %v2449 = vunpack.c.l.b16 %v864
      %v2450 = vunpack.c.l.b16 %v865
      %v2451 = vunpack.c.l.b16 %v866
      %v2452 = vunpack.c.l.b16 %v867
      %v2453 = vunpack.c.l.b16 %v868
      %v2454 = vunpack.c.l.b16 %v869
      %v2455 = vunpack.c.l.b16 %v870
      %v2456 = vunpack.c.l.b16 %v871
      %v2457 = vunpack.c.l.b16 %v872
      %v2458 = vunpack.c.l.b16 %v873
      %v2459 = vunpack.c.l.b16 %v874
      %v2460 = vunpack.c.l.b16 %v875
      %v2461 = vunpack.c.l.b16 %v876
      %v2462 = vunpack.c.l.b16 %v877
      %v2463 = vunpack.c.l.b16 %v878
      %v2464 = vunpack.c.l.b16 %v879
      %v2465 = vunpack.c.l.b16 %v880
      %v2466 = vunpack.c.l.b16 %v881
      %v2467 = vunpack.c.l.b16 %v882
      %v2468 = vunpack.c.l.b16 %v883
      %v2469 = vunpack.c.l.b16 %v884
      %v2470 = vunpack.c.l.b16 %v885
      %v2471 = vunpack.c.l.b16 %v886
      %v2472 = vunpack.c.l.b16 %v887
      %v2473 = vunpack.c.l.b16 %v888
      %v2474 = vunpack.c.l.b16 %v889
      %v2475 = vunpack.c.l.b16 %v890
      %v2476 = vunpack.c.l.b16 %v891
      %v2477 = vunpack.c.l.b16 %v892
      %v2478 = vunpack.c.l.b16 %v893
      %v2479 = vunpack.c.l.b16 %v894
      %v2480 = vunpack.c.l.b16 %v895
      %v2481 = vunpack.c.l.b16 %v896
      %v2482 = vunpack.c.l.b16 %v897
      %v2483 = vunpack.c.l.b16 %v898
      %v2484 = vunpack.c.l.b16 %v899
      %v2485 = vunpack.c.l.b16 %v900
      %v2486 = vunpack.c.l.b16 %v901
      %v2487 = vunpack.c.l.b16 %v902
      %v2488 = vunpack.c.l.b16 %v903
      %v2489 = vunpack.c.l.b16 %v904
      %v2490 = vunpack.c.l.b16 %v905
      %v2491 = vunpack.c.l.b16 %v906
      %v2492 = vunpack.c.l.b16 %v907
      %v2493 = vunpack.c.l.b16 %v908
      %v2494 = vunpack.c.l.b16 %v909
      %v2495 = vunpack.c.l.b16 %v910
      %v2496 = vunpack.c.l.b16 %v911
      %v2497 = vunpack.c.l.b16 %v912
      %v2498 = vunpack.c.l.b16 %v913
      %v2499 = vunpack.c.l.b16 %v914
      %v2500 = vunpack.c.l.b16 %v915
      %v2501 = vunpack.c.l.b16 %v916
      %v2502 = vunpack.c.l.b16 %v917
      %v2503 = vunpack.c.l.b16 %v918
      %v2504 = vunpack.c.l.b16 %v919
      %v2505 = vunpack.c.l.b16 %v920
      %v2506 = vunpack.c.l.b16 %v921
      %v2507 = vunpack.c.l.b16 %v922
      %v2508 = vunpack.c.l.b16 %v923
      %v2509 = vunpack.c.l.b16 %v924
      %v2510 = vunpack.c.l.b16 %v925
      %v2511 = vunpack.c.l.b16 %v926
      %v2512 = vunpack.c.l.b16 %v927
      %v2513 = vunpack.c.l.b16 %v928
      %v2514 = vunpack.c.l.b16 %v929
      %v2515 = vunpack.c.l.b16 %v930
      %v2516 = vunpack.c.l.b16 %v931
      %v2517 = vunpack.c.l.b16 %v932
      %v2518 = vunpack.c.l.b16 %v933
      %v2519 = vunpack.c.l.b16 %v934
      %v2520 = vunpack.c.l.b16 %v935
      %v2521 = vunpack.c.l.b16 %v936
      %v2522 = vunpack.c.l.b16 %v937
      %v2523 = vunpack.c.l.b16 %v938
      %v2524 = vunpack.c.l.b16 %v939
      %v2525 = vunpack.c.l.b16 %v940
      %v2526 = vunpack.c.l.b16 %v941
      %v2527 = vunpack.c.l.b16 %v942
      %v2528 = vunpack.c.l.b16 %v943
      %v2529 = vunpack.c.l.b16 %v944
      %v2530 = vunpack.c.l.b16 %v945
      %v2531 = vunpack.c.l.b16 %v946
      %v2532 = vunpack.c.l.b16 %v947
      %v2533 = vunpack.c.l.b16 %v948
      %v2534 = vunpack.c.l.b16 %v949
      %v2535 = vunpack.c.l.b16 %v950
      %v2536 = vunpack.c.l.b16 %v951
      %v2537 = vunpack.c.l.b16 %v952
      %v2538 = vunpack.c.l.b16 %v953
      %v2539 = vunpack.c.l.b16 %v954
      %v2540 = vunpack.c.l.b16 %v955
      %v2541 = vunpack.c.l.b16 %v956
      %v2542 = vunpack.c.l.b16 %v957
      %v2543 = vunpack.c.l.b16 %v958
      %v2544 = vpack.c.b16 %v1761, %v1760
      %v2545 = vpack.c.b16 %v1763, %v1762
      %v2546 = vpack.c.b16 %v1765, %v1764
      %v2547 = vpack.c.b16 %v1767, %v1766
      %v2548 = vpack.c.b16 %v1769, %v1768
      %v2549 = vpack.c.b16 %v1771, %v1770
      %v2550 = vpack.c.b16 %v1773, %v1772
      %v2551 = vpack.c.b16 %v1775, %v1774
      %v2552 = vpack.c.b16 %v1777, %v1776
      %v2553 = vpack.c.b16 %v1779, %v1778
      %v2554 = vpack.c.b16 %v1781, %v1780
      %v2555 = vpack.c.b16 %v1783, %v1782
      %v2556 = vpack.c.b16 %v1785, %v1784
      %v2557 = vpack.c.b16 %v1787, %v1786
      %v2558 = vpack.c.b16 %v1789, %v1788
      %v2559 = vpack.c.b16 %v1791, %v1790
      %v2560 = vpack.c.b16 %v1793, %v1792
      %v2561 = vpack.c.b16 %v1795, %v1794
      %v2562 = vpack.c.b16 %v1797, %v1796
      %v2563 = vpack.c.b16 %v1799, %v1798
      %v2564 = vpack.c.b16 %v1801, %v1800
      %v2565 = vpack.c.b16 %v1803, %v1802
      %v2566 = vpack.c.b16 %v1805, %v1804
      %v2567 = vpack.c.b16 %v1807, %v1806
      %v2568 = vpack.c.b16 %v1809, %v1808
      %v2569 = vpack.c.b16 %v1811, %v1810
      %v2570 = vpack.c.b16 %v1813, %v1812
      %v2571 = vpack.c.b16 %v1815, %v1814
      %v2572 = vpack.c.b16 %v1817, %v1816
      %v2573 = vpack.c.b16 %v1819, %v1818
      %v2574 = vpack.c.b16 %v1821, %v1820
      %v2575 = vpack.c.b16 %v1823, %v1822
      %v2576 = vpack.c.b16 %v1825, %v1824
      %v2577 = vpack.c.b16 %v1827, %v1826
      %v2578 = vpack.c.b16 %v1829, %v1828
      %v2579 = vpack.c.b16 %v1831, %v1830
      %v2580 = vpack.c.b16 %v1833, %v1832
      %v2581 = vpack.c.b16 %v1835, %v1834
      %v2582 = vpack.c.b16 %v1837, %v1836
      %v2583 = vpack.c.b16 %v1839, %v1838
      %v2584 = vpack.c.b16 %v1841, %v1840
      %v2585 = vpack.c.b16 %v1843, %v1842
      %v2586 = vpack.c.b16 %v1845, %v1844
      %v2587 = vpack.c.b16 %v1847, %v1846
      %v2588 = vpack.c.b16 %v1849, %v1848
      %v2589 = vpack.c.b16 %v1851, %v1850
      %v2590 = vpack.c.b16 %v1853, %v1852
      %v2591 = vpack.c.b16 %v1855, %v1854
      %v2592 = vpack.c.b16 %v1857, %v1856
      %v2593 = vpack.c.b16 %v1859, %v1858
      %v2594 = vpack.c.b16 %v1861, %v1860
      %v2595 = vpack.c.b16 %v1863, %v1862
      %v2596 = vpack.c.b16 %v1865, %v1864
      %v2597 = vpack.c.b16 %v1867, %v1866
      %v2598 = vpack.c.b16 %v1869, %v1868
      %v2599 = vpack.c.b16 %v1871, %v1870
      %v2600 = vpack.c.b16 %v1873, %v1872
      %v2601 = vpack.c.b16 %v1875, %v1874
      %v2602 = vpack.c.b16 %v1877, %v1876
      %v2603 = vpack.c.b16 %v1879, %v1878
      %v2604 = vpack.c.b16 %v1881, %v1880
      %v2605 = vpack.c.b16 %v1883, %v1882
      %v2606 = vpack.c.b16 %v1885, %v1884
      %v2607 = vpack.c.b16 %v1887, %v1886
      %v2608 = vpack.c.b16 %v1889, %v1888
      %v2609 = vpack.c.b16 %v1891, %v1890
      %v2610 = vpack.c.b16 %v1893, %v1892
      %v2611 = vpack.c.b16 %v1895, %v1894
      %v2612 = vpack.c.b16 %v1897, %v1896
      %v2613 = vpack.c.b16 %v1899, %v1898
      %v2614 = vpack.c.b16 %v1901, %v1900
      %v2615 = vpack.c.b16 %v1903, %v1902
      %v2616 = vpack.c.b16 %v1905, %v1904
      %v2617 = vpack.c.b16 %v1907, %v1906
      %v2618 = vpack.c.b16 %v1909, %v1908
      %v2619 = vpack.c.b16 %v1911, %v1910
      %v2620 = vpack.c.b16 %v1913, %v1912
      %v2621 = vpack.c.b16 %v1915, %v1914
      %v2622 = vpack.c.b16 %v1917, %v1916
      %v2623 = vpack.c.b16 %v1919, %v1918
      %v2624 = vpack.c.b16 %v1921, %v1920
      %v2625 = vpack.c.b16 %v1923, %v1922
      %v2626 = vpack.c.b16 %v1925, %v1924
      %v2627 = vpack.c.b16 %v1927, %v1926
      %v2628 = vpack.c.b16 %v1929, %v1928
      %v2629 = vpack.c.b16 %v1931, %v1930
      %v2630 = vpack.c.b16 %v1933, %v1932
      %v2631 = vpack.c.b16 %v1935, %v1934
      %v2632 = vpack.c.b16 %v1937, %v1936
      %v2633 = vpack.c.b16 %v1939, %v1938
      %v2634 = vpack.c.b16 %v1941, %v1940
      %v2635 = vpack.c.b16 %v1943, %v1942
      %v2636 = vpack.c.b16 %v1945, %v1944
      %v2637 = vpack.c.b16 %v1947, %v1946
      %v2638 = vpack.c.b16 %v1949, %v1948
      %v2639 = vpack.c.b16 %v1951, %v1950
      %v2640 = vpack.c.b16 %v1953, %v1952
      %v2641 = vpack.c.b16 %v1955, %v1954
      %v2642 = vpack.c.b16 %v1957, %v1956
      %v2643 = vpack.c.b16 %v1959, %v1958
      %v2644 = vpack.c.b16 %v1961, %v1960
      %v2645 = vpack.c.b16 %v1963, %v1962
      %v2646 = vpack.c.b16 %v1965, %v1964
      %v2647 = vpack.c.b16 %v1967, %v1966
      %v2648 = vpack.c.b16 %v1969, %v1968
      %v2649 = vpack.c.b16 %v1971, %v1970
      %v2650 = vpack.c.b16 %v1973, %v1972
      %v2651 = vpack.c.b16 %v1975, %v1974
      %v2652 = vpack.c.b16 %v1977, %v1976
      %v2653 = vpack.c.b16 %v1979, %v1978
      %v2654 = vpack.c.b16 %v1981, %v1980
      %v2655 = vpack.c.b16 %v1983, %v1982
      %v2656 = vpack.c.b16 %v1985, %v1984
      %v2657 = vpack.c.b16 %v1987, %v1986
      %v2658 = vpack.c.b16 %v1989, %v1988
      %v2659 = vpack.c.b16 %v1991, %v1990
      %v2660 = vpack.c.b16 %v1993, %v1992
      %v2661 = vpack.c.b16 %v1995, %v1994
      %v2662 = vpack.c.b16 %v1997, %v1996
      %v2663 = vpack.c.b16 %v1999, %v1998
      %v2664 = vpack.c.b16 %v2001, %v2000
      %v2665 = vpack.c.b16 %v2003, %v2002
      %v2666 = vpack.c.b16 %v2005, %v2004
      %v2667 = vpack.c.b16 %v2007, %v2006
      %v2668 = vpack.c.b16 %v2009, %v2008
      %v2669 = vpack.c.b16 %v2011, %v2010
      %v2670 = vpack.c.b16 %v2013, %v2012
      %v2671 = vpack.c.b16 %v2015, %v2014
      %v2672 = vpack.c.b16 %v2017, %v2016
      %v2673 = vpack.c.b16 %v2019, %v2018
      %v2674 = vpack.c.b16 %v2021, %v2020
      %v2675 = vpack.c.b16 %v2023, %v2022
      %v2676 = vpack.c.b16 %v2025, %v2024
      %v2677 = vpack.c.b16 %v2027, %v2026
      %v2678 = vpack.c.b16 %v2029, %v2028
      %v2679 = vpack.c.b16 %v2031, %v2030
      %v2680 = vpack.c.b16 %v2033, %v2032
      %v2681 = vpack.c.b16 %v2035, %v2034
      %v2682 = vpack.c.b16 %v2037, %v2036
      %v2683 = vpack.c.b16 %v2039, %v2038
      %v2684 = vpack.c.b16 %v2041, %v2040
      %v2685 = vpack.c.b16 %v2043, %v2042
      %v2686 = vpack.c.b16 %v2045, %v2044
      %v2687 = vpack.c.b16 %v2047, %v2046
      %v2688 = vpack.c.b16 %v2049, %v2048
      %v2689 = vpack.c.b16 %v2051, %v2050
      %v2690 = vpack.c.b16 %v2053, %v2052
      %v2691 = vpack.c.b16 %v2055, %v2054
      %v2692 = vpack.c.b16 %v2057, %v2056
      %v2693 = vpack.c.b16 %v2059, %v2058
      %v2694 = vpack.c.b16 %v2061, %v2060
      %v2695 = vpack.c.b16 %v2063, %v2062
      %v2696 = vpack.c.b16 %v2065, %v2064
      %v2697 = vpack.c.b16 %v2067, %v2066
      %v2698 = vpack.c.b16 %v2069, %v2068
      %v2699 = vpack.c.b16 %v2071, %v2070
      %v2700 = vpack.c.b16 %v2073, %v2072
      %v2701 = vpack.c.b16 %v2075, %v2074
      %v2702 = vpack.c.b16 %v2077, %v2076
      %v2703 = vpack.c.b16 %v2079, %v2078
      %v2704 = vpack.c.b16 %v2081, %v2080
      %v2705 = vpack.c.b16 %v2083, %v2082
      %v2706 = vpack.c.b16 %v2085, %v2084
      %v2707 = vpack.c.b16 %v2087, %v2086
      %v2708 = vpack.c.b16 %v2089, %v2088
      %v2709 = vpack.c.b16 %v2091, %v2090
      %v2710 = vpack.c.b16 %v2093, %v2092
      %v2711 = vpack.c.b16 %v2095, %v2094
      %v2712 = vpack.c.b16 %v2097, %v2096
      %v2713 = vpack.c.b16 %v2099, %v2098
      %v2714 = vpack.c.b16 %v2101, %v2100
      %v2715 = vpack.c.b16 %v2103, %v2102
      %v2716 = vpack.c.b16 %v2105, %v2104
      %v2717 = vpack.c.b16 %v2107, %v2106
      %v2718 = vpack.c.b16 %v2109, %v2108
      %v2719 = vpack.c.b16 %v2111, %v2110
      %v2720 = vpack.c.b16 %v2113, %v2112
      %v2721 = vpack.c.b16 %v2115, %v2114
      %v2722 = vpack.c.b16 %v2117, %v2116
      %v2723 = vpack.c.b16 %v2119, %v2118
      %v2724 = vpack.c.b16 %v2121, %v2120
      %v2725 = vpack.c.b16 %v2123, %v2122
      %v2726 = vpack.c.b16 %v2125, %v2124
      %v2727 = vpack.c.b16 %v2127, %v2126
      %v2728 = vpack.c.b16 %v2129, %v2128
      %v2729 = vpack.c.b16 %v2131, %v2130
      %v2730 = vpack.c.b16 %v2133, %v2132
      %v2731 = vpack.c.b16 %v2135, %v2134
      %v2732 = vpack.c.b16 %v2137, %v2136
      %v2733 = vpack.c.b16 %v2139, %v2138
      %v2734 = vpack.c.b16 %v2141, %v2140
      %v2735 = vpack.c.b16 %v2143, %v2142
      %v2736 = vpack.c.b16 %v2145, %v2144
      %v2737 = vpack.c.b16 %v2147, %v2146
      %v2738 = vpack.c.b16 %v2149, %v2148
      %v2739 = vpack.c.b16 %v2151, %v2150
      %v2740 = vpack.c.b16 %v2153, %v2152
      %v2741 = vpack.c.b16 %v2155, %v2154
      %v2742 = vpack.c.b16 %v2157, %v2156
      %v2743 = vpack.c.b16 %v2159, %v2158
      %v2744 = vpack.c.b16 %v2161, %v2160
      %v2745 = vpack.c.b16 %v2163, %v2162
      %v2746 = vpack.c.b16 %v2165, %v2164
      %v2747 = vpack.c.b16 %v2167, %v2166
      %v2748 = vpack.c.b16 %v2169, %v2168
      %v2749 = vpack.c.b16 %v2171, %v2170
      %v2750 = vpack.c.b16 %v2173, %v2172
      %v2751 = vpack.c.b16 %v2175, %v2174
      %v2752 = vpack.c.b16 %v2177, %v2176
      %v2753 = vpack.c.b16 %v2179, %v2178
      %v2754 = vpack.c.b16 %v2181, %v2180
      %v2755 = vpack.c.b16 %v2183, %v2182
      %v2756 = vpack.c.b16 %v2185, %v2184
      %v2757 = vpack.c.b16 %v2187, %v2186
      %v2758 = vpack.c.b16 %v2189, %v2188
      %v2759 = vpack.c.b16 %v2191, %v2190
      %v2760 = vpack.c.b16 %v2193, %v2192
      %v2761 = vpack.c.b16 %v2195, %v2194
      %v2762 = vpack.c.b16 %v2197, %v2196
      %v2763 = vpack.c.b16 %v2199, %v2198
      %v2764 = vpack.c.b16 %v2201, %v2200
      %v2765 = vpack.c.b16 %v2203, %v2202
      %v2766 = vpack.c.b16 %v2205, %v2204
      %v2767 = vpack.c.b16 %v2207, %v2206
      %v2768 = vpack.c.b16 %v2209, %v2208
      %v2769 = vpack.c.b16 %v2211, %v2210
      %v2770 = vpack.c.b16 %v2213, %v2212
      %v2771 = vpack.c.b16 %v2215, %v2214
      %v2772 = vpack.c.b16 %v2217, %v2216
      %v2773 = vpack.c.b16 %v2219, %v2218
      %v2774 = vpack.c.b16 %v2221, %v2220
      %v2775 = vpack.c.b16 %v2223, %v2222
      %v2776 = vpack.c.b16 %v2225, %v2224
      %v2777 = vpack.c.b16 %v2227, %v2226
      %v2778 = vpack.c.b16 %v2229, %v2228
      %v2779 = vpack.c.b16 %v2231, %v2230
      %v2780 = vpack.c.b16 %v2233, %v2232
      %v2781 = vpack.c.b16 %v2235, %v2234
      %v2782 = vpack.c.b16 %v2237, %v2236
      %v2783 = vpack.c.b16 %v2239, %v2238
      %v2784 = vpack.c.b16 %v2241, %v2240
      %v2785 = vpack.c.b16 %v2243, %v2242
      %v2786 = vpack.c.b16 %v2245, %v2244
      %v2787 = vpack.c.b16 %v2247, %v2246
      %v2788 = vpack.c.b16 %v2249, %v2248
      %v2789 = vpack.c.b16 %v2251, %v2250
      %v2790 = vpack.c.b16 %v2253, %v2252
      %v2791 = vpack.c.b16 %v2255, %v2254
      %v2792 = vpack.c.b16 %v2257, %v2256
      %v2793 = vpack.c.b16 %v2259, %v2258
      %v2794 = vpack.c.b16 %v2261, %v2260
      %v2795 = vpack.c.b16 %v2263, %v2262
      %v2796 = vpack.c.b16 %v2265, %v2264
      %v2797 = vpack.c.b16 %v2267, %v2266
      %v2798 = vpack.c.b16 %v2269, %v2268
      %v2799 = vpack.c.b16 %v2271, %v2270
      %v2800 = vpack.c.b16 %v2273, %v2272
      %v2801 = vpack.c.b16 %v2275, %v2274
      %v2802 = vpack.c.b16 %v2277, %v2276
      %v2803 = vpack.c.b16 %v2279, %v2278
      %v2804 = vpack.c.b16 %v2281, %v2280
      %v2805 = vpack.c.b16 %v2283, %v2282
      %v2806 = vpack.c.b16 %v2285, %v2284
      %v2807 = vpack.c.b16 %v2287, %v2286
      %v2808 = vpack.c.b16 %v2289, %v2288
      %v2809 = vpack.c.b16 %v2291, %v2290
      %v2810 = vpack.c.b16 %v2293, %v2292
      %v2811 = vpack.c.b16 %v2295, %v2294
      %v2812 = vpack.c.b16 %v2297, %v2296
      %v2813 = vpack.c.b16 %v2299, %v2298
      %v2814 = vpack.c.b16 %v2301, %v2300
      %v2815 = vpack.c.b16 %v2303, %v2302
      %v2816 = vpack.c.b16 %v2305, %v2304
      %v2817 = vpack.c.b16 %v2307, %v2306
      %v2818 = vpack.c.b16 %v2309, %v2308
      %v2819 = vpack.c.b16 %v2311, %v2310
      %v2820 = vpack.c.b16 %v2313, %v2312
      %v2821 = vpack.c.b16 %v2315, %v2314
      %v2822 = vpack.c.b16 %v2317, %v2316
      %v2823 = vpack.c.b16 %v2319, %v2318
      %v2824 = vpack.c.b16 %v2321, %v2320
      %v2825 = vpack.c.b16 %v2323, %v2322
      %v2826 = vpack.c.b16 %v2325, %v2324
      %v2827 = vpack.c.b16 %v2327, %v2326
      %v2828 = vpack.c.b16 %v2329, %v2328
      %v2829 = vpack.c.b16 %v2331, %v2330
      %v2830 = vpack.c.b16 %v2333, %v2332
      %v2831 = vpack.c.b16 %v2335, %v2334
      %v2832 = vpack.c.b16 %v2337, %v2336
      %v2833 = vpack.c.b16 %v2339, %v2338
      %v2834 = vpack.c.b16 %v2341, %v2340
      %v2835 = vpack.c.b16 %v2343, %v2342
      %v2836 = vpack.c.b16 %v2345, %v2344
      %v2837 = vpack.c.b16 %v2347, %v2346
      %v2838 = vpack.c.b16 %v2349, %v2348
      %v2839 = vpack.c.b16 %v2351, %v2350
      %v2840 = vpack.c.b16 %v2353, %v2352
      %v2841 = vpack.c.b16 %v2355, %v2354
      %v2842 = vpack.c.b16 %v2357, %v2356
      %v2843 = vpack.c.b16 %v2359, %v2358
      %v2844 = vpack.c.b16 %v2361, %v2360
      %v2845 = vpack.c.b16 %v2363, %v2362
      %v2846 = vpack.c.b16 %v2365, %v2364
      %v2847 = vpack.c.b16 %v2367, %v2366
      %v2848 = vpack.c.b16 %v2369, %v2368
      %v2849 = vpack.c.b16 %v2371, %v2370
      %v2850 = vpack.c.b16 %v2373, %v2372
      %v2851 = vpack.c.b16 %v2375, %v2374
      %v2852 = vpack.c.b16 %v2377, %v2376
      %v2853 = vpack.c.b16 %v2379, %v2378
      %v2854 = vpack.c.b16 %v2381, %v2380
      %v2855 = vpack.c.b16 %v2383, %v2382
      %v2856 = vpack.c.b16 %v2385, %v2384
      %v2857 = vpack.c.b16 %v2387, %v2386
      %v2858 = vpack.c.b16 %v2389, %v2388
      %v2859 = vpack.c.b16 %v2391, %v2390
      %v2860 = vpack.c.b16 %v2393, %v2392
      %v2861 = vpack.c.b16 %v2395, %v2394
      %v2862 = vpack.c.b16 %v2397, %v2396
      %v2863 = vpack.c.b16 %v2399, %v2398
      %v2864 = vpack.c.b16 %v2401, %v2400
      %v2865 = vpack.c.b16 %v2403, %v2402
      %v2866 = vpack.c.b16 %v2405, %v2404
      %v2867 = vpack.c.b16 %v2407, %v2406
      %v2868 = vpack.c.b16 %v2409, %v2408
      %v2869 = vpack.c.b16 %v2411, %v2410
      %v2870 = vpack.c.b16 %v2413, %v2412
      %v2871 = vpack.c.b16 %v2415, %v2414
      %v2872 = vpack.c.b16 %v2417, %v2416
      %v2873 = vpack.c.b16 %v2419, %v2418
      %v2874 = vpack.c.b16 %v2421, %v2420
      %v2875 = vpack.c.b16 %v2423, %v2422
      %v2876 = vpack.c.b16 %v2425, %v2424
      %v2877 = vpack.c.b16 %v2427, %v2426
      %v2878 = vpack.c.b16 %v2429, %v2428
      %v2879 = vpack.c.b16 %v2431, %v2430
      %v2880 = vpack.c.b16 %v2433, %v2432
      %v2881 = vpack.c.b16 %v2435, %v2434
      %v2882 = vpack.c.b16 %v2437, %v2436
      %v2883 = vpack.c.b16 %v2439, %v2438
      %v2884 = vpack.c.b16 %v2441, %v2440
      %v2885 = vpack.c.b16 %v2443, %v2442
      %v2886 = vpack.c.b16 %v2445, %v2444
      %v2887 = vpack.c.b16 %v2447, %v2446
      %v2888 = vpack.c.b16 %v2449, %v2448
      %v2889 = vpack.c.b16 %v2451, %v2450
      %v2890 = vpack.c.b16 %v2453, %v2452
      %v2891 = vpack.c.b16 %v2455, %v2454
      %v2892 = vpack.c.b16 %v2457, %v2456
      %v2893 = vpack.c.b16 %v2459, %v2458
      %v2894 = vpack.c.b16 %v2461, %v2460
      %v2895 = vpack.c.b16 %v2463, %v2462
      %v2896 = vpack.c.b16 %v2465, %v2464
      %v2897 = vpack.c.b16 %v2467, %v2466
      %v2898 = vpack.c.b16 %v2469, %v2468
      %v2899 = vpack.c.b16 %v2471, %v2470
      %v2900 = vpack.c.b16 %v2473, %v2472
      %v2901 = vpack.c.b16 %v2475, %v2474
      %v2902 = vpack.c.b16 %v2477, %v2476
      %v2903 = vpack.c.b16 %v2479, %v2478
      %v2904 = vpack.c.b16 %v2481, %v2480
      %v2905 = vpack.c.b16 %v2483, %v2482
      %v2906 = vpack.c.b16 %v2485, %v2484
      %v2907 = vpack.c.b16 %v2487, %v2486
      %v2908 = vpack.c.b16 %v2489, %v2488
      %v2909 = vpack.c.b16 %v2491, %v2490
      %v2910 = vpack.c.b16 %v2493, %v2492
      %v2911 = vpack.c.b16 %v2495, %v2494
      %v2912 = vpack.c.b16 %v2497, %v2496
      %v2913 = vpack.c.b16 %v2499, %v2498
      %v2914 = vpack.c.b16 %v2501, %v2500
      %v2915 = vpack.c.b16 %v2503, %v2502
      %v2916 = vpack.c.b16 %v2505, %v2504
      %v2917 = vpack.c.b16 %v2507, %v2506
      %v2918 = vpack.c.b16 %v2509, %v2508
      %v2919 = vpack.c.b16 %v2511, %v2510
      %v2920 = vpack.c.b16 %v2513, %v2512
      %v2921 = vpack.c.b16 %v2515, %v2514
      %v2922 = vpack.c.b16 %v2517, %v2516
      %v2923 = vpack.c.b16 %v2519, %v2518
      %v2924 = vpack.c.b16 %v2521, %v2520
      %v2925 = vpack.c.b16 %v2523, %v2522
      %v2926 = vpack.c.b16 %v2525, %v2524
      %v2927 = vpack.c.b16 %v2527, %v2526
      %v2928 = vpack.c.b16 %v2529, %v2528
      %v2929 = vpack.c.b16 %v2531, %v2530
      %v2930 = vpack.c.b16 %v2533, %v2532
      %v2931 = vpack.c.b16 %v2535, %v2534
      %v2932 = vpack.c.b16 %v2537, %v2536
      %v2933 = vpack.c.b16 %v2539, %v2538
      %v2934 = vpack.c.b16 %v2541, %v2540
      %v2935 = vpack.c.b16 %v2543, %v2542
      %v2946 = vunpack.c.l.b16 %v959
      %v2947 = vunpack.c.l.b16 %v960
      %v2948 = vunpack.c.l.b16 %v961
      %v2949 = vunpack.c.l.b16 %v962
      %v2950 = vunpack.c.l.b16 %v963
      %v2951 = vunpack.c.l.b16 %v964
      %v2952 = vunpack.c.l.b16 %v965
      %v2953 = vunpack.c.l.b16 %v966
      %v2954 = vunpack.c.l.b16 %v967
      %v2955 = vunpack.c.l.b16 %v968
      %v2956 = vpack.c.b16 %v2947, %v2946
      %v2957 = vpack.c.b16 %v2949, %v2948
      %v2958 = vpack.c.b16 %v2951, %v2950
      %v2959 = vpack.c.b16 %v2953, %v2952
      %v2960 = vpack.c.b16 %v2955, %v2954
      %vm2965 = vcmask 613376
      %v2967 = vsel %vm2965, %v2544, 0
      %v2970 = vsel %vm2965, %v2545, 0
      %v2973 = vsel %vm2965, %v2546, 0
      %v2976 = vsel %vm2965, %v2547, 0
      %v2979 = vsel %vm2965, %v2548, 0
      %v2982 = vsel %vm2965, %v2549, 0
      %v2985 = vsel %vm2965, %v2550, 0
      %v2988 = vsel %vm2965, %v2551, 0
      %v2991 = vsel %vm2965, %v2552, 0
      %v2994 = vsel %vm2965, %v2553, 0
      %v2997 = vsel %vm2965, %v2554, 0
      %v3000 = vsel %vm2965, %v2555, 0
      %v3003 = vsel %vm2965, %v2556, 0
      %v3006 = vsel %vm2965, %v2557, 0
      %v3009 = vsel %vm2965, %v2558, 0
      %v3012 = vsel %vm2965, %v2559, 0
      %v3015 = vsel %vm2965, %v2560, 0
      %v3018 = vsel %vm2965, %v2561, 0
      %v3021 = vsel %vm2965, %v2562, 0
      %v3024 = vsel %vm2965, %v2563, 0
      %v3027 = vsel %vm2965, %v2564, 0
      %v3030 = vsel %vm2965, %v2565, 0
      %v3033 = vsel %vm2965, %v2566, 0
      %v3036 = vsel %vm2965, %v2567, 0
      %v3039 = vsel %vm2965, %v2568, 0
      %v3042 = vsel %vm2965, %v2569, 0
      %v3045 = vsel %vm2965, %v2570, 0
      %v3048 = vsel %vm2965, %v2571, 0
      %v3051 = vsel %vm2965, %v2572, 0
      %v3054 = vsel %vm2965, %v2573, 0
      %v3057 = vsel %vm2965, %v2574, 0
      %v3060 = vsel %vm2965, %v2575, 0
      %v3063 = vsel %vm2965, %v2576, 0
      %v3066 = vsel %vm2965, %v2577, 0
      %v3069 = vsel %vm2965, %v2578, 0
      %v3072 = vsel %vm2965, %v2579, 0
      %v3075 = vsel %vm2965, %v2580, 0
      %v3078 = vsel %vm2965, %v2581, 0
      %v3081 = vsel %vm2965, %v2582, 0
      %v3084 = vsel %vm2965, %v2583, 0
      %v3087 = vsel %vm2965, %v2584, 0
      %v3090 = vsel %vm2965, %v2585, 0
      %v3093 = vsel %vm2965, %v2586, 0
      %v3096 = vsel %vm2965, %v2587, 0
      %v3099 = vsel %vm2965, %v2588, 0
      %v3102 = vsel %vm2965, %v2589, 0
      %v3105 = vsel %vm2965, %v2590, 0
      %v3108 = vsel %vm2965, %v2591, 0
      %v3111 = vsel %vm2965, %v2592, 0
      %v3114 = vsel %vm2965, %v2593, 0
      %v3117 = vsel %vm2965, %v2594, 0
      %v3120 = vsel %vm2965, %v2595, 0
      %v3123 = vsel %vm2965, %v2596, 0
      %v3126 = vsel %vm2965, %v2597, 0
      %v3129 = vsel %vm2965, %v2598, 0
      %v3132 = vsel %vm2965, %v2599, 0
      %v3135 = vsel %vm2965, %v2600, 0
      %v3138 = vsel %vm2965, %v2601, 0
      %v3141 = vsel %vm2965, %v2602, 0
      %v3144 = vsel %vm2965, %v2603, 0
      %v3147 = vsel %vm2965, %v2604, 0
      %v3150 = vsel %vm2965, %v2605, 0
      %v3153 = vsel %vm2965, %v2606, 0
      %v3156 = vsel %vm2965, %v2607, 0
      %v3159 = vsel %vm2965, %v2608, 0
      %v3162 = vsel %vm2965, %v2609, 0
      %v3165 = vsel %vm2965, %v2610, 0
      %v3168 = vsel %vm2965, %v2611, 0
      %v3171 = vsel %vm2965, %v2612, 0
      %v3174 = vsel %vm2965, %v2613, 0
      %v3177 = vsel %vm2965, %v2614, 0
      %v3180 = vsel %vm2965, %v2615, 0
      %v3183 = vsel %vm2965, %v2616, 0
      %v3186 = vsel %vm2965, %v2617, 0
      %v3189 = vsel %vm2965, %v2618, 0
      %v3192 = vsel %vm2965, %v2619, 0
      %v3195 = vsel %vm2965, %v2620, 0
      %v3198 = vsel %vm2965, %v2621, 0
      %v3201 = vsel %vm2965, %v2622, 0
      %v3204 = vsel %vm2965, %v2623, 0
      %v3207 = vsel %vm2965, %v2624, 0
      %v3210 = vsel %vm2965, %v2625, 0
      %v3213 = vsel %vm2965, %v2626, 0
      %v3216 = vsel %vm2965, %v2627, 0
      %v3219 = vsel %vm2965, %v2628, 0
      %v3222 = vsel %vm2965, %v2629, 0
      %v3225 = vsel %vm2965, %v2630, 0
      %v3228 = vsel %vm2965, %v2631, 0
      %v3231 = vsel %vm2965, %v2632, 0
      %v3234 = vsel %vm2965, %v2633, 0
      %v3237 = vsel %vm2965, %v2634, 0
      %v3240 = vsel %vm2965, %v2635, 0
      %v3243 = vsel %vm2965, %v2636, 0
      %v3246 = vsel %vm2965, %v2637, 0
      %v3249 = vsel %vm2965, %v2638, 0
      %v3252 = vsel %vm2965, %v2639, 0
      %v3255 = vsel %vm2965, %v2640, 0
      %v3258 = vsel %vm2965, %v2641, 0
      %v3261 = vsel %vm2965, %v2642, 0
      %v3264 = vsel %vm2965, %v2643, 0
      %v3267 = vsel %vm2965, %v2644, 0
      %v3270 = vsel %vm2965, %v2645, 0
      %v3273 = vsel %vm2965, %v2646, 0
      %v3276 = vsel %vm2965, %v2647, 0
      %v3279 = vsel %vm2965, %v2648, 0
      %v3282 = vsel %vm2965, %v2649, 0
      %v3285 = vsel %vm2965, %v2650, 0
      %v3288 = vsel %vm2965, %v2651, 0
      %v3291 = vsel %vm2965, %v2652, 0
      %v3294 = vsel %vm2965, %v2653, 0
      %v3297 = vsel %vm2965, %v2654, 0
      %v3300 = vsel %vm2965, %v2655, 0
      %v3303 = vsel %vm2965, %v2656, 0
      %v3306 = vsel %vm2965, %v2657, 0
      %v3309 = vsel %vm2965, %v2658, 0
      %v3312 = vsel %vm2965, %v2659, 0
      %v3315 = vsel %vm2965, %v2660, 0
      %v3318 = vsel %vm2965, %v2661, 0
      %v3321 = vsel %vm2965, %v2662, 0
      %v3324 = vsel %vm2965, %v2663, 0
      %v3327 = vsel %vm2965, %v2664, 0
      %v3330 = vsel %vm2965, %v2665, 0
      %v3333 = vsel %vm2965, %v2666, 0
      %v3336 = vsel %vm2965, %v2667, 0
      %v3339 = vsel %vm2965, %v2668, 0
      %v3342 = vsel %vm2965, %v2669, 0
      %v3345 = vsel %vm2965, %v2670, 0
      %v3348 = vsel %vm2965, %v2671, 0
      %v3351 = vsel %vm2965, %v2672, 0
      %v3354 = vsel %vm2965, %v2673, 0
      %v3357 = vsel %vm2965, %v2674, 0
      %v3360 = vsel %vm2965, %v2675, 0
      %v3363 = vsel %vm2965, %v2676, 0
      %v3366 = vsel %vm2965, %v2677, 0
      %v3369 = vsel %vm2965, %v2678, 0
      %v3372 = vsel %vm2965, %v2679, 0
      %v3375 = vsel %vm2965, %v2680, 0
      %v3378 = vsel %vm2965, %v2681, 0
      %v3381 = vsel %vm2965, %v2682, 0
      %v3384 = vsel %vm2965, %v2683, 0
      %v3387 = vsel %vm2965, %v2684, 0
      %v3390 = vsel %vm2965, %v2685, 0
      %v3393 = vsel %vm2965, %v2686, 0
      %v3396 = vsel %vm2965, %v2687, 0
      %v3399 = vsel %vm2965, %v2688, 0
      %v3402 = vsel %vm2965, %v2689, 0
      %v3405 = vsel %vm2965, %v2690, 0
      %v3408 = vsel %vm2965, %v2691, 0
      %v3411 = vsel %vm2965, %v2692, 0
      %v3414 = vsel %vm2965, %v2693, 0
      %v3417 = vsel %vm2965, %v2694, 0
      %v3420 = vsel %vm2965, %v2695, 0
      %v3423 = vsel %vm2965, %v2696, 0
      %v3426 = vsel %vm2965, %v2697, 0
      %v3429 = vsel %vm2965, %v2698, 0
      %v3432 = vsel %vm2965, %v2699, 0
      %v3435 = vsel %vm2965, %v2700, 0
      %v3438 = vsel %vm2965, %v2701, 0
      %v3441 = vsel %vm2965, %v2702, 0
      %v3444 = vsel %vm2965, %v2703, 0
      %v3447 = vsel %vm2965, %v2704, 0
      %v3450 = vsel %vm2965, %v2705, 0
      %v3453 = vsel %vm2965, %v2706, 0
      %v3456 = vsel %vm2965, %v2707, 0
      %v3459 = vsel %vm2965, %v2708, 0
      %v3462 = vsel %vm2965, %v2709, 0
      %v3465 = vsel %vm2965, %v2710, 0
      %v3468 = vsel %vm2965, %v2711, 0
      %v3471 = vsel %vm2965, %v2712, 0
      %v3474 = vsel %vm2965, %v2713, 0
      %v3477 = vsel %vm2965, %v2714, 0
      %v3480 = vsel %vm2965, %v2715, 0
      %v3483 = vsel %vm2965, %v2716, 0
      %v3486 = vsel %vm2965, %v2717, 0
      %v3489 = vsel %vm2965, %v2718, 0
      %v3492 = vsel %vm2965, %v2719, 0
      %v3495 = vsel %vm2965, %v2720, 0
      %v3498 = vsel %vm2965, %v2721, 0
      %v3501 = vsel %vm2965, %v2722, 0
      %v3504 = vsel %vm2965, %v2723, 0
      %v3507 = vsel %vm2965, %v2724, 0
      %v3510 = vsel %vm2965, %v2725, 0
      %v3513 = vsel %vm2965, %v2726, 0
      %v3516 = vsel %vm2965, %v2727, 0
      %v3519 = vsel %vm2965, %v2728, 0
      %v3522 = vsel %vm2965, %v2729, 0
      %v3525 = vsel %vm2965, %v2730, 0
      %v3528 = vsel %vm2965, %v2731, 0
      %v3531 = vsel %vm2965, %v2732, 0
      %v3534 = vsel %vm2965, %v2733, 0
      %v3537 = vsel %vm2965, %v2734, 0
      %v3540 = vsel %vm2965, %v2735, 0
      %v3543 = vsel %vm2965, %v2736, 0
      %v3546 = vsel %vm2965, %v2737, 0
      %v3549 = vsel %vm2965, %v2738, 0
      %v3552 = vsel %vm2965, %v2739, 0
      %v3555 = vsel %vm2965, %v2740, 0
      %v3558 = vsel %vm2965, %v2741, 0
      %v3561 = vsel %vm2965, %v2742, 0
      %v3564 = vsel %vm2965, %v2743, 0
      %v3567 = vsel %vm2965, %v2744, 0
      %v3570 = vsel %vm2965, %v2745, 0
      %v3573 = vsel %vm2965, %v2746, 0
      %v3576 = vsel %vm2965, %v2747, 0
      %v3579 = vsel %vm2965, %v2748, 0
      %v3582 = vsel %vm2965, %v2749, 0
      %v3585 = vsel %vm2965, %v2750, 0
      %v3588 = vsel %vm2965, %v2751, 0
      %v3591 = vsel %vm2965, %v2752, 0
      %v3594 = vsel %vm2965, %v2753, 0
      %v3597 = vsel %vm2965, %v2754, 0
      %v3600 = vsel %vm2965, %v2755, 0
      %v3603 = vsel %vm2965, %v2756, 0
      %v3606 = vsel %vm2965, %v2757, 0
      %v3609 = vsel %vm2965, %v2758, 0
      %v3612 = vsel %vm2965, %v2759, 0
      %v3615 = vsel %vm2965, %v2760, 0
      %v3618 = vsel %vm2965, %v2761, 0
      %v3621 = vsel %vm2965, %v2762, 0
      %v3624 = vsel %vm2965, %v2763, 0
      %v3627 = vsel %vm2965, %v2764, 0
      %v3630 = vsel %vm2965, %v2765, 0
      %v3633 = vsel %vm2965, %v2766, 0
      %v3636 = vsel %vm2965, %v2767, 0
      %v3639 = vsel %vm2965, %v2768, 0
      %v3642 = vsel %vm2965, %v2769, 0
      %v3645 = vsel %vm2965, %v2770, 0
      %v3648 = vsel %vm2965, %v2771, 0
      %v3651 = vsel %vm2965, %v2772, 0
      %v3654 = vsel %vm2965, %v2773, 0
      %v3657 = vsel %vm2965, %v2774, 0
      %v3660 = vsel %vm2965, %v2775, 0
      %v3663 = vsel %vm2965, %v2776, 0
      %v3666 = vsel %vm2965, %v2777, 0
      %v3669 = vsel %vm2965, %v2778, 0
      %v3672 = vsel %vm2965, %v2779, 0
      %v3675 = vsel %vm2965, %v2780, 0
      %v3678 = vsel %vm2965, %v2781, 0
      %v3681 = vsel %vm2965, %v2782, 0
      %v3684 = vsel %vm2965, %v2783, 0
      %v3687 = vsel %vm2965, %v2784, 0
      %v3690 = vsel %vm2965, %v2785, 0
      %v3693 = vsel %vm2965, %v2786, 0
      %v3696 = vsel %vm2965, %v2787, 0
      %v3699 = vsel %vm2965, %v2788, 0
      %v3702 = vsel %vm2965, %v2789, 0
      %v3705 = vsel %vm2965, %v2790, 0
      %v3708 = vsel %vm2965, %v2791, 0
      %v3711 = vsel %vm2965, %v2792, 0
      %v3714 = vsel %vm2965, %v2793, 0
      %v3717 = vsel %vm2965, %v2794, 0
      %v3720 = vsel %vm2965, %v2795, 0
      %v3723 = vsel %vm2965, %v2796, 0
      %v3726 = vsel %vm2965, %v2797, 0
      %v3729 = vsel %vm2965, %v2798, 0
      %v3732 = vsel %vm2965, %v2799, 0
      %v3735 = vsel %vm2965, %v2800, 0
      %v3738 = vsel %vm2965, %v2801, 0
      %v3741 = vsel %vm2965, %v2802, 0
      %v3744 = vsel %vm2965, %v2803, 0
      %v3747 = vsel %vm2965, %v2804, 0
      %v3750 = vsel %vm2965, %v2805, 0
      %v3753 = vsel %vm2965, %v2806, 0
      %v3756 = vsel %vm2965, %v2807, 0
      %v3759 = vsel %vm2965, %v2808, 0
      %v3762 = vsel %vm2965, %v2809, 0
      %v3765 = vsel %vm2965, %v2810, 0
      %v3768 = vsel %vm2965, %v2811, 0
      %v3771 = vsel %vm2965, %v2812, 0
      %v3774 = vsel %vm2965, %v2813, 0
      %v3777 = vsel %vm2965, %v2814, 0
      %v3780 = vsel %vm2965, %v2815, 0
      %v3783 = vsel %vm2965, %v2816, 0
      %v3786 = vsel %vm2965, %v2817, 0
      %v3789 = vsel %vm2965, %v2818, 0
      %v3792 = vsel %vm2965, %v2819, 0
      %v3795 = vsel %vm2965, %v2820, 0
      %v3798 = vsel %vm2965, %v2821, 0
      %v3801 = vsel %vm2965, %v2822, 0
      %v3804 = vsel %vm2965, %v2823, 0
      %v3807 = vsel %vm2965, %v2824, 0
      %v3810 = vsel %vm2965, %v2825, 0
      %v3813 = vsel %vm2965, %v2826, 0
      %v3816 = vsel %vm2965, %v2827, 0
      %v3819 = vsel %vm2965, %v2828, 0
      %v3822 = vsel %vm2965, %v2829, 0
      %v3825 = vsel %vm2965, %v2830, 0
      %v3828 = vsel %vm2965, %v2831, 0
      %v3831 = vsel %vm2965, %v2832, 0
      %v3834 = vsel %vm2965, %v2833, 0
      %v3837 = vsel %vm2965, %v2834, 0
      %v3840 = vsel %vm2965, %v2835, 0
      %v3843 = vsel %vm2965, %v2836, 0
      %v3846 = vsel %vm2965, %v2837, 0
      %v3849 = vsel %vm2965, %v2838, 0
      %v3852 = vsel %vm2965, %v2839, 0
      %v3855 = vsel %vm2965, %v2840, 0
      %v3858 = vsel %vm2965, %v2841, 0
      %v3861 = vsel %vm2965, %v2842, 0
      %v3864 = vsel %vm2965, %v2843, 0
      %v3867 = vsel %vm2965, %v2844, 0
      %v3870 = vsel %vm2965, %v2845, 0
      %v3873 = vsel %vm2965, %v2846, 0
      %v3876 = vsel %vm2965, %v2847, 0
      %v3879 = vsel %vm2965, %v2848, 0
      %v3882 = vsel %vm2965, %v2849, 0
      %v3885 = vsel %vm2965, %v2850, 0
      %v3888 = vsel %vm2965, %v2851, 0
      %v3891 = vsel %vm2965, %v2852, 0
      %v3894 = vsel %vm2965, %v2853, 0
      %v3897 = vsel %vm2965, %v2854, 0
      %v3900 = vsel %vm2965, %v2855, 0
      %v3903 = vsel %vm2965, %v2856, 0
      %v3906 = vsel %vm2965, %v2857, 0
      %v3909 = vsel %vm2965, %v2858, 0
      %v3912 = vsel %vm2965, %v2859, 0
      %v3915 = vsel %vm2965, %v2860, 0
      %v3918 = vsel %vm2965, %v2861, 0
      %v3921 = vsel %vm2965, %v2862, 0
      %v3924 = vsel %vm2965, %v2863, 0
      %v3927 = vsel %vm2965, %v2864, 0
      %v3930 = vsel %vm2965, %v2865, 0
      %v3933 = vsel %vm2965, %v2866, 0
      %v3936 = vsel %vm2965, %v2867, 0
      %v3939 = vsel %vm2965, %v2868, 0
      %v3942 = vsel %vm2965, %v2869, 0
      %v3945 = vsel %vm2965, %v2870, 0
      %v3948 = vsel %vm2965, %v2871, 0
      %v3951 = vsel %vm2965, %v2872, 0
      %v3954 = vsel %vm2965, %v2873, 0
      %v3957 = vsel %vm2965, %v2874, 0
      %v3960 = vsel %vm2965, %v2875, 0
      %v3963 = vsel %vm2965, %v2876, 0
      %v3966 = vsel %vm2965, %v2877, 0
      %v3969 = vsel %vm2965, %v2878, 0
      %v3972 = vsel %vm2965, %v2879, 0
      %v3975 = vsel %vm2965, %v2880, 0
      %v3978 = vsel %vm2965, %v2881, 0
      %v3981 = vsel %vm2965, %v2882, 0
      %v3984 = vsel %vm2965, %v2883, 0
      %v3987 = vsel %vm2965, %v2884, 0
      %v3990 = vsel %vm2965, %v2885, 0
      %v3993 = vsel %vm2965, %v2886, 0
      %v3996 = vsel %vm2965, %v2887, 0
      %v3999 = vsel %vm2965, %v2888, 0
      %v4002 = vsel %vm2965, %v2889, 0
      %v4005 = vsel %vm2965, %v2890, 0
      %v4008 = vsel %vm2965, %v2891, 0
      %v4011 = vsel %vm2965, %v2892, 0
      %v4014 = vsel %vm2965, %v2893, 0
      %v4017 = vsel %vm2965, %v2894, 0
      %v4020 = vsel %vm2965, %v2895, 0
      %v4023 = vsel %vm2965, %v2896, 0
      %v4026 = vsel %vm2965, %v2897, 0
      %v4029 = vsel %vm2965, %v2898, 0
      %v4032 = vsel %vm2965, %v2899, 0
      %v4035 = vsel %vm2965, %v2900, 0
      %v4038 = vsel %vm2965, %v2901, 0
      %v4041 = vsel %vm2965, %v2902, 0
      %v4044 = vsel %vm2965, %v2903, 0
      %v4047 = vsel %vm2965, %v2904, 0
      %v4050 = vsel %vm2965, %v2905, 0
      %v4053 = vsel %vm2965, %v2906, 0
      %v4056 = vsel %vm2965, %v2907, 0
      %v4059 = vsel %vm2965, %v2908, 0
      %v4062 = vsel %vm2965, %v2909, 0
      %v4065 = vsel %vm2965, %v2910, 0
      %v4068 = vsel %vm2965, %v2911, 0
      %v4071 = vsel %vm2965, %v2912, 0
      %v4074 = vsel %vm2965, %v2913, 0
      %v4077 = vsel %vm2965, %v2914, 0
      %v4080 = vsel %vm2965, %v2915, 0
      %v4083 = vsel %vm2965, %v2916, 0
      %v4086 = vsel %vm2965, %v2917, 0
      %v4089 = vsel %vm2965, %v2918, 0
      %v4092 = vsel %vm2965, %v2919, 0
      %v4095 = vsel %vm2965, %v2920, 0
      %v4098 = vsel %vm2965, %v2921, 0
      %v4101 = vsel %vm2965, %v2922, 0
      %v4104 = vsel %vm2965, %v2923, 0
      %v4107 = vsel %vm2965, %v2924, 0
      %v4110 = vsel %vm2965, %v2925, 0
      %v4113 = vsel %vm2965, %v2926, 0
      %v4116 = vsel %vm2965, %v2927, 0
      %v4119 = vsel %vm2965, %v2928, 0
      %v4122 = vsel %vm2965, %v2929, 0
      %v4125 = vsel %vm2965, %v2930, 0
      %v4128 = vsel %vm2965, %v2931, 0
      %v4131 = vsel %vm2965, %v2932, 0
      %v4134 = vsel %vm2965, %v2933, 0
      %v4137 = vsel %vm2965, %v2934, 0
      %v4140 = vsel %vm2965, %v2935, 0
      %vm4142 = vcmask 1044480
      %vm4143 = vcmask 1045504
      %v4144 = vsel %vm4142, 4294967295, 65535
      %v4145 = vsel %vm4143, %v4144, 0
      %v4147 = vand.u32 %v2960, %v4145
      %4149 = vmatprep.subr.bf16.mxu0 0
      %4150 = vmatpush1.bf16.msra.mxu0 %v2956
      %4151 = vmatprep.subr.bf16.mxu0 0
      %4152 = vmatpush1.bf16.msra.mxu0 %v2957
      %4153 = vmatprep.subr.bf16.mxu0 0
      %4154 = vmatpush1.bf16.msra.mxu0 %v2958
      %4155 = vmatprep.subr.bf16.mxu0 0
      %4156 = vmatpush1.bf16.msra.mxu0 %v2959
      %4157 = vmatprep.subr.bf16.mxu0 0
      %4158 = vmatpush1.bf16.msra.mxu0 %v4147
      %4159 = vmatprep.subr.bf16.mxu0 0
      %4160 = vmatpush1.bf16.msra.mxu0 0
      %4161 = vmatprep.subr.bf16.mxu0 0
      %4162 = vmatpush1.bf16.msra.mxu0 0
      %4163 = vmatprep.subr.bf16.mxu0 0
      %4164 = vmatpush1.bf16.msra.mxu0 0
      %4165 = vmatprep.subr.bf16.mxu0 0
      %4166 = vmatpush1.bf16.msra.mxu0 0
      %4167 = vmatprep.subr.bf16.mxu0 0
      %4168 = vmatpush1.bf16.msra.mxu0 0
      %4169 = vmatprep.subr.bf16.mxu0 0
      %4170 = vmatpush1.bf16.msra.mxu0 0
      %4171 = vmatprep.subr.bf16.mxu0 0
      %4172 = vmatpush1.bf16.msra.mxu0 0
      %4173 = vmatprep.subr.bf16.mxu0 0
      %4174 = vmatpush1.bf16.msra.mxu0 0
      %4175 = vmatprep.subr.bf16.mxu0 0
      %4176 = vmatpush1.bf16.msra.mxu0 0
      %4177 = vmatprep.subr.bf16.mxu0 0
      %4178 = vmatpush1.bf16.msra.mxu0 0
      %4179 = vmatprep.subr.bf16.mxu0 0
      %4180 = vmatpush1.bf16.msra.mxu0 0
      %4181 = vmatprep.mubr.bf16.mxu0 0
      %4182 = vmatmul.mubr.bf16.gmra.mrb[0].mxu0 %v2967
      %v4183 = vpop.f32.mrb[0].mxu0
      %v4184 = vadd.f32 %v974, %v4183
      %v4185 = vpop.f32.mrb[0].mxu0
      %v4186 = vpop.f32.mrb[0].mxu0
      %v4187 = vadd.f32 %v974, %v4186
      %v4188 = vpop.f32.mrb[0].mxu0
      %4189 = vmatprep.mubr.bf16.mxu0 0
      %4190 = vmatmul.mubr.bf16.gmra.mrb[0].mxu0 %v2970
      %v4191 = vpop.f32.mrb[0].mxu0
      %v4192 = vadd.f32 %v974, %v4191
      %v4193 = vpop.f32.mrb[0].mxu0
      %v4194 = vpop.f32.mrb[0].mxu0
      %v4195 = vadd.f32 %v974, %v4194
      %v4196 = vpop.f32.mrb[0].mxu0
      %4197 = vmatprep.mubr.bf16.mxu0 0
      %4198 = vmatmul.mubr.bf16.gmra.mrb[0].mxu0 %v2973
      %v4199 = vpop.f32.mrb[0].mxu0
      %v4200 = vadd.f32 %v974, %v4199
      %v4201 = vpop.f32.mrb[0].mxu0
      %v4202 = vpop.f32.mrb[0].mxu0
      %v4203 = vadd.f32 %v974, %v4202
      %v4204 = vpop.f32.mrb[0].mxu0
      %4205 = vmatprep.mubr.bf16.mxu0 0
      %4206 = vmatmul.mubr.bf16.gmra.mrb[0].mxu0 %v2976
      %v4207 = vpop.f32.mrb[0].mxu0
      %v4208 = vadd.f32 %v974, %v4207
      %v4209 = vpop.f32.mrb[0].mxu0
      %v4210 = vpop.f32.mrb[0].mxu0
      %v4211 = vadd.f32 %v974, %v4210
      %v4212 = vpop.f32.mrb[0].mxu0
      %4213 = vmatprep.mubr.bf16.mxu0 0
      %4214 = vmatmul.mubr.bf16.gmra.mrb[0].mxu0 %v2979
      %v4215 = vpop.f32.mrb[0].mxu0
      %v4216 = vadd.f32 %v974, %v4215
      %v4217 = vpop.f32.mrb[0].mxu0
      %v4218 = vpop.f32.mrb[0].mxu0
      %v4219 = vadd.f32 %v974, %v4218
      %v4220 = vpop.f32.mrb[0].mxu0
      %4221 = vmatprep.mubr.bf16.mxu0 0
      %4222 = vmatmul.mubr.bf16.gmra.mrb[0].mxu0 %v2982
      %v4223 = vpop.f32.mrb[0].mxu0
      %v4224 = vadd.f32 %v974, %v4223
      %v4225 = vpop.f32.mrb[0].mxu0
      %v4226 = vpop.f32.mrb[0].mxu0
      %v4227 = vadd.f32 %v974, %v4226
      %v4228 = vpop.f32.mrb[0].mxu0
      %4229 = vmatprep.mubr.bf16.mxu0 0
      %4230 = vmatmul.mubr.bf16.gmra.mrb[0].mxu0 %v2985
      %v4231 = vpop.f32.mrb[0].mxu0
      %v4232 = vadd.f32 %v974, %v4231
      %v4233 = vpop.f32.mrb[0].mxu0
      %v4234 = vpop.f32.mrb[0].mxu0
      %v4235 = vadd.f32 %v974, %v4234
      %v4236 = vpop.f32.mrb[0].mxu0
      %4237 = vmatprep.mubr.bf16.mxu0 0
      %4238 = vmatmul.mubr.bf16.gmra.mrb[0].mxu0 %v2988
      %v4239 = vpop.f32.mrb[0].mxu0
      %v4240 = vadd.f32 %v974, %v4239
      %v4241 = vpop.f32.mrb[0].mxu0
      %v4242 = vpop.f32.mrb[0].mxu0
      %v4243 = vadd.f32 %v974, %v4242
      %v4244 = vpop.f32.mrb[0].mxu0
      %4245 = vmatprep.mubr.bf16.mxu0 0
      %4246 = vmatmul.mubr.bf16.gmra.mrb[0].mxu0 %v2991
      %v4247 = vpop.f32.mrb[0].mxu0
      %v4248 = vadd.f32 %v974, %v4247
      %v4249 = vpop.f32.mrb[0].mxu0
      %v4250 = vpop.f32.mrb[0].mxu0
      %v4251 = vadd.f32 %v974, %v4250
      %v4252 = vpop.f32.mrb[0].mxu0
      %4253 = vmatprep.mubr.bf16.mxu0 0
      %4254 = vmatmul.mubr.bf16.gmra.mrb[0].mxu0 %v2994
      %v4255 = vpop.f32.mrb[0].mxu0
      %v4256 = vadd.f32 %v974, %v4255
      %v4257 = vpop.f32.mrb[0].mxu0
      %v4258 = vpop.f32.mrb[0].mxu0
      %v4259 = vadd.f32 %v974, %v4258
      %v4260 = vpop.f32.mrb[0].mxu0
      %4261 = vmatprep.mubr.bf16.mxu0 0
      %4262 = vmatmul.mubr.bf16.gmra.mrb[0].mxu0 %v2997
      %v4263 = vpop.f32.mrb[0].mxu0
      %v4264 = vadd.f32 %v974, %v4263
      %v4265 = vpop.f32.mrb[0].mxu0
      %v4266 = vpop.f32.mrb[0].mxu0
      %v4267 = vadd.f32 %v974, %v4266
      %v4268 = vpop.f32.mrb[0].mxu0
      %4269 = vmatprep.mubr.bf16.mxu0 0
      %4270 = vmatmul.mubr.bf16.gmra.mrb[0].mxu0 %v3000
      %v4271 = vpop.f32.mrb[0].mxu0
      %v4272 = vadd.f32 %v974, %v4271
      %v4273 = vpop.f32.mrb[0].mxu0
      %v4274 = vpop.f32.mrb[0].mxu0
      %v4275 = vadd.f32 %v974, %v4274
      %v4276 = vpop.f32.mrb[0].mxu0
      %4277 = vmatprep.mubr.bf16.mxu0 0
      %4278 = vmatmul.mubr.bf16.gmra.mrb[0].mxu0 %v3003
      %v4279 = vpop.f32.mrb[0].mxu0
      %v4280 = vadd.f32 %v974, %v4279
      %v4281 = vpop.f32.mrb[0].mxu0
      %v4282 = vpop.f32.mrb[0].mxu0
      %v4283 = vadd.f32 %v974, %v4282
      %v4284 = vpop.f32.mrb[0].mxu0
      %4285 = vmatprep.mubr.bf16.mxu0 0
      %4286 = vmatmul.mubr.bf16.gmra.mrb[0].mxu0 %v3006
      %v4287 = vpop.f32.mrb[0].mxu0
      %v4288 = vadd.f32 %v974, %v4287
      %v4289 = vpop.f32.mrb[0].mxu0
      %v4290 = vpop.f32.mrb[0].mxu0
      %v4291 = vadd.f32 %v974, %v4290
      %v4292 = vpop.f32.mrb[0].mxu0
      %4293 = vmatprep.mubr.bf16.mxu0 0
      %4294 = vmatmul.mubr.bf16.gmra.mrb[0].mxu0 %v3009
      %v4295 = vpop.f32.mrb[0].mxu0
      %v4296 = vadd.f32 %v974, %v4295
      %v4297 = vpop.f32.mrb[0].mxu0
      %v4298 = vpop.f32.mrb[0].mxu0
      %v4299 = vadd.f32 %v974, %v4298
      %v4300 = vpop.f32.mrb[0].mxu0
      %4301 = vmatprep.mubr.bf16.mxu0 0
      %4302 = vmatmul.mubr.bf16.gmra.mrb[0].mxu0 %v3012
      %v4303 = vpop.f32.mrb[0].mxu0
      %v4304 = vadd.f32 %v974, %v4303
      %v4305 = vpop.f32.mrb[0].mxu0
      %v4306 = vpop.f32.mrb[0].mxu0
      %v4307 = vadd.f32 %v974, %v4306
      %v4308 = vpop.f32.mrb[0].mxu0
      %4309 = vmatprep.mubr.bf16.mxu0 0
      %4310 = vmatmul.mubr.bf16.gmra.mrb[0].mxu0 %v3015
      %v4311 = vpop.f32.mrb[0].mxu0
      %v4312 = vadd.f32 %v974, %v4311
      %v4313 = vpop.f32.mrb[0].mxu0
      %v4314 = vpop.f32.mrb[0].mxu0
      %v4315 = vadd.f32 %v974, %v4314
      %v4316 = vpop.f32.mrb[0].mxu0
      %4317 = vmatprep.mubr.bf16.mxu0 0
      %4318 = vmatmul.mubr.bf16.gmra.mrb[0].mxu0 %v3018
      %v4319 = vpop.f32.mrb[0].mxu0
      %v4320 = vadd.f32 %v974, %v4319
      %v4321 = vpop.f32.mrb[0].mxu0
      %v4322 = vpop.f32.mrb[0].mxu0
      %v4323 = vadd.f32 %v974, %v4322
      %v4324 = vpop.f32.mrb[0].mxu0
      %4325 = vmatprep.mubr.bf16.mxu0 0
      %4326 = vmatmul.mubr.bf16.gmra.mrb[0].mxu0 %v3021
      %v4327 = vpop.f32.mrb[0].mxu0
      %v4328 = vadd.f32 %v974, %v4327
      %v4329 = vpop.f32.mrb[0].mxu0
      %v4330 = vpop.f32.mrb[0].mxu0
      %v4331 = vadd.f32 %v974, %v4330
      %v4332 = vpop.f32.mrb[0].mxu0
      %4333 = vmatprep.mubr.bf16.mxu0 0
      %4334 = vmatmul.mubr.bf16.gmra.mrb[0].mxu0 %v3024
      %v4335 = vpop.f32.mrb[0].mxu0
      %v4336 = vadd.f32 %v974, %v4335
      %v4337 = vpop.f32.mrb[0].mxu0
      %v4338 = vpop.f32.mrb[0].mxu0
      %v4339 = vadd.f32 %v974, %v4338
      %v4340 = vpop.f32.mrb[0].mxu0
      %4341 = vmatprep.mubr.bf16.mxu0 0
      %4342 = vmatmul.mubr.bf16.gmra.mrb[0].mxu0 %v3027
      %v4343 = vpop.f32.mrb[0].mxu0
      %v4344 = vadd.f32 %v974, %v4343
      %v4345 = vpop.f32.mrb[0].mxu0
      %v4346 = vpop.f32.mrb[0].mxu0
      %v4347 = vadd.f32 %v974, %v4346
      %v4348 = vpop.f32.mrb[0].mxu0
      %4349 = vmatprep.mubr.bf16.mxu0 0
      %4350 = vmatmul.mubr.bf16.gmra.mrb[0].mxu0 %v3030
      %v4351 = vpop.f32.mrb[0].mxu0
      %v4352 = vadd.f32 %v974, %v4351
      %v4353 = vpop.f32.mrb[0].mxu0
      %v4354 = vpop.f32.mrb[0].mxu0
      %v4355 = vadd.f32 %v974, %v4354
      %v4356 = vpop.f32.mrb[0].mxu0
      %4357 = vmatprep.mubr.bf16.mxu0 0
      %4358 = vmatmul.mubr.bf16.gmra.mrb[0].mxu0 %v3033
      %v4359 = vpop.f32.mrb[0].mxu0
      %v4360 = vadd.f32 %v974, %v4359
      %v4361 = vpop.f32.mrb[0].mxu0
      %v4362 = vpop.f32.mrb[0].mxu0
      %v4363 = vadd.f32 %v974, %v4362
      %v4364 = vpop.f32.mrb[0].mxu0
      %4365 = vmatprep.mubr.bf16.mxu0 0
      %4366 = vmatmul.mubr.bf16.gmra.mrb[0].mxu0 %v3036
      %v4367 = vpop.f32.mrb[0].mxu0
      %v4368 = vadd.f32 %v974, %v4367
      %v4369 = vpop.f32.mrb[0].mxu0
      %v4370 = vpop.f32.mrb[0].mxu0
      %v4371 = vadd.f32 %v974, %v4370
      %v4372 = vpop.f32.mrb[0].mxu0
      %4373 = vmatprep.mubr.bf16.mxu0 0
      %4374 = vmatmul.mubr.bf16.gmra.mrb[0].mxu0 %v3039
      %v4375 = vpop.f32.mrb[0].mxu0
      %v4376 = vadd.f32 %v974, %v4375
      %v4377 = vpop.f32.mrb[0].mxu0
      %v4378 = vpop.f32.mrb[0].mxu0
      %v4379 = vadd.f32 %v974, %v4378
      %v4380 = vpop.f32.mrb[0].mxu0
      %4381 = vmatprep.mubr.bf16.mxu0 0
      %4382 = vmatmul.mubr.bf16.gmra.mrb[0].mxu0 %v3042
      %v4383 = vpop.f32.mrb[0].mxu0
      %v4384 = vadd.f32 %v974, %v4383
      %v4385 = vpop.f32.mrb[0].mxu0
      %v4386 = vpop.f32.mrb[0].mxu0
      %v4387 = vadd.f32 %v974, %v4386
      %v4388 = vpop.f32.mrb[0].mxu0
      %4389 = vmatprep.mubr.bf16.mxu0 0
      %4390 = vmatmul.mubr.bf16.gmra.mrb[0].mxu0 %v3045
      %v4391 = vpop.f32.mrb[0].mxu0
      %v4392 = vadd.f32 %v974, %v4391
      %v4393 = vpop.f32.mrb[0].mxu0
      %v4394 = vpop.f32.mrb[0].mxu0
      %v4395 = vadd.f32 %v974, %v4394
      %v4396 = vpop.f32.mrb[0].mxu0
      %4397 = vmatprep.mubr.bf16.mxu0 0
      %4398 = vmatmul.mubr.bf16.gmra.mrb[0].mxu0 %v3048
      %v4399 = vpop.f32.mrb[0].mxu0
      %v4400 = vadd.f32 %v974, %v4399
      %v4401 = vpop.f32.mrb[0].mxu0
      %v4402 = vpop.f32.mrb[0].mxu0
      %v4403 = vadd.f32 %v974, %v4402
      %v4404 = vpop.f32.mrb[0].mxu0
      %4405 = vmatprep.mubr.bf16.mxu0 0
      %4406 = vmatmul.mubr.bf16.gmra.mrb[0].mxu0 %v3051
      %v4407 = vpop.f32.mrb[0].mxu0
      %v4408 = vadd.f32 %v974, %v4407
      %v4409 = vpop.f32.mrb[0].mxu0
      %v4410 = vpop.f32.mrb[0].mxu0
      %v4411 = vadd.f32 %v974, %v4410
      %v4412 = vpop.f32.mrb[0].mxu0
      %4413 = vmatprep.mubr.bf16.mxu0 0
      %4414 = vmatmul.mubr.bf16.gmra.mrb[0].mxu0 %v3054
      %v4415 = vpop.f32.mrb[0].mxu0
      %v4416 = vadd.f32 %v974, %v4415
      %v4417 = vpop.f32.mrb[0].mxu0
      %v4418 = vpop.f32.mrb[0].mxu0
      %v4419 = vadd.f32 %v974, %v4418
      %v4420 = vpop.f32.mrb[0].mxu0
      %4421 = vmatprep.mubr.bf16.mxu0 0
      %4422 = vmatmul.mubr.bf16.gmra.mrb[0].mxu0 %v3057
      %v4423 = vpop.f32.mrb[0].mxu0
      %v4424 = vadd.f32 %v974, %v4423
      %v4425 = vpop.f32.mrb[0].mxu0
      %v4426 = vpop.f32.mrb[0].mxu0
      %v4427 = vadd.f32 %v974, %v4426
      %v4428 = vpop.f32.mrb[0].mxu0
      %4429 = vmatprep.mubr.bf16.mxu0 0
      %4430 = vmatmul.mubr.bf16.gmra.mrb[0].mxu0 %v3060
      %v4431 = vpop.f32.mrb[0].mxu0
      %v4432 = vadd.f32 %v974, %v4431
      %v4433 = vpop.f32.mrb[0].mxu0
      %v4434 = vpop.f32.mrb[0].mxu0
      %v4435 = vadd.f32 %v974, %v4434
      %v4436 = vpop.f32.mrb[0].mxu0
      %4437 = vmatprep.mubr.bf16.mxu0 0
      %4438 = vmatmul.mubr.bf16.gmra.mrb[0].mxu0 %v3063
      %v4439 = vpop.f32.mrb[0].mxu0
      %v4440 = vadd.f32 %v974, %v4439
      %v4441 = vpop.f32.mrb[0].mxu0
      %v4442 = vpop.f32.mrb[0].mxu0
      %v4443 = vadd.f32 %v974, %v4442
      %v4444 = vpop.f32.mrb[0].mxu0
      %4445 = vmatprep.mubr.bf16.mxu0 0
      %4446 = vmatmul.mubr.bf16.gmra.mrb[0].mxu0 %v3066
      %v4447 = vpop.f32.mrb[0].mxu0
      %v4448 = vadd.f32 %v974, %v4447
      %v4449 = vpop.f32.mrb[0].mxu0
      %v4450 = vpop.f32.mrb[0].mxu0
      %v4451 = vadd.f32 %v974, %v4450
      %v4452 = vpop.f32.mrb[0].mxu0
      %4453 = vmatprep.mubr.bf16.mxu0 0
      %4454 = vmatmul.mubr.bf16.gmra.mrb[0].mxu0 %v3069
      %v4455 = vpop.f32.mrb[0].mxu0
      %v4456 = vadd.f32 %v974, %v4455
      %v4457 = vpop.f32.mrb[0].mxu0
      %v4458 = vpop.f32.mrb[0].mxu0
      %v4459 = vadd.f32 %v974, %v4458
      %v4460 = vpop.f32.mrb[0].mxu0
      %4461 = vmatprep.mubr.bf16.mxu0 0
      %4462 = vmatmul.mubr.bf16.gmra.mrb[0].mxu0 %v3072
      %v4463 = vpop.f32.mrb[0].mxu0
      %v4464 = vadd.f32 %v974, %v4463
      %v4465 = vpop.f32.mrb[0].mxu0
      %v4466 = vpop.f32.mrb[0].mxu0
      %v4467 = vadd.f32 %v974, %v4466
      %v4468 = vpop.f32.mrb[0].mxu0
      %4469 = vmatprep.mubr.bf16.mxu0 0
      %4470 = vmatmul.mubr.bf16.gmra.mrb[0].mxu0 %v3075
      %v4471 = vpop.f32.mrb[0].mxu0
      %v4472 = vadd.f32 %v974, %v4471
      %v4473 = vpop.f32.mrb[0].mxu0
      %v4474 = vpop.f32.mrb[0].mxu0
      %v4475 = vadd.f32 %v974, %v4474
      %v4476 = vpop.f32.mrb[0].mxu0
      %4477 = vmatprep.mubr.bf16.mxu0 0
      %4478 = vmatmul.mubr.bf16.gmra.mrb[0].mxu0 %v3078
      %v4479 = vpop.f32.mrb[0].mxu0
      %v4480 = vadd.f32 %v974, %v4479
      %v4481 = vpop.f32.mrb[0].mxu0
      %v4482 = vpop.f32.mrb[0].mxu0
      %v4483 = vadd.f32 %v974, %v4482
      %v4484 = vpop.f32.mrb[0].mxu0
      %4485 = vmatprep.mubr.bf16.mxu0 0
      %4486 = vmatmul.mubr.bf16.gmra.mrb[0].mxu0 %v3081
      %v4487 = vpop.f32.mrb[0].mxu0
      %v4488 = vadd.f32 %v974, %v4487
      %v4489 = vpop.f32.mrb[0].mxu0
      %v4490 = vpop.f32.mrb[0].mxu0
      %v4491 = vadd.f32 %v974, %v4490
      %v4492 = vpop.f32.mrb[0].mxu0
      %4493 = vmatprep.mubr.bf16.mxu0 0
      %4494 = vmatmul.mubr.bf16.gmra.mrb[0].mxu0 %v3084
      %v4495 = vpop.f32.mrb[0].mxu0
      %v4496 = vadd.f32 %v974, %v4495
      %v4497 = vpop.f32.mrb[0].mxu0
      %v4498 = vpop.f32.mrb[0].mxu0
      %v4499 = vadd.f32 %v974, %v4498
      %v4500 = vpop.f32.mrb[0].mxu0
      %4501 = vmatprep.mubr.bf16.mxu0 0
      %4502 = vmatmul.mubr.bf16.gmra.mrb[0].mxu0 %v3087
      %v4503 = vpop.f32.mrb[0].mxu0
      %v4504 = vadd.f32 %v974, %v4503
      %v4505 = vpop.f32.mrb[0].mxu0
      %v4506 = vpop.f32.mrb[0].mxu0
      %v4507 = vadd.f32 %v974, %v4506
      %v4508 = vpop.f32.mrb[0].mxu0
      %4509 = vmatprep.mubr.bf16.mxu0 0
      %4510 = vmatmul.mubr.bf16.gmra.mrb[0].mxu0 %v3090
      %v4511 = vpop.f32.mrb[0].mxu0
      %v4512 = vadd.f32 %v974, %v4511
      %v4513 = vpop.f32.mrb[0].mxu0
      %v4514 = vpop.f32.mrb[0].mxu0
      %v4515 = vadd.f32 %v974, %v4514
      %v4516 = vpop.f32.mrb[0].mxu0
      %4517 = vmatprep.mubr.bf16.mxu0 0
      %4518 = vmatmul.mubr.bf16.gmra.mrb[0].mxu0 %v3093
      %v4519 = vpop.f32.mrb[0].mxu0
      %v4520 = vadd.f32 %v974, %v4519
      %v4521 = vpop.f32.mrb[0].mxu0
      %v4522 = vpop.f32.mrb[0].mxu0
      %v4523 = vadd.f32 %v974, %v4522
      %v4524 = vpop.f32.mrb[0].mxu0
      %4525 = vmatprep.mubr.bf16.mxu0 0
      %4526 = vmatmul.mubr.bf16.gmra.mrb[0].mxu0 %v3096
      %v4527 = vpop.f32.mrb[0].mxu0
      %v4528 = vadd.f32 %v974, %v4527
      %v4529 = vpop.f32.mrb[0].mxu0
      %v4530 = vpop.f32.mrb[0].mxu0
      %v4531 = vadd.f32 %v974, %v4530
      %v4532 = vpop.f32.mrb[0].mxu0
      %4533 = vmatprep.mubr.bf16.mxu0 0
      %4534 = vmatmul.mubr.bf16.gmra.mrb[0].mxu0 %v3099
      %v4535 = vpop.f32.mrb[0].mxu0
      %v4536 = vadd.f32 %v974, %v4535
      %v4537 = vpop.f32.mrb[0].mxu0
      %v4538 = vpop.f32.mrb[0].mxu0
      %v4539 = vadd.f32 %v974, %v4538
      %v4540 = vpop.f32.mrb[0].mxu0
      %4541 = vmatprep.mubr.bf16.mxu0 0
      %4542 = vmatmul.mubr.bf16.gmra.mrb[0].mxu0 %v3102
      %v4543 = vpop.f32.mrb[0].mxu0
      %v4544 = vadd.f32 %v974, %v4543
      %v4545 = vpop.f32.mrb[0].mxu0
      %v4546 = vpop.f32.mrb[0].mxu0
      %v4547 = vadd.f32 %v974, %v4546
      %v4548 = vpop.f32.mrb[0].mxu0
      %4549 = vmatprep.mubr.bf16.mxu0 0
      %4550 = vmatmul.mubr.bf16.gmra.mrb[0].mxu0 %v3105
      %v4551 = vpop.f32.mrb[0].mxu0
      %v4552 = vadd.f32 %v974, %v4551
      %v4553 = vpop.f32.mrb[0].mxu0
      %v4554 = vpop.f32.mrb[0].mxu0
      %v4555 = vadd.f32 %v974, %v4554
      %v4556 = vpop.f32.mrb[0].mxu0
      %4557 = vmatprep.mubr.bf16.mxu0 0
      %4558 = vmatmul.mubr.bf16.gmra.mrb[0].mxu0 %v3108
      %v4559 = vpop.f32.mrb[0].mxu0
      %v4560 = vadd.f32 %v974, %v4559
      %v4561 = vpop.f32.mrb[0].mxu0
      %v4562 = vpop.f32.mrb[0].mxu0
      %v4563 = vadd.f32 %v974, %v4562
      %v4564 = vpop.f32.mrb[0].mxu0
      %4565 = vmatprep.mubr.bf16.mxu0 0
      %4566 = vmatmul.mubr.bf16.gmra.mrb[0].mxu0 %v3111
      %v4567 = vpop.f32.mrb[0].mxu0
      %v4568 = vadd.f32 %v974, %v4567
      %v4569 = vpop.f32.mrb[0].mxu0
      %v4570 = vpop.f32.mrb[0].mxu0
      %v4571 = vadd.f32 %v974, %v4570
      %v4572 = vpop.f32.mrb[0].mxu0
      %4573 = vmatprep.mubr.bf16.mxu0 0
      %4574 = vmatmul.mubr.bf16.gmra.mrb[0].mxu0 %v3114
      %v4575 = vpop.f32.mrb[0].mxu0
      %v4576 = vadd.f32 %v974, %v4575
      %v4577 = vpop.f32.mrb[0].mxu0
      %v4578 = vpop.f32.mrb[0].mxu0
      %v4579 = vadd.f32 %v974, %v4578
      %v4580 = vpop.f32.mrb[0].mxu0
      %4581 = vmatprep.mubr.bf16.mxu0 0
      %4582 = vmatmul.mubr.bf16.gmra.mrb[0].mxu0 %v3117
      %v4583 = vpop.f32.mrb[0].mxu0
      %v4584 = vadd.f32 %v974, %v4583
      %v4585 = vpop.f32.mrb[0].mxu0
      %v4586 = vpop.f32.mrb[0].mxu0
      %v4587 = vadd.f32 %v974, %v4586
      %v4588 = vpop.f32.mrb[0].mxu0
      %4589 = vmatprep.mubr.bf16.mxu0 0
      %4590 = vmatmul.mubr.bf16.gmra.mrb[0].mxu0 %v3120
      %v4591 = vpop.f32.mrb[0].mxu0
      %v4592 = vadd.f32 %v974, %v4591
      %v4593 = vpop.f32.mrb[0].mxu0
      %v4594 = vpop.f32.mrb[0].mxu0
      %v4595 = vadd.f32 %v974, %v4594
      %v4596 = vpop.f32.mrb[0].mxu0
      %4597 = vmatprep.mubr.bf16.mxu0 0
      %4598 = vmatmul.mubr.bf16.gmra.mrb[0].mxu0 %v3123
      %v4599 = vpop.f32.mrb[0].mxu0
      %v4600 = vadd.f32 %v974, %v4599
      %v4601 = vpop.f32.mrb[0].mxu0
      %v4602 = vpop.f32.mrb[0].mxu0
      %v4603 = vadd.f32 %v974, %v4602
      %v4604 = vpop.f32.mrb[0].mxu0
      %4605 = vmatprep.mubr.bf16.mxu0 0
      %4606 = vmatmul.mubr.bf16.gmra.mrb[0].mxu0 %v3126
      %v4607 = vpop.f32.mrb[0].mxu0
      %v4608 = vadd.f32 %v974, %v4607
      %v4609 = vpop.f32.mrb[0].mxu0
      %v4610 = vpop.f32.mrb[0].mxu0
      %v4611 = vadd.f32 %v974, %v4610
      %v4612 = vpop.f32.mrb[0].mxu0
      %4613 = vmatprep.mubr.bf16.mxu0 0
      %4614 = vmatmul.mubr.bf16.gmra.mrb[0].mxu0 %v3129
      %v4615 = vpop.f32.mrb[0].mxu0
      %v4616 = vadd.f32 %v974, %v4615
      %v4617 = vpop.f32.mrb[0].mxu0
      %v4618 = vpop.f32.mrb[0].mxu0
      %v4619 = vadd.f32 %v974, %v4618
      %v4620 = vpop.f32.mrb[0].mxu0
      %4621 = vmatprep.mubr.bf16.mxu0 0
      %4622 = vmatmul.mubr.bf16.gmra.mrb[0].mxu0 %v3132
      %v4623 = vpop.f32.mrb[0].mxu0
      %v4624 = vadd.f32 %v974, %v4623
      %v4625 = vpop.f32.mrb[0].mxu0
      %v4626 = vpop.f32.mrb[0].mxu0
      %v4627 = vadd.f32 %v974, %v4626
      %v4628 = vpop.f32.mrb[0].mxu0
      %4629 = vmatprep.mubr.bf16.mxu0 0
      %4630 = vmatmul.mubr.bf16.gmra.mrb[0].mxu0 %v3135
      %v4631 = vpop.f32.mrb[0].mxu0
      %v4632 = vadd.f32 %v974, %v4631
      %v4633 = vpop.f32.mrb[0].mxu0
      %v4634 = vpop.f32.mrb[0].mxu0
      %v4635 = vadd.f32 %v974, %v4634
      %v4636 = vpop.f32.mrb[0].mxu0
      %4637 = vmatprep.mubr.bf16.mxu0 0
      %4638 = vmatmul.mubr.bf16.gmra.mrb[0].mxu0 %v3138
      %v4639 = vpop.f32.mrb[0].mxu0
      %v4640 = vadd.f32 %v974, %v4639
      %v4641 = vpop.f32.mrb[0].mxu0
      %v4642 = vpop.f32.mrb[0].mxu0
      %v4643 = vadd.f32 %v974, %v4642
      %v4644 = vpop.f32.mrb[0].mxu0
      %4645 = vmatprep.mubr.bf16.mxu0 0
      %4646 = vmatmul.mubr.bf16.gmra.mrb[0].mxu0 %v3141
      %v4647 = vpop.f32.mrb[0].mxu0
      %v4648 = vadd.f32 %v974, %v4647
      %v4649 = vpop.f32.mrb[0].mxu0
      %v4650 = vpop.f32.mrb[0].mxu0
      %v4651 = vadd.f32 %v974, %v4650
      %v4652 = vpop.f32.mrb[0].mxu0
      %4653 = vmatprep.mubr.bf16.mxu0 0
      %4654 = vmatmul.mubr.bf16.gmra.mrb[0].mxu0 %v3144
      %v4655 = vpop.f32.mrb[0].mxu0
      %v4656 = vadd.f32 %v974, %v4655
      %v4657 = vpop.f32.mrb[0].mxu0
      %v4658 = vpop.f32.mrb[0].mxu0
      %v4659 = vadd.f32 %v974, %v4658
      %v4660 = vpop.f32.mrb[0].mxu0
      %4661 = vmatprep.mubr.bf16.mxu0 0
      %4662 = vmatmul.mubr.bf16.gmra.mrb[0].mxu0 %v3147
      %v4663 = vpop.f32.mrb[0].mxu0
      %v4664 = vadd.f32 %v974, %v4663
      %v4665 = vpop.f32.mrb[0].mxu0
      %v4666 = vpop.f32.mrb[0].mxu0
      %v4667 = vadd.f32 %v974, %v4666
      %v4668 = vpop.f32.mrb[0].mxu0
      %4669 = vmatprep.mubr.bf16.mxu0 0
      %4670 = vmatmul.mubr.bf16.gmra.mrb[0].mxu0 %v3150
      %v4671 = vpop.f32.mrb[0].mxu0
      %v4672 = vadd.f32 %v974, %v4671
      %v4673 = vpop.f32.mrb[0].mxu0
      %v4674 = vpop.f32.mrb[0].mxu0
      %v4675 = vadd.f32 %v974, %v4674
      %v4676 = vpop.f32.mrb[0].mxu0
      %4677 = vmatprep.mubr.bf16.mxu0 0
      %4678 = vmatmul.mubr.bf16.gmra.mrb[0].mxu0 %v3153
      %v4679 = vpop.f32.mrb[0].mxu0
      %v4680 = vadd.f32 %v974, %v4679
      %v4681 = vpop.f32.mrb[0].mxu0
      %v4682 = vpop.f32.mrb[0].mxu0
      %v4683 = vadd.f32 %v974, %v4682
      %v4684 = vpop.f32.mrb[0].mxu0
      %4685 = vmatprep.mubr.bf16.mxu0 0
      %4686 = vmatmul.mubr.bf16.gmra.mrb[0].mxu0 %v3156
      %v4687 = vpop.f32.mrb[0].mxu0
      %v4688 = vadd.f32 %v974, %v4687
      %v4689 = vpop.f32.mrb[0].mxu0
      %v4690 = vpop.f32.mrb[0].mxu0
      %v4691 = vadd.f32 %v974, %v4690
      %v4692 = vpop.f32.mrb[0].mxu0
      %4693 = vmatprep.mubr.bf16.mxu0 0
      %4694 = vmatmul.mubr.bf16.gmra.mrb[0].mxu0 %v3159
      %v4695 = vpop.f32.mrb[0].mxu0
      %v4696 = vadd.f32 %v974, %v4695
      %v4697 = vpop.f32.mrb[0].mxu0
      %v4698 = vpop.f32.mrb[0].mxu0
      %v4699 = vadd.f32 %v974, %v4698
      %v4700 = vpop.f32.mrb[0].mxu0
      %4701 = vmatprep.mubr.bf16.mxu0 0
      %4702 = vmatmul.mubr.bf16.gmra.mrb[0].mxu0 %v3162
      %v4703 = vpop.f32.mrb[0].mxu0
      %v4704 = vadd.f32 %v974, %v4703
      %v4705 = vpop.f32.mrb[0].mxu0
      %v4706 = vpop.f32.mrb[0].mxu0
      %v4707 = vadd.f32 %v974, %v4706
      %v4708 = vpop.f32.mrb[0].mxu0
      %4709 = vmatprep.mubr.bf16.mxu0 0
      %4710 = vmatmul.mubr.bf16.gmra.mrb[0].mxu0 %v3165
      %v4711 = vpop.f32.mrb[0].mxu0
      %v4712 = vadd.f32 %v974, %v4711
      %v4713 = vpop.f32.mrb[0].mxu0
      %v4714 = vpop.f32.mrb[0].mxu0
      %v4715 = vadd.f32 %v974, %v4714
      %v4716 = vpop.f32.mrb[0].mxu0
      %4717 = vmatprep.mubr.bf16.mxu0 0
      %4718 = vmatmul.mubr.bf16.gmra.mrb[0].mxu0 %v3168
      %v4719 = vpop.f32.mrb[0].mxu0
      %v4720 = vadd.f32 %v974, %v4719
      %v4721 = vpop.f32.mrb[0].mxu0
      %v4722 = vpop.f32.mrb[0].mxu0
      %v4723 = vadd.f32 %v974, %v4722
      %v4724 = vpop.f32.mrb[0].mxu0
      %4725 = vmatprep.mubr.bf16.mxu0 0
      %4726 = vmatmul.mubr.bf16.gmra.mrb[0].mxu0 %v3171
      %v4727 = vpop.f32.mrb[0].mxu0
      %v4728 = vadd.f32 %v974, %v4727
      %v4729 = vpop.f32.mrb[0].mxu0
      %v4730 = vpop.f32.mrb[0].mxu0
      %v4731 = vadd.f32 %v974, %v4730
      %v4732 = vpop.f32.mrb[0].mxu0
      %4733 = vmatprep.mubr.bf16.mxu0 0
      %4734 = vmatmul.mubr.bf16.gmra.mrb[0].mxu0 %v3174
      %v4735 = vpop.f32.mrb[0].mxu0
      %v4736 = vadd.f32 %v974, %v4735
      %v4737 = vpop.f32.mrb[0].mxu0
      %v4738 = vpop.f32.mrb[0].mxu0
      %v4739 = vadd.f32 %v974, %v4738
      %v4740 = vpop.f32.mrb[0].mxu0
      %4741 = vmatprep.mubr.bf16.mxu0 0
      %4742 = vmatmul.mubr.bf16.gmra.mrb[0].mxu0 %v3177
      %v4743 = vpop.f32.mrb[0].mxu0
      %v4744 = vadd.f32 %v974, %v4743
      %v4745 = vpop.f32.mrb[0].mxu0
      %v4746 = vpop.f32.mrb[0].mxu0
      %v4747 = vadd.f32 %v974, %v4746
      %v4748 = vpop.f32.mrb[0].mxu0
      %4749 = vmatprep.mubr.bf16.mxu0 0
      %4750 = vmatmul.mubr.bf16.gmra.mrb[0].mxu0 %v3180
      %v4751 = vpop.f32.mrb[0].mxu0
      %v4752 = vadd.f32 %v974, %v4751
      %v4753 = vpop.f32.mrb[0].mxu0
      %v4754 = vpop.f32.mrb[0].mxu0
      %v4755 = vadd.f32 %v974, %v4754
      %v4756 = vpop.f32.mrb[0].mxu0
      %4757 = vmatprep.mubr.bf16.mxu0 0
      %4758 = vmatmul.mubr.bf16.gmra.mrb[0].mxu0 %v3183
      %v4759 = vpop.f32.mrb[0].mxu0
      %v4760 = vadd.f32 %v974, %v4759
      %v4761 = vpop.f32.mrb[0].mxu0
      %v4762 = vpop.f32.mrb[0].mxu0
      %v4763 = vadd.f32 %v974, %v4762
      %v4764 = vpop.f32.mrb[0].mxu0
      %4765 = vmatprep.mubr.bf16.mxu0 0
      %4766 = vmatmul.mubr.bf16.gmra.mrb[0].mxu0 %v3186
      %v4767 = vpop.f32.mrb[0].mxu0
      %v4768 = vadd.f32 %v974, %v4767
      %v4769 = vpop.f32.mrb[0].mxu0
      %v4770 = vpop.f32.mrb[0].mxu0
      %v4771 = vadd.f32 %v974, %v4770
      %v4772 = vpop.f32.mrb[0].mxu0
      %4773 = vmatprep.mubr.bf16.mxu0 0
      %4774 = vmatmul.mubr.bf16.gmra.mrb[0].mxu0 %v3189
      %v4775 = vpop.f32.mrb[0].mxu0
      %v4776 = vadd.f32 %v974, %v4775
      %v4777 = vpop.f32.mrb[0].mxu0
      %v4778 = vpop.f32.mrb[0].mxu0
      %v4779 = vadd.f32 %v974, %v4778
      %v4780 = vpop.f32.mrb[0].mxu0
      %4781 = vmatprep.mubr.bf16.mxu0 0
      %4782 = vmatmul.mubr.bf16.gmra.mrb[0].mxu0 %v3192
      %v4783 = vpop.f32.mrb[0].mxu0
      %v4784 = vadd.f32 %v974, %v4783
      %v4785 = vpop.f32.mrb[0].mxu0
      %v4786 = vpop.f32.mrb[0].mxu0
      %v4787 = vadd.f32 %v974, %v4786
      %v4788 = vpop.f32.mrb[0].mxu0
      %4789 = vmatprep.mubr.bf16.mxu0 0
      %4790 = vmatmul.mubr.bf16.gmra.mrb[0].mxu0 %v3195
      %v4791 = vpop.f32.mrb[0].mxu0
      %v4792 = vadd.f32 %v974, %v4791
      %v4793 = vpop.f32.mrb[0].mxu0
      %v4794 = vpop.f32.mrb[0].mxu0
      %v4795 = vadd.f32 %v974, %v4794
      %v4796 = vpop.f32.mrb[0].mxu0
      %4797 = vmatprep.mubr.bf16.mxu0 0
      %4798 = vmatmul.mubr.bf16.gmra.mrb[0].mxu0 %v3198
      %v4799 = vpop.f32.mrb[0].mxu0
      %v4800 = vadd.f32 %v974, %v4799
      %v4801 = vpop.f32.mrb[0].mxu0
      %v4802 = vpop.f32.mrb[0].mxu0
      %v4803 = vadd.f32 %v974, %v4802
      %v4804 = vpop.f32.mrb[0].mxu0
      %4805 = vmatprep.mubr.bf16.mxu0 0
      %4806 = vmatmul.mubr.bf16.gmra.mrb[0].mxu0 %v3201
      %v4807 = vpop.f32.mrb[0].mxu0
      %v4808 = vadd.f32 %v974, %v4807
      %v4809 = vpop.f32.mrb[0].mxu0
      %v4810 = vpop.f32.mrb[0].mxu0
      %v4811 = vadd.f32 %v974, %v4810
      %v4812 = vpop.f32.mrb[0].mxu0
      %4813 = vmatprep.mubr.bf16.mxu0 0
      %4814 = vmatmul.mubr.bf16.gmra.mrb[0].mxu0 %v3204
      %v4815 = vpop.f32.mrb[0].mxu0
      %v4816 = vadd.f32 %v974, %v4815
      %v4817 = vpop.f32.mrb[0].mxu0
      %v4818 = vpop.f32.mrb[0].mxu0
      %v4819 = vadd.f32 %v974, %v4818
      %v4820 = vpop.f32.mrb[0].mxu0
      %4821 = vmatprep.mubr.bf16.mxu0 0
      %4822 = vmatmul.mubr.bf16.gmra.mrb[0].mxu0 %v3207
      %v4823 = vpop.f32.mrb[0].mxu0
      %v4824 = vadd.f32 %v974, %v4823
      %v4825 = vpop.f32.mrb[0].mxu0
      %v4826 = vpop.f32.mrb[0].mxu0
      %v4827 = vadd.f32 %v974, %v4826
      %v4828 = vpop.f32.mrb[0].mxu0
      %4829 = vmatprep.mubr.bf16.mxu0 0
      %4830 = vmatmul.mubr.bf16.gmra.mrb[0].mxu0 %v3210
      %v4831 = vpop.f32.mrb[0].mxu0
      %v4832 = vadd.f32 %v974, %v4831
      %v4833 = vpop.f32.mrb[0].mxu0
      %v4834 = vpop.f32.mrb[0].mxu0
      %v4835 = vadd.f32 %v974, %v4834
      %v4836 = vpop.f32.mrb[0].mxu0
      %4837 = vmatprep.mubr.bf16.mxu0 0
      %4838 = vmatmul.mubr.bf16.gmra.mrb[0].mxu0 %v3213
      %v4839 = vpop.f32.mrb[0].mxu0
      %v4840 = vadd.f32 %v974, %v4839
      %v4841 = vpop.f32.mrb[0].mxu0
      %v4842 = vpop.f32.mrb[0].mxu0
      %v4843 = vadd.f32 %v974, %v4842
      %v4844 = vpop.f32.mrb[0].mxu0
      %4845 = vmatprep.mubr.bf16.mxu0 0
      %4846 = vmatmul.mubr.bf16.gmra.mrb[0].mxu0 %v3216
      %v4847 = vpop.f32.mrb[0].mxu0
      %v4848 = vadd.f32 %v974, %v4847
      %v4849 = vpop.f32.mrb[0].mxu0
      %v4850 = vpop.f32.mrb[0].mxu0
      %v4851 = vadd.f32 %v974, %v4850
      %v4852 = vpop.f32.mrb[0].mxu0
      %4853 = vmatprep.mubr.bf16.mxu0 0
      %4854 = vmatmul.mubr.bf16.gmra.mrb[0].mxu0 %v3219
      %v4855 = vpop.f32.mrb[0].mxu0
      %v4856 = vadd.f32 %v974, %v4855
      %v4857 = vpop.f32.mrb[0].mxu0
      %v4858 = vpop.f32.mrb[0].mxu0
      %v4859 = vadd.f32 %v974, %v4858
      %v4860 = vpop.f32.mrb[0].mxu0
      %4861 = vmatprep.mubr.bf16.mxu0 0
      %4862 = vmatmul.mubr.bf16.gmra.mrb[0].mxu0 %v3222
      %v4863 = vpop.f32.mrb[0].mxu0
      %v4864 = vadd.f32 %v974, %v4863
      %v4865 = vpop.f32.mrb[0].mxu0
      %v4866 = vpop.f32.mrb[0].mxu0
      %v4867 = vadd.f32 %v974, %v4866
      %v4868 = vpop.f32.mrb[0].mxu0
      %4869 = vmatprep.mubr.bf16.mxu0 0
      %4870 = vmatmul.mubr.bf16.gmra.mrb[0].mxu0 %v3225
      %v4871 = vpop.f32.mrb[0].mxu0
      %v4872 = vadd.f32 %v974, %v4871
      %v4873 = vpop.f32.mrb[0].mxu0
      %v4874 = vpop.f32.mrb[0].mxu0
      %v4875 = vadd.f32 %v974, %v4874
      %v4876 = vpop.f32.mrb[0].mxu0
      %4877 = vmatprep.mubr.bf16.mxu0 0
      %4878 = vmatmul.mubr.bf16.gmra.mrb[0].mxu0 %v3228
      %v4879 = vpop.f32.mrb[0].mxu0
      %v4880 = vadd.f32 %v974, %v4879
      %v4881 = vpop.f32.mrb[0].mxu0
      %v4882 = vpop.f32.mrb[0].mxu0
      %v4883 = vadd.f32 %v974, %v4882
      %v4884 = vpop.f32.mrb[0].mxu0
      %4885 = vmatprep.mubr.bf16.mxu0 0
      %4886 = vmatmul.mubr.bf16.gmra.mrb[0].mxu0 %v3231
      %v4887 = vpop.f32.mrb[0].mxu0
      %v4888 = vadd.f32 %v974, %v4887
      %v4889 = vpop.f32.mrb[0].mxu0
      %v4890 = vpop.f32.mrb[0].mxu0
      %v4891 = vadd.f32 %v974, %v4890
      %v4892 = vpop.f32.mrb[0].mxu0
      %4893 = vmatprep.mubr.bf16.mxu0 0
      %4894 = vmatmul.mubr.bf16.gmra.mrb[0].mxu0 %v3234
      %v4895 = vpop.f32.mrb[0].mxu0
      %v4896 = vadd.f32 %v974, %v4895
      %v4897 = vpop.f32.mrb[0].mxu0
      %v4898 = vpop.f32.mrb[0].mxu0
      %v4899 = vadd.f32 %v974, %v4898
      %v4900 = vpop.f32.mrb[0].mxu0
      %4901 = vmatprep.mubr.bf16.mxu0 0
      %4902 = vmatmul.mubr.bf16.gmra.mrb[0].mxu0 %v3237
      %v4903 = vpop.f32.mrb[0].mxu0
      %v4904 = vadd.f32 %v974, %v4903
      %v4905 = vpop.f32.mrb[0].mxu0
      %v4906 = vpop.f32.mrb[0].mxu0
      %v4907 = vadd.f32 %v974, %v4906
      %v4908 = vpop.f32.mrb[0].mxu0
      %4909 = vmatprep.mubr.bf16.mxu0 0
      %4910 = vmatmul.mubr.bf16.gmra.mrb[0].mxu0 %v3240
      %v4911 = vpop.f32.mrb[0].mxu0
      %v4912 = vadd.f32 %v974, %v4911
      %v4913 = vpop.f32.mrb[0].mxu0
      %v4914 = vpop.f32.mrb[0].mxu0
      %v4915 = vadd.f32 %v974, %v4914
      %v4916 = vpop.f32.mrb[0].mxu0
      %4917 = vmatprep.mubr.bf16.mxu0 0
      %4918 = vmatmul.mubr.bf16.gmra.mrb[0].mxu0 %v3243
      %v4919 = vpop.f32.mrb[0].mxu0
      %v4920 = vadd.f32 %v974, %v4919
      %v4921 = vpop.f32.mrb[0].mxu0
      %v4922 = vpop.f32.mrb[0].mxu0
      %v4923 = vadd.f32 %v974, %v4922
      %v4924 = vpop.f32.mrb[0].mxu0
      %4925 = vmatprep.mubr.bf16.mxu0 0
      %4926 = vmatmul.mubr.bf16.gmra.mrb[0].mxu0 %v3246
      %v4927 = vpop.f32.mrb[0].mxu0
      %v4928 = vadd.f32 %v974, %v4927
      %v4929 = vpop.f32.mrb[0].mxu0
      %v4930 = vpop.f32.mrb[0].mxu0
      %v4931 = vadd.f32 %v974, %v4930
      %v4932 = vpop.f32.mrb[0].mxu0
      %4933 = vmatprep.mubr.bf16.mxu0 0
      %4934 = vmatmul.mubr.bf16.gmra.mrb[0].mxu0 %v3249
      %v4935 = vpop.f32.mrb[0].mxu0
      %v4936 = vadd.f32 %v974, %v4935
      %v4937 = vpop.f32.mrb[0].mxu0
      %v4938 = vpop.f32.mrb[0].mxu0
      %v4939 = vadd.f32 %v974, %v4938
      %v4940 = vpop.f32.mrb[0].mxu0
      %4941 = vmatprep.mubr.bf16.mxu0 0
      %4942 = vmatmul.mubr.bf16.gmra.mrb[0].mxu0 %v3252
      %v4943 = vpop.f32.mrb[0].mxu0
      %v4944 = vadd.f32 %v974, %v4943
      %v4945 = vpop.f32.mrb[0].mxu0
      %v4946 = vpop.f32.mrb[0].mxu0
      %v4947 = vadd.f32 %v974, %v4946
      %v4948 = vpop.f32.mrb[0].mxu0
      %4949 = vmatprep.mubr.bf16.mxu0 0
      %4950 = vmatmul.mubr.bf16.gmra.mrb[0].mxu0 %v3255
      %v4951 = vpop.f32.mrb[0].mxu0
      %v4952 = vadd.f32 %v974, %v4951
      %v4953 = vpop.f32.mrb[0].mxu0
      %v4954 = vpop.f32.mrb[0].mxu0
      %v4955 = vadd.f32 %v974, %v4954
      %v4956 = vpop.f32.mrb[0].mxu0
      %4957 = vmatprep.mubr.bf16.mxu0 0
      %4958 = vmatmul.mubr.bf16.gmra.mrb[0].mxu0 %v3258
      %v4959 = vpop.f32.mrb[0].mxu0
      %v4960 = vadd.f32 %v974, %v4959
      %v4961 = vpop.f32.mrb[0].mxu0
      %v4962 = vpop.f32.mrb[0].mxu0
      %v4963 = vadd.f32 %v974, %v4962
      %v4964 = vpop.f32.mrb[0].mxu0
      %4965 = vmatprep.mubr.bf16.mxu0 0
      %4966 = vmatmul.mubr.bf16.gmra.mrb[0].mxu0 %v3261
      %v4967 = vpop.f32.mrb[0].mxu0
      %v4968 = vadd.f32 %v974, %v4967
      %v4969 = vpop.f32.mrb[0].mxu0
      %v4970 = vpop.f32.mrb[0].mxu0
      %v4971 = vadd.f32 %v974, %v4970
      %v4972 = vpop.f32.mrb[0].mxu0
      %4973 = vmatprep.mubr.bf16.mxu0 0
      %4974 = vmatmul.mubr.bf16.gmra.mrb[0].mxu0 %v3264
      %v4975 = vpop.f32.mrb[0].mxu0
      %v4976 = vadd.f32 %v974, %v4975
      %v4977 = vpop.f32.mrb[0].mxu0
      %v4978 = vpop.f32.mrb[0].mxu0
      %v4979 = vadd.f32 %v974, %v4978
      %v4980 = vpop.f32.mrb[0].mxu0
      %4981 = vmatprep.mubr.bf16.mxu0 0
      %4982 = vmatmul.mubr.bf16.gmra.mrb[0].mxu0 %v3267
      %v4983 = vpop.f32.mrb[0].mxu0
      %v4984 = vadd.f32 %v974, %v4983
      %v4985 = vpop.f32.mrb[0].mxu0
      %v4986 = vpop.f32.mrb[0].mxu0
      %v4987 = vadd.f32 %v974, %v4986
      %v4988 = vpop.f32.mrb[0].mxu0
      %4989 = vmatprep.mubr.bf16.mxu0 0
      %4990 = vmatmul.mubr.bf16.gmra.mrb[0].mxu0 %v3270
      %v4991 = vpop.f32.mrb[0].mxu0
      %v4992 = vadd.f32 %v974, %v4991
      %v4993 = vpop.f32.mrb[0].mxu0
      %v4994 = vpop.f32.mrb[0].mxu0
      %v4995 = vadd.f32 %v974, %v4994
      %v4996 = vpop.f32.mrb[0].mxu0
      %4997 = vmatprep.mubr.bf16.mxu0 0
      %4998 = vmatmul.mubr.bf16.gmra.mrb[0].mxu0 %v3273
      %v4999 = vpop.f32.mrb[0].mxu0
      %v5000 = vadd.f32 %v974, %v4999
      %v5001 = vpop.f32.mrb[0].mxu0
      %v5002 = vpop.f32.mrb[0].mxu0
      %v5003 = vadd.f32 %v974, %v5002
      %v5004 = vpop.f32.mrb[0].mxu0
      %5005 = vmatprep.mubr.bf16.mxu0 0
      %5006 = vmatmul.mubr.bf16.gmra.mrb[0].mxu0 %v3276
      %v5007 = vpop.f32.mrb[0].mxu0
      %v5008 = vadd.f32 %v974, %v5007
      %v5009 = vpop.f32.mrb[0].mxu0
      %v5010 = vpop.f32.mrb[0].mxu0
      %v5011 = vadd.f32 %v974, %v5010
      %v5012 = vpop.f32.mrb[0].mxu0
      %5013 = vmatprep.mubr.bf16.mxu0 0
      %5014 = vmatmul.mubr.bf16.gmra.mrb[0].mxu0 %v3279
      %v5015 = vpop.f32.mrb[0].mxu0
      %v5016 = vadd.f32 %v974, %v5015
      %v5017 = vpop.f32.mrb[0].mxu0
      %v5018 = vpop.f32.mrb[0].mxu0
      %v5019 = vadd.f32 %v974, %v5018
      %v5020 = vpop.f32.mrb[0].mxu0
      %5021 = vmatprep.mubr.bf16.mxu0 0
      %5022 = vmatmul.mubr.bf16.gmra.mrb[0].mxu0 %v3282
      %v5023 = vpop.f32.mrb[0].mxu0
      %v5024 = vadd.f32 %v974, %v5023
      %v5025 = vpop.f32.mrb[0].mxu0
      %v5026 = vpop.f32.mrb[0].mxu0
      %v5027 = vadd.f32 %v974, %v5026
      %v5028 = vpop.f32.mrb[0].mxu0
      %5029 = vmatprep.mubr.bf16.mxu0 0
      %5030 = vmatmul.mubr.bf16.gmra.mrb[0].mxu0 %v3285
      %v5031 = vpop.f32.mrb[0].mxu0
      %v5032 = vadd.f32 %v974, %v5031
      %v5033 = vpop.f32.mrb[0].mxu0
      %v5034 = vpop.f32.mrb[0].mxu0
      %v5035 = vadd.f32 %v974, %v5034
      %v5036 = vpop.f32.mrb[0].mxu0
      %5037 = vmatprep.mubr.bf16.mxu0 0
      %5038 = vmatmul.mubr.bf16.gmra.mrb[0].mxu0 %v3288
      %v5039 = vpop.f32.mrb[0].mxu0
      %v5040 = vadd.f32 %v974, %v5039
      %v5041 = vpop.f32.mrb[0].mxu0
      %v5042 = vpop.f32.mrb[0].mxu0
      %v5043 = vadd.f32 %v974, %v5042
      %v5044 = vpop.f32.mrb[0].mxu0
      %5045 = vmatprep.mubr.bf16.mxu0 0
      %5046 = vmatmul.mubr.bf16.gmra.mrb[0].mxu0 %v3291
      %v5047 = vpop.f32.mrb[0].mxu0
      %v5048 = vadd.f32 %v974, %v5047
      %v5049 = vpop.f32.mrb[0].mxu0
      %v5050 = vpop.f32.mrb[0].mxu0
      %v5051 = vadd.f32 %v974, %v5050
      %v5052 = vpop.f32.mrb[0].mxu0
      %5053 = vmatprep.mubr.bf16.mxu0 0
      %5054 = vmatmul.mubr.bf16.gmra.mrb[0].mxu0 %v3294
      %v5055 = vpop.f32.mrb[0].mxu0
      %v5056 = vadd.f32 %v974, %v5055
      %v5057 = vpop.f32.mrb[0].mxu0
      %v5058 = vpop.f32.mrb[0].mxu0
      %v5059 = vadd.f32 %v974, %v5058
      %v5060 = vpop.f32.mrb[0].mxu0
      %5061 = vmatprep.mubr.bf16.mxu0 0
      %5062 = vmatmul.mubr.bf16.gmra.mrb[0].mxu0 %v3297
      %v5063 = vpop.f32.mrb[0].mxu0
      %v5064 = vadd.f32 %v974, %v5063
      %v5065 = vpop.f32.mrb[0].mxu0
      %v5066 = vpop.f32.mrb[0].mxu0
      %v5067 = vadd.f32 %v974, %v5066
      %v5068 = vpop.f32.mrb[0].mxu0
      %5069 = vmatprep.mubr.bf16.mxu0 0
      %5070 = vmatmul.mubr.bf16.gmra.mrb[0].mxu0 %v3300
      %v5071 = vpop.f32.mrb[0].mxu0
      %v5072 = vadd.f32 %v974, %v5071
      %v5073 = vpop.f32.mrb[0].mxu0
      %v5074 = vpop.f32.mrb[0].mxu0
      %v5075 = vadd.f32 %v974, %v5074
      %v5076 = vpop.f32.mrb[0].mxu0
      %5077 = vmatprep.mubr.bf16.mxu0 0
      %5078 = vmatmul.mubr.bf16.gmra.mrb[0].mxu0 %v3303
      %v5079 = vpop.f32.mrb[0].mxu0
      %v5080 = vadd.f32 %v974, %v5079
      %v5081 = vpop.f32.mrb[0].mxu0
      %v5082 = vpop.f32.mrb[0].mxu0
      %v5083 = vadd.f32 %v974, %v5082
      %v5084 = vpop.f32.mrb[0].mxu0
      %5085 = vmatprep.mubr.bf16.mxu0 0
      %5086 = vmatmul.mubr.bf16.gmra.mrb[0].mxu0 %v3306
      %v5087 = vpop.f32.mrb[0].mxu0
      %v5088 = vadd.f32 %v974, %v5087
      %v5089 = vpop.f32.mrb[0].mxu0
      %v5090 = vpop.f32.mrb[0].mxu0
      %v5091 = vadd.f32 %v974, %v5090
      %v5092 = vpop.f32.mrb[0].mxu0
      %5093 = vmatprep.mubr.bf16.mxu0 0
      %5094 = vmatmul.mubr.bf16.gmra.mrb[0].mxu0 %v3309
      %v5095 = vpop.f32.mrb[0].mxu0
      %v5096 = vadd.f32 %v974, %v5095
      %v5097 = vpop.f32.mrb[0].mxu0
      %v5098 = vpop.f32.mrb[0].mxu0
      %v5099 = vadd.f32 %v974, %v5098
      %v5100 = vpop.f32.mrb[0].mxu0
      %5101 = vmatprep.mubr.bf16.mxu0 0
      %5102 = vmatmul.mubr.bf16.gmra.mrb[0].mxu0 %v3312
      %v5103 = vpop.f32.mrb[0].mxu0
      %v5104 = vadd.f32 %v974, %v5103
      %v5105 = vpop.f32.mrb[0].mxu0
      %v5106 = vpop.f32.mrb[0].mxu0
      %v5107 = vadd.f32 %v974, %v5106
      %v5108 = vpop.f32.mrb[0].mxu0
      %5109 = vmatprep.mubr.bf16.mxu0 0
      %5110 = vmatmul.mubr.bf16.gmra.mrb[0].mxu0 %v3315
      %v5111 = vpop.f32.mrb[0].mxu0
      %v5112 = vadd.f32 %v974, %v5111
      %v5113 = vpop.f32.mrb[0].mxu0
      %v5114 = vpop.f32.mrb[0].mxu0
      %v5115 = vadd.f32 %v974, %v5114
      %v5116 = vpop.f32.mrb[0].mxu0
      %5117 = vmatprep.mubr.bf16.mxu0 0
      %5118 = vmatmul.mubr.bf16.gmra.mrb[0].mxu0 %v3318
      %v5119 = vpop.f32.mrb[0].mxu0
      %v5120 = vadd.f32 %v974, %v5119
      %v5121 = vpop.f32.mrb[0].mxu0
      %v5122 = vpop.f32.mrb[0].mxu0
      %v5123 = vadd.f32 %v974, %v5122
      %v5124 = vpop.f32.mrb[0].mxu0
      %5125 = vmatprep.mubr.bf16.mxu0 0
      %5126 = vmatmul.mubr.bf16.gmra.mrb[0].mxu0 %v3321
      %v5127 = vpop.f32.mrb[0].mxu0
      %v5128 = vadd.f32 %v974, %v5127
      %v5129 = vpop.f32.mrb[0].mxu0
      %v5130 = vpop.f32.mrb[0].mxu0
      %v5131 = vadd.f32 %v974, %v5130
      %v5132 = vpop.f32.mrb[0].mxu0
      %5133 = vmatprep.mubr.bf16.mxu0 0
      %5134 = vmatmul.mubr.bf16.gmra.mrb[0].mxu0 %v3324
      %v5135 = vpop.f32.mrb[0].mxu0
      %v5136 = vadd.f32 %v974, %v5135
      %v5137 = vpop.f32.mrb[0].mxu0
      %v5138 = vpop.f32.mrb[0].mxu0
      %v5139 = vadd.f32 %v974, %v5138
      %v5140 = vpop.f32.mrb[0].mxu0
      %5141 = vmatprep.mubr.bf16.mxu0 0
      %5142 = vmatmul.mubr.bf16.gmra.mrb[0].mxu0 %v3327
      %v5143 = vpop.f32.mrb[0].mxu0
      %v5144 = vadd.f32 %v974, %v5143
      %v5145 = vpop.f32.mrb[0].mxu0
      %v5146 = vpop.f32.mrb[0].mxu0
      %v5147 = vadd.f32 %v974, %v5146
      %v5148 = vpop.f32.mrb[0].mxu0
      %5149 = vmatprep.mubr.bf16.mxu0 0
      %5150 = vmatmul.mubr.bf16.gmra.mrb[0].mxu0 %v3330
      %v5151 = vpop.f32.mrb[0].mxu0
      %v5152 = vadd.f32 %v974, %v5151
      %v5153 = vpop.f32.mrb[0].mxu0
      %v5154 = vpop.f32.mrb[0].mxu0
      %v5155 = vadd.f32 %v974, %v5154
      %v5156 = vpop.f32.mrb[0].mxu0
      %5157 = vmatprep.mubr.bf16.mxu0 0
      %5158 = vmatmul.mubr.bf16.gmra.mrb[0].mxu0 %v3333
      %v5159 = vpop.f32.mrb[0].mxu0
      %v5160 = vadd.f32 %v974, %v5159
      %v5161 = vpop.f32.mrb[0].mxu0
      %v5162 = vpop.f32.mrb[0].mxu0
      %v5163 = vadd.f32 %v974, %v5162
      %v5164 = vpop.f32.mrb[0].mxu0
      %5165 = vmatprep.mubr.bf16.mxu0 0
      %5166 = vmatmul.mubr.bf16.gmra.mrb[0].mxu0 %v3336
      %v5167 = vpop.f32.mrb[0].mxu0
      %v5168 = vadd.f32 %v974, %v5167
      %v5169 = vpop.f32.mrb[0].mxu0
      %v5170 = vpop.f32.mrb[0].mxu0
      %v5171 = vadd.f32 %v974, %v5170
      %v5172 = vpop.f32.mrb[0].mxu0
      %5173 = vmatprep.mubr.bf16.mxu0 0
      %5174 = vmatmul.mubr.bf16.gmra.mrb[0].mxu0 %v3339
      %v5175 = vpop.f32.mrb[0].mxu0
      %v5176 = vadd.f32 %v974, %v5175
      %v5177 = vpop.f32.mrb[0].mxu0
      %v5178 = vpop.f32.mrb[0].mxu0
      %v5179 = vadd.f32 %v974, %v5178
      %v5180 = vpop.f32.mrb[0].mxu0
      %5181 = vmatprep.mubr.bf16.mxu0 0
      %5182 = vmatmul.mubr.bf16.gmra.mrb[0].mxu0 %v3342
      %v5183 = vpop.f32.mrb[0].mxu0
      %v5184 = vadd.f32 %v974, %v5183
      %v5185 = vpop.f32.mrb[0].mxu0
      %v5186 = vpop.f32.mrb[0].mxu0
      %v5187 = vadd.f32 %v974, %v5186
      %v5188 = vpop.f32.mrb[0].mxu0
      %5189 = vmatprep.mubr.bf16.mxu0 0
      %5190 = vmatmul.mubr.bf16.gmra.mrb[0].mxu0 %v3345
      %v5191 = vpop.f32.mrb[0].mxu0
      %v5192 = vadd.f32 %v974, %v5191
      %v5193 = vpop.f32.mrb[0].mxu0
      %v5194 = vpop.f32.mrb[0].mxu0
      %v5195 = vadd.f32 %v974, %v5194
      %v5196 = vpop.f32.mrb[0].mxu0
      %5197 = vmatprep.mubr.bf16.mxu0 0
      %5198 = vmatmul.mubr.bf16.gmra.mrb[0].mxu0 %v3348
      %v5199 = vpop.f32.mrb[0].mxu0
      %v5200 = vadd.f32 %v974, %v5199
      %v5201 = vpop.f32.mrb[0].mxu0
      %v5202 = vpop.f32.mrb[0].mxu0
      %v5203 = vadd.f32 %v974, %v5202
      %v5204 = vpop.f32.mrb[0].mxu0
      %5205 = vmatprep.mubr.bf16.mxu0 0
      %5206 = vmatmul.mubr.bf16.gmra.mrb[0].mxu0 %v3351
      %v5207 = vpop.f32.mrb[0].mxu0
      %v5208 = vadd.f32 %v974, %v5207
      %v5209 = vpop.f32.mrb[0].mxu0
      %v5210 = vpop.f32.mrb[0].mxu0
      %v5211 = vadd.f32 %v974, %v5210
      %v5212 = vpop.f32.mrb[0].mxu0
      %5213 = vmatprep.mubr.bf16.mxu0 0
      %5214 = vmatmul.mubr.bf16.gmra.mrb[0].mxu0 %v3354
      %v5215 = vpop.f32.mrb[0].mxu0
      %v5216 = vadd.f32 %v974, %v5215
      %v5217 = vpop.f32.mrb[0].mxu0
      %v5218 = vpop.f32.mrb[0].mxu0
      %v5219 = vadd.f32 %v974, %v5218
      %v5220 = vpop.f32.mrb[0].mxu0
      %5221 = vmatprep.mubr.bf16.mxu0 0
      %5222 = vmatmul.mubr.bf16.gmra.mrb[0].mxu0 %v3357
      %v5223 = vpop.f32.mrb[0].mxu0
      %v5224 = vadd.f32 %v974, %v5223
      %v5225 = vpop.f32.mrb[0].mxu0
      %v5226 = vpop.f32.mrb[0].mxu0
      %v5227 = vadd.f32 %v974, %v5226
      %v5228 = vpop.f32.mrb[0].mxu0
      %5229 = vmatprep.mubr.bf16.mxu0 0
      %5230 = vmatmul.mubr.bf16.gmra.mrb[0].mxu0 %v3360
      %v5231 = vpop.f32.mrb[0].mxu0
      %v5232 = vadd.f32 %v974, %v5231
      %v5233 = vpop.f32.mrb[0].mxu0
      %v5234 = vpop.f32.mrb[0].mxu0
      %v5235 = vadd.f32 %v974, %v5234
      %v5236 = vpop.f32.mrb[0].mxu0
      %5237 = vmatprep.mubr.bf16.mxu0 0
      %5238 = vmatmul.mubr.bf16.gmra.mrb[0].mxu0 %v3363
      %v5239 = vpop.f32.mrb[0].mxu0
      %v5240 = vadd.f32 %v974, %v5239
      %v5241 = vpop.f32.mrb[0].mxu0
      %v5242 = vpop.f32.mrb[0].mxu0
      %v5243 = vadd.f32 %v974, %v5242
      %v5244 = vpop.f32.mrb[0].mxu0
      %5245 = vmatprep.mubr.bf16.mxu0 0
      %5246 = vmatmul.mubr.bf16.gmra.mrb[0].mxu0 %v3366
      %v5247 = vpop.f32.mrb[0].mxu0
      %v5248 = vadd.f32 %v974, %v5247
      %v5249 = vpop.f32.mrb[0].mxu0
      %v5250 = vpop.f32.mrb[0].mxu0
      %v5251 = vadd.f32 %v974, %v5250
      %v5252 = vpop.f32.mrb[0].mxu0
      %5253 = vmatprep.mubr.bf16.mxu0 0
      %5254 = vmatmul.mubr.bf16.gmra.mrb[0].mxu0 %v3369
      %v5255 = vpop.f32.mrb[0].mxu0
      %v5256 = vadd.f32 %v974, %v5255
      %v5257 = vpop.f32.mrb[0].mxu0
      %v5258 = vpop.f32.mrb[0].mxu0
      %v5259 = vadd.f32 %v974, %v5258
      %v5260 = vpop.f32.mrb[0].mxu0
      %5261 = vmatprep.mubr.bf16.mxu0 0
      %5262 = vmatmul.mubr.bf16.gmra.mrb[0].mxu0 %v3372
      %v5263 = vpop.f32.mrb[0].mxu0
      %v5264 = vadd.f32 %v974, %v5263
      %v5265 = vpop.f32.mrb[0].mxu0
      %v5266 = vpop.f32.mrb[0].mxu0
      %v5267 = vadd.f32 %v974, %v5266
      %v5268 = vpop.f32.mrb[0].mxu0
      %5269 = vmatprep.mubr.bf16.mxu0 0
      %5270 = vmatmul.mubr.bf16.gmra.mrb[0].mxu0 %v3375
      %v5271 = vpop.f32.mrb[0].mxu0
      %v5272 = vadd.f32 %v974, %v5271
      %v5273 = vpop.f32.mrb[0].mxu0
      %v5274 = vpop.f32.mrb[0].mxu0
      %v5275 = vadd.f32 %v974, %v5274
      %v5276 = vpop.f32.mrb[0].mxu0
      %5277 = vmatprep.mubr.bf16.mxu0 0
      %5278 = vmatmul.mubr.bf16.gmra.mrb[0].mxu0 %v3378
      %v5279 = vpop.f32.mrb[0].mxu0
      %v5280 = vadd.f32 %v974, %v5279
      %v5281 = vpop.f32.mrb[0].mxu0
      %v5282 = vpop.f32.mrb[0].mxu0
      %v5283 = vadd.f32 %v974, %v5282
      %v5284 = vpop.f32.mrb[0].mxu0
      %5285 = vmatprep.mubr.bf16.mxu0 0
      %5286 = vmatmul.mubr.bf16.gmra.mrb[0].mxu0 %v3381
      %v5287 = vpop.f32.mrb[0].mxu0
      %v5288 = vadd.f32 %v974, %v5287
      %v5289 = vpop.f32.mrb[0].mxu0
      %v5290 = vpop.f32.mrb[0].mxu0
      %v5291 = vadd.f32 %v974, %v5290
      %v5292 = vpop.f32.mrb[0].mxu0
      %5293 = vmatprep.mubr.bf16.mxu0 0
      %5294 = vmatmul.mubr.bf16.gmra.mrb[0].mxu0 %v3384
      %v5295 = vpop.f32.mrb[0].mxu0
      %v5296 = vadd.f32 %v974, %v5295
      %v5297 = vpop.f32.mrb[0].mxu0
      %v5298 = vpop.f32.mrb[0].mxu0
      %v5299 = vadd.f32 %v974, %v5298
      %v5300 = vpop.f32.mrb[0].mxu0
      %5301 = vmatprep.mubr.bf16.mxu0 0
      %5302 = vmatmul.mubr.bf16.gmra.mrb[0].mxu0 %v3387
      %v5303 = vpop.f32.mrb[0].mxu0
      %v5304 = vadd.f32 %v974, %v5303
      %v5305 = vpop.f32.mrb[0].mxu0
      %v5306 = vpop.f32.mrb[0].mxu0
      %v5307 = vadd.f32 %v974, %v5306
      %v5308 = vpop.f32.mrb[0].mxu0
      %5309 = vmatprep.mubr.bf16.mxu0 0
      %5310 = vmatmul.mubr.bf16.gmra.mrb[0].mxu0 %v3390
      %v5311 = vpop.f32.mrb[0].mxu0
      %v5312 = vadd.f32 %v974, %v5311
      %v5313 = vpop.f32.mrb[0].mxu0
      %v5314 = vpop.f32.mrb[0].mxu0
      %v5315 = vadd.f32 %v974, %v5314
      %v5316 = vpop.f32.mrb[0].mxu0
      %5317 = vmatprep.mubr.bf16.mxu0 0
      %5318 = vmatmul.mubr.bf16.gmra.mrb[0].mxu0 %v3393
      %v5319 = vpop.f32.mrb[0].mxu0
      %v5320 = vadd.f32 %v974, %v5319
      %v5321 = vpop.f32.mrb[0].mxu0
      %v5322 = vpop.f32.mrb[0].mxu0
      %v5323 = vadd.f32 %v974, %v5322
      %v5324 = vpop.f32.mrb[0].mxu0
      %5325 = vmatprep.mubr.bf16.mxu0 0
      %5326 = vmatmul.mubr.bf16.gmra.mrb[0].mxu0 %v3396
      %v5327 = vpop.f32.mrb[0].mxu0
      %v5328 = vadd.f32 %v974, %v5327
      %v5329 = vpop.f32.mrb[0].mxu0
      %v5330 = vpop.f32.mrb[0].mxu0
      %v5331 = vadd.f32 %v974, %v5330
      %v5332 = vpop.f32.mrb[0].mxu0
      %5333 = vmatprep.mubr.bf16.mxu0 0
      %5334 = vmatmul.mubr.bf16.gmra.mrb[0].mxu0 %v3399
      %v5335 = vpop.f32.mrb[0].mxu0
      %v5336 = vadd.f32 %v974, %v5335
      %v5337 = vpop.f32.mrb[0].mxu0
      %v5338 = vpop.f32.mrb[0].mxu0
      %v5339 = vadd.f32 %v974, %v5338
      %v5340 = vpop.f32.mrb[0].mxu0
      %5341 = vmatprep.mubr.bf16.mxu0 0
      %5342 = vmatmul.mubr.bf16.gmra.mrb[0].mxu0 %v3402
      %v5343 = vpop.f32.mrb[0].mxu0
      %v5344 = vadd.f32 %v974, %v5343
      %v5345 = vpop.f32.mrb[0].mxu0
      %v5346 = vpop.f32.mrb[0].mxu0
      %v5347 = vadd.f32 %v974, %v5346
      %v5348 = vpop.f32.mrb[0].mxu0
      %5349 = vmatprep.mubr.bf16.mxu0 0
      %5350 = vmatmul.mubr.bf16.gmra.mrb[0].mxu0 %v3405
      %v5351 = vpop.f32.mrb[0].mxu0
      %v5352 = vadd.f32 %v974, %v5351
      %v5353 = vpop.f32.mrb[0].mxu0
      %v5354 = vpop.f32.mrb[0].mxu0
      %v5355 = vadd.f32 %v974, %v5354
      %v5356 = vpop.f32.mrb[0].mxu0
      %5357 = vmatprep.mubr.bf16.mxu0 0
      %5358 = vmatmul.mubr.bf16.gmra.mrb[0].mxu0 %v3408
      %v5359 = vpop.f32.mrb[0].mxu0
      %v5360 = vadd.f32 %v974, %v5359
      %v5361 = vpop.f32.mrb[0].mxu0
      %v5362 = vpop.f32.mrb[0].mxu0
      %v5363 = vadd.f32 %v974, %v5362
      %v5364 = vpop.f32.mrb[0].mxu0
      %5365 = vmatprep.mubr.bf16.mxu0 0
      %5366 = vmatmul.mubr.bf16.gmra.mrb[0].mxu0 %v3411
      %v5367 = vpop.f32.mrb[0].mxu0
      %v5368 = vadd.f32 %v974, %v5367
      %v5369 = vpop.f32.mrb[0].mxu0
      %v5370 = vpop.f32.mrb[0].mxu0
      %v5371 = vadd.f32 %v974, %v5370
      %v5372 = vpop.f32.mrb[0].mxu0
      %5373 = vmatprep.mubr.bf16.mxu0 0
      %5374 = vmatmul.mubr.bf16.gmra.mrb[0].mxu0 %v3414
      %v5375 = vpop.f32.mrb[0].mxu0
      %v5376 = vadd.f32 %v974, %v5375
      %v5377 = vpop.f32.mrb[0].mxu0
      %v5378 = vpop.f32.mrb[0].mxu0
      %v5379 = vadd.f32 %v974, %v5378
      %v5380 = vpop.f32.mrb[0].mxu0
      %5381 = vmatprep.mubr.bf16.mxu0 0
      %5382 = vmatmul.mubr.bf16.gmra.mrb[0].mxu0 %v3417
      %v5383 = vpop.f32.mrb[0].mxu0
      %v5384 = vadd.f32 %v974, %v5383
      %v5385 = vpop.f32.mrb[0].mxu0
      %v5386 = vpop.f32.mrb[0].mxu0
      %v5387 = vadd.f32 %v974, %v5386
      %v5388 = vpop.f32.mrb[0].mxu0
      %5389 = vmatprep.mubr.bf16.mxu0 0
      %5390 = vmatmul.mubr.bf16.gmra.mrb[0].mxu0 %v3420
      %v5391 = vpop.f32.mrb[0].mxu0
      %v5392 = vadd.f32 %v974, %v5391
      %v5393 = vpop.f32.mrb[0].mxu0
      %v5394 = vpop.f32.mrb[0].mxu0
      %v5395 = vadd.f32 %v974, %v5394
      %v5396 = vpop.f32.mrb[0].mxu0
      %5397 = vmatprep.mubr.bf16.mxu0 0
      %5398 = vmatmul.mubr.bf16.gmra.mrb[0].mxu0 %v3423
      %v5399 = vpop.f32.mrb[0].mxu0
      %v5400 = vadd.f32 %v974, %v5399
      %v5401 = vpop.f32.mrb[0].mxu0
      %v5402 = vpop.f32.mrb[0].mxu0
      %v5403 = vadd.f32 %v974, %v5402
      %v5404 = vpop.f32.mrb[0].mxu0
      %5405 = vmatprep.mubr.bf16.mxu0 0
      %5406 = vmatmul.mubr.bf16.gmra.mrb[0].mxu0 %v3426
      %v5407 = vpop.f32.mrb[0].mxu0
      %v5408 = vadd.f32 %v974, %v5407
      %v5409 = vpop.f32.mrb[0].mxu0
      %v5410 = vpop.f32.mrb[0].mxu0
      %v5411 = vadd.f32 %v974, %v5410
      %v5412 = vpop.f32.mrb[0].mxu0
      %5413 = vmatprep.mubr.bf16.mxu0 0
      %5414 = vmatmul.mubr.bf16.gmra.mrb[0].mxu0 %v3429
      %v5415 = vpop.f32.mrb[0].mxu0
      %v5416 = vadd.f32 %v974, %v5415
      %v5417 = vpop.f32.mrb[0].mxu0
      %v5418 = vpop.f32.mrb[0].mxu0
      %v5419 = vadd.f32 %v974, %v5418
      %v5420 = vpop.f32.mrb[0].mxu0
      %5421 = vmatprep.mubr.bf16.mxu0 0
      %5422 = vmatmul.mubr.bf16.gmra.mrb[0].mxu0 %v3432
      %v5423 = vpop.f32.mrb[0].mxu0
      %v5424 = vadd.f32 %v974, %v5423
      %v5425 = vpop.f32.mrb[0].mxu0
      %v5426 = vpop.f32.mrb[0].mxu0
      %v5427 = vadd.f32 %v974, %v5426
      %v5428 = vpop.f32.mrb[0].mxu0
      %5429 = vmatprep.mubr.bf16.mxu0 0
      %5430 = vmatmul.mubr.bf16.gmra.mrb[0].mxu0 %v3435
      %v5431 = vpop.f32.mrb[0].mxu0
      %v5432 = vadd.f32 %v974, %v5431
      %v5433 = vpop.f32.mrb[0].mxu0
      %v5434 = vpop.f32.mrb[0].mxu0
      %v5435 = vadd.f32 %v974, %v5434
      %v5436 = vpop.f32.mrb[0].mxu0
      %5437 = vmatprep.mubr.bf16.mxu0 0
      %5438 = vmatmul.mubr.bf16.gmra.mrb[0].mxu0 %v3438
      %v5439 = vpop.f32.mrb[0].mxu0
      %v5440 = vadd.f32 %v974, %v5439
      %v5441 = vpop.f32.mrb[0].mxu0
      %v5442 = vpop.f32.mrb[0].mxu0
      %v5443 = vadd.f32 %v974, %v5442
      %v5444 = vpop.f32.mrb[0].mxu0
      %5445 = vmatprep.mubr.bf16.mxu0 0
      %5446 = vmatmul.mubr.bf16.gmra.mrb[0].mxu0 %v3441
      %v5447 = vpop.f32.mrb[0].mxu0
      %v5448 = vadd.f32 %v974, %v5447
      %v5449 = vpop.f32.mrb[0].mxu0
      %v5450 = vpop.f32.mrb[0].mxu0
      %v5451 = vadd.f32 %v974, %v5450
      %v5452 = vpop.f32.mrb[0].mxu0
      %5453 = vmatprep.mubr.bf16.mxu0 0
      %5454 = vmatmul.mubr.bf16.gmra.mrb[0].mxu0 %v3444
      %v5455 = vpop.f32.mrb[0].mxu0
      %v5456 = vadd.f32 %v974, %v5455
      %v5457 = vpop.f32.mrb[0].mxu0
      %v5458 = vpop.f32.mrb[0].mxu0
      %v5459 = vadd.f32 %v974, %v5458
      %v5460 = vpop.f32.mrb[0].mxu0
      %5461 = vmatprep.mubr.bf16.mxu0 0
      %5462 = vmatmul.mubr.bf16.gmra.mrb[0].mxu0 %v3447
      %v5463 = vpop.f32.mrb[0].mxu0
      %v5464 = vadd.f32 %v974, %v5463
      %v5465 = vpop.f32.mrb[0].mxu0
      %v5466 = vpop.f32.mrb[0].mxu0
      %v5467 = vadd.f32 %v974, %v5466
      %v5468 = vpop.f32.mrb[0].mxu0
      %5469 = vmatprep.mubr.bf16.mxu0 0
      %5470 = vmatmul.mubr.bf16.gmra.mrb[0].mxu0 %v3450
      %v5471 = vpop.f32.mrb[0].mxu0
      %v5472 = vadd.f32 %v974, %v5471
      %v5473 = vpop.f32.mrb[0].mxu0
      %v5474 = vpop.f32.mrb[0].mxu0
      %v5475 = vadd.f32 %v974, %v5474
      %v5476 = vpop.f32.mrb[0].mxu0
      %5477 = vmatprep.mubr.bf16.mxu0 0
      %5478 = vmatmul.mubr.bf16.gmra.mrb[0].mxu0 %v3453
      %v5479 = vpop.f32.mrb[0].mxu0
      %v5480 = vadd.f32 %v974, %v5479
      %v5481 = vpop.f32.mrb[0].mxu0
      %v5482 = vpop.f32.mrb[0].mxu0
      %v5483 = vadd.f32 %v974, %v5482
      %v5484 = vpop.f32.mrb[0].mxu0
      %5485 = vmatprep.mubr.bf16.mxu0 0
      %5486 = vmatmul.mubr.bf16.gmra.mrb[0].mxu0 %v3456
      %v5487 = vpop.f32.mrb[0].mxu0
      %v5488 = vadd.f32 %v974, %v5487
      %v5489 = vpop.f32.mrb[0].mxu0
      %v5490 = vpop.f32.mrb[0].mxu0
      %v5491 = vadd.f32 %v974, %v5490
      %v5492 = vpop.f32.mrb[0].mxu0
      %5493 = vmatprep.mubr.bf16.mxu0 0
      %5494 = vmatmul.mubr.bf16.gmra.mrb[0].mxu0 %v3459
      %v5495 = vpop.f32.mrb[0].mxu0
      %v5496 = vadd.f32 %v974, %v5495
      %v5497 = vpop.f32.mrb[0].mxu0
      %v5498 = vpop.f32.mrb[0].mxu0
      %v5499 = vadd.f32 %v974, %v5498
      %v5500 = vpop.f32.mrb[0].mxu0
      %5501 = vmatprep.mubr.bf16.mxu0 0
      %5502 = vmatmul.mubr.bf16.gmra.mrb[0].mxu0 %v3462
      %v5503 = vpop.f32.mrb[0].mxu0
      %v5504 = vadd.f32 %v974, %v5503
      %v5505 = vpop.f32.mrb[0].mxu0
      %v5506 = vpop.f32.mrb[0].mxu0
      %v5507 = vadd.f32 %v974, %v5506
      %v5508 = vpop.f32.mrb[0].mxu0
      %5509 = vmatprep.mubr.bf16.mxu0 0
      %5510 = vmatmul.mubr.bf16.gmra.mrb[0].mxu0 %v3465
      %v5511 = vpop.f32.mrb[0].mxu0
      %v5512 = vadd.f32 %v974, %v5511
      %v5513 = vpop.f32.mrb[0].mxu0
      %v5514 = vpop.f32.mrb[0].mxu0
      %v5515 = vadd.f32 %v974, %v5514
      %v5516 = vpop.f32.mrb[0].mxu0
      %5517 = vmatprep.mubr.bf16.mxu0 0
      %5518 = vmatmul.mubr.bf16.gmra.mrb[0].mxu0 %v3468
      %v5519 = vpop.f32.mrb[0].mxu0
      %v5520 = vadd.f32 %v974, %v5519
      %v5521 = vpop.f32.mrb[0].mxu0
      %v5522 = vpop.f32.mrb[0].mxu0
      %v5523 = vadd.f32 %v974, %v5522
      %v5524 = vpop.f32.mrb[0].mxu0
      %5525 = vmatprep.mubr.bf16.mxu0 0
      %5526 = vmatmul.mubr.bf16.gmra.mrb[0].mxu0 %v3471
      %v5527 = vpop.f32.mrb[0].mxu0
      %v5528 = vadd.f32 %v974, %v5527
      %v5529 = vpop.f32.mrb[0].mxu0
      %v5530 = vpop.f32.mrb[0].mxu0
      %v5531 = vadd.f32 %v974, %v5530
      %v5532 = vpop.f32.mrb[0].mxu0
      %5533 = vmatprep.mubr.bf16.mxu0 0
      %5534 = vmatmul.mubr.bf16.gmra.mrb[0].mxu0 %v3474
      %v5535 = vpop.f32.mrb[0].mxu0
      %v5536 = vadd.f32 %v974, %v5535
      %v5537 = vpop.f32.mrb[0].mxu0
      %v5538 = vpop.f32.mrb[0].mxu0
      %v5539 = vadd.f32 %v974, %v5538
      %v5540 = vpop.f32.mrb[0].mxu0
      %5541 = vmatprep.mubr.bf16.mxu0 0
      %5542 = vmatmul.mubr.bf16.gmra.mrb[0].mxu0 %v3477
      %v5543 = vpop.f32.mrb[0].mxu0
      %v5544 = vadd.f32 %v974, %v5543
      %v5545 = vpop.f32.mrb[0].mxu0
      %v5546 = vpop.f32.mrb[0].mxu0
      %v5547 = vadd.f32 %v974, %v5546
      %v5548 = vpop.f32.mrb[0].mxu0
      %5549 = vmatprep.mubr.bf16.mxu0 0
      %5550 = vmatmul.mubr.bf16.gmra.mrb[0].mxu0 %v3480
      %v5551 = vpop.f32.mrb[0].mxu0
      %v5552 = vadd.f32 %v974, %v5551
      %v5553 = vpop.f32.mrb[0].mxu0
      %v5554 = vpop.f32.mrb[0].mxu0
      %v5555 = vadd.f32 %v974, %v5554
      %v5556 = vpop.f32.mrb[0].mxu0
      %5557 = vmatprep.mubr.bf16.mxu0 0
      %5558 = vmatmul.mubr.bf16.gmra.mrb[0].mxu0 %v3483
      %v5559 = vpop.f32.mrb[0].mxu0
      %v5560 = vadd.f32 %v974, %v5559
      %v5561 = vpop.f32.mrb[0].mxu0
      %v5562 = vpop.f32.mrb[0].mxu0
      %v5563 = vadd.f32 %v974, %v5562
      %v5564 = vpop.f32.mrb[0].mxu0
      %5565 = vmatprep.mubr.bf16.mxu0 0
      %5566 = vmatmul.mubr.bf16.gmra.mrb[0].mxu0 %v3486
      %v5567 = vpop.f32.mrb[0].mxu0
      %v5568 = vadd.f32 %v974, %v5567
      %v5569 = vpop.f32.mrb[0].mxu0
      %v5570 = vpop.f32.mrb[0].mxu0
      %v5571 = vadd.f32 %v974, %v5570
      %v5572 = vpop.f32.mrb[0].mxu0
      %5573 = vmatprep.mubr.bf16.mxu0 0
      %5574 = vmatmul.mubr.bf16.gmra.mrb[0].mxu0 %v3489
      %v5575 = vpop.f32.mrb[0].mxu0
      %v5576 = vadd.f32 %v974, %v5575
      %v5577 = vpop.f32.mrb[0].mxu0
      %v5578 = vpop.f32.mrb[0].mxu0
      %v5579 = vadd.f32 %v974, %v5578
      %v5580 = vpop.f32.mrb[0].mxu0
      %5581 = vmatprep.mubr.bf16.mxu0 0
      %5582 = vmatmul.mubr.bf16.gmra.mrb[0].mxu0 %v3492
      %v5583 = vpop.f32.mrb[0].mxu0
      %v5584 = vadd.f32 %v974, %v5583
      %v5585 = vpop.f32.mrb[0].mxu0
      %v5586 = vpop.f32.mrb[0].mxu0
      %v5587 = vadd.f32 %v974, %v5586
      %v5588 = vpop.f32.mrb[0].mxu0
      %5589 = vmatprep.mubr.bf16.mxu0 0
      %5590 = vmatmul.mubr.bf16.gmra.mrb[0].mxu0 %v3495
      %v5591 = vpop.f32.mrb[0].mxu0
      %v5592 = vadd.f32 %v974, %v5591
      %v5593 = vpop.f32.mrb[0].mxu0
      %v5594 = vpop.f32.mrb[0].mxu0
      %v5595 = vadd.f32 %v974, %v5594
      %v5596 = vpop.f32.mrb[0].mxu0
      %5597 = vmatprep.mubr.bf16.mxu0 0
      %5598 = vmatmul.mubr.bf16.gmra.mrb[0].mxu0 %v3498
      %v5599 = vpop.f32.mrb[0].mxu0
      %v5600 = vadd.f32 %v974, %v5599
      %v5601 = vpop.f32.mrb[0].mxu0
      %v5602 = vpop.f32.mrb[0].mxu0
      %v5603 = vadd.f32 %v974, %v5602
      %v5604 = vpop.f32.mrb[0].mxu0
      %5605 = vmatprep.mubr.bf16.mxu0 0
      %5606 = vmatmul.mubr.bf16.gmra.mrb[0].mxu0 %v3501
      %v5607 = vpop.f32.mrb[0].mxu0
      %v5608 = vadd.f32 %v974, %v5607
      %v5609 = vpop.f32.mrb[0].mxu0
      %v5610 = vpop.f32.mrb[0].mxu0
      %v5611 = vadd.f32 %v974, %v5610
      %v5612 = vpop.f32.mrb[0].mxu0
      %5613 = vmatprep.mubr.bf16.mxu0 0
      %5614 = vmatmul.mubr.bf16.gmra.mrb[0].mxu0 %v3504
      %v5615 = vpop.f32.mrb[0].mxu0
      %v5616 = vadd.f32 %v974, %v5615
      %v5617 = vpop.f32.mrb[0].mxu0
      %v5618 = vpop.f32.mrb[0].mxu0
      %v5619 = vadd.f32 %v974, %v5618
      %v5620 = vpop.f32.mrb[0].mxu0
      %5621 = vmatprep.mubr.bf16.mxu0 0
      %5622 = vmatmul.mubr.bf16.gmra.mrb[0].mxu0 %v3507
      %v5623 = vpop.f32.mrb[0].mxu0
      %v5624 = vadd.f32 %v974, %v5623
      %v5625 = vpop.f32.mrb[0].mxu0
      %v5626 = vpop.f32.mrb[0].mxu0
      %v5627 = vadd.f32 %v974, %v5626
      %v5628 = vpop.f32.mrb[0].mxu0
      %5629 = vmatprep.mubr.bf16.mxu0 0
      %5630 = vmatmul.mubr.bf16.gmra.mrb[0].mxu0 %v3510
      %v5631 = vpop.f32.mrb[0].mxu0
      %v5632 = vadd.f32 %v974, %v5631
      %v5633 = vpop.f32.mrb[0].mxu0
      %v5634 = vpop.f32.mrb[0].mxu0
      %v5635 = vadd.f32 %v974, %v5634
      %v5636 = vpop.f32.mrb[0].mxu0
      %5637 = vmatprep.mubr.bf16.mxu0 0
      %5638 = vmatmul.mubr.bf16.gmra.mrb[0].mxu0 %v3513
      %v5639 = vpop.f32.mrb[0].mxu0
      %v5640 = vadd.f32 %v974, %v5639
      %v5641 = vpop.f32.mrb[0].mxu0
      %v5642 = vpop.f32.mrb[0].mxu0
      %v5643 = vadd.f32 %v974, %v5642
      %v5644 = vpop.f32.mrb[0].mxu0
      %5645 = vmatprep.mubr.bf16.mxu0 0
      %5646 = vmatmul.mubr.bf16.gmra.mrb[0].mxu0 %v3516
      %v5647 = vpop.f32.mrb[0].mxu0
      %v5648 = vadd.f32 %v974, %v5647
      %v5649 = vpop.f32.mrb[0].mxu0
      %v5650 = vpop.f32.mrb[0].mxu0
      %v5651 = vadd.f32 %v974, %v5650
      %v5652 = vpop.f32.mrb[0].mxu0
      %5653 = vmatprep.mubr.bf16.mxu0 0
      %5654 = vmatmul.mubr.bf16.gmra.mrb[0].mxu0 %v3519
      %v5655 = vpop.f32.mrb[0].mxu0
      %v5656 = vadd.f32 %v974, %v5655
      %v5657 = vpop.f32.mrb[0].mxu0
      %v5658 = vpop.f32.mrb[0].mxu0
      %v5659 = vadd.f32 %v974, %v5658
      %v5660 = vpop.f32.mrb[0].mxu0
      %5661 = vmatprep.mubr.bf16.mxu0 0
      %5662 = vmatmul.mubr.bf16.gmra.mrb[0].mxu0 %v3522
      %v5663 = vpop.f32.mrb[0].mxu0
      %v5664 = vadd.f32 %v974, %v5663
      %v5665 = vpop.f32.mrb[0].mxu0
      %v5666 = vpop.f32.mrb[0].mxu0
      %v5667 = vadd.f32 %v974, %v5666
      %v5668 = vpop.f32.mrb[0].mxu0
      %5669 = vmatprep.mubr.bf16.mxu0 0
      %5670 = vmatmul.mubr.bf16.gmra.mrb[0].mxu0 %v3525
      %v5671 = vpop.f32.mrb[0].mxu0
      %v5672 = vadd.f32 %v974, %v5671
      %v5673 = vpop.f32.mrb[0].mxu0
      %v5674 = vpop.f32.mrb[0].mxu0
      %v5675 = vadd.f32 %v974, %v5674
      %v5676 = vpop.f32.mrb[0].mxu0
      %5677 = vmatprep.mubr.bf16.mxu0 0
      %5678 = vmatmul.mubr.bf16.gmra.mrb[0].mxu0 %v3528
      %v5679 = vpop.f32.mrb[0].mxu0
      %v5680 = vadd.f32 %v974, %v5679
      %v5681 = vpop.f32.mrb[0].mxu0
      %v5682 = vpop.f32.mrb[0].mxu0
      %v5683 = vadd.f32 %v974, %v5682
      %v5684 = vpop.f32.mrb[0].mxu0
      %5685 = vmatprep.mubr.bf16.mxu0 0
      %5686 = vmatmul.mubr.bf16.gmra.mrb[0].mxu0 %v3531
      %v5687 = vpop.f32.mrb[0].mxu0
      %v5688 = vadd.f32 %v974, %v5687
      %v5689 = vpop.f32.mrb[0].mxu0
      %v5690 = vpop.f32.mrb[0].mxu0
      %v5691 = vadd.f32 %v974, %v5690
      %v5692 = vpop.f32.mrb[0].mxu0
      %5693 = vmatprep.mubr.bf16.mxu0 0
      %5694 = vmatmul.mubr.bf16.gmra.mrb[0].mxu0 %v3534
      %v5695 = vpop.f32.mrb[0].mxu0
      %v5696 = vadd.f32 %v974, %v5695
      %v5697 = vpop.f32.mrb[0].mxu0
      %v5698 = vpop.f32.mrb[0].mxu0
      %v5699 = vadd.f32 %v974, %v5698
      %v5700 = vpop.f32.mrb[0].mxu0
      %5701 = vmatprep.mubr.bf16.mxu0 0
      %5702 = vmatmul.mubr.bf16.gmra.mrb[0].mxu0 %v3537
      %v5703 = vpop.f32.mrb[0].mxu0
      %v5704 = vadd.f32 %v974, %v5703
      %v5705 = vpop.f32.mrb[0].mxu0
      %v5706 = vpop.f32.mrb[0].mxu0
      %v5707 = vadd.f32 %v974, %v5706
      %v5708 = vpop.f32.mrb[0].mxu0
      %5709 = vmatprep.mubr.bf16.mxu0 0
      %5710 = vmatmul.mubr.bf16.gmra.mrb[0].mxu0 %v3540
      %v5711 = vpop.f32.mrb[0].mxu0
      %v5712 = vadd.f32 %v974, %v5711
      %v5713 = vpop.f32.mrb[0].mxu0
      %v5714 = vpop.f32.mrb[0].mxu0
      %v5715 = vadd.f32 %v974, %v5714
      %v5716 = vpop.f32.mrb[0].mxu0
      %5717 = vmatprep.mubr.bf16.mxu0 0
      %5718 = vmatmul.mubr.bf16.gmra.mrb[0].mxu0 %v3543
      %v5719 = vpop.f32.mrb[0].mxu0
      %v5720 = vadd.f32 %v974, %v5719
      %v5721 = vpop.f32.mrb[0].mxu0
      %v5722 = vpop.f32.mrb[0].mxu0
      %v5723 = vadd.f32 %v974, %v5722
      %v5724 = vpop.f32.mrb[0].mxu0
      %5725 = vmatprep.mubr.bf16.mxu0 0
      %5726 = vmatmul.mubr.bf16.gmra.mrb[0].mxu0 %v3546
      %v5727 = vpop.f32.mrb[0].mxu0
      %v5728 = vadd.f32 %v974, %v5727
      %v5729 = vpop.f32.mrb[0].mxu0
      %v5730 = vpop.f32.mrb[0].mxu0
      %v5731 = vadd.f32 %v974, %v5730
      %v5732 = vpop.f32.mrb[0].mxu0
      %5733 = vmatprep.mubr.bf16.mxu0 0
      %5734 = vmatmul.mubr.bf16.gmra.mrb[0].mxu0 %v3549
      %v5735 = vpop.f32.mrb[0].mxu0
      %v5736 = vadd.f32 %v974, %v5735
      %v5737 = vpop.f32.mrb[0].mxu0
      %v5738 = vpop.f32.mrb[0].mxu0
      %v5739 = vadd.f32 %v974, %v5738
      %v5740 = vpop.f32.mrb[0].mxu0
      %5741 = vmatprep.mubr.bf16.mxu0 0
      %5742 = vmatmul.mubr.bf16.gmra.mrb[0].mxu0 %v3552
      %v5743 = vpop.f32.mrb[0].mxu0
      %v5744 = vadd.f32 %v974, %v5743
      %v5745 = vpop.f32.mrb[0].mxu0
      %v5746 = vpop.f32.mrb[0].mxu0
      %v5747 = vadd.f32 %v974, %v5746
      %v5748 = vpop.f32.mrb[0].mxu0
      %5749 = vmatprep.mubr.bf16.mxu0 0
      %5750 = vmatmul.mubr.bf16.gmra.mrb[0].mxu0 %v3555
      %v5751 = vpop.f32.mrb[0].mxu0
      %v5752 = vadd.f32 %v974, %v5751
      %v5753 = vpop.f32.mrb[0].mxu0
      %v5754 = vpop.f32.mrb[0].mxu0
      %v5755 = vadd.f32 %v974, %v5754
      %v5756 = vpop.f32.mrb[0].mxu0
      %5757 = vmatprep.mubr.bf16.mxu0 0
      %5758 = vmatmul.mubr.bf16.gmra.mrb[0].mxu0 %v3558
      %v5759 = vpop.f32.mrb[0].mxu0
      %v5760 = vadd.f32 %v974, %v5759
      %v5761 = vpop.f32.mrb[0].mxu0
      %v5762 = vpop.f32.mrb[0].mxu0
      %v5763 = vadd.f32 %v974, %v5762
      %v5764 = vpop.f32.mrb[0].mxu0
      %5765 = vmatprep.mubr.bf16.mxu0 0
      %5766 = vmatmul.mubr.bf16.gmra.mrb[0].mxu0 %v3561
      %v5767 = vpop.f32.mrb[0].mxu0
      %v5768 = vadd.f32 %v974, %v5767
      %v5769 = vpop.f32.mrb[0].mxu0
      %v5770 = vpop.f32.mrb[0].mxu0
      %v5771 = vadd.f32 %v974, %v5770
      %v5772 = vpop.f32.mrb[0].mxu0
      %5773 = vmatprep.mubr.bf16.mxu0 0
      %5774 = vmatmul.mubr.bf16.gmra.mrb[0].mxu0 %v3564
      %v5775 = vpop.f32.mrb[0].mxu0
      %v5776 = vadd.f32 %v974, %v5775
      %v5777 = vpop.f32.mrb[0].mxu0
      %v5778 = vpop.f32.mrb[0].mxu0
      %v5779 = vadd.f32 %v974, %v5778
      %v5780 = vpop.f32.mrb[0].mxu0
      %5781 = vmatprep.mubr.bf16.mxu0 0
      %5782 = vmatmul.mubr.bf16.gmra.mrb[0].mxu0 %v3567
      %v5783 = vpop.f32.mrb[0].mxu0
      %v5784 = vadd.f32 %v974, %v5783
      %v5785 = vpop.f32.mrb[0].mxu0
      %v5786 = vpop.f32.mrb[0].mxu0
      %v5787 = vadd.f32 %v974, %v5786
      %v5788 = vpop.f32.mrb[0].mxu0
      %5789 = vmatprep.mubr.bf16.mxu0 0
      %5790 = vmatmul.mubr.bf16.gmra.mrb[0].mxu0 %v3570
      %v5791 = vpop.f32.mrb[0].mxu0
      %v5792 = vadd.f32 %v974, %v5791
      %v5793 = vpop.f32.mrb[0].mxu0
      %v5794 = vpop.f32.mrb[0].mxu0
      %v5795 = vadd.f32 %v974, %v5794
      %v5796 = vpop.f32.mrb[0].mxu0
      %5797 = vmatprep.mubr.bf16.mxu0 0
      %5798 = vmatmul.mubr.bf16.gmra.mrb[0].mxu0 %v3573
      %v5799 = vpop.f32.mrb[0].mxu0
      %v5800 = vadd.f32 %v974, %v5799
      %v5801 = vpop.f32.mrb[0].mxu0
      %v5802 = vpop.f32.mrb[0].mxu0
      %v5803 = vadd.f32 %v974, %v5802
      %v5804 = vpop.f32.mrb[0].mxu0
      %5805 = vmatprep.mubr.bf16.mxu0 0
      %5806 = vmatmul.mubr.bf16.gmra.mrb[0].mxu0 %v3576
      %v5807 = vpop.f32.mrb[0].mxu0
      %v5808 = vadd.f32 %v974, %v5807
      %v5809 = vpop.f32.mrb[0].mxu0
      %v5810 = vpop.f32.mrb[0].mxu0
      %v5811 = vadd.f32 %v974, %v5810
      %v5812 = vpop.f32.mrb[0].mxu0
      %5813 = vmatprep.mubr.bf16.mxu0 0
      %5814 = vmatmul.mubr.bf16.gmra.mrb[0].mxu0 %v3579
      %v5815 = vpop.f32.mrb[0].mxu0
      %v5816 = vadd.f32 %v974, %v5815
      %v5817 = vpop.f32.mrb[0].mxu0
      %v5818 = vpop.f32.mrb[0].mxu0
      %v5819 = vadd.f32 %v974, %v5818
      %v5820 = vpop.f32.mrb[0].mxu0
      %5821 = vmatprep.mubr.bf16.mxu0 0
      %5822 = vmatmul.mubr.bf16.gmra.mrb[0].mxu0 %v3582
      %v5823 = vpop.f32.mrb[0].mxu0
      %v5824 = vadd.f32 %v974, %v5823
      %v5825 = vpop.f32.mrb[0].mxu0
      %v5826 = vpop.f32.mrb[0].mxu0
      %v5827 = vadd.f32 %v974, %v5826
      %v5828 = vpop.f32.mrb[0].mxu0
      %5829 = vmatprep.mubr.bf16.mxu0 0
      %5830 = vmatmul.mubr.bf16.gmra.mrb[0].mxu0 %v3585
      %v5831 = vpop.f32.mrb[0].mxu0
      %v5832 = vadd.f32 %v974, %v5831
      %v5833 = vpop.f32.mrb[0].mxu0
      %v5834 = vpop.f32.mrb[0].mxu0
      %v5835 = vadd.f32 %v974, %v5834
      %v5836 = vpop.f32.mrb[0].mxu0
      %5837 = vmatprep.mubr.bf16.mxu0 0
      %5838 = vmatmul.mubr.bf16.gmra.mrb[0].mxu0 %v3588
      %v5839 = vpop.f32.mrb[0].mxu0
      %v5840 = vadd.f32 %v974, %v5839
      %v5841 = vpop.f32.mrb[0].mxu0
      %v5842 = vpop.f32.mrb[0].mxu0
      %v5843 = vadd.f32 %v974, %v5842
      %v5844 = vpop.f32.mrb[0].mxu0
      %5845 = vmatprep.mubr.bf16.mxu0 0
      %5846 = vmatmul.mubr.bf16.gmra.mrb[0].mxu0 %v3591
      %v5847 = vpop.f32.mrb[0].mxu0
      %v5848 = vadd.f32 %v974, %v5847
      %v5849 = vpop.f32.mrb[0].mxu0
      %v5850 = vpop.f32.mrb[0].mxu0
      %v5851 = vadd.f32 %v974, %v5850
      %v5852 = vpop.f32.mrb[0].mxu0
      %5853 = vmatprep.mubr.bf16.mxu0 0
      %5854 = vmatmul.mubr.bf16.gmra.mrb[0].mxu0 %v3594
      %v5855 = vpop.f32.mrb[0].mxu0
      %v5856 = vadd.f32 %v974, %v5855
      %v5857 = vpop.f32.mrb[0].mxu0
      %v5858 = vpop.f32.mrb[0].mxu0
      %v5859 = vadd.f32 %v974, %v5858
      %v5860 = vpop.f32.mrb[0].mxu0
      %5861 = vmatprep.mubr.bf16.mxu0 0
      %5862 = vmatmul.mubr.bf16.gmra.mrb[0].mxu0 %v3597
      %v5863 = vpop.f32.mrb[0].mxu0
      %v5864 = vadd.f32 %v974, %v5863
      %v5865 = vpop.f32.mrb[0].mxu0
      %v5866 = vpop.f32.mrb[0].mxu0
      %v5867 = vadd.f32 %v974, %v5866
      %v5868 = vpop.f32.mrb[0].mxu0
      %5869 = vmatprep.mubr.bf16.mxu0 0
      %5870 = vmatmul.mubr.bf16.gmra.mrb[0].mxu0 %v3600
      %v5871 = vpop.f32.mrb[0].mxu0
      %v5872 = vadd.f32 %v974, %v5871
      %v5873 = vpop.f32.mrb[0].mxu0
      %v5874 = vpop.f32.mrb[0].mxu0
      %v5875 = vadd.f32 %v974, %v5874
      %v5876 = vpop.f32.mrb[0].mxu0
      %5877 = vmatprep.mubr.bf16.mxu0 0
      %5878 = vmatmul.mubr.bf16.gmra.mrb[0].mxu0 %v3603
      %v5879 = vpop.f32.mrb[0].mxu0
      %v5880 = vadd.f32 %v974, %v5879
      %v5881 = vpop.f32.mrb[0].mxu0
      %v5882 = vpop.f32.mrb[0].mxu0
      %v5883 = vadd.f32 %v974, %v5882
      %v5884 = vpop.f32.mrb[0].mxu0
      %5885 = vmatprep.mubr.bf16.mxu0 0
      %5886 = vmatmul.mubr.bf16.gmra.mrb[0].mxu0 %v3606
      %v5887 = vpop.f32.mrb[0].mxu0
      %v5888 = vadd.f32 %v974, %v5887
      %v5889 = vpop.f32.mrb[0].mxu0
      %v5890 = vpop.f32.mrb[0].mxu0
      %v5891 = vadd.f32 %v974, %v5890
      %v5892 = vpop.f32.mrb[0].mxu0
      %5893 = vmatprep.mubr.bf16.mxu0 0
      %5894 = vmatmul.mubr.bf16.gmra.mrb[0].mxu0 %v3609
      %v5895 = vpop.f32.mrb[0].mxu0
      %v5896 = vadd.f32 %v974, %v5895
      %v5897 = vpop.f32.mrb[0].mxu0
      %v5898 = vpop.f32.mrb[0].mxu0
      %v5899 = vadd.f32 %v974, %v5898
      %v5900 = vpop.f32.mrb[0].mxu0
      %5901 = vmatprep.mubr.bf16.mxu0 0
      %5902 = vmatmul.mubr.bf16.gmra.mrb[0].mxu0 %v3612
      %v5903 = vpop.f32.mrb[0].mxu0
      %v5904 = vadd.f32 %v974, %v5903
      %v5905 = vpop.f32.mrb[0].mxu0
      %v5906 = vpop.f32.mrb[0].mxu0
      %v5907 = vadd.f32 %v974, %v5906
      %v5908 = vpop.f32.mrb[0].mxu0
      %5909 = vmatprep.mubr.bf16.mxu0 0
      %5910 = vmatmul.mubr.bf16.gmra.mrb[0].mxu0 %v3615
      %v5911 = vpop.f32.mrb[0].mxu0
      %v5912 = vadd.f32 %v974, %v5911
      %v5913 = vpop.f32.mrb[0].mxu0
      %v5914 = vpop.f32.mrb[0].mxu0
      %v5915 = vadd.f32 %v974, %v5914
      %v5916 = vpop.f32.mrb[0].mxu0
      %5917 = vmatprep.mubr.bf16.mxu0 0
      %5918 = vmatmul.mubr.bf16.gmra.mrb[0].mxu0 %v3618
      %v5919 = vpop.f32.mrb[0].mxu0
      %v5920 = vadd.f32 %v974, %v5919
      %v5921 = vpop.f32.mrb[0].mxu0
      %v5922 = vpop.f32.mrb[0].mxu0
      %v5923 = vadd.f32 %v974, %v5922
      %v5924 = vpop.f32.mrb[0].mxu0
      %5925 = vmatprep.mubr.bf16.mxu0 0
      %5926 = vmatmul.mubr.bf16.gmra.mrb[0].mxu0 %v3621
      %v5927 = vpop.f32.mrb[0].mxu0
      %v5928 = vadd.f32 %v974, %v5927
      %v5929 = vpop.f32.mrb[0].mxu0
      %v5930 = vpop.f32.mrb[0].mxu0
      %v5931 = vadd.f32 %v974, %v5930
      %v5932 = vpop.f32.mrb[0].mxu0
      %5933 = vmatprep.mubr.bf16.mxu0 0
      %5934 = vmatmul.mubr.bf16.gmra.mrb[0].mxu0 %v3624
      %v5935 = vpop.f32.mrb[0].mxu0
      %v5936 = vadd.f32 %v974, %v5935
      %v5937 = vpop.f32.mrb[0].mxu0
      %v5938 = vpop.f32.mrb[0].mxu0
      %v5939 = vadd.f32 %v974, %v5938
      %v5940 = vpop.f32.mrb[0].mxu0
      %5941 = vmatprep.mubr.bf16.mxu0 0
      %5942 = vmatmul.mubr.bf16.gmra.mrb[0].mxu0 %v3627
      %v5943 = vpop.f32.mrb[0].mxu0
      %v5944 = vadd.f32 %v974, %v5943
      %v5945 = vpop.f32.mrb[0].mxu0
      %v5946 = vpop.f32.mrb[0].mxu0
      %v5947 = vadd.f32 %v974, %v5946
      %v5948 = vpop.f32.mrb[0].mxu0
      %5949 = vmatprep.mubr.bf16.mxu0 0
      %5950 = vmatmul.mubr.bf16.gmra.mrb[0].mxu0 %v3630
      %v5951 = vpop.f32.mrb[0].mxu0
      %v5952 = vadd.f32 %v974, %v5951
      %v5953 = vpop.f32.mrb[0].mxu0
      %v5954 = vpop.f32.mrb[0].mxu0
      %v5955 = vadd.f32 %v974, %v5954
      %v5956 = vpop.f32.mrb[0].mxu0
      %5957 = vmatprep.mubr.bf16.mxu0 0
      %5958 = vmatmul.mubr.bf16.gmra.mrb[0].mxu0 %v3633
      %v5959 = vpop.f32.mrb[0].mxu0
      %v5960 = vadd.f32 %v974, %v5959
      %v5961 = vpop.f32.mrb[0].mxu0
      %v5962 = vpop.f32.mrb[0].mxu0
      %v5963 = vadd.f32 %v974, %v5962
      %v5964 = vpop.f32.mrb[0].mxu0
      %5965 = vmatprep.mubr.bf16.mxu0 0
      %5966 = vmatmul.mubr.bf16.gmra.mrb[0].mxu0 %v3636
      %v5967 = vpop.f32.mrb[0].mxu0
      %v5968 = vadd.f32 %v974, %v5967
      %v5969 = vpop.f32.mrb[0].mxu0
      %v5970 = vpop.f32.mrb[0].mxu0
      %v5971 = vadd.f32 %v974, %v5970
      %v5972 = vpop.f32.mrb[0].mxu0
      %5973 = vmatprep.mubr.bf16.mxu0 0
      %5974 = vmatmul.mubr.bf16.gmra.mrb[0].mxu0 %v3639
      %v5975 = vpop.f32.mrb[0].mxu0
      %v5976 = vadd.f32 %v974, %v5975
      %v5977 = vpop.f32.mrb[0].mxu0
      %v5978 = vpop.f32.mrb[0].mxu0
      %v5979 = vadd.f32 %v974, %v5978
      %v5980 = vpop.f32.mrb[0].mxu0
      %5981 = vmatprep.mubr.bf16.mxu0 0
      %5982 = vmatmul.mubr.bf16.gmra.mrb[0].mxu0 %v3642
      %v5983 = vpop.f32.mrb[0].mxu0
      %v5984 = vadd.f32 %v974, %v5983
      %v5985 = vpop.f32.mrb[0].mxu0
      %v5986 = vpop.f32.mrb[0].mxu0
      %v5987 = vadd.f32 %v974, %v5986
      %v5988 = vpop.f32.mrb[0].mxu0
      %5989 = vmatprep.mubr.bf16.mxu0 0
      %5990 = vmatmul.mubr.bf16.gmra.mrb[0].mxu0 %v3645
      %v5991 = vpop.f32.mrb[0].mxu0
      %v5992 = vadd.f32 %v974, %v5991
      %v5993 = vpop.f32.mrb[0].mxu0
      %v5994 = vpop.f32.mrb[0].mxu0
      %v5995 = vadd.f32 %v974, %v5994
      %v5996 = vpop.f32.mrb[0].mxu0
      %5997 = vmatprep.mubr.bf16.mxu0 0
      %5998 = vmatmul.mubr.bf16.gmra.mrb[0].mxu0 %v3648
      %v5999 = vpop.f32.mrb[0].mxu0
      %v6000 = vadd.f32 %v974, %v5999
      %v6001 = vpop.f32.mrb[0].mxu0
      %v6002 = vpop.f32.mrb[0].mxu0
      %v6003 = vadd.f32 %v974, %v6002
      %v6004 = vpop.f32.mrb[0].mxu0
      %6005 = vmatprep.mubr.bf16.mxu0 0
      %6006 = vmatmul.mubr.bf16.gmra.mrb[0].mxu0 %v3651
      %v6007 = vpop.f32.mrb[0].mxu0
      %v6008 = vadd.f32 %v974, %v6007
      %v6009 = vpop.f32.mrb[0].mxu0
      %v6010 = vpop.f32.mrb[0].mxu0
      %v6011 = vadd.f32 %v974, %v6010
      %v6012 = vpop.f32.mrb[0].mxu0
      %6013 = vmatprep.mubr.bf16.mxu0 0
      %6014 = vmatmul.mubr.bf16.gmra.mrb[0].mxu0 %v3654
      %v6015 = vpop.f32.mrb[0].mxu0
      %v6016 = vadd.f32 %v974, %v6015
      %v6017 = vpop.f32.mrb[0].mxu0
      %v6018 = vpop.f32.mrb[0].mxu0
      %v6019 = vadd.f32 %v974, %v6018
      %v6020 = vpop.f32.mrb[0].mxu0
      %6021 = vmatprep.mubr.bf16.mxu0 0
      %6022 = vmatmul.mubr.bf16.gmra.mrb[0].mxu0 %v3657
      %v6023 = vpop.f32.mrb[0].mxu0
      %v6024 = vadd.f32 %v974, %v6023
      %v6025 = vpop.f32.mrb[0].mxu0
      %v6026 = vpop.f32.mrb[0].mxu0
      %v6027 = vadd.f32 %v974, %v6026
      %v6028 = vpop.f32.mrb[0].mxu0
      %6029 = vmatprep.mubr.bf16.mxu0 0
      %6030 = vmatmul.mubr.bf16.gmra.mrb[0].mxu0 %v3660
      %v6031 = vpop.f32.mrb[0].mxu0
      %v6032 = vadd.f32 %v974, %v6031
      %v6033 = vpop.f32.mrb[0].mxu0
      %v6034 = vpop.f32.mrb[0].mxu0
      %v6035 = vadd.f32 %v974, %v6034
      %v6036 = vpop.f32.mrb[0].mxu0
      %6037 = vmatprep.mubr.bf16.mxu0 0
      %6038 = vmatmul.mubr.bf16.gmra.mrb[0].mxu0 %v3663
      %v6039 = vpop.f32.mrb[0].mxu0
      %v6040 = vadd.f32 %v974, %v6039
      %v6041 = vpop.f32.mrb[0].mxu0
      %v6042 = vpop.f32.mrb[0].mxu0
      %v6043 = vadd.f32 %v974, %v6042
      %v6044 = vpop.f32.mrb[0].mxu0
      %6045 = vmatprep.mubr.bf16.mxu0 0
      %6046 = vmatmul.mubr.bf16.gmra.mrb[0].mxu0 %v3666
      %v6047 = vpop.f32.mrb[0].mxu0
      %v6048 = vadd.f32 %v974, %v6047
      %v6049 = vpop.f32.mrb[0].mxu0
      %v6050 = vpop.f32.mrb[0].mxu0
      %v6051 = vadd.f32 %v974, %v6050
      %v6052 = vpop.f32.mrb[0].mxu0
      %6053 = vmatprep.mubr.bf16.mxu0 0
      %6054 = vmatmul.mubr.bf16.gmra.mrb[0].mxu0 %v3669
      %v6055 = vpop.f32.mrb[0].mxu0
      %v6056 = vadd.f32 %v974, %v6055
      %v6057 = vpop.f32.mrb[0].mxu0
      %v6058 = vpop.f32.mrb[0].mxu0
      %v6059 = vadd.f32 %v974, %v6058
      %v6060 = vpop.f32.mrb[0].mxu0
      %6061 = vmatprep.mubr.bf16.mxu0 0
      %6062 = vmatmul.mubr.bf16.gmra.mrb[0].mxu0 %v3672
      %v6063 = vpop.f32.mrb[0].mxu0
      %v6064 = vadd.f32 %v974, %v6063
      %v6065 = vpop.f32.mrb[0].mxu0
      %v6066 = vpop.f32.mrb[0].mxu0
      %v6067 = vadd.f32 %v974, %v6066
      %v6068 = vpop.f32.mrb[0].mxu0
      %6069 = vmatprep.mubr.bf16.mxu0 0
      %6070 = vmatmul.mubr.bf16.gmra.mrb[0].mxu0 %v3675
      %v6071 = vpop.f32.mrb[0].mxu0
      %v6072 = vadd.f32 %v974, %v6071
      %v6073 = vpop.f32.mrb[0].mxu0
      %v6074 = vpop.f32.mrb[0].mxu0
      %v6075 = vadd.f32 %v974, %v6074
      %v6076 = vpop.f32.mrb[0].mxu0
      %6077 = vmatprep.mubr.bf16.mxu0 0
      %6078 = vmatmul.mubr.bf16.gmra.mrb[0].mxu0 %v3678
      %v6079 = vpop.f32.mrb[0].mxu0
      %v6080 = vadd.f32 %v974, %v6079
      %v6081 = vpop.f32.mrb[0].mxu0
      %v6082 = vpop.f32.mrb[0].mxu0
      %v6083 = vadd.f32 %v974, %v6082
      %v6084 = vpop.f32.mrb[0].mxu0
      %6085 = vmatprep.mubr.bf16.mxu0 0
      %6086 = vmatmul.mubr.bf16.gmra.mrb[0].mxu0 %v3681
      %v6087 = vpop.f32.mrb[0].mxu0
      %v6088 = vadd.f32 %v974, %v6087
      %v6089 = vpop.f32.mrb[0].mxu0
      %v6090 = vpop.f32.mrb[0].mxu0
      %v6091 = vadd.f32 %v974, %v6090
      %v6092 = vpop.f32.mrb[0].mxu0
      %6093 = vmatprep.mubr.bf16.mxu0 0
      %6094 = vmatmul.mubr.bf16.gmra.mrb[0].mxu0 %v3684
      %v6095 = vpop.f32.mrb[0].mxu0
      %v6096 = vadd.f32 %v974, %v6095
      %v6097 = vpop.f32.mrb[0].mxu0
      %v6098 = vpop.f32.mrb[0].mxu0
      %v6099 = vadd.f32 %v974, %v6098
      %v6100 = vpop.f32.mrb[0].mxu0
      %6101 = vmatprep.mubr.bf16.mxu0 0
      %6102 = vmatmul.mubr.bf16.gmra.mrb[0].mxu0 %v3687
      %v6103 = vpop.f32.mrb[0].mxu0
      %v6104 = vadd.f32 %v974, %v6103
      %v6105 = vpop.f32.mrb[0].mxu0
      %v6106 = vpop.f32.mrb[0].mxu0
      %v6107 = vadd.f32 %v974, %v6106
      %v6108 = vpop.f32.mrb[0].mxu0
      %6109 = vmatprep.mubr.bf16.mxu0 0
      %6110 = vmatmul.mubr.bf16.gmra.mrb[0].mxu0 %v3690
      %v6111 = vpop.f32.mrb[0].mxu0
      %v6112 = vadd.f32 %v974, %v6111
      %v6113 = vpop.f32.mrb[0].mxu0
      %v6114 = vpop.f32.mrb[0].mxu0
      %v6115 = vadd.f32 %v974, %v6114
      %v6116 = vpop.f32.mrb[0].mxu0
      %6117 = vmatprep.mubr.bf16.mxu0 0
      %6118 = vmatmul.mubr.bf16.gmra.mrb[0].mxu0 %v3693
      %v6119 = vpop.f32.mrb[0].mxu0
      %v6120 = vadd.f32 %v974, %v6119
      %v6121 = vpop.f32.mrb[0].mxu0
      %v6122 = vpop.f32.mrb[0].mxu0
      %v6123 = vadd.f32 %v974, %v6122
      %v6124 = vpop.f32.mrb[0].mxu0
      %6125 = vmatprep.mubr.bf16.mxu0 0
      %6126 = vmatmul.mubr.bf16.gmra.mrb[0].mxu0 %v3696
      %v6127 = vpop.f32.mrb[0].mxu0
      %v6128 = vadd.f32 %v974, %v6127
      %v6129 = vpop.f32.mrb[0].mxu0
      %v6130 = vpop.f32.mrb[0].mxu0
      %v6131 = vadd.f32 %v974, %v6130
      %v6132 = vpop.f32.mrb[0].mxu0
      %6133 = vmatprep.mubr.bf16.mxu0 0
      %6134 = vmatmul.mubr.bf16.gmra.mrb[0].mxu0 %v3699
      %v6135 = vpop.f32.mrb[0].mxu0
      %v6136 = vadd.f32 %v974, %v6135
      %v6137 = vpop.f32.mrb[0].mxu0
      %v6138 = vpop.f32.mrb[0].mxu0
      %v6139 = vadd.f32 %v974, %v6138
      %v6140 = vpop.f32.mrb[0].mxu0
      %6141 = vmatprep.mubr.bf16.mxu0 0
      %6142 = vmatmul.mubr.bf16.gmra.mrb[0].mxu0 %v3702
      %v6143 = vpop.f32.mrb[0].mxu0
      %v6144 = vadd.f32 %v974, %v6143
      %v6145 = vpop.f32.mrb[0].mxu0
      %v6146 = vpop.f32.mrb[0].mxu0
      %v6147 = vadd.f32 %v974, %v6146
      %v6148 = vpop.f32.mrb[0].mxu0
      %6149 = vmatprep.mubr.bf16.mxu0 0
      %6150 = vmatmul.mubr.bf16.gmra.mrb[0].mxu0 %v3705
      %v6151 = vpop.f32.mrb[0].mxu0
      %v6152 = vadd.f32 %v974, %v6151
      %v6153 = vpop.f32.mrb[0].mxu0
      %v6154 = vpop.f32.mrb[0].mxu0
      %v6155 = vadd.f32 %v974, %v6154
      %v6156 = vpop.f32.mrb[0].mxu0
      %6157 = vmatprep.mubr.bf16.mxu0 0
      %6158 = vmatmul.mubr.bf16.gmra.mrb[0].mxu0 %v3708
      %v6159 = vpop.f32.mrb[0].mxu0
      %v6160 = vadd.f32 %v974, %v6159
      %v6161 = vpop.f32.mrb[0].mxu0
      %v6162 = vpop.f32.mrb[0].mxu0
      %v6163 = vadd.f32 %v974, %v6162
      %v6164 = vpop.f32.mrb[0].mxu0
      %6165 = vmatprep.mubr.bf16.mxu0 0
      %6166 = vmatmul.mubr.bf16.gmra.mrb[0].mxu0 %v3711
      %v6167 = vpop.f32.mrb[0].mxu0
      %v6168 = vadd.f32 %v974, %v6167
      %v6169 = vpop.f32.mrb[0].mxu0
      %v6170 = vpop.f32.mrb[0].mxu0
      %v6171 = vadd.f32 %v974, %v6170
      %v6172 = vpop.f32.mrb[0].mxu0
      %6173 = vmatprep.mubr.bf16.mxu0 0
      %6174 = vmatmul.mubr.bf16.gmra.mrb[0].mxu0 %v3714
      %v6175 = vpop.f32.mrb[0].mxu0
      %v6176 = vadd.f32 %v974, %v6175
      %v6177 = vpop.f32.mrb[0].mxu0
      %v6178 = vpop.f32.mrb[0].mxu0
      %v6179 = vadd.f32 %v974, %v6178
      %v6180 = vpop.f32.mrb[0].mxu0
      %6181 = vmatprep.mubr.bf16.mxu0 0
      %6182 = vmatmul.mubr.bf16.gmra.mrb[0].mxu0 %v3717
      %v6183 = vpop.f32.mrb[0].mxu0
      %v6184 = vadd.f32 %v974, %v6183
      %v6185 = vpop.f32.mrb[0].mxu0
      %v6186 = vpop.f32.mrb[0].mxu0
      %v6187 = vadd.f32 %v974, %v6186
      %v6188 = vpop.f32.mrb[0].mxu0
      %6189 = vmatprep.mubr.bf16.mxu0 0
      %6190 = vmatmul.mubr.bf16.gmra.mrb[0].mxu0 %v3720
      %v6191 = vpop.f32.mrb[0].mxu0
      %v6192 = vadd.f32 %v974, %v6191
      %v6193 = vpop.f32.mrb[0].mxu0
      %v6194 = vpop.f32.mrb[0].mxu0
      %v6195 = vadd.f32 %v974, %v6194
      %v6196 = vpop.f32.mrb[0].mxu0
      %6197 = vmatprep.mubr.bf16.mxu0 0
      %6198 = vmatmul.mubr.bf16.gmra.mrb[0].mxu0 %v3723
      %v6199 = vpop.f32.mrb[0].mxu0
      %v6200 = vadd.f32 %v974, %v6199
      %v6201 = vpop.f32.mrb[0].mxu0
      %v6202 = vpop.f32.mrb[0].mxu0
      %v6203 = vadd.f32 %v974, %v6202
      %v6204 = vpop.f32.mrb[0].mxu0
      %6205 = vmatprep.mubr.bf16.mxu0 0
      %6206 = vmatmul.mubr.bf16.gmra.mrb[0].mxu0 %v3726
      %v6207 = vpop.f32.mrb[0].mxu0
      %v6208 = vadd.f32 %v974, %v6207
      %v6209 = vpop.f32.mrb[0].mxu0
      %v6210 = vpop.f32.mrb[0].mxu0
      %v6211 = vadd.f32 %v974, %v6210
      %v6212 = vpop.f32.mrb[0].mxu0
      %6213 = vmatprep.mubr.bf16.mxu0 0
      %6214 = vmatmul.mubr.bf16.gmra.mrb[0].mxu0 %v3729
      %v6215 = vpop.f32.mrb[0].mxu0
      %v6216 = vadd.f32 %v974, %v6215
      %v6217 = vpop.f32.mrb[0].mxu0
      %v6218 = vpop.f32.mrb[0].mxu0
      %v6219 = vadd.f32 %v974, %v6218
      %v6220 = vpop.f32.mrb[0].mxu0
      %6221 = vmatprep.mubr.bf16.mxu0 0
      %6222 = vmatmul.mubr.bf16.gmra.mrb[0].mxu0 %v3732
      %v6223 = vpop.f32.mrb[0].mxu0
      %v6224 = vadd.f32 %v974, %v6223
      %v6225 = vpop.f32.mrb[0].mxu0
      %v6226 = vpop.f32.mrb[0].mxu0
      %v6227 = vadd.f32 %v974, %v6226
      %v6228 = vpop.f32.mrb[0].mxu0
      %6229 = vmatprep.mubr.bf16.mxu0 0
      %6230 = vmatmul.mubr.bf16.gmra.mrb[0].mxu0 %v3735
      %v6231 = vpop.f32.mrb[0].mxu0
      %v6232 = vadd.f32 %v974, %v6231
      %v6233 = vpop.f32.mrb[0].mxu0
      %v6234 = vpop.f32.mrb[0].mxu0
      %v6235 = vadd.f32 %v974, %v6234
      %v6236 = vpop.f32.mrb[0].mxu0
      %6237 = vmatprep.mubr.bf16.mxu0 0
      %6238 = vmatmul.mubr.bf16.gmra.mrb[0].mxu0 %v3738
      %v6239 = vpop.f32.mrb[0].mxu0
      %v6240 = vadd.f32 %v974, %v6239
      %v6241 = vpop.f32.mrb[0].mxu0
      %v6242 = vpop.f32.mrb[0].mxu0
      %v6243 = vadd.f32 %v974, %v6242
      %v6244 = vpop.f32.mrb[0].mxu0
      %6245 = vmatprep.mubr.bf16.mxu0 0
      %6246 = vmatmul.mubr.bf16.gmra.mrb[0].mxu0 %v3741
      %v6247 = vpop.f32.mrb[0].mxu0
      %v6248 = vadd.f32 %v974, %v6247
      %v6249 = vpop.f32.mrb[0].mxu0
      %v6250 = vpop.f32.mrb[0].mxu0
      %v6251 = vadd.f32 %v974, %v6250
      %v6252 = vpop.f32.mrb[0].mxu0
      %6253 = vmatprep.mubr.bf16.mxu0 0
      %6254 = vmatmul.mubr.bf16.gmra.mrb[0].mxu0 %v3744
      %v6255 = vpop.f32.mrb[0].mxu0
      %v6256 = vadd.f32 %v974, %v6255
      %v6257 = vpop.f32.mrb[0].mxu0
      %v6258 = vpop.f32.mrb[0].mxu0
      %v6259 = vadd.f32 %v974, %v6258
      %v6260 = vpop.f32.mrb[0].mxu0
      %6261 = vmatprep.mubr.bf16.mxu0 0
      %6262 = vmatmul.mubr.bf16.gmra.mrb[0].mxu0 %v3747
      %v6263 = vpop.f32.mrb[0].mxu0
      %v6264 = vadd.f32 %v974, %v6263
      %v6265 = vpop.f32.mrb[0].mxu0
      %v6266 = vpop.f32.mrb[0].mxu0
      %v6267 = vadd.f32 %v974, %v6266
      %v6268 = vpop.f32.mrb[0].mxu0
      %6269 = vmatprep.mubr.bf16.mxu0 0
      %6270 = vmatmul.mubr.bf16.gmra.mrb[0].mxu0 %v3750
      %v6271 = vpop.f32.mrb[0].mxu0
      %v6272 = vadd.f32 %v974, %v6271
      %v6273 = vpop.f32.mrb[0].mxu0
      %v6274 = vpop.f32.mrb[0].mxu0
      %v6275 = vadd.f32 %v974, %v6274
      %v6276 = vpop.f32.mrb[0].mxu0
      %6277 = vmatprep.mubr.bf16.mxu0 0
      %6278 = vmatmul.mubr.bf16.gmra.mrb[0].mxu0 %v3753
      %v6279 = vpop.f32.mrb[0].mxu0
      %v6280 = vadd.f32 %v974, %v6279
      %v6281 = vpop.f32.mrb[0].mxu0
      %v6282 = vpop.f32.mrb[0].mxu0
      %v6283 = vadd.f32 %v974, %v6282
      %v6284 = vpop.f32.mrb[0].mxu0
      %6285 = vmatprep.mubr.bf16.mxu0 0
      %6286 = vmatmul.mubr.bf16.gmra.mrb[0].mxu0 %v3756
      %v6287 = vpop.f32.mrb[0].mxu0
      %v6288 = vadd.f32 %v974, %v6287
      %v6289 = vpop.f32.mrb[0].mxu0
      %v6290 = vpop.f32.mrb[0].mxu0
      %v6291 = vadd.f32 %v974, %v6290
      %v6292 = vpop.f32.mrb[0].mxu0
      %6293 = vmatprep.mubr.bf16.mxu0 0
      %6294 = vmatmul.mubr.bf16.gmra.mrb[0].mxu0 %v3759
      %v6295 = vpop.f32.mrb[0].mxu0
      %v6296 = vadd.f32 %v974, %v6295
      %v6297 = vpop.f32.mrb[0].mxu0
      %v6298 = vpop.f32.mrb[0].mxu0
      %v6299 = vadd.f32 %v974, %v6298
      %v6300 = vpop.f32.mrb[0].mxu0
      %6301 = vmatprep.mubr.bf16.mxu0 0
      %6302 = vmatmul.mubr.bf16.gmra.mrb[0].mxu0 %v3762
      %v6303 = vpop.f32.mrb[0].mxu0
      %v6304 = vadd.f32 %v974, %v6303
      %v6305 = vpop.f32.mrb[0].mxu0
      %v6306 = vpop.f32.mrb[0].mxu0
      %v6307 = vadd.f32 %v974, %v6306
      %v6308 = vpop.f32.mrb[0].mxu0
      %6309 = vmatprep.mubr.bf16.mxu0 0
      %6310 = vmatmul.mubr.bf16.gmra.mrb[0].mxu0 %v3765
      %v6311 = vpop.f32.mrb[0].mxu0
      %v6312 = vadd.f32 %v974, %v6311
      %v6313 = vpop.f32.mrb[0].mxu0
      %v6314 = vpop.f32.mrb[0].mxu0
      %v6315 = vadd.f32 %v974, %v6314
      %v6316 = vpop.f32.mrb[0].mxu0
      %6317 = vmatprep.mubr.bf16.mxu0 0
      %6318 = vmatmul.mubr.bf16.gmra.mrb[0].mxu0 %v3768
      %v6319 = vpop.f32.mrb[0].mxu0
      %v6320 = vadd.f32 %v974, %v6319
      %v6321 = vpop.f32.mrb[0].mxu0
      %v6322 = vpop.f32.mrb[0].mxu0
      %v6323 = vadd.f32 %v974, %v6322
      %v6324 = vpop.f32.mrb[0].mxu0
      %6325 = vmatprep.mubr.bf16.mxu0 0
      %6326 = vmatmul.mubr.bf16.gmra.mrb[0].mxu0 %v3771
      %v6327 = vpop.f32.mrb[0].mxu0
      %v6328 = vadd.f32 %v974, %v6327
      %v6329 = vpop.f32.mrb[0].mxu0
      %v6330 = vpop.f32.mrb[0].mxu0
      %v6331 = vadd.f32 %v974, %v6330
      %v6332 = vpop.f32.mrb[0].mxu0
      %6333 = vmatprep.mubr.bf16.mxu0 0
      %6334 = vmatmul.mubr.bf16.gmra.mrb[0].mxu0 %v3774
      %v6335 = vpop.f32.mrb[0].mxu0
      %v6336 = vadd.f32 %v974, %v6335
      %v6337 = vpop.f32.mrb[0].mxu0
      %v6338 = vpop.f32.mrb[0].mxu0
      %v6339 = vadd.f32 %v974, %v6338
      %v6340 = vpop.f32.mrb[0].mxu0
      %6341 = vmatprep.mubr.bf16.mxu0 0
      %6342 = vmatmul.mubr.bf16.gmra.mrb[0].mxu0 %v3777
      %v6343 = vpop.f32.mrb[0].mxu0
      %v6344 = vadd.f32 %v974, %v6343
      %v6345 = vpop.f32.mrb[0].mxu0
      %v6346 = vpop.f32.mrb[0].mxu0
      %v6347 = vadd.f32 %v974, %v6346
      %v6348 = vpop.f32.mrb[0].mxu0
      %6349 = vmatprep.mubr.bf16.mxu0 0
      %6350 = vmatmul.mubr.bf16.gmra.mrb[0].mxu0 %v3780
      %v6351 = vpop.f32.mrb[0].mxu0
      %v6352 = vadd.f32 %v974, %v6351
      %v6353 = vpop.f32.mrb[0].mxu0
      %v6354 = vpop.f32.mrb[0].mxu0
      %v6355 = vadd.f32 %v974, %v6354
      %v6356 = vpop.f32.mrb[0].mxu0
      %6357 = vmatprep.mubr.bf16.mxu0 0
      %6358 = vmatmul.mubr.bf16.gmra.mrb[0].mxu0 %v3783
      %v6359 = vpop.f32.mrb[0].mxu0
      %v6360 = vadd.f32 %v974, %v6359
      %v6361 = vpop.f32.mrb[0].mxu0
      %v6362 = vpop.f32.mrb[0].mxu0
      %v6363 = vadd.f32 %v974, %v6362
      %v6364 = vpop.f32.mrb[0].mxu0
      %6365 = vmatprep.mubr.bf16.mxu0 0
      %6366 = vmatmul.mubr.bf16.gmra.mrb[0].mxu0 %v3786
      %v6367 = vpop.f32.mrb[0].mxu0
      %v6368 = vadd.f32 %v974, %v6367
      %v6369 = vpop.f32.mrb[0].mxu0
      %v6370 = vpop.f32.mrb[0].mxu0
      %v6371 = vadd.f32 %v974, %v6370
      %v6372 = vpop.f32.mrb[0].mxu0
      %6373 = vmatprep.mubr.bf16.mxu0 0
      %6374 = vmatmul.mubr.bf16.gmra.mrb[0].mxu0 %v3789
      %v6375 = vpop.f32.mrb[0].mxu0
      %v6376 = vadd.f32 %v974, %v6375
      %v6377 = vpop.f32.mrb[0].mxu0
      %v6378 = vpop.f32.mrb[0].mxu0
      %v6379 = vadd.f32 %v974, %v6378
      %v6380 = vpop.f32.mrb[0].mxu0
      %6381 = vmatprep.mubr.bf16.mxu0 0
      %6382 = vmatmul.mubr.bf16.gmra.mrb[0].mxu0 %v3792
      %v6383 = vpop.f32.mrb[0].mxu0
      %v6384 = vadd.f32 %v974, %v6383
      %v6385 = vpop.f32.mrb[0].mxu0
      %v6386 = vpop.f32.mrb[0].mxu0
      %v6387 = vadd.f32 %v974, %v6386
      %v6388 = vpop.f32.mrb[0].mxu0
      %6389 = vmatprep.mubr.bf16.mxu0 0
      %6390 = vmatmul.mubr.bf16.gmra.mrb[0].mxu0 %v3795
      %v6391 = vpop.f32.mrb[0].mxu0
      %v6392 = vadd.f32 %v974, %v6391
      %v6393 = vpop.f32.mrb[0].mxu0
      %v6394 = vpop.f32.mrb[0].mxu0
      %v6395 = vadd.f32 %v974, %v6394
      %v6396 = vpop.f32.mrb[0].mxu0
      %6397 = vmatprep.mubr.bf16.mxu0 0
      %6398 = vmatmul.mubr.bf16.gmra.mrb[0].mxu0 %v3798
      %v6399 = vpop.f32.mrb[0].mxu0
      %v6400 = vadd.f32 %v974, %v6399
      %v6401 = vpop.f32.mrb[0].mxu0
      %v6402 = vpop.f32.mrb[0].mxu0
      %v6403 = vadd.f32 %v974, %v6402
      %v6404 = vpop.f32.mrb[0].mxu0
      %6405 = vmatprep.mubr.bf16.mxu0 0
      %6406 = vmatmul.mubr.bf16.gmra.mrb[0].mxu0 %v3801
      %v6407 = vpop.f32.mrb[0].mxu0
      %v6408 = vadd.f32 %v974, %v6407
      %v6409 = vpop.f32.mrb[0].mxu0
      %v6410 = vpop.f32.mrb[0].mxu0
      %v6411 = vadd.f32 %v974, %v6410
      %v6412 = vpop.f32.mrb[0].mxu0
      %6413 = vmatprep.mubr.bf16.mxu0 0
      %6414 = vmatmul.mubr.bf16.gmra.mrb[0].mxu0 %v3804
      %v6415 = vpop.f32.mrb[0].mxu0
      %v6416 = vadd.f32 %v974, %v6415
      %v6417 = vpop.f32.mrb[0].mxu0
      %v6418 = vpop.f32.mrb[0].mxu0
      %v6419 = vadd.f32 %v974, %v6418
      %v6420 = vpop.f32.mrb[0].mxu0
      %6421 = vmatprep.mubr.bf16.mxu0 0
      %6422 = vmatmul.mubr.bf16.gmra.mrb[0].mxu0 %v3807
      %v6423 = vpop.f32.mrb[0].mxu0
      %v6424 = vadd.f32 %v974, %v6423
      %v6425 = vpop.f32.mrb[0].mxu0
      %v6426 = vpop.f32.mrb[0].mxu0
      %v6427 = vadd.f32 %v974, %v6426
      %v6428 = vpop.f32.mrb[0].mxu0
      %6429 = vmatprep.mubr.bf16.mxu0 0
      %6430 = vmatmul.mubr.bf16.gmra.mrb[0].mxu0 %v3810
      %v6431 = vpop.f32.mrb[0].mxu0
      %v6432 = vadd.f32 %v974, %v6431
      %v6433 = vpop.f32.mrb[0].mxu0
      %v6434 = vpop.f32.mrb[0].mxu0
      %v6435 = vadd.f32 %v974, %v6434
      %v6436 = vpop.f32.mrb[0].mxu0
      %6437 = vmatprep.mubr.bf16.mxu0 0
      %6438 = vmatmul.mubr.bf16.gmra.mrb[0].mxu0 %v3813
      %v6439 = vpop.f32.mrb[0].mxu0
      %v6440 = vadd.f32 %v974, %v6439
      %v6441 = vpop.f32.mrb[0].mxu0
      %v6442 = vpop.f32.mrb[0].mxu0
      %v6443 = vadd.f32 %v974, %v6442
      %v6444 = vpop.f32.mrb[0].mxu0
      %6445 = vmatprep.mubr.bf16.mxu0 0
      %6446 = vmatmul.mubr.bf16.gmra.mrb[0].mxu0 %v3816
      %v6447 = vpop.f32.mrb[0].mxu0
      %v6448 = vadd.f32 %v974, %v6447
      %v6449 = vpop.f32.mrb[0].mxu0
      %v6450 = vpop.f32.mrb[0].mxu0
      %v6451 = vadd.f32 %v974, %v6450
      %v6452 = vpop.f32.mrb[0].mxu0
      %6453 = vmatprep.mubr.bf16.mxu0 0
      %6454 = vmatmul.mubr.bf16.gmra.mrb[0].mxu0 %v3819
      %v6455 = vpop.f32.mrb[0].mxu0
      %v6456 = vadd.f32 %v974, %v6455
      %v6457 = vpop.f32.mrb[0].mxu0
      %v6458 = vpop.f32.mrb[0].mxu0
      %v6459 = vadd.f32 %v974, %v6458
      %v6460 = vpop.f32.mrb[0].mxu0
      %6461 = vmatprep.mubr.bf16.mxu0 0
      %6462 = vmatmul.mubr.bf16.gmra.mrb[0].mxu0 %v3822
      %v6463 = vpop.f32.mrb[0].mxu0
      %v6464 = vadd.f32 %v974, %v6463
      %v6465 = vpop.f32.mrb[0].mxu0
      %v6466 = vpop.f32.mrb[0].mxu0
      %v6467 = vadd.f32 %v974, %v6466
      %v6468 = vpop.f32.mrb[0].mxu0
      %6469 = vmatprep.mubr.bf16.mxu0 0
      %6470 = vmatmul.mubr.bf16.gmra.mrb[0].mxu0 %v3825
      %v6471 = vpop.f32.mrb[0].mxu0
      %v6472 = vadd.f32 %v974, %v6471
      %v6473 = vpop.f32.mrb[0].mxu0
      %v6474 = vpop.f32.mrb[0].mxu0
      %v6475 = vadd.f32 %v974, %v6474
      %v6476 = vpop.f32.mrb[0].mxu0
      %6477 = vmatprep.mubr.bf16.mxu0 0
      %6478 = vmatmul.mubr.bf16.gmra.mrb[0].mxu0 %v3828
      %v6479 = vpop.f32.mrb[0].mxu0
      %v6480 = vadd.f32 %v974, %v6479
      %v6481 = vpop.f32.mrb[0].mxu0
      %v6482 = vpop.f32.mrb[0].mxu0
      %v6483 = vadd.f32 %v974, %v6482
      %v6484 = vpop.f32.mrb[0].mxu0
      %6485 = vmatprep.mubr.bf16.mxu0 0
      %6486 = vmatmul.mubr.bf16.gmra.mrb[0].mxu0 %v3831
      %v6487 = vpop.f32.mrb[0].mxu0
      %v6488 = vadd.f32 %v974, %v6487
      %v6489 = vpop.f32.mrb[0].mxu0
      %v6490 = vpop.f32.mrb[0].mxu0
      %v6491 = vadd.f32 %v974, %v6490
      %v6492 = vpop.f32.mrb[0].mxu0
      %6493 = vmatprep.mubr.bf16.mxu0 0
      %6494 = vmatmul.mubr.bf16.gmra.mrb[0].mxu0 %v3834
      %v6495 = vpop.f32.mrb[0].mxu0
      %v6496 = vadd.f32 %v974, %v6495
      %v6497 = vpop.f32.mrb[0].mxu0
      %v6498 = vpop.f32.mrb[0].mxu0
      %v6499 = vadd.f32 %v974, %v6498
      %v6500 = vpop.f32.mrb[0].mxu0
      %6501 = vmatprep.mubr.bf16.mxu0 0
      %6502 = vmatmul.mubr.bf16.gmra.mrb[0].mxu0 %v3837
      %v6503 = vpop.f32.mrb[0].mxu0
      %v6504 = vadd.f32 %v974, %v6503
      %v6505 = vpop.f32.mrb[0].mxu0
      %v6506 = vpop.f32.mrb[0].mxu0
      %v6507 = vadd.f32 %v974, %v6506
      %v6508 = vpop.f32.mrb[0].mxu0
      %6509 = vmatprep.mubr.bf16.mxu0 0
      %6510 = vmatmul.mubr.bf16.gmra.mrb[0].mxu0 %v3840
      %v6511 = vpop.f32.mrb[0].mxu0
      %v6512 = vadd.f32 %v974, %v6511
      %v6513 = vpop.f32.mrb[0].mxu0
      %v6514 = vpop.f32.mrb[0].mxu0
      %v6515 = vadd.f32 %v974, %v6514
      %v6516 = vpop.f32.mrb[0].mxu0
      %6517 = vmatprep.mubr.bf16.mxu0 0
      %6518 = vmatmul.mubr.bf16.gmra.mrb[0].mxu0 %v3843
      %v6519 = vpop.f32.mrb[0].mxu0
      %v6520 = vadd.f32 %v974, %v6519
      %v6521 = vpop.f32.mrb[0].mxu0
      %v6522 = vpop.f32.mrb[0].mxu0
      %v6523 = vadd.f32 %v974, %v6522
      %v6524 = vpop.f32.mrb[0].mxu0
      %6525 = vmatprep.mubr.bf16.mxu0 0
      %6526 = vmatmul.mubr.bf16.gmra.mrb[0].mxu0 %v3846
      %v6527 = vpop.f32.mrb[0].mxu0
      %v6528 = vadd.f32 %v974, %v6527
      %v6529 = vpop.f32.mrb[0].mxu0
      %v6530 = vpop.f32.mrb[0].mxu0
      %v6531 = vadd.f32 %v974, %v6530
      %v6532 = vpop.f32.mrb[0].mxu0
      %6533 = vmatprep.mubr.bf16.mxu0 0
      %6534 = vmatmul.mubr.bf16.gmra.mrb[0].mxu0 %v3849
      %v6535 = vpop.f32.mrb[0].mxu0
      %v6536 = vadd.f32 %v974, %v6535
      %v6537 = vpop.f32.mrb[0].mxu0
      %v6538 = vpop.f32.mrb[0].mxu0
      %v6539 = vadd.f32 %v974, %v6538
      %v6540 = vpop.f32.mrb[0].mxu0
      %6541 = vmatprep.mubr.bf16.mxu0 0
      %6542 = vmatmul.mubr.bf16.gmra.mrb[0].mxu0 %v3852
      %v6543 = vpop.f32.mrb[0].mxu0
      %v6544 = vadd.f32 %v974, %v6543
      %v6545 = vpop.f32.mrb[0].mxu0
      %v6546 = vpop.f32.mrb[0].mxu0
      %v6547 = vadd.f32 %v974, %v6546
      %v6548 = vpop.f32.mrb[0].mxu0
      %6549 = vmatprep.mubr.bf16.mxu0 0
      %6550 = vmatmul.mubr.bf16.gmra.mrb[0].mxu0 %v3855
      %v6551 = vpop.f32.mrb[0].mxu0
      %v6552 = vadd.f32 %v974, %v6551
      %v6553 = vpop.f32.mrb[0].mxu0
      %v6554 = vpop.f32.mrb[0].mxu0
      %v6555 = vadd.f32 %v974, %v6554
      %v6556 = vpop.f32.mrb[0].mxu0
      %6557 = vmatprep.mubr.bf16.mxu0 0
      %6558 = vmatmul.mubr.bf16.gmra.mrb[0].mxu0 %v3858
      %v6559 = vpop.f32.mrb[0].mxu0
      %v6560 = vadd.f32 %v974, %v6559
      %v6561 = vpop.f32.mrb[0].mxu0
      %v6562 = vpop.f32.mrb[0].mxu0
      %v6563 = vadd.f32 %v974, %v6562
      %v6564 = vpop.f32.mrb[0].mxu0
      %6565 = vmatprep.mubr.bf16.mxu0 0
      %6566 = vmatmul.mubr.bf16.gmra.mrb[0].mxu0 %v3861
      %v6567 = vpop.f32.mrb[0].mxu0
      %v6568 = vadd.f32 %v974, %v6567
      %v6569 = vpop.f32.mrb[0].mxu0
      %v6570 = vpop.f32.mrb[0].mxu0
      %v6571 = vadd.f32 %v974, %v6570
      %v6572 = vpop.f32.mrb[0].mxu0
      %6573 = vmatprep.mubr.bf16.mxu0 0
      %6574 = vmatmul.mubr.bf16.gmra.mrb[0].mxu0 %v3864
      %v6575 = vpop.f32.mrb[0].mxu0
      %v6576 = vadd.f32 %v974, %v6575
      %v6577 = vpop.f32.mrb[0].mxu0
      %v6578 = vpop.f32.mrb[0].mxu0
      %v6579 = vadd.f32 %v974, %v6578
      %v6580 = vpop.f32.mrb[0].mxu0
      %6581 = vmatprep.mubr.bf16.mxu0 0
      %6582 = vmatmul.mubr.bf16.gmra.mrb[0].mxu0 %v3867
      %v6583 = vpop.f32.mrb[0].mxu0
      %v6584 = vadd.f32 %v974, %v6583
      %v6585 = vpop.f32.mrb[0].mxu0
      %v6586 = vpop.f32.mrb[0].mxu0
      %v6587 = vadd.f32 %v974, %v6586
      %v6588 = vpop.f32.mrb[0].mxu0
      %6589 = vmatprep.mubr.bf16.mxu0 0
      %6590 = vmatmul.mubr.bf16.gmra.mrb[0].mxu0 %v3870
      %v6591 = vpop.f32.mrb[0].mxu0
      %v6592 = vadd.f32 %v974, %v6591
      %v6593 = vpop.f32.mrb[0].mxu0
      %v6594 = vpop.f32.mrb[0].mxu0
      %v6595 = vadd.f32 %v974, %v6594
      %v6596 = vpop.f32.mrb[0].mxu0
      %6597 = vmatprep.mubr.bf16.mxu0 0
      %6598 = vmatmul.mubr.bf16.gmra.mrb[0].mxu0 %v3873
      %v6599 = vpop.f32.mrb[0].mxu0
      %v6600 = vadd.f32 %v974, %v6599
      %v6601 = vpop.f32.mrb[0].mxu0
      %v6602 = vpop.f32.mrb[0].mxu0
      %v6603 = vadd.f32 %v974, %v6602
      %v6604 = vpop.f32.mrb[0].mxu0
      %6605 = vmatprep.mubr.bf16.mxu0 0
      %6606 = vmatmul.mubr.bf16.gmra.mrb[0].mxu0 %v3876
      %v6607 = vpop.f32.mrb[0].mxu0
      %v6608 = vadd.f32 %v974, %v6607
      %v6609 = vpop.f32.mrb[0].mxu0
      %v6610 = vpop.f32.mrb[0].mxu0
      %v6611 = vadd.f32 %v974, %v6610
      %v6612 = vpop.f32.mrb[0].mxu0
      %6613 = vmatprep.mubr.bf16.mxu0 0
      %6614 = vmatmul.mubr.bf16.gmra.mrb[0].mxu0 %v3879
      %v6615 = vpop.f32.mrb[0].mxu0
      %v6616 = vadd.f32 %v974, %v6615
      %v6617 = vpop.f32.mrb[0].mxu0
      %v6618 = vpop.f32.mrb[0].mxu0
      %v6619 = vadd.f32 %v974, %v6618
      %v6620 = vpop.f32.mrb[0].mxu0
      %6621 = vmatprep.mubr.bf16.mxu0 0
      %6622 = vmatmul.mubr.bf16.gmra.mrb[0].mxu0 %v3882
      %v6623 = vpop.f32.mrb[0].mxu0
      %v6624 = vadd.f32 %v974, %v6623
      %v6625 = vpop.f32.mrb[0].mxu0
      %v6626 = vpop.f32.mrb[0].mxu0
      %v6627 = vadd.f32 %v974, %v6626
      %v6628 = vpop.f32.mrb[0].mxu0
      %6629 = vmatprep.mubr.bf16.mxu0 0
      %6630 = vmatmul.mubr.bf16.gmra.mrb[0].mxu0 %v3885
      %v6631 = vpop.f32.mrb[0].mxu0
      %v6632 = vadd.f32 %v974, %v6631
      %v6633 = vpop.f32.mrb[0].mxu0
      %v6634 = vpop.f32.mrb[0].mxu0
      %v6635 = vadd.f32 %v974, %v6634
      %v6636 = vpop.f32.mrb[0].mxu0
      %6637 = vmatprep.mubr.bf16.mxu0 0
      %6638 = vmatmul.mubr.bf16.gmra.mrb[0].mxu0 %v3888
      %v6639 = vpop.f32.mrb[0].mxu0
      %v6640 = vadd.f32 %v974, %v6639
      %v6641 = vpop.f32.mrb[0].mxu0
      %v6642 = vpop.f32.mrb[0].mxu0
      %v6643 = vadd.f32 %v974, %v6642
      %v6644 = vpop.f32.mrb[0].mxu0
      %6645 = vmatprep.mubr.bf16.mxu0 0
      %6646 = vmatmul.mubr.bf16.gmra.mrb[0].mxu0 %v3891
      %v6647 = vpop.f32.mrb[0].mxu0
      %v6648 = vadd.f32 %v974, %v6647
      %v6649 = vpop.f32.mrb[0].mxu0
      %v6650 = vpop.f32.mrb[0].mxu0
      %v6651 = vadd.f32 %v974, %v6650
      %v6652 = vpop.f32.mrb[0].mxu0
      %6653 = vmatprep.mubr.bf16.mxu0 0
      %6654 = vmatmul.mubr.bf16.gmra.mrb[0].mxu0 %v3894
      %v6655 = vpop.f32.mrb[0].mxu0
      %v6656 = vadd.f32 %v974, %v6655
      %v6657 = vpop.f32.mrb[0].mxu0
      %v6658 = vpop.f32.mrb[0].mxu0
      %v6659 = vadd.f32 %v974, %v6658
      %v6660 = vpop.f32.mrb[0].mxu0
      %6661 = vmatprep.mubr.bf16.mxu0 0
      %6662 = vmatmul.mubr.bf16.gmra.mrb[0].mxu0 %v3897
      %v6663 = vpop.f32.mrb[0].mxu0
      %v6664 = vadd.f32 %v974, %v6663
      %v6665 = vpop.f32.mrb[0].mxu0
      %v6666 = vpop.f32.mrb[0].mxu0
      %v6667 = vadd.f32 %v974, %v6666
      %v6668 = vpop.f32.mrb[0].mxu0
      %6669 = vmatprep.mubr.bf16.mxu0 0
      %6670 = vmatmul.mubr.bf16.gmra.mrb[0].mxu0 %v3900
      %v6671 = vpop.f32.mrb[0].mxu0
      %v6672 = vadd.f32 %v974, %v6671
      %v6673 = vpop.f32.mrb[0].mxu0
      %v6674 = vpop.f32.mrb[0].mxu0
      %v6675 = vadd.f32 %v974, %v6674
      %v6676 = vpop.f32.mrb[0].mxu0
      %6677 = vmatprep.mubr.bf16.mxu0 0
      %6678 = vmatmul.mubr.bf16.gmra.mrb[0].mxu0 %v3903
      %v6679 = vpop.f32.mrb[0].mxu0
      %v6680 = vadd.f32 %v974, %v6679
      %v6681 = vpop.f32.mrb[0].mxu0
      %v6682 = vpop.f32.mrb[0].mxu0
      %v6683 = vadd.f32 %v974, %v6682
      %v6684 = vpop.f32.mrb[0].mxu0
      %6685 = vmatprep.mubr.bf16.mxu0 0
      %6686 = vmatmul.mubr.bf16.gmra.mrb[0].mxu0 %v3906
      %v6687 = vpop.f32.mrb[0].mxu0
      %v6688 = vadd.f32 %v974, %v6687
      %v6689 = vpop.f32.mrb[0].mxu0
      %v6690 = vpop.f32.mrb[0].mxu0
      %v6691 = vadd.f32 %v974, %v6690
      %v6692 = vpop.f32.mrb[0].mxu0
      %6693 = vmatprep.mubr.bf16.mxu0 0
      %6694 = vmatmul.mubr.bf16.gmra.mrb[0].mxu0 %v3909
      %v6695 = vpop.f32.mrb[0].mxu0
      %v6696 = vadd.f32 %v974, %v6695
      %v6697 = vpop.f32.mrb[0].mxu0
      %v6698 = vpop.f32.mrb[0].mxu0
      %v6699 = vadd.f32 %v974, %v6698
      %v6700 = vpop.f32.mrb[0].mxu0
      %6701 = vmatprep.mubr.bf16.mxu0 0
      %6702 = vmatmul.mubr.bf16.gmra.mrb[0].mxu0 %v3912
      %v6703 = vpop.f32.mrb[0].mxu0
      %v6704 = vadd.f32 %v974, %v6703
      %v6705 = vpop.f32.mrb[0].mxu0
      %v6706 = vpop.f32.mrb[0].mxu0
      %v6707 = vadd.f32 %v974, %v6706
      %v6708 = vpop.f32.mrb[0].mxu0
      %6709 = vmatprep.mubr.bf16.mxu0 0
      %6710 = vmatmul.mubr.bf16.gmra.mrb[0].mxu0 %v3915
      %v6711 = vpop.f32.mrb[0].mxu0
      %v6712 = vadd.f32 %v974, %v6711
      %v6713 = vpop.f32.mrb[0].mxu0
      %v6714 = vpop.f32.mrb[0].mxu0
      %v6715 = vadd.f32 %v974, %v6714
      %v6716 = vpop.f32.mrb[0].mxu0
      %6717 = vmatprep.mubr.bf16.mxu0 0
      %6718 = vmatmul.mubr.bf16.gmra.mrb[0].mxu0 %v3918
      %v6719 = vpop.f32.mrb[0].mxu0
      %v6720 = vadd.f32 %v974, %v6719
      %v6721 = vpop.f32.mrb[0].mxu0
      %v6722 = vpop.f32.mrb[0].mxu0
      %v6723 = vadd.f32 %v974, %v6722
      %v6724 = vpop.f32.mrb[0].mxu0
      %6725 = vmatprep.mubr.bf16.mxu0 0
      %6726 = vmatmul.mubr.bf16.gmra.mrb[0].mxu0 %v3921
      %v6727 = vpop.f32.mrb[0].mxu0
      %v6728 = vadd.f32 %v974, %v6727
      %v6729 = vpop.f32.mrb[0].mxu0
      %v6730 = vpop.f32.mrb[0].mxu0
      %v6731 = vadd.f32 %v974, %v6730
      %v6732 = vpop.f32.mrb[0].mxu0
      %6733 = vmatprep.mubr.bf16.mxu0 0
      %6734 = vmatmul.mubr.bf16.gmra.mrb[0].mxu0 %v3924
      %v6735 = vpop.f32.mrb[0].mxu0
      %v6736 = vadd.f32 %v974, %v6735
      %v6737 = vpop.f32.mrb[0].mxu0
      %v6738 = vpop.f32.mrb[0].mxu0
      %v6739 = vadd.f32 %v974, %v6738
      %v6740 = vpop.f32.mrb[0].mxu0
      %6741 = vmatprep.mubr.bf16.mxu0 0
      %6742 = vmatmul.mubr.bf16.gmra.mrb[0].mxu0 %v3927
      %v6743 = vpop.f32.mrb[0].mxu0
      %v6744 = vadd.f32 %v974, %v6743
      %v6745 = vpop.f32.mrb[0].mxu0
      %v6746 = vpop.f32.mrb[0].mxu0
      %v6747 = vadd.f32 %v974, %v6746
      %v6748 = vpop.f32.mrb[0].mxu0
      %6749 = vmatprep.mubr.bf16.mxu0 0
      %6750 = vmatmul.mubr.bf16.gmra.mrb[0].mxu0 %v3930
      %v6751 = vpop.f32.mrb[0].mxu0
      %v6752 = vadd.f32 %v974, %v6751
      %v6753 = vpop.f32.mrb[0].mxu0
      %v6754 = vpop.f32.mrb[0].mxu0
      %v6755 = vadd.f32 %v974, %v6754
      %v6756 = vpop.f32.mrb[0].mxu0
      %6757 = vmatprep.mubr.bf16.mxu0 0
      %6758 = vmatmul.mubr.bf16.gmra.mrb[0].mxu0 %v3933
      %v6759 = vpop.f32.mrb[0].mxu0
      %v6760 = vadd.f32 %v974, %v6759
      %v6761 = vpop.f32.mrb[0].mxu0
      %v6762 = vpop.f32.mrb[0].mxu0
      %v6763 = vadd.f32 %v974, %v6762
      %v6764 = vpop.f32.mrb[0].mxu0
      %6765 = vmatprep.mubr.bf16.mxu0 0
      %6766 = vmatmul.mubr.bf16.gmra.mrb[0].mxu0 %v3936
      %v6767 = vpop.f32.mrb[0].mxu0
      %v6768 = vadd.f32 %v974, %v6767
      %v6769 = vpop.f32.mrb[0].mxu0
      %v6770 = vpop.f32.mrb[0].mxu0
      %v6771 = vadd.f32 %v974, %v6770
      %v6772 = vpop.f32.mrb[0].mxu0
      %6773 = vmatprep.mubr.bf16.mxu0 0
      %6774 = vmatmul.mubr.bf16.gmra.mrb[0].mxu0 %v3939
      %v6775 = vpop.f32.mrb[0].mxu0
      %v6776 = vadd.f32 %v974, %v6775
      %v6777 = vpop.f32.mrb[0].mxu0
      %v6778 = vpop.f32.mrb[0].mxu0
      %v6779 = vadd.f32 %v974, %v6778
      %v6780 = vpop.f32.mrb[0].mxu0
      %6781 = vmatprep.mubr.bf16.mxu0 0
      %6782 = vmatmul.mubr.bf16.gmra.mrb[0].mxu0 %v3942
      %v6783 = vpop.f32.mrb[0].mxu0
      %v6784 = vadd.f32 %v974, %v6783
      %v6785 = vpop.f32.mrb[0].mxu0
      %v6786 = vpop.f32.mrb[0].mxu0
      %v6787 = vadd.f32 %v974, %v6786
      %v6788 = vpop.f32.mrb[0].mxu0
      %6789 = vmatprep.mubr.bf16.mxu0 0
      %6790 = vmatmul.mubr.bf16.gmra.mrb[0].mxu0 %v3945
      %v6791 = vpop.f32.mrb[0].mxu0
      %v6792 = vadd.f32 %v974, %v6791
      %v6793 = vpop.f32.mrb[0].mxu0
      %v6794 = vpop.f32.mrb[0].mxu0
      %v6795 = vadd.f32 %v974, %v6794
      %v6796 = vpop.f32.mrb[0].mxu0
      %6797 = vmatprep.mubr.bf16.mxu0 0
      %6798 = vmatmul.mubr.bf16.gmra.mrb[0].mxu0 %v3948
      %v6799 = vpop.f32.mrb[0].mxu0
      %v6800 = vadd.f32 %v974, %v6799
      %v6801 = vpop.f32.mrb[0].mxu0
      %v6802 = vpop.f32.mrb[0].mxu0
      %v6803 = vadd.f32 %v974, %v6802
      %v6804 = vpop.f32.mrb[0].mxu0
      %6805 = vmatprep.mubr.bf16.mxu0 0
      %6806 = vmatmul.mubr.bf16.gmra.mrb[0].mxu0 %v3951
      %v6807 = vpop.f32.mrb[0].mxu0
      %v6808 = vadd.f32 %v974, %v6807
      %v6809 = vpop.f32.mrb[0].mxu0
      %v6810 = vpop.f32.mrb[0].mxu0
      %v6811 = vadd.f32 %v974, %v6810
      %v6812 = vpop.f32.mrb[0].mxu0
      %6813 = vmatprep.mubr.bf16.mxu0 0
      %6814 = vmatmul.mubr.bf16.gmra.mrb[0].mxu0 %v3954
      %v6815 = vpop.f32.mrb[0].mxu0
      %v6816 = vadd.f32 %v974, %v6815
      %v6817 = vpop.f32.mrb[0].mxu0
      %v6818 = vpop.f32.mrb[0].mxu0
      %v6819 = vadd.f32 %v974, %v6818
      %v6820 = vpop.f32.mrb[0].mxu0
      %6821 = vmatprep.mubr.bf16.mxu0 0
      %6822 = vmatmul.mubr.bf16.gmra.mrb[0].mxu0 %v3957
      %v6823 = vpop.f32.mrb[0].mxu0
      %v6824 = vadd.f32 %v974, %v6823
      %v6825 = vpop.f32.mrb[0].mxu0
      %v6826 = vpop.f32.mrb[0].mxu0
      %v6827 = vadd.f32 %v974, %v6826
      %v6828 = vpop.f32.mrb[0].mxu0
      %6829 = vmatprep.mubr.bf16.mxu0 0
      %6830 = vmatmul.mubr.bf16.gmra.mrb[0].mxu0 %v3960
      %v6831 = vpop.f32.mrb[0].mxu0
      %v6832 = vadd.f32 %v974, %v6831
      %v6833 = vpop.f32.mrb[0].mxu0
      %v6834 = vpop.f32.mrb[0].mxu0
      %v6835 = vadd.f32 %v974, %v6834
      %v6836 = vpop.f32.mrb[0].mxu0
      %6837 = vmatprep.mubr.bf16.mxu0 0
      %6838 = vmatmul.mubr.bf16.gmra.mrb[0].mxu0 %v3963
      %v6839 = vpop.f32.mrb[0].mxu0
      %v6840 = vadd.f32 %v974, %v6839
      %v6841 = vpop.f32.mrb[0].mxu0
      %v6842 = vpop.f32.mrb[0].mxu0
      %v6843 = vadd.f32 %v974, %v6842
      %v6844 = vpop.f32.mrb[0].mxu0
      %6845 = vmatprep.mubr.bf16.mxu0 0
      %6846 = vmatmul.mubr.bf16.gmra.mrb[0].mxu0 %v3966
      %v6847 = vpop.f32.mrb[0].mxu0
      %v6848 = vadd.f32 %v974, %v6847
      %v6849 = vpop.f32.mrb[0].mxu0
      %v6850 = vpop.f32.mrb[0].mxu0
      %v6851 = vadd.f32 %v974, %v6850
      %v6852 = vpop.f32.mrb[0].mxu0
      %6853 = vmatprep.mubr.bf16.mxu0 0
      %6854 = vmatmul.mubr.bf16.gmra.mrb[0].mxu0 %v3969
      %v6855 = vpop.f32.mrb[0].mxu0
      %v6856 = vadd.f32 %v974, %v6855
      %v6857 = vpop.f32.mrb[0].mxu0
      %v6858 = vpop.f32.mrb[0].mxu0
      %v6859 = vadd.f32 %v974, %v6858
      %v6860 = vpop.f32.mrb[0].mxu0
      %6861 = vmatprep.mubr.bf16.mxu0 0
      %6862 = vmatmul.mubr.bf16.gmra.mrb[0].mxu0 %v3972
      %v6863 = vpop.f32.mrb[0].mxu0
      %v6864 = vadd.f32 %v974, %v6863
      %v6865 = vpop.f32.mrb[0].mxu0
      %v6866 = vpop.f32.mrb[0].mxu0
      %v6867 = vadd.f32 %v974, %v6866
      %v6868 = vpop.f32.mrb[0].mxu0
      %6869 = vmatprep.mubr.bf16.mxu0 0
      %6870 = vmatmul.mubr.bf16.gmra.mrb[0].mxu0 %v3975
      %v6871 = vpop.f32.mrb[0].mxu0
      %v6872 = vadd.f32 %v974, %v6871
      %v6873 = vpop.f32.mrb[0].mxu0
      %v6874 = vpop.f32.mrb[0].mxu0
      %v6875 = vadd.f32 %v974, %v6874
      %v6876 = vpop.f32.mrb[0].mxu0
      %6877 = vmatprep.mubr.bf16.mxu0 0
      %6878 = vmatmul.mubr.bf16.gmra.mrb[0].mxu0 %v3978
      %v6879 = vpop.f32.mrb[0].mxu0
      %v6880 = vadd.f32 %v974, %v6879
      %v6881 = vpop.f32.mrb[0].mxu0
      %v6882 = vpop.f32.mrb[0].mxu0
      %v6883 = vadd.f32 %v974, %v6882
      %v6884 = vpop.f32.mrb[0].mxu0
      %6885 = vmatprep.mubr.bf16.mxu0 0
      %6886 = vmatmul.mubr.bf16.gmra.mrb[0].mxu0 %v3981
      %v6887 = vpop.f32.mrb[0].mxu0
      %v6888 = vadd.f32 %v974, %v6887
      %v6889 = vpop.f32.mrb[0].mxu0
      %v6890 = vpop.f32.mrb[0].mxu0
      %v6891 = vadd.f32 %v974, %v6890
      %v6892 = vpop.f32.mrb[0].mxu0
      %6893 = vmatprep.mubr.bf16.mxu0 0
      %6894 = vmatmul.mubr.bf16.gmra.mrb[0].mxu0 %v3984
      %v6895 = vpop.f32.mrb[0].mxu0
      %v6896 = vadd.f32 %v974, %v6895
      %v6897 = vpop.f32.mrb[0].mxu0
      %v6898 = vpop.f32.mrb[0].mxu0
      %v6899 = vadd.f32 %v974, %v6898
      %v6900 = vpop.f32.mrb[0].mxu0
      %6901 = vmatprep.mubr.bf16.mxu0 0
      %6902 = vmatmul.mubr.bf16.gmra.mrb[0].mxu0 %v3987
      %v6903 = vpop.f32.mrb[0].mxu0
      %v6904 = vadd.f32 %v974, %v6903
      %v6905 = vpop.f32.mrb[0].mxu0
      %v6906 = vpop.f32.mrb[0].mxu0
      %v6907 = vadd.f32 %v974, %v6906
      %v6908 = vpop.f32.mrb[0].mxu0
      %6909 = vmatprep.mubr.bf16.mxu0 0
      %6910 = vmatmul.mubr.bf16.gmra.mrb[0].mxu0 %v3990
      %v6911 = vpop.f32.mrb[0].mxu0
      %v6912 = vadd.f32 %v974, %v6911
      %v6913 = vpop.f32.mrb[0].mxu0
      %v6914 = vpop.f32.mrb[0].mxu0
      %v6915 = vadd.f32 %v974, %v6914
      %v6916 = vpop.f32.mrb[0].mxu0
      %6917 = vmatprep.mubr.bf16.mxu0 0
      %6918 = vmatmul.mubr.bf16.gmra.mrb[0].mxu0 %v3993
      %v6919 = vpop.f32.mrb[0].mxu0
      %v6920 = vadd.f32 %v974, %v6919
      %v6921 = vpop.f32.mrb[0].mxu0
      %v6922 = vpop.f32.mrb[0].mxu0
      %v6923 = vadd.f32 %v974, %v6922
      %v6924 = vpop.f32.mrb[0].mxu0
      %6925 = vmatprep.mubr.bf16.mxu0 0
      %6926 = vmatmul.mubr.bf16.gmra.mrb[0].mxu0 %v3996
      %v6927 = vpop.f32.mrb[0].mxu0
      %v6928 = vadd.f32 %v974, %v6927
      %v6929 = vpop.f32.mrb[0].mxu0
      %v6930 = vpop.f32.mrb[0].mxu0
      %v6931 = vadd.f32 %v974, %v6930
      %v6932 = vpop.f32.mrb[0].mxu0
      %6933 = vmatprep.mubr.bf16.mxu0 0
      %6934 = vmatmul.mubr.bf16.gmra.mrb[0].mxu0 %v3999
      %v6935 = vpop.f32.mrb[0].mxu0
      %v6936 = vadd.f32 %v974, %v6935
      %v6937 = vpop.f32.mrb[0].mxu0
      %v6938 = vpop.f32.mrb[0].mxu0
      %v6939 = vadd.f32 %v974, %v6938
      %v6940 = vpop.f32.mrb[0].mxu0
      %6941 = vmatprep.mubr.bf16.mxu0 0
      %6942 = vmatmul.mubr.bf16.gmra.mrb[0].mxu0 %v4002
      %v6943 = vpop.f32.mrb[0].mxu0
      %v6944 = vadd.f32 %v974, %v6943
      %v6945 = vpop.f32.mrb[0].mxu0
      %v6946 = vpop.f32.mrb[0].mxu0
      %v6947 = vadd.f32 %v974, %v6946
      %v6948 = vpop.f32.mrb[0].mxu0
      %6949 = vmatprep.mubr.bf16.mxu0 0
      %6950 = vmatmul.mubr.bf16.gmra.mrb[0].mxu0 %v4005
      %v6951 = vpop.f32.mrb[0].mxu0
      %v6952 = vadd.f32 %v974, %v6951
      %v6953 = vpop.f32.mrb[0].mxu0
      %v6954 = vpop.f32.mrb[0].mxu0
      %v6955 = vadd.f32 %v974, %v6954
      %v6956 = vpop.f32.mrb[0].mxu0
      %6957 = vmatprep.mubr.bf16.mxu0 0
      %6958 = vmatmul.mubr.bf16.gmra.mrb[0].mxu0 %v4008
      %v6959 = vpop.f32.mrb[0].mxu0
      %v6960 = vadd.f32 %v974, %v6959
      %v6961 = vpop.f32.mrb[0].mxu0
      %v6962 = vpop.f32.mrb[0].mxu0
      %v6963 = vadd.f32 %v974, %v6962
      %v6964 = vpop.f32.mrb[0].mxu0
      %6965 = vmatprep.mubr.bf16.mxu0 0
      %6966 = vmatmul.mubr.bf16.gmra.mrb[0].mxu0 %v4011
      %v6967 = vpop.f32.mrb[0].mxu0
      %v6968 = vadd.f32 %v974, %v6967
      %v6969 = vpop.f32.mrb[0].mxu0
      %v6970 = vpop.f32.mrb[0].mxu0
      %v6971 = vadd.f32 %v974, %v6970
      %v6972 = vpop.f32.mrb[0].mxu0
      %6973 = vmatprep.mubr.bf16.mxu0 0
      %6974 = vmatmul.mubr.bf16.gmra.mrb[0].mxu0 %v4014
      %v6975 = vpop.f32.mrb[0].mxu0
      %v6976 = vadd.f32 %v974, %v6975
      %v6977 = vpop.f32.mrb[0].mxu0
      %v6978 = vpop.f32.mrb[0].mxu0
      %v6979 = vadd.f32 %v974, %v6978
      %v6980 = vpop.f32.mrb[0].mxu0
      %6981 = vmatprep.mubr.bf16.mxu0 0
      %6982 = vmatmul.mubr.bf16.gmra.mrb[0].mxu0 %v4017
      %v6983 = vpop.f32.mrb[0].mxu0
      %v6984 = vadd.f32 %v974, %v6983
      %v6985 = vpop.f32.mrb[0].mxu0
      %v6986 = vpop.f32.mrb[0].mxu0
      %v6987 = vadd.f32 %v974, %v6986
      %v6988 = vpop.f32.mrb[0].mxu0
      %6989 = vmatprep.mubr.bf16.mxu0 0
      %6990 = vmatmul.mubr.bf16.gmra.mrb[0].mxu0 %v4020
      %v6991 = vpop.f32.mrb[0].mxu0
      %v6992 = vadd.f32 %v974, %v6991
      %v6993 = vpop.f32.mrb[0].mxu0
      %v6994 = vpop.f32.mrb[0].mxu0
      %v6995 = vadd.f32 %v974, %v6994
      %v6996 = vpop.f32.mrb[0].mxu0
      %6997 = vmatprep.mubr.bf16.mxu0 0
      %6998 = vmatmul.mubr.bf16.gmra.mrb[0].mxu0 %v4023
      %v6999 = vpop.f32.mrb[0].mxu0
      %v7000 = vadd.f32 %v974, %v6999
      %v7001 = vpop.f32.mrb[0].mxu0
      %v7002 = vpop.f32.mrb[0].mxu0
      %v7003 = vadd.f32 %v974, %v7002
      %v7004 = vpop.f32.mrb[0].mxu0
      %7005 = vmatprep.mubr.bf16.mxu0 0
      %7006 = vmatmul.mubr.bf16.gmra.mrb[0].mxu0 %v4026
      %v7007 = vpop.f32.mrb[0].mxu0
      %v7008 = vadd.f32 %v974, %v7007
      %v7009 = vpop.f32.mrb[0].mxu0
      %v7010 = vpop.f32.mrb[0].mxu0
      %v7011 = vadd.f32 %v974, %v7010
      %v7012 = vpop.f32.mrb[0].mxu0
      %7013 = vmatprep.mubr.bf16.mxu0 0
      %7014 = vmatmul.mubr.bf16.gmra.mrb[0].mxu0 %v4029
      %v7015 = vpop.f32.mrb[0].mxu0
      %v7016 = vadd.f32 %v974, %v7015
      %v7017 = vpop.f32.mrb[0].mxu0
      %v7018 = vpop.f32.mrb[0].mxu0
      %v7019 = vadd.f32 %v974, %v7018
      %v7020 = vpop.f32.mrb[0].mxu0
      %7021 = vmatprep.mubr.bf16.mxu0 0
      %7022 = vmatmul.mubr.bf16.gmra.mrb[0].mxu0 %v4032
      %v7023 = vpop.f32.mrb[0].mxu0
      %v7024 = vadd.f32 %v974, %v7023
      %v7025 = vpop.f32.mrb[0].mxu0
      %v7026 = vpop.f32.mrb[0].mxu0
      %v7027 = vadd.f32 %v974, %v7026
      %v7028 = vpop.f32.mrb[0].mxu0
      %7029 = vmatprep.mubr.bf16.mxu0 0
      %7030 = vmatmul.mubr.bf16.gmra.mrb[0].mxu0 %v4035
      %v7031 = vpop.f32.mrb[0].mxu0
      %v7032 = vadd.f32 %v974, %v7031
      %v7033 = vpop.f32.mrb[0].mxu0
      %v7034 = vpop.f32.mrb[0].mxu0
      %v7035 = vadd.f32 %v974, %v7034
      %v7036 = vpop.f32.mrb[0].mxu0
      %7037 = vmatprep.mubr.bf16.mxu0 0
      %7038 = vmatmul.mubr.bf16.gmra.mrb[0].mxu0 %v4038
      %v7039 = vpop.f32.mrb[0].mxu0
      %v7040 = vadd.f32 %v974, %v7039
      %v7041 = vpop.f32.mrb[0].mxu0
      %v7042 = vpop.f32.mrb[0].mxu0
      %v7043 = vadd.f32 %v974, %v7042
      %v7044 = vpop.f32.mrb[0].mxu0
      %7045 = vmatprep.mubr.bf16.mxu0 0
      %7046 = vmatmul.mubr.bf16.gmra.mrb[0].mxu0 %v4041
      %v7047 = vpop.f32.mrb[0].mxu0
      %v7048 = vadd.f32 %v974, %v7047
      %v7049 = vpop.f32.mrb[0].mxu0
      %v7050 = vpop.f32.mrb[0].mxu0
      %v7051 = vadd.f32 %v974, %v7050
      %v7052 = vpop.f32.mrb[0].mxu0
      %7053 = vmatprep.mubr.bf16.mxu0 0
      %7054 = vmatmul.mubr.bf16.gmra.mrb[0].mxu0 %v4044
      %v7055 = vpop.f32.mrb[0].mxu0
      %v7056 = vadd.f32 %v974, %v7055
      %v7057 = vpop.f32.mrb[0].mxu0
      %v7058 = vpop.f32.mrb[0].mxu0
      %v7059 = vadd.f32 %v974, %v7058
      %v7060 = vpop.f32.mrb[0].mxu0
      %7061 = vmatprep.mubr.bf16.mxu0 0
      %7062 = vmatmul.mubr.bf16.gmra.mrb[0].mxu0 %v4047
      %v7063 = vpop.f32.mrb[0].mxu0
      %v7064 = vadd.f32 %v974, %v7063
      %v7065 = vpop.f32.mrb[0].mxu0
      %v7066 = vpop.f32.mrb[0].mxu0
      %v7067 = vadd.f32 %v974, %v7066
      %v7068 = vpop.f32.mrb[0].mxu0
      %7069 = vmatprep.mubr.bf16.mxu0 0
      %7070 = vmatmul.mubr.bf16.gmra.mrb[0].mxu0 %v4050
      %v7071 = vpop.f32.mrb[0].mxu0
      %v7072 = vadd.f32 %v974, %v7071
      %v7073 = vpop.f32.mrb[0].mxu0
      %v7074 = vpop.f32.mrb[0].mxu0
      %v7075 = vadd.f32 %v974, %v7074
      %v7076 = vpop.f32.mrb[0].mxu0
      %7077 = vmatprep.mubr.bf16.mxu0 0
      %7078 = vmatmul.mubr.bf16.gmra.mrb[0].mxu0 %v4053
      %v7079 = vpop.f32.mrb[0].mxu0
      %v7080 = vadd.f32 %v974, %v7079
      %v7081 = vpop.f32.mrb[0].mxu0
      %v7082 = vpop.f32.mrb[0].mxu0
      %v7083 = vadd.f32 %v974, %v7082
      %v7084 = vpop.f32.mrb[0].mxu0
      %7085 = vmatprep.mubr.bf16.mxu0 0
      %7086 = vmatmul.mubr.bf16.gmra.mrb[0].mxu0 %v4056
      %v7087 = vpop.f32.mrb[0].mxu0
      %v7088 = vadd.f32 %v974, %v7087
      %v7089 = vpop.f32.mrb[0].mxu0
      %v7090 = vpop.f32.mrb[0].mxu0
      %v7091 = vadd.f32 %v974, %v7090
      %v7092 = vpop.f32.mrb[0].mxu0
      %7093 = vmatprep.mubr.bf16.mxu0 0
      %7094 = vmatmul.mubr.bf16.gmra.mrb[0].mxu0 %v4059
      %v7095 = vpop.f32.mrb[0].mxu0
      %v7096 = vadd.f32 %v974, %v7095
      %v7097 = vpop.f32.mrb[0].mxu0
      %v7098 = vpop.f32.mrb[0].mxu0
      %v7099 = vadd.f32 %v974, %v7098
      %v7100 = vpop.f32.mrb[0].mxu0
      %7101 = vmatprep.mubr.bf16.mxu0 0
      %7102 = vmatmul.mubr.bf16.gmra.mrb[0].mxu0 %v4062
      %v7103 = vpop.f32.mrb[0].mxu0
      %v7104 = vadd.f32 %v974, %v7103
      %v7105 = vpop.f32.mrb[0].mxu0
      %v7106 = vpop.f32.mrb[0].mxu0
      %v7107 = vadd.f32 %v974, %v7106
      %v7108 = vpop.f32.mrb[0].mxu0
      %7109 = vmatprep.mubr.bf16.mxu0 0
      %7110 = vmatmul.mubr.bf16.gmra.mrb[0].mxu0 %v4065
      %v7111 = vpop.f32.mrb[0].mxu0
      %v7112 = vadd.f32 %v974, %v7111
      %v7113 = vpop.f32.mrb[0].mxu0
      %v7114 = vpop.f32.mrb[0].mxu0
      %v7115 = vadd.f32 %v974, %v7114
      %v7116 = vpop.f32.mrb[0].mxu0
      %7117 = vmatprep.mubr.bf16.mxu0 0
      %7118 = vmatmul.mubr.bf16.gmra.mrb[0].mxu0 %v4068
      %v7119 = vpop.f32.mrb[0].mxu0
      %v7120 = vadd.f32 %v974, %v7119
      %v7121 = vpop.f32.mrb[0].mxu0
      %v7122 = vpop.f32.mrb[0].mxu0
      %v7123 = vadd.f32 %v974, %v7122
      %v7124 = vpop.f32.mrb[0].mxu0
      %7125 = vmatprep.mubr.bf16.mxu0 0
      %7126 = vmatmul.mubr.bf16.gmra.mrb[0].mxu0 %v4071
      %v7127 = vpop.f32.mrb[0].mxu0
      %v7128 = vadd.f32 %v974, %v7127
      %v7129 = vpop.f32.mrb[0].mxu0
      %v7130 = vpop.f32.mrb[0].mxu0
      %v7131 = vadd.f32 %v974, %v7130
      %v7132 = vpop.f32.mrb[0].mxu0
      %7133 = vmatprep.mubr.bf16.mxu0 0
      %7134 = vmatmul.mubr.bf16.gmra.mrb[0].mxu0 %v4074
      %v7135 = vpop.f32.mrb[0].mxu0
      %v7136 = vadd.f32 %v974, %v7135
      %v7137 = vpop.f32.mrb[0].mxu0
      %v7138 = vpop.f32.mrb[0].mxu0
      %v7139 = vadd.f32 %v974, %v7138
      %v7140 = vpop.f32.mrb[0].mxu0
      %7141 = vmatprep.mubr.bf16.mxu0 0
      %7142 = vmatmul.mubr.bf16.gmra.mrb[0].mxu0 %v4077
      %v7143 = vpop.f32.mrb[0].mxu0
      %v7144 = vadd.f32 %v974, %v7143
      %v7145 = vpop.f32.mrb[0].mxu0
      %v7146 = vpop.f32.mrb[0].mxu0
      %v7147 = vadd.f32 %v974, %v7146
      %v7148 = vpop.f32.mrb[0].mxu0
      %7149 = vmatprep.mubr.bf16.mxu0 0
      %7150 = vmatmul.mubr.bf16.gmra.mrb[0].mxu0 %v4080
      %v7151 = vpop.f32.mrb[0].mxu0
      %v7152 = vadd.f32 %v974, %v7151
      %v7153 = vpop.f32.mrb[0].mxu0
      %v7154 = vpop.f32.mrb[0].mxu0
      %v7155 = vadd.f32 %v974, %v7154
      %v7156 = vpop.f32.mrb[0].mxu0
      %7157 = vmatprep.mubr.bf16.mxu0 0
      %7158 = vmatmul.mubr.bf16.gmra.mrb[0].mxu0 %v4083
      %v7159 = vpop.f32.mrb[0].mxu0
      %v7160 = vadd.f32 %v974, %v7159
      %v7161 = vpop.f32.mrb[0].mxu0
      %v7162 = vpop.f32.mrb[0].mxu0
      %v7163 = vadd.f32 %v974, %v7162
      %v7164 = vpop.f32.mrb[0].mxu0
      %7165 = vmatprep.mubr.bf16.mxu0 0
      %7166 = vmatmul.mubr.bf16.gmra.mrb[0].mxu0 %v4086
      %v7167 = vpop.f32.mrb[0].mxu0
      %v7168 = vadd.f32 %v974, %v7167
      %v7169 = vpop.f32.mrb[0].mxu0
      %v7170 = vpop.f32.mrb[0].mxu0
      %v7171 = vadd.f32 %v974, %v7170
      %v7172 = vpop.f32.mrb[0].mxu0
      %7173 = vmatprep.mubr.bf16.mxu0 0
      %7174 = vmatmul.mubr.bf16.gmra.mrb[0].mxu0 %v4089
      %v7175 = vpop.f32.mrb[0].mxu0
      %v7176 = vadd.f32 %v974, %v7175
      %v7177 = vpop.f32.mrb[0].mxu0
      %v7178 = vpop.f32.mrb[0].mxu0
      %v7179 = vadd.f32 %v974, %v7178
      %v7180 = vpop.f32.mrb[0].mxu0
      %7181 = vmatprep.mubr.bf16.mxu0 0
      %7182 = vmatmul.mubr.bf16.gmra.mrb[0].mxu0 %v4092
      %v7183 = vpop.f32.mrb[0].mxu0
      %v7184 = vadd.f32 %v974, %v7183
      %v7185 = vpop.f32.mrb[0].mxu0
      %v7186 = vpop.f32.mrb[0].mxu0
      %v7187 = vadd.f32 %v974, %v7186
      %v7188 = vpop.f32.mrb[0].mxu0
      %7189 = vmatprep.mubr.bf16.mxu0 0
      %7190 = vmatmul.mubr.bf16.gmra.mrb[0].mxu0 %v4095
      %v7191 = vpop.f32.mrb[0].mxu0
      %v7192 = vadd.f32 %v974, %v7191
      %v7193 = vpop.f32.mrb[0].mxu0
      %v7194 = vpop.f32.mrb[0].mxu0
      %v7195 = vadd.f32 %v974, %v7194
      %v7196 = vpop.f32.mrb[0].mxu0
      %7197 = vmatprep.mubr.bf16.mxu0 0
      %7198 = vmatmul.mubr.bf16.gmra.mrb[0].mxu0 %v4098
      %v7199 = vpop.f32.mrb[0].mxu0
      %v7200 = vadd.f32 %v974, %v7199
      %v7201 = vpop.f32.mrb[0].mxu0
      %v7202 = vpop.f32.mrb[0].mxu0
      %v7203 = vadd.f32 %v974, %v7202
      %v7204 = vpop.f32.mrb[0].mxu0
      %7205 = vmatprep.mubr.bf16.mxu0 0
      %7206 = vmatmul.mubr.bf16.gmra.mrb[0].mxu0 %v4101
      %v7207 = vpop.f32.mrb[0].mxu0
      %v7208 = vadd.f32 %v974, %v7207
      %v7209 = vpop.f32.mrb[0].mxu0
      %v7210 = vpop.f32.mrb[0].mxu0
      %v7211 = vadd.f32 %v974, %v7210
      %v7212 = vpop.f32.mrb[0].mxu0
      %7213 = vmatprep.mubr.bf16.mxu0 0
      %7214 = vmatmul.mubr.bf16.gmra.mrb[0].mxu0 %v4104
      %v7215 = vpop.f32.mrb[0].mxu0
      %v7216 = vadd.f32 %v974, %v7215
      %v7217 = vpop.f32.mrb[0].mxu0
      %v7218 = vpop.f32.mrb[0].mxu0
      %v7219 = vadd.f32 %v974, %v7218
      %v7220 = vpop.f32.mrb[0].mxu0
      %7221 = vmatprep.mubr.bf16.mxu0 0
      %7222 = vmatmul.mubr.bf16.gmra.mrb[0].mxu0 %v4107
      %v7223 = vpop.f32.mrb[0].mxu0
      %v7224 = vadd.f32 %v974, %v7223
      %v7225 = vpop.f32.mrb[0].mxu0
      %v7226 = vpop.f32.mrb[0].mxu0
      %v7227 = vadd.f32 %v974, %v7226
      %v7228 = vpop.f32.mrb[0].mxu0
      %7229 = vmatprep.mubr.bf16.mxu0 0
      %7230 = vmatmul.mubr.bf16.gmra.mrb[0].mxu0 %v4110
      %v7231 = vpop.f32.mrb[0].mxu0
      %v7232 = vadd.f32 %v974, %v7231
      %v7233 = vpop.f32.mrb[0].mxu0
      %v7234 = vpop.f32.mrb[0].mxu0
      %v7235 = vadd.f32 %v974, %v7234
      %v7236 = vpop.f32.mrb[0].mxu0
      %7237 = vmatprep.mubr.bf16.mxu0 0
      %7238 = vmatmul.mubr.bf16.gmra.mrb[0].mxu0 %v4113
      %v7239 = vpop.f32.mrb[0].mxu0
      %v7240 = vadd.f32 %v974, %v7239
      %v7241 = vpop.f32.mrb[0].mxu0
      %v7242 = vpop.f32.mrb[0].mxu0
      %v7243 = vadd.f32 %v974, %v7242
      %v7244 = vpop.f32.mrb[0].mxu0
      %7245 = vmatprep.mubr.bf16.mxu0 0
      %7246 = vmatmul.mubr.bf16.gmra.mrb[0].mxu0 %v4116
      %v7247 = vpop.f32.mrb[0].mxu0
      %v7248 = vadd.f32 %v974, %v7247
      %v7249 = vpop.f32.mrb[0].mxu0
      %v7250 = vpop.f32.mrb[0].mxu0
      %v7251 = vadd.f32 %v974, %v7250
      %v7252 = vpop.f32.mrb[0].mxu0
      %7253 = vmatprep.mubr.bf16.mxu0 0
      %7254 = vmatmul.mubr.bf16.gmra.mrb[0].mxu0 %v4119
      %v7255 = vpop.f32.mrb[0].mxu0
      %v7256 = vadd.f32 %v974, %v7255
      %v7257 = vpop.f32.mrb[0].mxu0
      %v7258 = vpop.f32.mrb[0].mxu0
      %v7259 = vadd.f32 %v974, %v7258
      %v7260 = vpop.f32.mrb[0].mxu0
      %7261 = vmatprep.mubr.bf16.mxu0 0
      %7262 = vmatmul.mubr.bf16.gmra.mrb[0].mxu0 %v4122
      %v7263 = vpop.f32.mrb[0].mxu0
      %v7264 = vadd.f32 %v974, %v7263
      %v7265 = vpop.f32.mrb[0].mxu0
      %v7266 = vpop.f32.mrb[0].mxu0
      %v7267 = vadd.f32 %v974, %v7266
      %v7268 = vpop.f32.mrb[0].mxu0
      %7269 = vmatprep.mubr.bf16.mxu0 0
      %7270 = vmatmul.mubr.bf16.gmra.mrb[0].mxu0 %v4125
      %v7271 = vpop.f32.mrb[0].mxu0
      %v7272 = vadd.f32 %v974, %v7271
      %v7273 = vpop.f32.mrb[0].mxu0
      %v7274 = vpop.f32.mrb[0].mxu0
      %v7275 = vadd.f32 %v974, %v7274
      %v7276 = vpop.f32.mrb[0].mxu0
      %7277 = vmatprep.mubr.bf16.mxu0 0
      %7278 = vmatmul.mubr.bf16.gmra.mrb[0].mxu0 %v4128
      %v7279 = vpop.f32.mrb[0].mxu0
      %v7280 = vadd.f32 %v974, %v7279
      %v7281 = vpop.f32.mrb[0].mxu0
      %v7282 = vpop.f32.mrb[0].mxu0
      %v7283 = vadd.f32 %v974, %v7282
      %v7284 = vpop.f32.mrb[0].mxu0
      %7285 = vmatprep.mubr.bf16.mxu0 0
      %7286 = vmatmul.mubr.bf16.gmra.mrb[0].mxu0 %v4131
      %v7287 = vpop.f32.mrb[0].mxu0
      %v7288 = vadd.f32 %v974, %v7287
      %v7289 = vpop.f32.mrb[0].mxu0
      %v7290 = vpop.f32.mrb[0].mxu0
      %v7291 = vadd.f32 %v974, %v7290
      %v7292 = vpop.f32.mrb[0].mxu0
      %7293 = vmatprep.mubr.bf16.mxu0 0
      %7294 = vmatmul.mubr.bf16.gmra.mrb[0].mxu0 %v4134
      %v7295 = vpop.f32.mrb[0].mxu0
      %v7296 = vadd.f32 %v974, %v7295
      %v7297 = vpop.f32.mrb[0].mxu0
      %v7298 = vpop.f32.mrb[0].mxu0
      %v7299 = vadd.f32 %v974, %v7298
      %v7300 = vpop.f32.mrb[0].mxu0
      %7301 = vmatprep.mubr.bf16.mxu0 0
      %7302 = vmatmul.mubr.bf16.gmra.mrb[0].mxu0 %v4137
      %v7303 = vpop.f32.mrb[0].mxu0
      %v7304 = vadd.f32 %v974, %v7303
      %v7305 = vpop.f32.mrb[0].mxu0
      %v7306 = vpop.f32.mrb[0].mxu0
      %v7307 = vadd.f32 %v974, %v7306
      %v7308 = vpop.f32.mrb[0].mxu0
      %7309 = vmatprep.mubr.bf16.mxu0 0
      %7310 = vmatmul.mubr.bf16.gmra.mrb[0].mxu0 %v4140
      %v7311 = vpop.f32.mrb[0].mxu0
      %v7312 = vadd.f32 %v974, %v7311
      %v7313 = vpop.f32.mrb[0].mxu0
      %v7314 = vpop.f32.mrb[0].mxu0
      %v7315 = vadd.f32 %v974, %v7314
      %v7316 = vpop.f32.mrb[0].mxu0
      %7317 = vdwg.mxu0
      %v7318 = vmax.f32 %v4184, 0.0
      %v7319 = vmax.f32 %v4187, 0.0
      %v7320 = vmax.f32 %v4192, 0.0
      %v7321 = vmax.f32 %v4195, 0.0
      %v7322 = vmax.f32 %v4200, 0.0
      %v7323 = vmax.f32 %v4203, 0.0
      %v7324 = vmax.f32 %v4208, 0.0
      %v7325 = vmax.f32 %v4211, 0.0
      %v7326 = vmax.f32 %v4216, 0.0
      %v7327 = vmax.f32 %v4219, 0.0
      %v7328 = vmax.f32 %v4224, 0.0
      %v7329 = vmax.f32 %v4227, 0.0
      %v7330 = vmax.f32 %v4232, 0.0
      %v7331 = vmax.f32 %v4235, 0.0
      %v7332 = vmax.f32 %v4240, 0.0
      %v7333 = vmax.f32 %v4243, 0.0
      %v7334 = vmax.f32 %v4248, 0.0
      %v7335 = vmax.f32 %v4251, 0.0
      %v7336 = vmax.f32 %v4256, 0.0
      %v7337 = vmax.f32 %v4259, 0.0
      %v7338 = vmax.f32 %v4264, 0.0
      %v7339 = vmax.f32 %v4267, 0.0
      %v7340 = vmax.f32 %v4272, 0.0
      %v7341 = vmax.f32 %v4275, 0.0
      %v7342 = vmax.f32 %v4280, 0.0
      %v7343 = vmax.f32 %v4283, 0.0
      %v7344 = vmax.f32 %v4288, 0.0
      %v7345 = vmax.f32 %v4291, 0.0
      %v7346 = vmax.f32 %v4296, 0.0
      %v7347 = vmax.f32 %v4299, 0.0
      %v7348 = vmax.f32 %v4304, 0.0
      %v7349 = vmax.f32 %v4307, 0.0
      %v7350 = vmax.f32 %v4312, 0.0
      %v7351 = vmax.f32 %v4315, 0.0
      %v7352 = vmax.f32 %v4320, 0.0
      %v7353 = vmax.f32 %v4323, 0.0
      %v7354 = vmax.f32 %v4328, 0.0
      %v7355 = vmax.f32 %v4331, 0.0
      %v7356 = vmax.f32 %v4336, 0.0
      %v7357 = vmax.f32 %v4339, 0.0
      %v7358 = vmax.f32 %v4344, 0.0
      %v7359 = vmax.f32 %v4347, 0.0
      %v7360 = vmax.f32 %v4352, 0.0
      %v7361 = vmax.f32 %v4355, 0.0
      %v7362 = vmax.f32 %v4360, 0.0
      %v7363 = vmax.f32 %v4363, 0.0
      %v7364 = vmax.f32 %v4368, 0.0
      %v7365 = vmax.f32 %v4371, 0.0
      %v7366 = vmax.f32 %v4376, 0.0
      %v7367 = vmax.f32 %v4379, 0.0
      %v7368 = vmax.f32 %v4384, 0.0
      %v7369 = vmax.f32 %v4387, 0.0
      %v7370 = vmax.f32 %v4392, 0.0
      %v7371 = vmax.f32 %v4395, 0.0
      %v7372 = vmax.f32 %v4400, 0.0
      %v7373 = vmax.f32 %v4403, 0.0
      %v7374 = vmax.f32 %v4408, 0.0
      %v7375 = vmax.f32 %v4411, 0.0
      %v7376 = vmax.f32 %v4416, 0.0
      %v7377 = vmax.f32 %v4419, 0.0
      %v7378 = vmax.f32 %v4424, 0.0
      %v7379 = vmax.f32 %v4427, 0.0
      %v7380 = vmax.f32 %v4432, 0.0
      %v7381 = vmax.f32 %v4435, 0.0
      %v7382 = vmax.f32 %v4440, 0.0
      %v7383 = vmax.f32 %v4443, 0.0
      %v7384 = vmax.f32 %v4448, 0.0
      %v7385 = vmax.f32 %v4451, 0.0
      %v7386 = vmax.f32 %v4456, 0.0
      %v7387 = vmax.f32 %v4459, 0.0
      %v7388 = vmax.f32 %v4464, 0.0
      %v7389 = vmax.f32 %v4467, 0.0
      %v7390 = vmax.f32 %v4472, 0.0
      %v7391 = vmax.f32 %v4475, 0.0
      %v7392 = vmax.f32 %v4480, 0.0
      %v7393 = vmax.f32 %v4483, 0.0
      %v7394 = vmax.f32 %v4488, 0.0
      %v7395 = vmax.f32 %v4491, 0.0
      %v7396 = vmax.f32 %v4496, 0.0
      %v7397 = vmax.f32 %v4499, 0.0
      %v7398 = vmax.f32 %v4504, 0.0
      %v7399 = vmax.f32 %v4507, 0.0
      %v7400 = vmax.f32 %v4512, 0.0
      %v7401 = vmax.f32 %v4515, 0.0
      %v7402 = vmax.f32 %v4520, 0.0
      %v7403 = vmax.f32 %v4523, 0.0
      %v7404 = vmax.f32 %v4528, 0.0
      %v7405 = vmax.f32 %v4531, 0.0
      %v7406 = vmax.f32 %v4536, 0.0
      %v7407 = vmax.f32 %v4539, 0.0
      %v7408 = vmax.f32 %v4544, 0.0
      %v7409 = vmax.f32 %v4547, 0.0
      %v7410 = vmax.f32 %v4552, 0.0
      %v7411 = vmax.f32 %v4555, 0.0
      %v7412 = vmax.f32 %v4560, 0.0
      %v7413 = vmax.f32 %v4563, 0.0
      %v7414 = vmax.f32 %v4568, 0.0
      %v7415 = vmax.f32 %v4571, 0.0
      %v7416 = vmax.f32 %v4576, 0.0
      %v7417 = vmax.f32 %v4579, 0.0
      %v7418 = vmax.f32 %v4584, 0.0
      %v7419 = vmax.f32 %v4587, 0.0
      %v7420 = vmax.f32 %v4592, 0.0
      %v7421 = vmax.f32 %v4595, 0.0
      %v7422 = vmax.f32 %v4600, 0.0
      %v7423 = vmax.f32 %v4603, 0.0
      %v7424 = vmax.f32 %v4608, 0.0
      %v7425 = vmax.f32 %v4611, 0.0
      %v7426 = vmax.f32 %v4616, 0.0
      %v7427 = vmax.f32 %v4619, 0.0
      %v7428 = vmax.f32 %v4624, 0.0
      %v7429 = vmax.f32 %v4627, 0.0
      %v7430 = vmax.f32 %v4632, 0.0
      %v7431 = vmax.f32 %v4635, 0.0
      %v7432 = vmax.f32 %v4640, 0.0
      %v7433 = vmax.f32 %v4643, 0.0
      %v7434 = vmax.f32 %v4648, 0.0
      %v7435 = vmax.f32 %v4651, 0.0
      %v7436 = vmax.f32 %v4656, 0.0
      %v7437 = vmax.f32 %v4659, 0.0
      %v7438 = vmax.f32 %v4664, 0.0
      %v7439 = vmax.f32 %v4667, 0.0
      %v7440 = vmax.f32 %v4672, 0.0
      %v7441 = vmax.f32 %v4675, 0.0
      %v7442 = vmax.f32 %v4680, 0.0
      %v7443 = vmax.f32 %v4683, 0.0
      %v7444 = vmax.f32 %v4688, 0.0
      %v7445 = vmax.f32 %v4691, 0.0
      %v7446 = vmax.f32 %v4696, 0.0
      %v7447 = vmax.f32 %v4699, 0.0
      %v7448 = vmax.f32 %v4704, 0.0
      %v7449 = vmax.f32 %v4707, 0.0
      %v7450 = vmax.f32 %v4712, 0.0
      %v7451 = vmax.f32 %v4715, 0.0
      %v7452 = vmax.f32 %v4720, 0.0
      %v7453 = vmax.f32 %v4723, 0.0
      %v7454 = vmax.f32 %v4728, 0.0
      %v7455 = vmax.f32 %v4731, 0.0
      %v7456 = vmax.f32 %v4736, 0.0
      %v7457 = vmax.f32 %v4739, 0.0
      %v7458 = vmax.f32 %v4744, 0.0
      %v7459 = vmax.f32 %v4747, 0.0
      %v7460 = vmax.f32 %v4752, 0.0
      %v7461 = vmax.f32 %v4755, 0.0
      %v7462 = vmax.f32 %v4760, 0.0
      %v7463 = vmax.f32 %v4763, 0.0
      %v7464 = vmax.f32 %v4768, 0.0
      %v7465 = vmax.f32 %v4771, 0.0
      %v7466 = vmax.f32 %v4776, 0.0
      %v7467 = vmax.f32 %v4779, 0.0
      %v7468 = vmax.f32 %v4784, 0.0
      %v7469 = vmax.f32 %v4787, 0.0
      %v7470 = vmax.f32 %v4792, 0.0
      %v7471 = vmax.f32 %v4795, 0.0
      %v7472 = vmax.f32 %v4800, 0.0
      %v7473 = vmax.f32 %v4803, 0.0
      %v7474 = vmax.f32 %v4808, 0.0
      %v7475 = vmax.f32 %v4811, 0.0
      %v7476 = vmax.f32 %v4816, 0.0
      %v7477 = vmax.f32 %v4819, 0.0
      %v7478 = vmax.f32 %v4824, 0.0
      %v7479 = vmax.f32 %v4827, 0.0
      %v7480 = vmax.f32 %v4832, 0.0
      %v7481 = vmax.f32 %v4835, 0.0
      %v7482 = vmax.f32 %v4840, 0.0
      %v7483 = vmax.f32 %v4843, 0.0
      %v7484 = vmax.f32 %v4848, 0.0
      %v7485 = vmax.f32 %v4851, 0.0
      %v7486 = vmax.f32 %v4856, 0.0
      %v7487 = vmax.f32 %v4859, 0.0
      %v7488 = vmax.f32 %v4864, 0.0
      %v7489 = vmax.f32 %v4867, 0.0
      %v7490 = vmax.f32 %v4872, 0.0
      %v7491 = vmax.f32 %v4875, 0.0
      %v7492 = vmax.f32 %v4880, 0.0
      %v7493 = vmax.f32 %v4883, 0.0
      %v7494 = vmax.f32 %v4888, 0.0
      %v7495 = vmax.f32 %v4891, 0.0
      %v7496 = vmax.f32 %v4896, 0.0
      %v7497 = vmax.f32 %v4899, 0.0
      %v7498 = vmax.f32 %v4904, 0.0
      %v7499 = vmax.f32 %v4907, 0.0
      %v7500 = vmax.f32 %v4912, 0.0
      %v7501 = vmax.f32 %v4915, 0.0
      %v7502 = vmax.f32 %v4920, 0.0
      %v7503 = vmax.f32 %v4923, 0.0
      %v7504 = vmax.f32 %v4928, 0.0
      %v7505 = vmax.f32 %v4931, 0.0
      %v7506 = vmax.f32 %v4936, 0.0
      %v7507 = vmax.f32 %v4939, 0.0
      %v7508 = vmax.f32 %v4944, 0.0
      %v7509 = vmax.f32 %v4947, 0.0
      %v7510 = vmax.f32 %v4952, 0.0
      %v7511 = vmax.f32 %v4955, 0.0
      %v7512 = vmax.f32 %v4960, 0.0
      %v7513 = vmax.f32 %v4963, 0.0
      %v7514 = vmax.f32 %v4968, 0.0
      %v7515 = vmax.f32 %v4971, 0.0
      %v7516 = vmax.f32 %v4976, 0.0
      %v7517 = vmax.f32 %v4979, 0.0
      %v7518 = vmax.f32 %v4984, 0.0
      %v7519 = vmax.f32 %v4987, 0.0
      %v7520 = vmax.f32 %v4992, 0.0
      %v7521 = vmax.f32 %v4995, 0.0
      %v7522 = vmax.f32 %v5000, 0.0
      %v7523 = vmax.f32 %v5003, 0.0
      %v7524 = vmax.f32 %v5008, 0.0
      %v7525 = vmax.f32 %v5011, 0.0
      %v7526 = vmax.f32 %v5016, 0.0
      %v7527 = vmax.f32 %v5019, 0.0
      %v7528 = vmax.f32 %v5024, 0.0
      %v7529 = vmax.f32 %v5027, 0.0
      %v7530 = vmax.f32 %v5032, 0.0
      %v7531 = vmax.f32 %v5035, 0.0
      %v7532 = vmax.f32 %v5040, 0.0
      %v7533 = vmax.f32 %v5043, 0.0
      %v7534 = vmax.f32 %v5048, 0.0
      %v7535 = vmax.f32 %v5051, 0.0
      %v7536 = vmax.f32 %v5056, 0.0
      %v7537 = vmax.f32 %v5059, 0.0
      %v7538 = vmax.f32 %v5064, 0.0
      %v7539 = vmax.f32 %v5067, 0.0
      %v7540 = vmax.f32 %v5072, 0.0
      %v7541 = vmax.f32 %v5075, 0.0
      %v7542 = vmax.f32 %v5080, 0.0
      %v7543 = vmax.f32 %v5083, 0.0
      %v7544 = vmax.f32 %v5088, 0.0
      %v7545 = vmax.f32 %v5091, 0.0
      %v7546 = vmax.f32 %v5096, 0.0
      %v7547 = vmax.f32 %v5099, 0.0
      %v7548 = vmax.f32 %v5104, 0.0
      %v7549 = vmax.f32 %v5107, 0.0
      %v7550 = vmax.f32 %v5112, 0.0
      %v7551 = vmax.f32 %v5115, 0.0
      %v7552 = vmax.f32 %v5120, 0.0
      %v7553 = vmax.f32 %v5123, 0.0
      %v7554 = vmax.f32 %v5128, 0.0
      %v7555 = vmax.f32 %v5131, 0.0
      %v7556 = vmax.f32 %v5136, 0.0
      %v7557 = vmax.f32 %v5139, 0.0
      %v7558 = vmax.f32 %v5144, 0.0
      %v7559 = vmax.f32 %v5147, 0.0
      %v7560 = vmax.f32 %v5152, 0.0
      %v7561 = vmax.f32 %v5155, 0.0
      %v7562 = vmax.f32 %v5160, 0.0
      %v7563 = vmax.f32 %v5163, 0.0
      %v7564 = vmax.f32 %v5168, 0.0
      %v7565 = vmax.f32 %v5171, 0.0
      %v7566 = vmax.f32 %v5176, 0.0
      %v7567 = vmax.f32 %v5179, 0.0
      %v7568 = vmax.f32 %v5184, 0.0
      %v7569 = vmax.f32 %v5187, 0.0
      %v7570 = vmax.f32 %v5192, 0.0
      %v7571 = vmax.f32 %v5195, 0.0
      %v7572 = vmax.f32 %v5200, 0.0
      %v7573 = vmax.f32 %v5203, 0.0
      %v7574 = vmax.f32 %v5208, 0.0
      %v7575 = vmax.f32 %v5211, 0.0
      %v7576 = vmax.f32 %v5216, 0.0
      %v7577 = vmax.f32 %v5219, 0.0
      %v7578 = vmax.f32 %v5224, 0.0
      %v7579 = vmax.f32 %v5227, 0.0
      %v7580 = vmax.f32 %v5232, 0.0
      %v7581 = vmax.f32 %v5235, 0.0
      %v7582 = vmax.f32 %v5240, 0.0
      %v7583 = vmax.f32 %v5243, 0.0
      %v7584 = vmax.f32 %v5248, 0.0
      %v7585 = vmax.f32 %v5251, 0.0
      %v7586 = vmax.f32 %v5256, 0.0
      %v7587 = vmax.f32 %v5259, 0.0
      %v7588 = vmax.f32 %v5264, 0.0
      %v7589 = vmax.f32 %v5267, 0.0
      %v7590 = vmax.f32 %v5272, 0.0
      %v7591 = vmax.f32 %v5275, 0.0
      %v7592 = vmax.f32 %v5280, 0.0
      %v7593 = vmax.f32 %v5283, 0.0
      %v7594 = vmax.f32 %v5288, 0.0
      %v7595 = vmax.f32 %v5291, 0.0
      %v7596 = vmax.f32 %v5296, 0.0
      %v7597 = vmax.f32 %v5299, 0.0
      %v7598 = vmax.f32 %v5304, 0.0
      %v7599 = vmax.f32 %v5307, 0.0
      %v7600 = vmax.f32 %v5312, 0.0
      %v7601 = vmax.f32 %v5315, 0.0
      %v7602 = vmax.f32 %v5320, 0.0
      %v7603 = vmax.f32 %v5323, 0.0
      %v7604 = vmax.f32 %v5328, 0.0
      %v7605 = vmax.f32 %v5331, 0.0
      %v7606 = vmax.f32 %v5336, 0.0
      %v7607 = vmax.f32 %v5339, 0.0
      %v7608 = vmax.f32 %v5344, 0.0
      %v7609 = vmax.f32 %v5347, 0.0
      %v7610 = vmax.f32 %v5352, 0.0
      %v7611 = vmax.f32 %v5355, 0.0
      %v7612 = vmax.f32 %v5360, 0.0
      %v7613 = vmax.f32 %v5363, 0.0
      %v7614 = vmax.f32 %v5368, 0.0
      %v7615 = vmax.f32 %v5371, 0.0
      %v7616 = vmax.f32 %v5376, 0.0
      %v7617 = vmax.f32 %v5379, 0.0
      %v7618 = vmax.f32 %v5384, 0.0
      %v7619 = vmax.f32 %v5387, 0.0
      %v7620 = vmax.f32 %v5392, 0.0
      %v7621 = vmax.f32 %v5395, 0.0
      %v7622 = vmax.f32 %v5400, 0.0
      %v7623 = vmax.f32 %v5403, 0.0
      %v7624 = vmax.f32 %v5408, 0.0
      %v7625 = vmax.f32 %v5411, 0.0
      %v7626 = vmax.f32 %v5416, 0.0
      %v7627 = vmax.f32 %v5419, 0.0
      %v7628 = vmax.f32 %v5424, 0.0
      %v7629 = vmax.f32 %v5427, 0.0
      %v7630 = vmax.f32 %v5432, 0.0
      %v7631 = vmax.f32 %v5435, 0.0
      %v7632 = vmax.f32 %v5440, 0.0
      %v7633 = vmax.f32 %v5443, 0.0
      %v7634 = vmax.f32 %v5448, 0.0
      %v7635 = vmax.f32 %v5451, 0.0
      %v7636 = vmax.f32 %v5456, 0.0
      %v7637 = vmax.f32 %v5459, 0.0
      %v7638 = vmax.f32 %v5464, 0.0
      %v7639 = vmax.f32 %v5467, 0.0
      %v7640 = vmax.f32 %v5472, 0.0
      %v7641 = vmax.f32 %v5475, 0.0
      %v7642 = vmax.f32 %v5480, 0.0
      %v7643 = vmax.f32 %v5483, 0.0
      %v7644 = vmax.f32 %v5488, 0.0
      %v7645 = vmax.f32 %v5491, 0.0
      %v7646 = vmax.f32 %v5496, 0.0
      %v7647 = vmax.f32 %v5499, 0.0
      %v7648 = vmax.f32 %v5504, 0.0
      %v7649 = vmax.f32 %v5507, 0.0
      %v7650 = vmax.f32 %v5512, 0.0
      %v7651 = vmax.f32 %v5515, 0.0
      %v7652 = vmax.f32 %v5520, 0.0
      %v7653 = vmax.f32 %v5523, 0.0
      %v7654 = vmax.f32 %v5528, 0.0
      %v7655 = vmax.f32 %v5531, 0.0
      %v7656 = vmax.f32 %v5536, 0.0
      %v7657 = vmax.f32 %v5539, 0.0
      %v7658 = vmax.f32 %v5544, 0.0
      %v7659 = vmax.f32 %v5547, 0.0
      %v7660 = vmax.f32 %v5552, 0.0
      %v7661 = vmax.f32 %v5555, 0.0
      %v7662 = vmax.f32 %v5560, 0.0
      %v7663 = vmax.f32 %v5563, 0.0
      %v7664 = vmax.f32 %v5568, 0.0
      %v7665 = vmax.f32 %v5571, 0.0
      %v7666 = vmax.f32 %v5576, 0.0
      %v7667 = vmax.f32 %v5579, 0.0
      %v7668 = vmax.f32 %v5584, 0.0
      %v7669 = vmax.f32 %v5587, 0.0
      %v7670 = vmax.f32 %v5592, 0.0
      %v7671 = vmax.f32 %v5595, 0.0
      %v7672 = vmax.f32 %v5600, 0.0
      %v7673 = vmax.f32 %v5603, 0.0
      %v7674 = vmax.f32 %v5608, 0.0
      %v7675 = vmax.f32 %v5611, 0.0
      %v7676 = vmax.f32 %v5616, 0.0
      %v7677 = vmax.f32 %v5619, 0.0
      %v7678 = vmax.f32 %v5624, 0.0
      %v7679 = vmax.f32 %v5627, 0.0
      %v7680 = vmax.f32 %v5632, 0.0
      %v7681 = vmax.f32 %v5635, 0.0
      %v7682 = vmax.f32 %v5640, 0.0
      %v7683 = vmax.f32 %v5643, 0.0
      %v7684 = vmax.f32 %v5648, 0.0
      %v7685 = vmax.f32 %v5651, 0.0
      %v7686 = vmax.f32 %v5656, 0.0
      %v7687 = vmax.f32 %v5659, 0.0
      %v7688 = vmax.f32 %v5664, 0.0
      %v7689 = vmax.f32 %v5667, 0.0
      %v7690 = vmax.f32 %v5672, 0.0
      %v7691 = vmax.f32 %v5675, 0.0
      %v7692 = vmax.f32 %v5680, 0.0
      %v7693 = vmax.f32 %v5683, 0.0
      %v7694 = vmax.f32 %v5688, 0.0
      %v7695 = vmax.f32 %v5691, 0.0
      %v7696 = vmax.f32 %v5696, 0.0
      %v7697 = vmax.f32 %v5699, 0.0
      %v7698 = vmax.f32 %v5704, 0.0
      %v7699 = vmax.f32 %v5707, 0.0
      %v7700 = vmax.f32 %v5712, 0.0
      %v7701 = vmax.f32 %v5715, 0.0
      %v7702 = vmax.f32 %v5720, 0.0
      %v7703 = vmax.f32 %v5723, 0.0
      %v7704 = vmax.f32 %v5728, 0.0
      %v7705 = vmax.f32 %v5731, 0.0
      %v7706 = vmax.f32 %v5736, 0.0
      %v7707 = vmax.f32 %v5739, 0.0
      %v7708 = vmax.f32 %v5744, 0.0
      %v7709 = vmax.f32 %v5747, 0.0
      %v7710 = vmax.f32 %v5752, 0.0
      %v7711 = vmax.f32 %v5755, 0.0
      %v7712 = vmax.f32 %v5760, 0.0
      %v7713 = vmax.f32 %v5763, 0.0
      %v7714 = vmax.f32 %v5768, 0.0
      %v7715 = vmax.f32 %v5771, 0.0
      %v7716 = vmax.f32 %v5776, 0.0
      %v7717 = vmax.f32 %v5779, 0.0
      %v7718 = vmax.f32 %v5784, 0.0
      %v7719 = vmax.f32 %v5787, 0.0
      %v7720 = vmax.f32 %v5792, 0.0
      %v7721 = vmax.f32 %v5795, 0.0
      %v7722 = vmax.f32 %v5800, 0.0
      %v7723 = vmax.f32 %v5803, 0.0
      %v7724 = vmax.f32 %v5808, 0.0
      %v7725 = vmax.f32 %v5811, 0.0
      %v7726 = vmax.f32 %v5816, 0.0
      %v7727 = vmax.f32 %v5819, 0.0
      %v7728 = vmax.f32 %v5824, 0.0
      %v7729 = vmax.f32 %v5827, 0.0
      %v7730 = vmax.f32 %v5832, 0.0
      %v7731 = vmax.f32 %v5835, 0.0
      %v7732 = vmax.f32 %v5840, 0.0
      %v7733 = vmax.f32 %v5843, 0.0
      %v7734 = vmax.f32 %v5848, 0.0
      %v7735 = vmax.f32 %v5851, 0.0
      %v7736 = vmax.f32 %v5856, 0.0
      %v7737 = vmax.f32 %v5859, 0.0
      %v7738 = vmax.f32 %v5864, 0.0
      %v7739 = vmax.f32 %v5867, 0.0
      %v7740 = vmax.f32 %v5872, 0.0
      %v7741 = vmax.f32 %v5875, 0.0
      %v7742 = vmax.f32 %v5880, 0.0
      %v7743 = vmax.f32 %v5883, 0.0
      %v7744 = vmax.f32 %v5888, 0.0
      %v7745 = vmax.f32 %v5891, 0.0
      %v7746 = vmax.f32 %v5896, 0.0
      %v7747 = vmax.f32 %v5899, 0.0
      %v7748 = vmax.f32 %v5904, 0.0
      %v7749 = vmax.f32 %v5907, 0.0
      %v7750 = vmax.f32 %v5912, 0.0
      %v7751 = vmax.f32 %v5915, 0.0
      %v7752 = vmax.f32 %v5920, 0.0
      %v7753 = vmax.f32 %v5923, 0.0
      %v7754 = vmax.f32 %v5928, 0.0
      %v7755 = vmax.f32 %v5931, 0.0
      %v7756 = vmax.f32 %v5936, 0.0
      %v7757 = vmax.f32 %v5939, 0.0
      %v7758 = vmax.f32 %v5944, 0.0
      %v7759 = vmax.f32 %v5947, 0.0
      %v7760 = vmax.f32 %v5952, 0.0
      %v7761 = vmax.f32 %v5955, 0.0
      %v7762 = vmax.f32 %v5960, 0.0
      %v7763 = vmax.f32 %v5963, 0.0
      %v7764 = vmax.f32 %v5968, 0.0
      %v7765 = vmax.f32 %v5971, 0.0
      %v7766 = vmax.f32 %v5976, 0.0
      %v7767 = vmax.f32 %v5979, 0.0
      %v7768 = vmax.f32 %v5984, 0.0
      %v7769 = vmax.f32 %v5987, 0.0
      %v7770 = vmax.f32 %v5992, 0.0
      %v7771 = vmax.f32 %v5995, 0.0
      %v7772 = vmax.f32 %v6000, 0.0
      %v7773 = vmax.f32 %v6003, 0.0
      %v7774 = vmax.f32 %v6008, 0.0
      %v7775 = vmax.f32 %v6011, 0.0
      %v7776 = vmax.f32 %v6016, 0.0
      %v7777 = vmax.f32 %v6019, 0.0
      %v7778 = vmax.f32 %v6024, 0.0
      %v7779 = vmax.f32 %v6027, 0.0
      %v7780 = vmax.f32 %v6032, 0.0
      %v7781 = vmax.f32 %v6035, 0.0
      %v7782 = vmax.f32 %v6040, 0.0
      %v7783 = vmax.f32 %v6043, 0.0
      %v7784 = vmax.f32 %v6048, 0.0
      %v7785 = vmax.f32 %v6051, 0.0
      %v7786 = vmax.f32 %v6056, 0.0
      %v7787 = vmax.f32 %v6059, 0.0
      %v7788 = vmax.f32 %v6064, 0.0
      %v7789 = vmax.f32 %v6067, 0.0
      %v7790 = vmax.f32 %v6072, 0.0
      %v7791 = vmax.f32 %v6075, 0.0
      %v7792 = vmax.f32 %v6080, 0.0
      %v7793 = vmax.f32 %v6083, 0.0
      %v7794 = vmax.f32 %v6088, 0.0
      %v7795 = vmax.f32 %v6091, 0.0
      %v7796 = vmax.f32 %v6096, 0.0
      %v7797 = vmax.f32 %v6099, 0.0
      %v7798 = vmax.f32 %v6104, 0.0
      %v7799 = vmax.f32 %v6107, 0.0
      %v7800 = vmax.f32 %v6112, 0.0
      %v7801 = vmax.f32 %v6115, 0.0
      %v7802 = vmax.f32 %v6120, 0.0
      %v7803 = vmax.f32 %v6123, 0.0
      %v7804 = vmax.f32 %v6128, 0.0
      %v7805 = vmax.f32 %v6131, 0.0
      %v7806 = vmax.f32 %v6136, 0.0
      %v7807 = vmax.f32 %v6139, 0.0
      %v7808 = vmax.f32 %v6144, 0.0
      %v7809 = vmax.f32 %v6147, 0.0
      %v7810 = vmax.f32 %v6152, 0.0
      %v7811 = vmax.f32 %v6155, 0.0
      %v7812 = vmax.f32 %v6160, 0.0
      %v7813 = vmax.f32 %v6163, 0.0
      %v7814 = vmax.f32 %v6168, 0.0
      %v7815 = vmax.f32 %v6171, 0.0
      %v7816 = vmax.f32 %v6176, 0.0
      %v7817 = vmax.f32 %v6179, 0.0
      %v7818 = vmax.f32 %v6184, 0.0
      %v7819 = vmax.f32 %v6187, 0.0
      %v7820 = vmax.f32 %v6192, 0.0
      %v7821 = vmax.f32 %v6195, 0.0
      %v7822 = vmax.f32 %v6200, 0.0
      %v7823 = vmax.f32 %v6203, 0.0
      %v7824 = vmax.f32 %v6208, 0.0
      %v7825 = vmax.f32 %v6211, 0.0
      %v7826 = vmax.f32 %v6216, 0.0
      %v7827 = vmax.f32 %v6219, 0.0
      %v7828 = vmax.f32 %v6224, 0.0
      %v7829 = vmax.f32 %v6227, 0.0
      %v7830 = vmax.f32 %v6232, 0.0
      %v7831 = vmax.f32 %v6235, 0.0
      %v7832 = vmax.f32 %v6240, 0.0
      %v7833 = vmax.f32 %v6243, 0.0
      %v7834 = vmax.f32 %v6248, 0.0
      %v7835 = vmax.f32 %v6251, 0.0
      %v7836 = vmax.f32 %v6256, 0.0
      %v7837 = vmax.f32 %v6259, 0.0
      %v7838 = vmax.f32 %v6264, 0.0
      %v7839 = vmax.f32 %v6267, 0.0
      %v7840 = vmax.f32 %v6272, 0.0
      %v7841 = vmax.f32 %v6275, 0.0
      %v7842 = vmax.f32 %v6280, 0.0
      %v7843 = vmax.f32 %v6283, 0.0
      %v7844 = vmax.f32 %v6288, 0.0
      %v7845 = vmax.f32 %v6291, 0.0
      %v7846 = vmax.f32 %v6296, 0.0
      %v7847 = vmax.f32 %v6299, 0.0
      %v7848 = vmax.f32 %v6304, 0.0
      %v7849 = vmax.f32 %v6307, 0.0
      %v7850 = vmax.f32 %v6312, 0.0
      %v7851 = vmax.f32 %v6315, 0.0
      %v7852 = vmax.f32 %v6320, 0.0
      %v7853 = vmax.f32 %v6323, 0.0
      %v7854 = vmax.f32 %v6328, 0.0
      %v7855 = vmax.f32 %v6331, 0.0
      %v7856 = vmax.f32 %v6336, 0.0
      %v7857 = vmax.f32 %v6339, 0.0
      %v7858 = vmax.f32 %v6344, 0.0
      %v7859 = vmax.f32 %v6347, 0.0
      %v7860 = vmax.f32 %v6352, 0.0
      %v7861 = vmax.f32 %v6355, 0.0
      %v7862 = vmax.f32 %v6360, 0.0
      %v7863 = vmax.f32 %v6363, 0.0
      %v7864 = vmax.f32 %v6368, 0.0
      %v7865 = vmax.f32 %v6371, 0.0
      %v7866 = vmax.f32 %v6376, 0.0
      %v7867 = vmax.f32 %v6379, 0.0
      %v7868 = vmax.f32 %v6384, 0.0
      %v7869 = vmax.f32 %v6387, 0.0
      %v7870 = vmax.f32 %v6392, 0.0
      %v7871 = vmax.f32 %v6395, 0.0
      %v7872 = vmax.f32 %v6400, 0.0
      %v7873 = vmax.f32 %v6403, 0.0
      %v7874 = vmax.f32 %v6408, 0.0
      %v7875 = vmax.f32 %v6411, 0.0
      %v7876 = vmax.f32 %v6416, 0.0
      %v7877 = vmax.f32 %v6419, 0.0
      %v7878 = vmax.f32 %v6424, 0.0
      %v7879 = vmax.f32 %v6427, 0.0
      %v7880 = vmax.f32 %v6432, 0.0
      %v7881 = vmax.f32 %v6435, 0.0
      %v7882 = vmax.f32 %v6440, 0.0
      %v7883 = vmax.f32 %v6443, 0.0
      %v7884 = vmax.f32 %v6448, 0.0
      %v7885 = vmax.f32 %v6451, 0.0
      %v7886 = vmax.f32 %v6456, 0.0
      %v7887 = vmax.f32 %v6459, 0.0
      %v7888 = vmax.f32 %v6464, 0.0
      %v7889 = vmax.f32 %v6467, 0.0
      %v7890 = vmax.f32 %v6472, 0.0
      %v7891 = vmax.f32 %v6475, 0.0
      %v7892 = vmax.f32 %v6480, 0.0
      %v7893 = vmax.f32 %v6483, 0.0
      %v7894 = vmax.f32 %v6488, 0.0
      %v7895 = vmax.f32 %v6491, 0.0
      %v7896 = vmax.f32 %v6496, 0.0
      %v7897 = vmax.f32 %v6499, 0.0
      %v7898 = vmax.f32 %v6504, 0.0
      %v7899 = vmax.f32 %v6507, 0.0
      %v7900 = vmax.f32 %v6512, 0.0
      %v7901 = vmax.f32 %v6515, 0.0
      %v7902 = vmax.f32 %v6520, 0.0
      %v7903 = vmax.f32 %v6523, 0.0
      %v7904 = vmax.f32 %v6528, 0.0
      %v7905 = vmax.f32 %v6531, 0.0
      %v7906 = vmax.f32 %v6536, 0.0
      %v7907 = vmax.f32 %v6539, 0.0
      %v7908 = vmax.f32 %v6544, 0.0
      %v7909 = vmax.f32 %v6547, 0.0
      %v7910 = vmax.f32 %v6552, 0.0
      %v7911 = vmax.f32 %v6555, 0.0
      %v7912 = vmax.f32 %v6560, 0.0
      %v7913 = vmax.f32 %v6563, 0.0
      %v7914 = vmax.f32 %v6568, 0.0
      %v7915 = vmax.f32 %v6571, 0.0
      %v7916 = vmax.f32 %v6576, 0.0
      %v7917 = vmax.f32 %v6579, 0.0
      %v7918 = vmax.f32 %v6584, 0.0
      %v7919 = vmax.f32 %v6587, 0.0
      %v7920 = vmax.f32 %v6592, 0.0
      %v7921 = vmax.f32 %v6595, 0.0
      %v7922 = vmax.f32 %v6600, 0.0
      %v7923 = vmax.f32 %v6603, 0.0
      %v7924 = vmax.f32 %v6608, 0.0
      %v7925 = vmax.f32 %v6611, 0.0
      %v7926 = vmax.f32 %v6616, 0.0
      %v7927 = vmax.f32 %v6619, 0.0
      %v7928 = vmax.f32 %v6624, 0.0
      %v7929 = vmax.f32 %v6627, 0.0
      %v7930 = vmax.f32 %v6632, 0.0
      %v7931 = vmax.f32 %v6635, 0.0
      %v7932 = vmax.f32 %v6640, 0.0
      %v7933 = vmax.f32 %v6643, 0.0
      %v7934 = vmax.f32 %v6648, 0.0
      %v7935 = vmax.f32 %v6651, 0.0
      %v7936 = vmax.f32 %v6656, 0.0
      %v7937 = vmax.f32 %v6659, 0.0
      %v7938 = vmax.f32 %v6664, 0.0
      %v7939 = vmax.f32 %v6667, 0.0
      %v7940 = vmax.f32 %v6672, 0.0
      %v7941 = vmax.f32 %v6675, 0.0
      %v7942 = vmax.f32 %v6680, 0.0
      %v7943 = vmax.f32 %v6683, 0.0
      %v7944 = vmax.f32 %v6688, 0.0
      %v7945 = vmax.f32 %v6691, 0.0
      %v7946 = vmax.f32 %v6696, 0.0
      %v7947 = vmax.f32 %v6699, 0.0
      %v7948 = vmax.f32 %v6704, 0.0
      %v7949 = vmax.f32 %v6707, 0.0
      %v7950 = vmax.f32 %v6712, 0.0
      %v7951 = vmax.f32 %v6715, 0.0
      %v7952 = vmax.f32 %v6720, 0.0
      %v7953 = vmax.f32 %v6723, 0.0
      %v7954 = vmax.f32 %v6728, 0.0
      %v7955 = vmax.f32 %v6731, 0.0
      %v7956 = vmax.f32 %v6736, 0.0
      %v7957 = vmax.f32 %v6739, 0.0
      %v7958 = vmax.f32 %v6744, 0.0
      %v7959 = vmax.f32 %v6747, 0.0
      %v7960 = vmax.f32 %v6752, 0.0
      %v7961 = vmax.f32 %v6755, 0.0
      %v7962 = vmax.f32 %v6760, 0.0
      %v7963 = vmax.f32 %v6763, 0.0
      %v7964 = vmax.f32 %v6768, 0.0
      %v7965 = vmax.f32 %v6771, 0.0
      %v7966 = vmax.f32 %v6776, 0.0
      %v7967 = vmax.f32 %v6779, 0.0
      %v7968 = vmax.f32 %v6784, 0.0
      %v7969 = vmax.f32 %v6787, 0.0
      %v7970 = vmax.f32 %v6792, 0.0
      %v7971 = vmax.f32 %v6795, 0.0
      %v7972 = vmax.f32 %v6800, 0.0
      %v7973 = vmax.f32 %v6803, 0.0
      %v7974 = vmax.f32 %v6808, 0.0
      %v7975 = vmax.f32 %v6811, 0.0
      %v7976 = vmax.f32 %v6816, 0.0
      %v7977 = vmax.f32 %v6819, 0.0
      %v7978 = vmax.f32 %v6824, 0.0
      %v7979 = vmax.f32 %v6827, 0.0
      %v7980 = vmax.f32 %v6832, 0.0
      %v7981 = vmax.f32 %v6835, 0.0
      %v7982 = vmax.f32 %v6840, 0.0
      %v7983 = vmax.f32 %v6843, 0.0
      %v7984 = vmax.f32 %v6848, 0.0
      %v7985 = vmax.f32 %v6851, 0.0
      %v7986 = vmax.f32 %v6856, 0.0
      %v7987 = vmax.f32 %v6859, 0.0
      %v7988 = vmax.f32 %v6864, 0.0
      %v7989 = vmax.f32 %v6867, 0.0
      %v7990 = vmax.f32 %v6872, 0.0
      %v7991 = vmax.f32 %v6875, 0.0
      %v7992 = vmax.f32 %v6880, 0.0
      %v7993 = vmax.f32 %v6883, 0.0
      %v7994 = vmax.f32 %v6888, 0.0
      %v7995 = vmax.f32 %v6891, 0.0
      %v7996 = vmax.f32 %v6896, 0.0
      %v7997 = vmax.f32 %v6899, 0.0
      %v7998 = vmax.f32 %v6904, 0.0
      %v7999 = vmax.f32 %v6907, 0.0
      %v8000 = vmax.f32 %v6912, 0.0
      %v8001 = vmax.f32 %v6915, 0.0
      %v8002 = vmax.f32 %v6920, 0.0
      %v8003 = vmax.f32 %v6923, 0.0
      %v8004 = vmax.f32 %v6928, 0.0
      %v8005 = vmax.f32 %v6931, 0.0
      %v8006 = vmax.f32 %v6936, 0.0
      %v8007 = vmax.f32 %v6939, 0.0
      %v8008 = vmax.f32 %v6944, 0.0
      %v8009 = vmax.f32 %v6947, 0.0
      %v8010 = vmax.f32 %v6952, 0.0
      %v8011 = vmax.f32 %v6955, 0.0
      %v8012 = vmax.f32 %v6960, 0.0
      %v8013 = vmax.f32 %v6963, 0.0
      %v8014 = vmax.f32 %v6968, 0.0
      %v8015 = vmax.f32 %v6971, 0.0
      %v8016 = vmax.f32 %v6976, 0.0
      %v8017 = vmax.f32 %v6979, 0.0
      %v8018 = vmax.f32 %v6984, 0.0
      %v8019 = vmax.f32 %v6987, 0.0
      %v8020 = vmax.f32 %v6992, 0.0
      %v8021 = vmax.f32 %v6995, 0.0
      %v8022 = vmax.f32 %v7000, 0.0
      %v8023 = vmax.f32 %v7003, 0.0
      %v8024 = vmax.f32 %v7008, 0.0
      %v8025 = vmax.f32 %v7011, 0.0
      %v8026 = vmax.f32 %v7016, 0.0
      %v8027 = vmax.f32 %v7019, 0.0
      %v8028 = vmax.f32 %v7024, 0.0
      %v8029 = vmax.f32 %v7027, 0.0
      %v8030 = vmax.f32 %v7032, 0.0
      %v8031 = vmax.f32 %v7035, 0.0
      %v8032 = vmax.f32 %v7040, 0.0
      %v8033 = vmax.f32 %v7043, 0.0
      %v8034 = vmax.f32 %v7048, 0.0
      %v8035 = vmax.f32 %v7051, 0.0
      %v8036 = vmax.f32 %v7056, 0.0
      %v8037 = vmax.f32 %v7059, 0.0
      %v8038 = vmax.f32 %v7064, 0.0
      %v8039 = vmax.f32 %v7067, 0.0
      %v8040 = vmax.f32 %v7072, 0.0
      %v8041 = vmax.f32 %v7075, 0.0
      %v8042 = vmax.f32 %v7080, 0.0
      %v8043 = vmax.f32 %v7083, 0.0
      %v8044 = vmax.f32 %v7088, 0.0
      %v8045 = vmax.f32 %v7091, 0.0
      %v8046 = vmax.f32 %v7096, 0.0
      %v8047 = vmax.f32 %v7099, 0.0
      %v8048 = vmax.f32 %v7104, 0.0
      %v8049 = vmax.f32 %v7107, 0.0
      %v8050 = vmax.f32 %v7112, 0.0
      %v8051 = vmax.f32 %v7115, 0.0
      %v8052 = vmax.f32 %v7120, 0.0
      %v8053 = vmax.f32 %v7123, 0.0
      %v8054 = vmax.f32 %v7128, 0.0
      %v8055 = vmax.f32 %v7131, 0.0
      %v8056 = vmax.f32 %v7136, 0.0
      %v8057 = vmax.f32 %v7139, 0.0
      %v8058 = vmax.f32 %v7144, 0.0
      %v8059 = vmax.f32 %v7147, 0.0
      %v8060 = vmax.f32 %v7152, 0.0
      %v8061 = vmax.f32 %v7155, 0.0
      %v8062 = vmax.f32 %v7160, 0.0
      %v8063 = vmax.f32 %v7163, 0.0
      %v8064 = vmax.f32 %v7168, 0.0
      %v8065 = vmax.f32 %v7171, 0.0
      %v8066 = vmax.f32 %v7176, 0.0
      %v8067 = vmax.f32 %v7179, 0.0
      %v8068 = vmax.f32 %v7184, 0.0
      %v8069 = vmax.f32 %v7187, 0.0
      %v8070 = vmax.f32 %v7192, 0.0
      %v8071 = vmax.f32 %v7195, 0.0
      %v8072 = vmax.f32 %v7200, 0.0
      %v8073 = vmax.f32 %v7203, 0.0
      %v8074 = vmax.f32 %v7208, 0.0
      %v8075 = vmax.f32 %v7211, 0.0
      %v8076 = vmax.f32 %v7216, 0.0
      %v8077 = vmax.f32 %v7219, 0.0
      %v8078 = vmax.f32 %v7224, 0.0
      %v8079 = vmax.f32 %v7227, 0.0
      %v8080 = vmax.f32 %v7232, 0.0
      %v8081 = vmax.f32 %v7235, 0.0
      %v8082 = vmax.f32 %v7240, 0.0
      %v8083 = vmax.f32 %v7243, 0.0
      %v8084 = vmax.f32 %v7248, 0.0
      %v8085 = vmax.f32 %v7251, 0.0
      %v8086 = vmax.f32 %v7256, 0.0
      %v8087 = vmax.f32 %v7259, 0.0
      %v8088 = vmax.f32 %v7264, 0.0
      %v8089 = vmax.f32 %v7267, 0.0
      %v8090 = vmax.f32 %v7272, 0.0
      %v8091 = vmax.f32 %v7275, 0.0
      %v8092 = vmax.f32 %v7280, 0.0
      %v8093 = vmax.f32 %v7283, 0.0
      %v8094 = vmax.f32 %v7288, 0.0
      %v8095 = vmax.f32 %v7291, 0.0
      %v8096 = vmax.f32 %v7296, 0.0
      %v8097 = vmax.f32 %v7299, 0.0
      %v8098 = vmax.f32 %v7304, 0.0
      %v8099 = vmax.f32 %v7307, 0.0
      %v8100 = vmax.f32 %v7312, 0.0
      %v8101 = vmax.f32 %v7315, 0.0
      %v8102 = vpack.c.bf16 %v7319, %v7318
      %v8103 = vpack.c.bf16 %v7321, %v7320
      %v8104 = vpack.c.bf16 %v7323, %v7322
      %v8105 = vpack.c.bf16 %v7325, %v7324
      %v8106 = vpack.c.bf16 %v7327, %v7326
      %v8107 = vpack.c.bf16 %v7329, %v7328
      %v8108 = vpack.c.bf16 %v7331, %v7330
      %v8109 = vpack.c.bf16 %v7333, %v7332
      %v8110 = vpack.c.bf16 %v7335, %v7334
      %v8111 = vpack.c.bf16 %v7337, %v7336
      %v8112 = vpack.c.bf16 %v7339, %v7338
      %v8113 = vpack.c.bf16 %v7341, %v7340
      %v8114 = vpack.c.bf16 %v7343, %v7342
      %v8115 = vpack.c.bf16 %v7345, %v7344
      %v8116 = vpack.c.bf16 %v7347, %v7346
      %v8117 = vpack.c.bf16 %v7349, %v7348
      %v8118 = vpack.c.bf16 %v7351, %v7350
      %v8119 = vpack.c.bf16 %v7353, %v7352
      %v8120 = vpack.c.bf16 %v7355, %v7354
      %v8121 = vpack.c.bf16 %v7357, %v7356
      %v8122 = vpack.c.bf16 %v7359, %v7358
      %v8123 = vpack.c.bf16 %v7361, %v7360
      %v8124 = vpack.c.bf16 %v7363, %v7362
      %v8125 = vpack.c.bf16 %v7365, %v7364
      %v8126 = vpack.c.bf16 %v7367, %v7366
      %v8127 = vpack.c.bf16 %v7369, %v7368
      %v8128 = vpack.c.bf16 %v7371, %v7370
      %v8129 = vpack.c.bf16 %v7373, %v7372
      %v8130 = vpack.c.bf16 %v7375, %v7374
      %v8131 = vpack.c.bf16 %v7377, %v7376
      %v8132 = vpack.c.bf16 %v7379, %v7378
      %v8133 = vpack.c.bf16 %v7381, %v7380
      %v8134 = vpack.c.bf16 %v7383, %v7382
      %v8135 = vpack.c.bf16 %v7385, %v7384
      %v8136 = vpack.c.bf16 %v7387, %v7386
      %v8137 = vpack.c.bf16 %v7389, %v7388
      %v8138 = vpack.c.bf16 %v7391, %v7390
      %v8139 = vpack.c.bf16 %v7393, %v7392
      %v8140 = vpack.c.bf16 %v7395, %v7394
      %v8141 = vpack.c.bf16 %v7397, %v7396
      %v8142 = vpack.c.bf16 %v7399, %v7398
      %v8143 = vpack.c.bf16 %v7401, %v7400
      %v8144 = vpack.c.bf16 %v7403, %v7402
      %v8145 = vpack.c.bf16 %v7405, %v7404
      %v8146 = vpack.c.bf16 %v7407, %v7406
      %v8147 = vpack.c.bf16 %v7409, %v7408
      %v8148 = vpack.c.bf16 %v7411, %v7410
      %v8149 = vpack.c.bf16 %v7413, %v7412
      %v8150 = vpack.c.bf16 %v7415, %v7414
      %v8151 = vpack.c.bf16 %v7417, %v7416
      %v8152 = vpack.c.bf16 %v7419, %v7418
      %v8153 = vpack.c.bf16 %v7421, %v7420
      %v8154 = vpack.c.bf16 %v7423, %v7422
      %v8155 = vpack.c.bf16 %v7425, %v7424
      %v8156 = vpack.c.bf16 %v7427, %v7426
      %v8157 = vpack.c.bf16 %v7429, %v7428
      %v8158 = vpack.c.bf16 %v7431, %v7430
      %v8159 = vpack.c.bf16 %v7433, %v7432
      %v8160 = vpack.c.bf16 %v7435, %v7434
      %v8161 = vpack.c.bf16 %v7437, %v7436
      %v8162 = vpack.c.bf16 %v7439, %v7438
      %v8163 = vpack.c.bf16 %v7441, %v7440
      %v8164 = vpack.c.bf16 %v7443, %v7442
      %v8165 = vpack.c.bf16 %v7445, %v7444
      %v8166 = vpack.c.bf16 %v7447, %v7446
      %v8167 = vpack.c.bf16 %v7449, %v7448
      %v8168 = vpack.c.bf16 %v7451, %v7450
      %v8169 = vpack.c.bf16 %v7453, %v7452
      %v8170 = vpack.c.bf16 %v7455, %v7454
      %v8171 = vpack.c.bf16 %v7457, %v7456
      %v8172 = vpack.c.bf16 %v7459, %v7458
      %v8173 = vpack.c.bf16 %v7461, %v7460
      %v8174 = vpack.c.bf16 %v7463, %v7462
      %v8175 = vpack.c.bf16 %v7465, %v7464
      %v8176 = vpack.c.bf16 %v7467, %v7466
      %v8177 = vpack.c.bf16 %v7469, %v7468
      %v8178 = vpack.c.bf16 %v7471, %v7470
      %v8179 = vpack.c.bf16 %v7473, %v7472
      %v8180 = vpack.c.bf16 %v7475, %v7474
      %v8181 = vpack.c.bf16 %v7477, %v7476
      %v8182 = vpack.c.bf16 %v7479, %v7478
      %v8183 = vpack.c.bf16 %v7481, %v7480
      %v8184 = vpack.c.bf16 %v7483, %v7482
      %v8185 = vpack.c.bf16 %v7485, %v7484
      %v8186 = vpack.c.bf16 %v7487, %v7486
      %v8187 = vpack.c.bf16 %v7489, %v7488
      %v8188 = vpack.c.bf16 %v7491, %v7490
      %v8189 = vpack.c.bf16 %v7493, %v7492
      %v8190 = vpack.c.bf16 %v7495, %v7494
      %v8191 = vpack.c.bf16 %v7497, %v7496
      %v8192 = vpack.c.bf16 %v7499, %v7498
      %v8193 = vpack.c.bf16 %v7501, %v7500
      %v8194 = vpack.c.bf16 %v7503, %v7502
      %v8195 = vpack.c.bf16 %v7505, %v7504
      %v8196 = vpack.c.bf16 %v7507, %v7506
      %v8197 = vpack.c.bf16 %v7509, %v7508
      %v8198 = vpack.c.bf16 %v7511, %v7510
      %v8199 = vpack.c.bf16 %v7513, %v7512
      %v8200 = vpack.c.bf16 %v7515, %v7514
      %v8201 = vpack.c.bf16 %v7517, %v7516
      %v8202 = vpack.c.bf16 %v7519, %v7518
      %v8203 = vpack.c.bf16 %v7521, %v7520
      %v8204 = vpack.c.bf16 %v7523, %v7522
      %v8205 = vpack.c.bf16 %v7525, %v7524
      %v8206 = vpack.c.bf16 %v7527, %v7526
      %v8207 = vpack.c.bf16 %v7529, %v7528
      %v8208 = vpack.c.bf16 %v7531, %v7530
      %v8209 = vpack.c.bf16 %v7533, %v7532
      %v8210 = vpack.c.bf16 %v7535, %v7534
      %v8211 = vpack.c.bf16 %v7537, %v7536
      %v8212 = vpack.c.bf16 %v7539, %v7538
      %v8213 = vpack.c.bf16 %v7541, %v7540
      %v8214 = vpack.c.bf16 %v7543, %v7542
      %v8215 = vpack.c.bf16 %v7545, %v7544
      %v8216 = vpack.c.bf16 %v7547, %v7546
      %v8217 = vpack.c.bf16 %v7549, %v7548
      %v8218 = vpack.c.bf16 %v7551, %v7550
      %v8219 = vpack.c.bf16 %v7553, %v7552
      %v8220 = vpack.c.bf16 %v7555, %v7554
      %v8221 = vpack.c.bf16 %v7557, %v7556
      %v8222 = vpack.c.bf16 %v7559, %v7558
      %v8223 = vpack.c.bf16 %v7561, %v7560
      %v8224 = vpack.c.bf16 %v7563, %v7562
      %v8225 = vpack.c.bf16 %v7565, %v7564
      %v8226 = vpack.c.bf16 %v7567, %v7566
      %v8227 = vpack.c.bf16 %v7569, %v7568
      %v8228 = vpack.c.bf16 %v7571, %v7570
      %v8229 = vpack.c.bf16 %v7573, %v7572
      %v8230 = vpack.c.bf16 %v7575, %v7574
      %v8231 = vpack.c.bf16 %v7577, %v7576
      %v8232 = vpack.c.bf16 %v7579, %v7578
      %v8233 = vpack.c.bf16 %v7581, %v7580
      %v8234 = vpack.c.bf16 %v7583, %v7582
      %v8235 = vpack.c.bf16 %v7585, %v7584
      %v8236 = vpack.c.bf16 %v7587, %v7586
      %v8237 = vpack.c.bf16 %v7589, %v7588
      %v8238 = vpack.c.bf16 %v7591, %v7590
      %v8239 = vpack.c.bf16 %v7593, %v7592
      %v8240 = vpack.c.bf16 %v7595, %v7594
      %v8241 = vpack.c.bf16 %v7597, %v7596
      %v8242 = vpack.c.bf16 %v7599, %v7598
      %v8243 = vpack.c.bf16 %v7601, %v7600
      %v8244 = vpack.c.bf16 %v7603, %v7602
      %v8245 = vpack.c.bf16 %v7605, %v7604
      %v8246 = vpack.c.bf16 %v7607, %v7606
      %v8247 = vpack.c.bf16 %v7609, %v7608
      %v8248 = vpack.c.bf16 %v7611, %v7610
      %v8249 = vpack.c.bf16 %v7613, %v7612
      %v8250 = vpack.c.bf16 %v7615, %v7614
      %v8251 = vpack.c.bf16 %v7617, %v7616
      %v8252 = vpack.c.bf16 %v7619, %v7618
      %v8253 = vpack.c.bf16 %v7621, %v7620
      %v8254 = vpack.c.bf16 %v7623, %v7622
      %v8255 = vpack.c.bf16 %v7625, %v7624
      %v8256 = vpack.c.bf16 %v7627, %v7626
      %v8257 = vpack.c.bf16 %v7629, %v7628
      %v8258 = vpack.c.bf16 %v7631, %v7630
      %v8259 = vpack.c.bf16 %v7633, %v7632
      %v8260 = vpack.c.bf16 %v7635, %v7634
      %v8261 = vpack.c.bf16 %v7637, %v7636
      %v8262 = vpack.c.bf16 %v7639, %v7638
      %v8263 = vpack.c.bf16 %v7641, %v7640
      %v8264 = vpack.c.bf16 %v7643, %v7642
      %v8265 = vpack.c.bf16 %v7645, %v7644
      %v8266 = vpack.c.bf16 %v7647, %v7646
      %v8267 = vpack.c.bf16 %v7649, %v7648
      %v8268 = vpack.c.bf16 %v7651, %v7650
      %v8269 = vpack.c.bf16 %v7653, %v7652
      %v8270 = vpack.c.bf16 %v7655, %v7654
      %v8271 = vpack.c.bf16 %v7657, %v7656
      %v8272 = vpack.c.bf16 %v7659, %v7658
      %v8273 = vpack.c.bf16 %v7661, %v7660
      %v8274 = vpack.c.bf16 %v7663, %v7662
      %v8275 = vpack.c.bf16 %v7665, %v7664
      %v8276 = vpack.c.bf16 %v7667, %v7666
      %v8277 = vpack.c.bf16 %v7669, %v7668
      %v8278 = vpack.c.bf16 %v7671, %v7670
      %v8279 = vpack.c.bf16 %v7673, %v7672
      %v8280 = vpack.c.bf16 %v7675, %v7674
      %v8281 = vpack.c.bf16 %v7677, %v7676
      %v8282 = vpack.c.bf16 %v7679, %v7678
      %v8283 = vpack.c.bf16 %v7681, %v7680
      %v8284 = vpack.c.bf16 %v7683, %v7682
      %v8285 = vpack.c.bf16 %v7685, %v7684
      %v8286 = vpack.c.bf16 %v7687, %v7686
      %v8287 = vpack.c.bf16 %v7689, %v7688
      %v8288 = vpack.c.bf16 %v7691, %v7690
      %v8289 = vpack.c.bf16 %v7693, %v7692
      %v8290 = vpack.c.bf16 %v7695, %v7694
      %v8291 = vpack.c.bf16 %v7697, %v7696
      %v8292 = vpack.c.bf16 %v7699, %v7698
      %v8293 = vpack.c.bf16 %v7701, %v7700
      %v8294 = vpack.c.bf16 %v7703, %v7702
      %v8295 = vpack.c.bf16 %v7705, %v7704
      %v8296 = vpack.c.bf16 %v7707, %v7706
      %v8297 = vpack.c.bf16 %v7709, %v7708
      %v8298 = vpack.c.bf16 %v7711, %v7710
      %v8299 = vpack.c.bf16 %v7713, %v7712
      %v8300 = vpack.c.bf16 %v7715, %v7714
      %v8301 = vpack.c.bf16 %v7717, %v7716
      %v8302 = vpack.c.bf16 %v7719, %v7718
      %v8303 = vpack.c.bf16 %v7721, %v7720
      %v8304 = vpack.c.bf16 %v7723, %v7722
      %v8305 = vpack.c.bf16 %v7725, %v7724
      %v8306 = vpack.c.bf16 %v7727, %v7726
      %v8307 = vpack.c.bf16 %v7729, %v7728
      %v8308 = vpack.c.bf16 %v7731, %v7730
      %v8309 = vpack.c.bf16 %v7733, %v7732
      %v8310 = vpack.c.bf16 %v7735, %v7734
      %v8311 = vpack.c.bf16 %v7737, %v7736
      %v8312 = vpack.c.bf16 %v7739, %v7738
      %v8313 = vpack.c.bf16 %v7741, %v7740
      %v8314 = vpack.c.bf16 %v7743, %v7742
      %v8315 = vpack.c.bf16 %v7745, %v7744
      %v8316 = vpack.c.bf16 %v7747, %v7746
      %v8317 = vpack.c.bf16 %v7749, %v7748
      %v8318 = vpack.c.bf16 %v7751, %v7750
      %v8319 = vpack.c.bf16 %v7753, %v7752
      %v8320 = vpack.c.bf16 %v7755, %v7754
      %v8321 = vpack.c.bf16 %v7757, %v7756
      %v8322 = vpack.c.bf16 %v7759, %v7758
      %v8323 = vpack.c.bf16 %v7761, %v7760
      %v8324 = vpack.c.bf16 %v7763, %v7762
      %v8325 = vpack.c.bf16 %v7765, %v7764
      %v8326 = vpack.c.bf16 %v7767, %v7766
      %v8327 = vpack.c.bf16 %v7769, %v7768
      %v8328 = vpack.c.bf16 %v7771, %v7770
      %v8329 = vpack.c.bf16 %v7773, %v7772
      %v8330 = vpack.c.bf16 %v7775, %v7774
      %v8331 = vpack.c.bf16 %v7777, %v7776
      %v8332 = vpack.c.bf16 %v7779, %v7778
      %v8333 = vpack.c.bf16 %v7781, %v7780
      %v8334 = vpack.c.bf16 %v7783, %v7782
      %v8335 = vpack.c.bf16 %v7785, %v7784
      %v8336 = vpack.c.bf16 %v7787, %v7786
      %v8337 = vpack.c.bf16 %v7789, %v7788
      %v8338 = vpack.c.bf16 %v7791, %v7790
      %v8339 = vpack.c.bf16 %v7793, %v7792
      %v8340 = vpack.c.bf16 %v7795, %v7794
      %v8341 = vpack.c.bf16 %v7797, %v7796
      %v8342 = vpack.c.bf16 %v7799, %v7798
      %v8343 = vpack.c.bf16 %v7801, %v7800
      %v8344 = vpack.c.bf16 %v7803, %v7802
      %v8345 = vpack.c.bf16 %v7805, %v7804
      %v8346 = vpack.c.bf16 %v7807, %v7806
      %v8347 = vpack.c.bf16 %v7809, %v7808
      %v8348 = vpack.c.bf16 %v7811, %v7810
      %v8349 = vpack.c.bf16 %v7813, %v7812
      %v8350 = vpack.c.bf16 %v7815, %v7814
      %v8351 = vpack.c.bf16 %v7817, %v7816
      %v8352 = vpack.c.bf16 %v7819, %v7818
      %v8353 = vpack.c.bf16 %v7821, %v7820
      %v8354 = vpack.c.bf16 %v7823, %v7822
      %v8355 = vpack.c.bf16 %v7825, %v7824
      %v8356 = vpack.c.bf16 %v7827, %v7826
      %v8357 = vpack.c.bf16 %v7829, %v7828
      %v8358 = vpack.c.bf16 %v7831, %v7830
      %v8359 = vpack.c.bf16 %v7833, %v7832
      %v8360 = vpack.c.bf16 %v7835, %v7834
      %v8361 = vpack.c.bf16 %v7837, %v7836
      %v8362 = vpack.c.bf16 %v7839, %v7838
      %v8363 = vpack.c.bf16 %v7841, %v7840
      %v8364 = vpack.c.bf16 %v7843, %v7842
      %v8365 = vpack.c.bf16 %v7845, %v7844
      %v8366 = vpack.c.bf16 %v7847, %v7846
      %v8367 = vpack.c.bf16 %v7849, %v7848
      %v8368 = vpack.c.bf16 %v7851, %v7850
      %v8369 = vpack.c.bf16 %v7853, %v7852
      %v8370 = vpack.c.bf16 %v7855, %v7854
      %v8371 = vpack.c.bf16 %v7857, %v7856
      %v8372 = vpack.c.bf16 %v7859, %v7858
      %v8373 = vpack.c.bf16 %v7861, %v7860
      %v8374 = vpack.c.bf16 %v7863, %v7862
      %v8375 = vpack.c.bf16 %v7865, %v7864
      %v8376 = vpack.c.bf16 %v7867, %v7866
      %v8377 = vpack.c.bf16 %v7869, %v7868
      %v8378 = vpack.c.bf16 %v7871, %v7870
      %v8379 = vpack.c.bf16 %v7873, %v7872
      %v8380 = vpack.c.bf16 %v7875, %v7874
      %v8381 = vpack.c.bf16 %v7877, %v7876
      %v8382 = vpack.c.bf16 %v7879, %v7878
      %v8383 = vpack.c.bf16 %v7881, %v7880
      %v8384 = vpack.c.bf16 %v7883, %v7882
      %v8385 = vpack.c.bf16 %v7885, %v7884
      %v8386 = vpack.c.bf16 %v7887, %v7886
      %v8387 = vpack.c.bf16 %v7889, %v7888
      %v8388 = vpack.c.bf16 %v7891, %v7890
      %v8389 = vpack.c.bf16 %v7893, %v7892
      %v8390 = vpack.c.bf16 %v7895, %v7894
      %v8391 = vpack.c.bf16 %v7897, %v7896
      %v8392 = vpack.c.bf16 %v7899, %v7898
      %v8393 = vpack.c.bf16 %v7901, %v7900
      %v8394 = vpack.c.bf16 %v7903, %v7902
      %v8395 = vpack.c.bf16 %v7905, %v7904
      %v8396 = vpack.c.bf16 %v7907, %v7906
      %v8397 = vpack.c.bf16 %v7909, %v7908
      %v8398 = vpack.c.bf16 %v7911, %v7910
      %v8399 = vpack.c.bf16 %v7913, %v7912
      %v8400 = vpack.c.bf16 %v7915, %v7914
      %v8401 = vpack.c.bf16 %v7917, %v7916
      %v8402 = vpack.c.bf16 %v7919, %v7918
      %v8403 = vpack.c.bf16 %v7921, %v7920
      %v8404 = vpack.c.bf16 %v7923, %v7922
      %v8405 = vpack.c.bf16 %v7925, %v7924
      %v8406 = vpack.c.bf16 %v7927, %v7926
      %v8407 = vpack.c.bf16 %v7929, %v7928
      %v8408 = vpack.c.bf16 %v7931, %v7930
      %v8409 = vpack.c.bf16 %v7933, %v7932
      %v8410 = vpack.c.bf16 %v7935, %v7934
      %v8411 = vpack.c.bf16 %v7937, %v7936
      %v8412 = vpack.c.bf16 %v7939, %v7938
      %v8413 = vpack.c.bf16 %v7941, %v7940
      %v8414 = vpack.c.bf16 %v7943, %v7942
      %v8415 = vpack.c.bf16 %v7945, %v7944
      %v8416 = vpack.c.bf16 %v7947, %v7946
      %v8417 = vpack.c.bf16 %v7949, %v7948
      %v8418 = vpack.c.bf16 %v7951, %v7950
      %v8419 = vpack.c.bf16 %v7953, %v7952
      %v8420 = vpack.c.bf16 %v7955, %v7954
      %v8421 = vpack.c.bf16 %v7957, %v7956
      %v8422 = vpack.c.bf16 %v7959, %v7958
      %v8423 = vpack.c.bf16 %v7961, %v7960
      %v8424 = vpack.c.bf16 %v7963, %v7962
      %v8425 = vpack.c.bf16 %v7965, %v7964
      %v8426 = vpack.c.bf16 %v7967, %v7966
      %v8427 = vpack.c.bf16 %v7969, %v7968
      %v8428 = vpack.c.bf16 %v7971, %v7970
      %v8429 = vpack.c.bf16 %v7973, %v7972
      %v8430 = vpack.c.bf16 %v7975, %v7974
      %v8431 = vpack.c.bf16 %v7977, %v7976
      %v8432 = vpack.c.bf16 %v7979, %v7978
      %v8433 = vpack.c.bf16 %v7981, %v7980
      %v8434 = vpack.c.bf16 %v7983, %v7982
      %v8435 = vpack.c.bf16 %v7985, %v7984
      %v8436 = vpack.c.bf16 %v7987, %v7986
      %v8437 = vpack.c.bf16 %v7989, %v7988
      %v8438 = vpack.c.bf16 %v7991, %v7990
      %v8439 = vpack.c.bf16 %v7993, %v7992
      %v8440 = vpack.c.bf16 %v7995, %v7994
      %v8441 = vpack.c.bf16 %v7997, %v7996
      %v8442 = vpack.c.bf16 %v7999, %v7998
      %v8443 = vpack.c.bf16 %v8001, %v8000
      %v8444 = vpack.c.bf16 %v8003, %v8002
      %v8445 = vpack.c.bf16 %v8005, %v8004
      %v8446 = vpack.c.bf16 %v8007, %v8006
      %v8447 = vpack.c.bf16 %v8009, %v8008
      %v8448 = vpack.c.bf16 %v8011, %v8010
      %v8449 = vpack.c.bf16 %v8013, %v8012
      %v8450 = vpack.c.bf16 %v8015, %v8014
      %v8451 = vpack.c.bf16 %v8017, %v8016
      %v8452 = vpack.c.bf16 %v8019, %v8018
      %v8453 = vpack.c.bf16 %v8021, %v8020
      %v8454 = vpack.c.bf16 %v8023, %v8022
      %v8455 = vpack.c.bf16 %v8025, %v8024
      %v8456 = vpack.c.bf16 %v8027, %v8026
      %v8457 = vpack.c.bf16 %v8029, %v8028
      %v8458 = vpack.c.bf16 %v8031, %v8030
      %v8459 = vpack.c.bf16 %v8033, %v8032
      %v8460 = vpack.c.bf16 %v8035, %v8034
      %v8461 = vpack.c.bf16 %v8037, %v8036
      %v8462 = vpack.c.bf16 %v8039, %v8038
      %v8463 = vpack.c.bf16 %v8041, %v8040
      %v8464 = vpack.c.bf16 %v8043, %v8042
      %v8465 = vpack.c.bf16 %v8045, %v8044
      %v8466 = vpack.c.bf16 %v8047, %v8046
      %v8467 = vpack.c.bf16 %v8049, %v8048
      %v8468 = vpack.c.bf16 %v8051, %v8050
      %v8469 = vpack.c.bf16 %v8053, %v8052
      %v8470 = vpack.c.bf16 %v8055, %v8054
      %v8471 = vpack.c.bf16 %v8057, %v8056
      %v8472 = vpack.c.bf16 %v8059, %v8058
      %v8473 = vpack.c.bf16 %v8061, %v8060
      %v8474 = vpack.c.bf16 %v8063, %v8062
      %v8475 = vpack.c.bf16 %v8065, %v8064
      %v8476 = vpack.c.bf16 %v8067, %v8066
      %v8477 = vpack.c.bf16 %v8069, %v8068
      %v8478 = vpack.c.bf16 %v8071, %v8070
      %v8479 = vpack.c.bf16 %v8073, %v8072
      %v8480 = vpack.c.bf16 %v8075, %v8074
      %v8481 = vpack.c.bf16 %v8077, %v8076
      %v8482 = vpack.c.bf16 %v8079, %v8078
      %v8483 = vpack.c.bf16 %v8081, %v8080
      %v8484 = vpack.c.bf16 %v8083, %v8082
      %v8485 = vpack.c.bf16 %v8085, %v8084
      %v8486 = vpack.c.bf16 %v8087, %v8086
      %v8487 = vpack.c.bf16 %v8089, %v8088
      %v8488 = vpack.c.bf16 %v8091, %v8090
      %v8489 = vpack.c.bf16 %v8093, %v8092
      %v8490 = vpack.c.bf16 %v8095, %v8094
      %v8491 = vpack.c.bf16 %v8097, %v8096
      %v8492 = vpack.c.bf16 %v8099, %v8098
      %v8493 = vpack.c.bf16 %v8101, %v8100
      %v8886 = vunpack.c.l.b16 %v8102
      %v8887 = vunpack.c.h.b16 %v8102
      %v8888 = vunpack.c.l.b16 %v8103
      %v8889 = vunpack.c.h.b16 %v8103
      %v8890 = vunpack.c.l.b16 %v8104
      %v8891 = vunpack.c.h.b16 %v8104
      %v8892 = vunpack.c.l.b16 %v8105
      %v8893 = vunpack.c.h.b16 %v8105
      %v8894 = vunpack.c.l.b16 %v8106
      %v8895 = vunpack.c.h.b16 %v8106
      %v8896 = vunpack.c.l.b16 %v8107
      %v8897 = vunpack.c.h.b16 %v8107
      %v8898 = vunpack.c.l.b16 %v8108
      %v8899 = vunpack.c.h.b16 %v8108
      %v8900 = vunpack.c.l.b16 %v8109
      %v8901 = vunpack.c.h.b16 %v8109
      %v8902 = vunpack.c.l.b16 %v8110
      %v8903 = vunpack.c.h.b16 %v8110
      %v8904 = vunpack.c.l.b16 %v8111
      %v8905 = vunpack.c.h.b16 %v8111
      %v8906 = vunpack.c.l.b16 %v8112
      %v8907 = vunpack.c.h.b16 %v8112
      %v8908 = vunpack.c.l.b16 %v8113
      %v8909 = vunpack.c.h.b16 %v8113
      %v8910 = vunpack.c.l.b16 %v8114
      %v8911 = vunpack.c.h.b16 %v8114
      %v8912 = vunpack.c.l.b16 %v8115
      %v8913 = vunpack.c.h.b16 %v8115
      %v8914 = vunpack.c.l.b16 %v8116
      %v8915 = vunpack.c.h.b16 %v8116
      %v8916 = vunpack.c.l.b16 %v8117
      %v8917 = vunpack.c.h.b16 %v8117
      %v8918 = vunpack.c.l.b16 %v8118
      %v8919 = vunpack.c.h.b16 %v8118
      %v8920 = vunpack.c.l.b16 %v8119
      %v8921 = vunpack.c.h.b16 %v8119
      %v8922 = vunpack.c.l.b16 %v8120
      %v8923 = vunpack.c.h.b16 %v8120
      %v8924 = vunpack.c.l.b16 %v8121
      %v8925 = vunpack.c.h.b16 %v8121
      %v8926 = vunpack.c.l.b16 %v8122
      %v8927 = vunpack.c.h.b16 %v8122
      %v8928 = vunpack.c.l.b16 %v8123
      %v8929 = vunpack.c.h.b16 %v8123
      %v8930 = vunpack.c.l.b16 %v8124
      %v8931 = vunpack.c.h.b16 %v8124
      %v8932 = vunpack.c.l.b16 %v8125
      %v8933 = vunpack.c.h.b16 %v8125
      %v8934 = vunpack.c.l.b16 %v8126
      %v8935 = vunpack.c.h.b16 %v8126
      %v8936 = vunpack.c.l.b16 %v8127
      %v8937 = vunpack.c.h.b16 %v8127
      %v8938 = vunpack.c.l.b16 %v8128
      %v8939 = vunpack.c.h.b16 %v8128
      %v8940 = vunpack.c.l.b16 %v8129
      %v8941 = vunpack.c.h.b16 %v8129
      %v8942 = vunpack.c.l.b16 %v8130
      %v8943 = vunpack.c.h.b16 %v8130
      %v8944 = vunpack.c.l.b16 %v8131
      %v8945 = vunpack.c.h.b16 %v8131
      %v8946 = vunpack.c.l.b16 %v8132
      %v8947 = vunpack.c.h.b16 %v8132
      %v8948 = vunpack.c.l.b16 %v8133
      %v8949 = vunpack.c.h.b16 %v8133
      %v8950 = vunpack.c.l.b16 %v8134
      %v8951 = vunpack.c.h.b16 %v8134
      %v8952 = vunpack.c.l.b16 %v8135
      %v8953 = vunpack.c.h.b16 %v8135
      %v8954 = vunpack.c.l.b16 %v8136
      %v8955 = vunpack.c.h.b16 %v8136
      %v8956 = vunpack.c.l.b16 %v8137
      %v8957 = vunpack.c.h.b16 %v8137
      %v8958 = vunpack.c.l.b16 %v8138
      %v8959 = vunpack.c.h.b16 %v8138
      %v8960 = vunpack.c.l.b16 %v8139
      %v8961 = vunpack.c.h.b16 %v8139
      %v8962 = vunpack.c.l.b16 %v8140
      %v8963 = vunpack.c.h.b16 %v8140
      %v8964 = vunpack.c.l.b16 %v8141
      %v8965 = vunpack.c.h.b16 %v8141
      %v8966 = vunpack.c.l.b16 %v8142
      %v8967 = vunpack.c.h.b16 %v8142
      %v8968 = vunpack.c.l.b16 %v8143
      %v8969 = vunpack.c.h.b16 %v8143
      %v8970 = vunpack.c.l.b16 %v8144
      %v8971 = vunpack.c.h.b16 %v8144
      %v8972 = vunpack.c.l.b16 %v8145
      %v8973 = vunpack.c.h.b16 %v8145
      %v8974 = vunpack.c.l.b16 %v8146
      %v8975 = vunpack.c.h.b16 %v8146
      %v8976 = vunpack.c.l.b16 %v8147
      %v8977 = vunpack.c.h.b16 %v8147
      %v8978 = vunpack.c.l.b16 %v8148
      %v8979 = vunpack.c.h.b16 %v8148
      %v8980 = vunpack.c.l.b16 %v8149
      %v8981 = vunpack.c.h.b16 %v8149
      %v8982 = vunpack.c.l.b16 %v8150
      %v8983 = vunpack.c.h.b16 %v8150
      %v8984 = vunpack.c.l.b16 %v8151
      %v8985 = vunpack.c.h.b16 %v8151
      %v8986 = vunpack.c.l.b16 %v8152
      %v8987 = vunpack.c.h.b16 %v8152
      %v8988 = vunpack.c.l.b16 %v8153
      %v8989 = vunpack.c.h.b16 %v8153
      %v8990 = vunpack.c.l.b16 %v8154
      %v8991 = vunpack.c.h.b16 %v8154
      %v8992 = vunpack.c.l.b16 %v8155
      %v8993 = vunpack.c.h.b16 %v8155
      %v8994 = vunpack.c.l.b16 %v8156
      %v8995 = vunpack.c.h.b16 %v8156
      %v8996 = vunpack.c.l.b16 %v8157
      %v8997 = vunpack.c.h.b16 %v8157
      %v8998 = vunpack.c.l.b16 %v8158
      %v8999 = vunpack.c.h.b16 %v8158
      %v9000 = vunpack.c.l.b16 %v8159
      %v9001 = vunpack.c.h.b16 %v8159
      %v9002 = vunpack.c.l.b16 %v8160
      %v9003 = vunpack.c.h.b16 %v8160
      %v9004 = vunpack.c.l.b16 %v8161
      %v9005 = vunpack.c.h.b16 %v8161
      %v9006 = vunpack.c.l.b16 %v8162
      %v9007 = vunpack.c.h.b16 %v8162
      %v9008 = vunpack.c.l.b16 %v8163
      %v9009 = vunpack.c.h.b16 %v8163
      %v9010 = vunpack.c.l.b16 %v8164
      %v9011 = vunpack.c.h.b16 %v8164
      %v9012 = vunpack.c.l.b16 %v8165
      %v9013 = vunpack.c.h.b16 %v8165
      %v9014 = vunpack.c.l.b16 %v8166
      %v9015 = vunpack.c.h.b16 %v8166
      %v9016 = vunpack.c.l.b16 %v8167
      %v9017 = vunpack.c.h.b16 %v8167
      %v9018 = vunpack.c.l.b16 %v8168
      %v9019 = vunpack.c.h.b16 %v8168
      %v9020 = vunpack.c.l.b16 %v8169
      %v9021 = vunpack.c.h.b16 %v8169
      %v9022 = vunpack.c.l.b16 %v8170
      %v9023 = vunpack.c.h.b16 %v8170
      %v9024 = vunpack.c.l.b16 %v8171
      %v9025 = vunpack.c.h.b16 %v8171
      %v9026 = vunpack.c.l.b16 %v8172
      %v9027 = vunpack.c.h.b16 %v8172
      %v9028 = vunpack.c.l.b16 %v8173
      %v9029 = vunpack.c.h.b16 %v8173
      %v9030 = vunpack.c.l.b16 %v8174
      %v9031 = vunpack.c.h.b16 %v8174
      %v9032 = vunpack.c.l.b16 %v8175
      %v9033 = vunpack.c.h.b16 %v8175
      %v9034 = vunpack.c.l.b16 %v8176
      %v9035 = vunpack.c.h.b16 %v8176
      %v9036 = vunpack.c.l.b16 %v8177
      %v9037 = vunpack.c.h.b16 %v8177
      %v9038 = vunpack.c.l.b16 %v8178
      %v9039 = vunpack.c.h.b16 %v8178
      %v9040 = vunpack.c.l.b16 %v8179
      %v9041 = vunpack.c.h.b16 %v8179
      %v9042 = vunpack.c.l.b16 %v8180
      %v9043 = vunpack.c.h.b16 %v8180
      %v9044 = vunpack.c.l.b16 %v8181
      %v9045 = vunpack.c.h.b16 %v8181
      %v9046 = vunpack.c.l.b16 %v8182
      %v9047 = vunpack.c.h.b16 %v8182
      %v9048 = vunpack.c.l.b16 %v8183
      %v9049 = vunpack.c.h.b16 %v8183
      %v9050 = vunpack.c.l.b16 %v8184
      %v9051 = vunpack.c.h.b16 %v8184
      %v9052 = vunpack.c.l.b16 %v8185
      %v9053 = vunpack.c.h.b16 %v8185
      %v9054 = vunpack.c.l.b16 %v8186
      %v9055 = vunpack.c.h.b16 %v8186
      %v9056 = vunpack.c.l.b16 %v8187
      %v9057 = vunpack.c.h.b16 %v8187
      %v9058 = vunpack.c.l.b16 %v8188
      %v9059 = vunpack.c.h.b16 %v8188
      %v9060 = vunpack.c.l.b16 %v8189
      %v9061 = vunpack.c.h.b16 %v8189
      %v9062 = vunpack.c.l.b16 %v8190
      %v9063 = vunpack.c.h.b16 %v8190
      %v9064 = vunpack.c.l.b16 %v8191
      %v9065 = vunpack.c.h.b16 %v8191
      %v9066 = vunpack.c.l.b16 %v8192
      %v9067 = vunpack.c.h.b16 %v8192
      %v9068 = vunpack.c.l.b16 %v8193
      %v9069 = vunpack.c.h.b16 %v8193
      %v9070 = vunpack.c.l.b16 %v8194
      %v9071 = vunpack.c.h.b16 %v8194
      %v9072 = vunpack.c.l.b16 %v8195
      %v9073 = vunpack.c.h.b16 %v8195
      %v9074 = vunpack.c.l.b16 %v8196
      %v9075 = vunpack.c.h.b16 %v8196
      %v9076 = vunpack.c.l.b16 %v8197
      %v9077 = vunpack.c.h.b16 %v8197
      %v9078 = vunpack.c.l.b16 %v8198
      %v9079 = vunpack.c.h.b16 %v8198
      %v9080 = vunpack.c.l.b16 %v8199
      %v9081 = vunpack.c.h.b16 %v8199
      %v9082 = vunpack.c.l.b16 %v8200
      %v9083 = vunpack.c.h.b16 %v8200
      %v9084 = vunpack.c.l.b16 %v8201
      %v9085 = vunpack.c.h.b16 %v8201
      %v9086 = vunpack.c.l.b16 %v8202
      %v9087 = vunpack.c.h.b16 %v8202
      %v9088 = vunpack.c.l.b16 %v8203
      %v9089 = vunpack.c.h.b16 %v8203
      %v9090 = vunpack.c.l.b16 %v8204
      %v9091 = vunpack.c.h.b16 %v8204
      %v9092 = vunpack.c.l.b16 %v8205
      %v9093 = vunpack.c.h.b16 %v8205
      %v9094 = vunpack.c.l.b16 %v8206
      %v9095 = vunpack.c.h.b16 %v8206
      %v9096 = vunpack.c.l.b16 %v8207
      %v9097 = vunpack.c.h.b16 %v8207
      %v9098 = vunpack.c.l.b16 %v8208
      %v9099 = vunpack.c.h.b16 %v8208
      %v9100 = vunpack.c.l.b16 %v8209
      %v9101 = vunpack.c.h.b16 %v8209
      %v9102 = vunpack.c.l.b16 %v8210
      %v9103 = vunpack.c.h.b16 %v8210
      %v9104 = vunpack.c.l.b16 %v8211
      %v9105 = vunpack.c.h.b16 %v8211
      %v9106 = vunpack.c.l.b16 %v8212
      %v9107 = vunpack.c.h.b16 %v8212
      %v9108 = vunpack.c.l.b16 %v8213
      %v9109 = vunpack.c.h.b16 %v8213
      %v9110 = vunpack.c.l.b16 %v8214
      %v9111 = vunpack.c.h.b16 %v8214
      %v9112 = vunpack.c.l.b16 %v8215
      %v9113 = vunpack.c.h.b16 %v8215
      %v9114 = vunpack.c.l.b16 %v8216
      %v9115 = vunpack.c.h.b16 %v8216
      %v9116 = vunpack.c.l.b16 %v8217
      %v9117 = vunpack.c.h.b16 %v8217
      %v9118 = vunpack.c.l.b16 %v8218
      %v9119 = vunpack.c.h.b16 %v8218
      %v9120 = vunpack.c.l.b16 %v8219
      %v9121 = vunpack.c.h.b16 %v8219
      %v9122 = vunpack.c.l.b16 %v8220
      %v9123 = vunpack.c.h.b16 %v8220
      %v9124 = vunpack.c.l.b16 %v8221
      %v9125 = vunpack.c.h.b16 %v8221
      %v9126 = vunpack.c.l.b16 %v8222
      %v9127 = vunpack.c.h.b16 %v8222
      %v9128 = vunpack.c.l.b16 %v8223
      %v9129 = vunpack.c.h.b16 %v8223
      %v9130 = vunpack.c.l.b16 %v8224
      %v9131 = vunpack.c.h.b16 %v8224
      %v9132 = vunpack.c.l.b16 %v8225
      %v9133 = vunpack.c.h.b16 %v8225
      %v9134 = vunpack.c.l.b16 %v8226
      %v9135 = vunpack.c.h.b16 %v8226
      %v9136 = vunpack.c.l.b16 %v8227
      %v9137 = vunpack.c.h.b16 %v8227
      %v9138 = vunpack.c.l.b16 %v8228
      %v9139 = vunpack.c.h.b16 %v8228
      %v9140 = vunpack.c.l.b16 %v8229
      %v9141 = vunpack.c.h.b16 %v8229
      %v9142 = vunpack.c.l.b16 %v8230
      %v9143 = vunpack.c.h.b16 %v8230
      %v9144 = vunpack.c.l.b16 %v8231
      %v9145 = vunpack.c.h.b16 %v8231
      %v9146 = vunpack.c.l.b16 %v8232
      %v9147 = vunpack.c.h.b16 %v8232
      %v9148 = vunpack.c.l.b16 %v8233
      %v9149 = vunpack.c.h.b16 %v8233
      %v9150 = vunpack.c.l.b16 %v8234
      %v9151 = vunpack.c.h.b16 %v8234
      %v9152 = vunpack.c.l.b16 %v8235
      %v9153 = vunpack.c.h.b16 %v8235
      %v9154 = vunpack.c.l.b16 %v8236
      %v9155 = vunpack.c.h.b16 %v8236
      %v9156 = vunpack.c.l.b16 %v8237
      %v9157 = vunpack.c.h.b16 %v8237
      %v9158 = vunpack.c.l.b16 %v8238
      %v9159 = vunpack.c.h.b16 %v8238
      %v9160 = vunpack.c.l.b16 %v8239
      %v9161 = vunpack.c.h.b16 %v8239
      %v9162 = vunpack.c.l.b16 %v8240
      %v9163 = vunpack.c.h.b16 %v8240
      %v9164 = vunpack.c.l.b16 %v8241
      %v9165 = vunpack.c.h.b16 %v8241
      %v9166 = vunpack.c.l.b16 %v8242
      %v9167 = vunpack.c.h.b16 %v8242
      %v9168 = vunpack.c.l.b16 %v8243
      %v9169 = vunpack.c.h.b16 %v8243
      %v9170 = vunpack.c.l.b16 %v8244
      %v9171 = vunpack.c.h.b16 %v8244
      %v9172 = vunpack.c.l.b16 %v8245
      %v9173 = vunpack.c.h.b16 %v8245
      %v9174 = vunpack.c.l.b16 %v8246
      %v9175 = vunpack.c.h.b16 %v8246
      %v9176 = vunpack.c.l.b16 %v8247
      %v9177 = vunpack.c.h.b16 %v8247
      %v9178 = vunpack.c.l.b16 %v8248
      %v9179 = vunpack.c.h.b16 %v8248
      %v9180 = vunpack.c.l.b16 %v8249
      %v9181 = vunpack.c.h.b16 %v8249
      %v9182 = vunpack.c.l.b16 %v8250
      %v9183 = vunpack.c.h.b16 %v8250
      %v9184 = vunpack.c.l.b16 %v8251
      %v9185 = vunpack.c.h.b16 %v8251
      %v9186 = vunpack.c.l.b16 %v8252
      %v9187 = vunpack.c.h.b16 %v8252
      %v9188 = vunpack.c.l.b16 %v8253
      %v9189 = vunpack.c.h.b16 %v8253
      %v9190 = vunpack.c.l.b16 %v8254
      %v9191 = vunpack.c.h.b16 %v8254
      %v9192 = vunpack.c.l.b16 %v8255
      %v9193 = vunpack.c.h.b16 %v8255
      %v9194 = vunpack.c.l.b16 %v8256
      %v9195 = vunpack.c.h.b16 %v8256
      %v9196 = vunpack.c.l.b16 %v8257
      %v9197 = vunpack.c.h.b16 %v8257
      %v9198 = vunpack.c.l.b16 %v8258
      %v9199 = vunpack.c.h.b16 %v8258
      %v9200 = vunpack.c.l.b16 %v8259
      %v9201 = vunpack.c.h.b16 %v8259
      %v9202 = vunpack.c.l.b16 %v8260
      %v9203 = vunpack.c.h.b16 %v8260
      %v9204 = vunpack.c.l.b16 %v8261
      %v9205 = vunpack.c.h.b16 %v8261
      %v9206 = vunpack.c.l.b16 %v8262
      %v9207 = vunpack.c.h.b16 %v8262
      %v9208 = vunpack.c.l.b16 %v8263
      %v9209 = vunpack.c.h.b16 %v8263
      %v9210 = vunpack.c.l.b16 %v8264
      %v9211 = vunpack.c.h.b16 %v8264
      %v9212 = vunpack.c.l.b16 %v8265
      %v9213 = vunpack.c.h.b16 %v8265
      %v9214 = vunpack.c.l.b16 %v8266
      %v9215 = vunpack.c.h.b16 %v8266
      %v9216 = vunpack.c.l.b16 %v8267
      %v9217 = vunpack.c.h.b16 %v8267
      %v9218 = vunpack.c.l.b16 %v8268
      %v9219 = vunpack.c.h.b16 %v8268
      %v9220 = vunpack.c.l.b16 %v8269
      %v9221 = vunpack.c.h.b16 %v8269
      %v9222 = vunpack.c.l.b16 %v8270
      %v9223 = vunpack.c.h.b16 %v8270
      %v9224 = vunpack.c.l.b16 %v8271
      %v9225 = vunpack.c.h.b16 %v8271
      %v9226 = vunpack.c.l.b16 %v8272
      %v9227 = vunpack.c.h.b16 %v8272
      %v9228 = vunpack.c.l.b16 %v8273
      %v9229 = vunpack.c.h.b16 %v8273
      %v9230 = vunpack.c.l.b16 %v8274
      %v9231 = vunpack.c.h.b16 %v8274
      %v9232 = vunpack.c.l.b16 %v8275
      %v9233 = vunpack.c.h.b16 %v8275
      %v9234 = vunpack.c.l.b16 %v8276
      %v9235 = vunpack.c.h.b16 %v8276
      %v9236 = vunpack.c.l.b16 %v8277
      %v9237 = vunpack.c.h.b16 %v8277
      %v9238 = vunpack.c.l.b16 %v8278
      %v9239 = vunpack.c.h.b16 %v8278
      %v9240 = vunpack.c.l.b16 %v8279
      %v9241 = vunpack.c.h.b16 %v8279
      %v9242 = vunpack.c.l.b16 %v8280
      %v9243 = vunpack.c.h.b16 %v8280
      %v9244 = vunpack.c.l.b16 %v8281
      %v9245 = vunpack.c.h.b16 %v8281
      %v9246 = vunpack.c.l.b16 %v8282
      %v9247 = vunpack.c.h.b16 %v8282
      %v9248 = vunpack.c.l.b16 %v8283
      %v9249 = vunpack.c.h.b16 %v8283
      %v9250 = vunpack.c.l.b16 %v8284
      %v9251 = vunpack.c.h.b16 %v8284
      %v9252 = vunpack.c.l.b16 %v8285
      %v9253 = vunpack.c.h.b16 %v8285
      %v9254 = vunpack.c.l.b16 %v8286
      %v9255 = vunpack.c.h.b16 %v8286
      %v9256 = vunpack.c.l.b16 %v8287
      %v9257 = vunpack.c.h.b16 %v8287
      %v9258 = vunpack.c.l.b16 %v8288
      %v9259 = vunpack.c.h.b16 %v8288
      %v9260 = vunpack.c.l.b16 %v8289
      %v9261 = vunpack.c.h.b16 %v8289
      %v9262 = vunpack.c.l.b16 %v8290
      %v9263 = vunpack.c.h.b16 %v8290
      %v9264 = vunpack.c.l.b16 %v8291
      %v9265 = vunpack.c.h.b16 %v8291
      %v9266 = vunpack.c.l.b16 %v8292
      %v9267 = vunpack.c.h.b16 %v8292
      %v9268 = vunpack.c.l.b16 %v8293
      %v9269 = vunpack.c.h.b16 %v8293
      %v9270 = vunpack.c.l.b16 %v8294
      %v9271 = vunpack.c.h.b16 %v8294
      %v9272 = vunpack.c.l.b16 %v8295
      %v9273 = vunpack.c.h.b16 %v8295
      %v9274 = vunpack.c.l.b16 %v8296
      %v9275 = vunpack.c.h.b16 %v8296
      %v9276 = vunpack.c.l.b16 %v8297
      %v9277 = vunpack.c.h.b16 %v8297
      %v9278 = vunpack.c.l.b16 %v8298
      %v9279 = vunpack.c.h.b16 %v8298
      %v9280 = vunpack.c.l.b16 %v8299
      %v9281 = vunpack.c.h.b16 %v8299
      %v9282 = vunpack.c.l.b16 %v8300
      %v9283 = vunpack.c.h.b16 %v8300
      %v9284 = vunpack.c.l.b16 %v8301
      %v9285 = vunpack.c.h.b16 %v8301
      %v9286 = vunpack.c.l.b16 %v8302
      %v9287 = vunpack.c.h.b16 %v8302
      %v9288 = vunpack.c.l.b16 %v8303
      %v9289 = vunpack.c.h.b16 %v8303
      %v9290 = vunpack.c.l.b16 %v8304
      %v9291 = vunpack.c.h.b16 %v8304
      %v9292 = vunpack.c.l.b16 %v8305
      %v9293 = vunpack.c.h.b16 %v8305
      %v9294 = vunpack.c.l.b16 %v8306
      %v9295 = vunpack.c.h.b16 %v8306
      %v9296 = vunpack.c.l.b16 %v8307
      %v9297 = vunpack.c.h.b16 %v8307
      %v9298 = vunpack.c.l.b16 %v8308
      %v9299 = vunpack.c.h.b16 %v8308
      %v9300 = vunpack.c.l.b16 %v8309
      %v9301 = vunpack.c.h.b16 %v8309
      %v9302 = vunpack.c.l.b16 %v8310
      %v9303 = vunpack.c.h.b16 %v8310
      %v9304 = vunpack.c.l.b16 %v8311
      %v9305 = vunpack.c.h.b16 %v8311
      %v9306 = vunpack.c.l.b16 %v8312
      %v9307 = vunpack.c.h.b16 %v8312
      %v9308 = vunpack.c.l.b16 %v8313
      %v9309 = vunpack.c.h.b16 %v8313
      %v9310 = vunpack.c.l.b16 %v8314
      %v9311 = vunpack.c.h.b16 %v8314
      %v9312 = vunpack.c.l.b16 %v8315
      %v9313 = vunpack.c.h.b16 %v8315
      %v9314 = vunpack.c.l.b16 %v8316
      %v9315 = vunpack.c.h.b16 %v8316
      %v9316 = vunpack.c.l.b16 %v8317
      %v9317 = vunpack.c.h.b16 %v8317
      %v9318 = vunpack.c.l.b16 %v8318
      %v9319 = vunpack.c.h.b16 %v8318
      %v9320 = vunpack.c.l.b16 %v8319
      %v9321 = vunpack.c.h.b16 %v8319
      %v9322 = vunpack.c.l.b16 %v8320
      %v9323 = vunpack.c.h.b16 %v8320
      %v9324 = vunpack.c.l.b16 %v8321
      %v9325 = vunpack.c.h.b16 %v8321
      %v9326 = vunpack.c.l.b16 %v8322
      %v9327 = vunpack.c.h.b16 %v8322
      %v9328 = vunpack.c.l.b16 %v8323
      %v9329 = vunpack.c.h.b16 %v8323
      %v9330 = vunpack.c.l.b16 %v8324
      %v9331 = vunpack.c.h.b16 %v8324
      %v9332 = vunpack.c.l.b16 %v8325
      %v9333 = vunpack.c.h.b16 %v8325
      %v9334 = vunpack.c.l.b16 %v8326
      %v9335 = vunpack.c.h.b16 %v8326
      %v9336 = vunpack.c.l.b16 %v8327
      %v9337 = vunpack.c.h.b16 %v8327
      %v9338 = vunpack.c.l.b16 %v8328
      %v9339 = vunpack.c.h.b16 %v8328
      %v9340 = vunpack.c.l.b16 %v8329
      %v9341 = vunpack.c.h.b16 %v8329
      %v9342 = vunpack.c.l.b16 %v8330
      %v9343 = vunpack.c.h.b16 %v8330
      %v9344 = vunpack.c.l.b16 %v8331
      %v9345 = vunpack.c.h.b16 %v8331
      %v9346 = vunpack.c.l.b16 %v8332
      %v9347 = vunpack.c.h.b16 %v8332
      %v9348 = vunpack.c.l.b16 %v8333
      %v9349 = vunpack.c.h.b16 %v8333
      %v9350 = vunpack.c.l.b16 %v8334
      %v9351 = vunpack.c.h.b16 %v8334
      %v9352 = vunpack.c.l.b16 %v8335
      %v9353 = vunpack.c.h.b16 %v8335
      %v9354 = vunpack.c.l.b16 %v8336
      %v9355 = vunpack.c.h.b16 %v8336
      %v9356 = vunpack.c.l.b16 %v8337
      %v9357 = vunpack.c.h.b16 %v8337
      %v9358 = vunpack.c.l.b16 %v8338
      %v9359 = vunpack.c.h.b16 %v8338
      %v9360 = vunpack.c.l.b16 %v8339
      %v9361 = vunpack.c.h.b16 %v8339
      %v9362 = vunpack.c.l.b16 %v8340
      %v9363 = vunpack.c.h.b16 %v8340
      %v9364 = vunpack.c.l.b16 %v8341
      %v9365 = vunpack.c.h.b16 %v8341
      %v9366 = vunpack.c.l.b16 %v8342
      %v9367 = vunpack.c.h.b16 %v8342
      %v9368 = vunpack.c.l.b16 %v8343
      %v9369 = vunpack.c.h.b16 %v8343
      %v9370 = vunpack.c.l.b16 %v8344
      %v9371 = vunpack.c.h.b16 %v8344
      %v9372 = vunpack.c.l.b16 %v8345
      %v9373 = vunpack.c.h.b16 %v8345
      %v9374 = vunpack.c.l.b16 %v8346
      %v9375 = vunpack.c.h.b16 %v8346
      %v9376 = vunpack.c.l.b16 %v8347
      %v9377 = vunpack.c.h.b16 %v8347
      %v9378 = vunpack.c.l.b16 %v8348
      %v9379 = vunpack.c.h.b16 %v8348
      %v9380 = vunpack.c.l.b16 %v8349
      %v9381 = vunpack.c.h.b16 %v8349
      %v9382 = vunpack.c.l.b16 %v8350
      %v9383 = vunpack.c.h.b16 %v8350
      %v9384 = vunpack.c.l.b16 %v8351
      %v9385 = vunpack.c.h.b16 %v8351
      %v9386 = vunpack.c.l.b16 %v8352
      %v9387 = vunpack.c.h.b16 %v8352
      %v9388 = vunpack.c.l.b16 %v8353
      %v9389 = vunpack.c.h.b16 %v8353
      %v9390 = vunpack.c.l.b16 %v8354
      %v9391 = vunpack.c.h.b16 %v8354
      %v9392 = vunpack.c.l.b16 %v8355
      %v9393 = vunpack.c.h.b16 %v8355
      %v9394 = vunpack.c.l.b16 %v8356
      %v9395 = vunpack.c.h.b16 %v8356
      %v9396 = vunpack.c.l.b16 %v8357
      %v9397 = vunpack.c.h.b16 %v8357
      %v9398 = vunpack.c.l.b16 %v8358
      %v9399 = vunpack.c.h.b16 %v8358
      %v9400 = vunpack.c.l.b16 %v8359
      %v9401 = vunpack.c.h.b16 %v8359
      %v9402 = vunpack.c.l.b16 %v8360
      %v9403 = vunpack.c.h.b16 %v8360
      %v9404 = vunpack.c.l.b16 %v8361
      %v9405 = vunpack.c.h.b16 %v8361
      %v9406 = vunpack.c.l.b16 %v8362
      %v9407 = vunpack.c.h.b16 %v8362
      %v9408 = vunpack.c.l.b16 %v8363
      %v9409 = vunpack.c.h.b16 %v8363
      %v9410 = vunpack.c.l.b16 %v8364
      %v9411 = vunpack.c.h.b16 %v8364
      %v9412 = vunpack.c.l.b16 %v8365
      %v9413 = vunpack.c.h.b16 %v8365
      %v9414 = vunpack.c.l.b16 %v8366
      %v9415 = vunpack.c.h.b16 %v8366
      %v9416 = vunpack.c.l.b16 %v8367
      %v9417 = vunpack.c.h.b16 %v8367
      %v9418 = vunpack.c.l.b16 %v8368
      %v9419 = vunpack.c.h.b16 %v8368
      %v9420 = vunpack.c.l.b16 %v8369
      %v9421 = vunpack.c.h.b16 %v8369
      %v9422 = vunpack.c.l.b16 %v8370
      %v9423 = vunpack.c.h.b16 %v8370
      %v9424 = vunpack.c.l.b16 %v8371
      %v9425 = vunpack.c.h.b16 %v8371
      %v9426 = vunpack.c.l.b16 %v8372
      %v9427 = vunpack.c.h.b16 %v8372
      %v9428 = vunpack.c.l.b16 %v8373
      %v9429 = vunpack.c.h.b16 %v8373
      %v9430 = vunpack.c.l.b16 %v8374
      %v9431 = vunpack.c.h.b16 %v8374
      %v9432 = vunpack.c.l.b16 %v8375
      %v9433 = vunpack.c.h.b16 %v8375
      %v9434 = vunpack.c.l.b16 %v8376
      %v9435 = vunpack.c.h.b16 %v8376
      %v9436 = vunpack.c.l.b16 %v8377
      %v9437 = vunpack.c.h.b16 %v8377
      %v9438 = vunpack.c.l.b16 %v8378
      %v9439 = vunpack.c.h.b16 %v8378
      %v9440 = vunpack.c.l.b16 %v8379
      %v9441 = vunpack.c.h.b16 %v8379
      %v9442 = vunpack.c.l.b16 %v8380
      %v9443 = vunpack.c.h.b16 %v8380
      %v9444 = vunpack.c.l.b16 %v8381
      %v9445 = vunpack.c.h.b16 %v8381
      %v9446 = vunpack.c.l.b16 %v8382
      %v9447 = vunpack.c.h.b16 %v8382
      %v9448 = vunpack.c.l.b16 %v8383
      %v9449 = vunpack.c.h.b16 %v8383
      %v9450 = vunpack.c.l.b16 %v8384
      %v9451 = vunpack.c.h.b16 %v8384
      %v9452 = vunpack.c.l.b16 %v8385
      %v9453 = vunpack.c.h.b16 %v8385
      %v9454 = vunpack.c.l.b16 %v8386
      %v9455 = vunpack.c.h.b16 %v8386
      %v9456 = vunpack.c.l.b16 %v8387
      %v9457 = vunpack.c.h.b16 %v8387
      %v9458 = vunpack.c.l.b16 %v8388
      %v9459 = vunpack.c.h.b16 %v8388
      %v9460 = vunpack.c.l.b16 %v8389
      %v9461 = vunpack.c.h.b16 %v8389
      %v9462 = vunpack.c.l.b16 %v8390
      %v9463 = vunpack.c.h.b16 %v8390
      %v9464 = vunpack.c.l.b16 %v8391
      %v9465 = vunpack.c.h.b16 %v8391
      %v9466 = vunpack.c.l.b16 %v8392
      %v9467 = vunpack.c.h.b16 %v8392
      %v9468 = vunpack.c.l.b16 %v8393
      %v9469 = vunpack.c.h.b16 %v8393
      %v9470 = vunpack.c.l.b16 %v8394
      %v9471 = vunpack.c.h.b16 %v8394
      %v9472 = vunpack.c.l.b16 %v8395
      %v9473 = vunpack.c.h.b16 %v8395
      %v9474 = vunpack.c.l.b16 %v8396
      %v9475 = vunpack.c.h.b16 %v8396
      %v9476 = vunpack.c.l.b16 %v8397
      %v9477 = vunpack.c.h.b16 %v8397
      %v9478 = vunpack.c.l.b16 %v8398
      %v9479 = vunpack.c.h.b16 %v8398
      %v9480 = vunpack.c.l.b16 %v8399
      %v9481 = vunpack.c.h.b16 %v8399
      %v9482 = vunpack.c.l.b16 %v8400
      %v9483 = vunpack.c.h.b16 %v8400
      %v9484 = vunpack.c.l.b16 %v8401
      %v9485 = vunpack.c.h.b16 %v8401
      %v9486 = vunpack.c.l.b16 %v8402
      %v9487 = vunpack.c.h.b16 %v8402
      %v9488 = vunpack.c.l.b16 %v8403
      %v9489 = vunpack.c.h.b16 %v8403
      %v9490 = vunpack.c.l.b16 %v8404
      %v9491 = vunpack.c.h.b16 %v8404
      %v9492 = vunpack.c.l.b16 %v8405
      %v9493 = vunpack.c.h.b16 %v8405
      %v9494 = vunpack.c.l.b16 %v8406
      %v9495 = vunpack.c.h.b16 %v8406
      %v9496 = vunpack.c.l.b16 %v8407
      %v9497 = vunpack.c.h.b16 %v8407
      %v9498 = vunpack.c.l.b16 %v8408
      %v9499 = vunpack.c.h.b16 %v8408
      %v9500 = vunpack.c.l.b16 %v8409
      %v9501 = vunpack.c.h.b16 %v8409
      %v9502 = vunpack.c.l.b16 %v8410
      %v9503 = vunpack.c.h.b16 %v8410
      %v9504 = vunpack.c.l.b16 %v8411
      %v9505 = vunpack.c.h.b16 %v8411
      %v9506 = vunpack.c.l.b16 %v8412
      %v9507 = vunpack.c.h.b16 %v8412
      %v9508 = vunpack.c.l.b16 %v8413
      %v9509 = vunpack.c.h.b16 %v8413
      %v9510 = vunpack.c.l.b16 %v8414
      %v9511 = vunpack.c.h.b16 %v8414
      %v9512 = vunpack.c.l.b16 %v8415
      %v9513 = vunpack.c.h.b16 %v8415
      %v9514 = vunpack.c.l.b16 %v8416
      %v9515 = vunpack.c.h.b16 %v8416
      %v9516 = vunpack.c.l.b16 %v8417
      %v9517 = vunpack.c.h.b16 %v8417
      %v9518 = vunpack.c.l.b16 %v8418
      %v9519 = vunpack.c.h.b16 %v8418
      %v9520 = vunpack.c.l.b16 %v8419
      %v9521 = vunpack.c.h.b16 %v8419
      %v9522 = vunpack.c.l.b16 %v8420
      %v9523 = vunpack.c.h.b16 %v8420
      %v9524 = vunpack.c.l.b16 %v8421
      %v9525 = vunpack.c.h.b16 %v8421
      %v9526 = vunpack.c.l.b16 %v8422
      %v9527 = vunpack.c.h.b16 %v8422
      %v9528 = vunpack.c.l.b16 %v8423
      %v9529 = vunpack.c.h.b16 %v8423
      %v9530 = vunpack.c.l.b16 %v8424
      %v9531 = vunpack.c.h.b16 %v8424
      %v9532 = vunpack.c.l.b16 %v8425
      %v9533 = vunpack.c.h.b16 %v8425
      %v9534 = vunpack.c.l.b16 %v8426
      %v9535 = vunpack.c.h.b16 %v8426
      %v9536 = vunpack.c.l.b16 %v8427
      %v9537 = vunpack.c.h.b16 %v8427
      %v9538 = vunpack.c.l.b16 %v8428
      %v9539 = vunpack.c.h.b16 %v8428
      %v9540 = vunpack.c.l.b16 %v8429
      %v9541 = vunpack.c.h.b16 %v8429
      %v9542 = vunpack.c.l.b16 %v8430
      %v9543 = vunpack.c.h.b16 %v8430
      %v9544 = vunpack.c.l.b16 %v8431
      %v9545 = vunpack.c.h.b16 %v8431
      %v9546 = vunpack.c.l.b16 %v8432
      %v9547 = vunpack.c.h.b16 %v8432
      %v9548 = vunpack.c.l.b16 %v8433
      %v9549 = vunpack.c.h.b16 %v8433
      %v9550 = vunpack.c.l.b16 %v8434
      %v9551 = vunpack.c.h.b16 %v8434
      %v9552 = vunpack.c.l.b16 %v8435
      %v9553 = vunpack.c.h.b16 %v8435
      %v9554 = vunpack.c.l.b16 %v8436
      %v9555 = vunpack.c.h.b16 %v8436
      %v9556 = vunpack.c.l.b16 %v8437
      %v9557 = vunpack.c.h.b16 %v8437
      %v9558 = vunpack.c.l.b16 %v8438
      %v9559 = vunpack.c.h.b16 %v8438
      %v9560 = vunpack.c.l.b16 %v8439
      %v9561 = vunpack.c.h.b16 %v8439
      %v9562 = vunpack.c.l.b16 %v8440
      %v9563 = vunpack.c.h.b16 %v8440
      %v9564 = vunpack.c.l.b16 %v8441
      %v9565 = vunpack.c.h.b16 %v8441
      %v9566 = vunpack.c.l.b16 %v8442
      %v9567 = vunpack.c.h.b16 %v8442
      %v9568 = vunpack.c.l.b16 %v8443
      %v9569 = vunpack.c.h.b16 %v8443
      %v9570 = vunpack.c.l.b16 %v8444
      %v9571 = vunpack.c.h.b16 %v8444
      %v9572 = vunpack.c.l.b16 %v8445
      %v9573 = vunpack.c.h.b16 %v8445
      %v9574 = vunpack.c.l.b16 %v8446
      %v9575 = vunpack.c.h.b16 %v8446
      %v9576 = vunpack.c.l.b16 %v8447
      %v9577 = vunpack.c.h.b16 %v8447
      %v9578 = vunpack.c.l.b16 %v8448
      %v9579 = vunpack.c.h.b16 %v8448
      %v9580 = vunpack.c.l.b16 %v8449
      %v9581 = vunpack.c.h.b16 %v8449
      %v9582 = vunpack.c.l.b16 %v8450
      %v9583 = vunpack.c.h.b16 %v8450
      %v9584 = vunpack.c.l.b16 %v8451
      %v9585 = vunpack.c.h.b16 %v8451
      %v9586 = vunpack.c.l.b16 %v8452
      %v9587 = vunpack.c.h.b16 %v8452
      %v9588 = vunpack.c.l.b16 %v8453
      %v9589 = vunpack.c.h.b16 %v8453
      %v9590 = vunpack.c.l.b16 %v8454
      %v9591 = vunpack.c.h.b16 %v8454
      %v9592 = vunpack.c.l.b16 %v8455
      %v9593 = vunpack.c.h.b16 %v8455
      %v9594 = vunpack.c.l.b16 %v8456
      %v9595 = vunpack.c.h.b16 %v8456
      %v9596 = vunpack.c.l.b16 %v8457
      %v9597 = vunpack.c.h.b16 %v8457
      %v9598 = vunpack.c.l.b16 %v8458
      %v9599 = vunpack.c.h.b16 %v8458
      %v9600 = vunpack.c.l.b16 %v8459
      %v9601 = vunpack.c.h.b16 %v8459
      %v9602 = vunpack.c.l.b16 %v8460
      %v9603 = vunpack.c.h.b16 %v8460
      %v9604 = vunpack.c.l.b16 %v8461
      %v9605 = vunpack.c.h.b16 %v8461
      %v9606 = vunpack.c.l.b16 %v8462
      %v9607 = vunpack.c.h.b16 %v8462
      %v9608 = vunpack.c.l.b16 %v8463
      %v9609 = vunpack.c.h.b16 %v8463
      %v9610 = vunpack.c.l.b16 %v8464
      %v9611 = vunpack.c.h.b16 %v8464
      %v9612 = vunpack.c.l.b16 %v8465
      %v9613 = vunpack.c.h.b16 %v8465
      %v9614 = vunpack.c.l.b16 %v8466
      %v9615 = vunpack.c.h.b16 %v8466
      %v9616 = vunpack.c.l.b16 %v8467
      %v9617 = vunpack.c.h.b16 %v8467
      %v9618 = vunpack.c.l.b16 %v8468
      %v9619 = vunpack.c.h.b16 %v8468
      %v9620 = vunpack.c.l.b16 %v8469
      %v9621 = vunpack.c.h.b16 %v8469
      %v9622 = vunpack.c.l.b16 %v8470
      %v9623 = vunpack.c.h.b16 %v8470
      %v9624 = vunpack.c.l.b16 %v8471
      %v9625 = vunpack.c.h.b16 %v8471
      %v9626 = vunpack.c.l.b16 %v8472
      %v9627 = vunpack.c.h.b16 %v8472
      %v9628 = vunpack.c.l.b16 %v8473
      %v9629 = vunpack.c.h.b16 %v8473
      %v9630 = vunpack.c.l.b16 %v8474
      %v9631 = vunpack.c.h.b16 %v8474
      %v9632 = vunpack.c.l.b16 %v8475
      %v9633 = vunpack.c.h.b16 %v8475
      %v9634 = vunpack.c.l.b16 %v8476
      %v9635 = vunpack.c.h.b16 %v8476
      %v9636 = vunpack.c.l.b16 %v8477
      %v9637 = vunpack.c.h.b16 %v8477
      %v9638 = vunpack.c.l.b16 %v8478
      %v9639 = vunpack.c.h.b16 %v8478
      %v9640 = vunpack.c.l.b16 %v8479
      %v9641 = vunpack.c.h.b16 %v8479
      %v9642 = vunpack.c.l.b16 %v8480
      %v9643 = vunpack.c.h.b16 %v8480
      %v9644 = vunpack.c.l.b16 %v8481
      %v9645 = vunpack.c.h.b16 %v8481
      %v9646 = vunpack.c.l.b16 %v8482
      %v9647 = vunpack.c.h.b16 %v8482
      %v9648 = vunpack.c.l.b16 %v8483
      %v9649 = vunpack.c.h.b16 %v8483
      %v9650 = vunpack.c.l.b16 %v8484
      %v9651 = vunpack.c.h.b16 %v8484
      %v9652 = vunpack.c.l.b16 %v8485
      %v9653 = vunpack.c.h.b16 %v8485
      %v9654 = vunpack.c.l.b16 %v8486
      %v9655 = vunpack.c.h.b16 %v8486
      %v9656 = vunpack.c.l.b16 %v8487
      %v9657 = vunpack.c.h.b16 %v8487
      %v9658 = vunpack.c.l.b16 %v8488
      %v9659 = vunpack.c.h.b16 %v8488
      %v9660 = vunpack.c.l.b16 %v8489
      %v9661 = vunpack.c.h.b16 %v8489
      %v9662 = vunpack.c.l.b16 %v8490
      %v9663 = vunpack.c.h.b16 %v8490
      %v9664 = vunpack.c.l.b16 %v8491
      %v9665 = vunpack.c.h.b16 %v8491
      %v9666 = vunpack.c.l.b16 %v8492
      %v9667 = vunpack.c.h.b16 %v8492
      %v9668 = vunpack.c.l.b16 %v8493
      %v9669 = vunpack.c.h.b16 %v8493
      %v9670 = vpack.c.b16 %v8886, %v8886
      %v9671 = vpack.c.b16 %v8887, %v8887
      %v9672 = vpack.c.b16 %v8888, %v8888
      %v9673 = vpack.c.b16 %v8889, %v8889
      %v9674 = vpack.c.b16 %v8890, %v8890
      %v9675 = vpack.c.b16 %v8891, %v8891
      %v9676 = vpack.c.b16 %v8892, %v8892
      %v9677 = vpack.c.b16 %v8893, %v8893
      %v9678 = vpack.c.b16 %v8894, %v8894
      %v9679 = vpack.c.b16 %v8895, %v8895
      %v9680 = vpack.c.b16 %v8896, %v8896
      %v9681 = vpack.c.b16 %v8897, %v8897
      %v9682 = vpack.c.b16 %v8898, %v8898
      %v9683 = vpack.c.b16 %v8899, %v8899
      %v9684 = vpack.c.b16 %v8900, %v8900
      %v9685 = vpack.c.b16 %v8901, %v8901
      %v9686 = vpack.c.b16 %v8902, %v8902
      %v9687 = vpack.c.b16 %v8903, %v8903
      %v9688 = vpack.c.b16 %v8904, %v8904
      %v9689 = vpack.c.b16 %v8905, %v8905
      %v9690 = vpack.c.b16 %v8906, %v8906
      %v9691 = vpack.c.b16 %v8907, %v8907
      %v9692 = vpack.c.b16 %v8908, %v8908
      %v9693 = vpack.c.b16 %v8909, %v8909
      %v9694 = vpack.c.b16 %v8910, %v8910
      %v9695 = vpack.c.b16 %v8911, %v8911
      %v9696 = vpack.c.b16 %v8912, %v8912
      %v9697 = vpack.c.b16 %v8913, %v8913
      %v9698 = vpack.c.b16 %v8914, %v8914
      %v9699 = vpack.c.b16 %v8915, %v8915
      %v9700 = vpack.c.b16 %v8916, %v8916
      %v9701 = vpack.c.b16 %v8917, %v8917
      %v9702 = vpack.c.b16 %v8918, %v8918
      %v9703 = vpack.c.b16 %v8919, %v8919
      %v9704 = vpack.c.b16 %v8920, %v8920
      %v9705 = vpack.c.b16 %v8921, %v8921
      %v9706 = vpack.c.b16 %v8922, %v8922
      %v9707 = vpack.c.b16 %v8923, %v8923
      %v9708 = vpack.c.b16 %v8924, %v8924
      %v9709 = vpack.c.b16 %v8925, %v8925
      %v9710 = vpack.c.b16 %v8926, %v8926
      %v9711 = vpack.c.b16 %v8927, %v8927
      %v9712 = vpack.c.b16 %v8928, %v8928
      %v9713 = vpack.c.b16 %v8929, %v8929
      %v9714 = vpack.c.b16 %v8930, %v8930
      %v9715 = vpack.c.b16 %v8931, %v8931
      %v9716 = vpack.c.b16 %v8932, %v8932
      %v9717 = vpack.c.b16 %v8933, %v8933
      %v9718 = vpack.c.b16 %v8934, %v8934
      %v9719 = vpack.c.b16 %v8935, %v8935
      %v9720 = vpack.c.b16 %v8936, %v8936
      %v9721 = vpack.c.b16 %v8937, %v8937
      %v9722 = vpack.c.b16 %v8938, %v8938
      %v9723 = vpack.c.b16 %v8939, %v8939
      %v9724 = vpack.c.b16 %v8940, %v8940
      %v9725 = vpack.c.b16 %v8941, %v8941
      %v9726 = vpack.c.b16 %v8942, %v8942
      %v9727 = vpack.c.b16 %v8943, %v8943
      %v9728 = vpack.c.b16 %v8944, %v8944
      %v9729 = vpack.c.b16 %v8945, %v8945
      %v9730 = vpack.c.b16 %v8946, %v8946
      %v9731 = vpack.c.b16 %v8947, %v8947
      %v9732 = vpack.c.b16 %v8948, %v8948
      %v9733 = vpack.c.b16 %v8949, %v8949
      %v9734 = vpack.c.b16 %v8950, %v8950
      %v9735 = vpack.c.b16 %v8951, %v8951
      %v9736 = vpack.c.b16 %v8952, %v8952
      %v9737 = vpack.c.b16 %v8953, %v8953
      %v9738 = vpack.c.b16 %v8954, %v8954
      %v9739 = vpack.c.b16 %v8955, %v8955
      %v9740 = vpack.c.b16 %v8956, %v8956
      %v9741 = vpack.c.b16 %v8957, %v8957
      %v9742 = vpack.c.b16 %v8958, %v8958
      %v9743 = vpack.c.b16 %v8959, %v8959
      %v9744 = vpack.c.b16 %v8960, %v8960
      %v9745 = vpack.c.b16 %v8961, %v8961
      %v9746 = vpack.c.b16 %v8962, %v8962
      %v9747 = vpack.c.b16 %v8963, %v8963
      %v9748 = vpack.c.b16 %v8964, %v8964
      %v9749 = vpack.c.b16 %v8965, %v8965
      %v9750 = vpack.c.b16 %v8966, %v8966
      %v9751 = vpack.c.b16 %v8967, %v8967
      %v9752 = vpack.c.b16 %v8968, %v8968
      %v9753 = vpack.c.b16 %v8969, %v8969
      %v9754 = vpack.c.b16 %v8970, %v8970
      %v9755 = vpack.c.b16 %v8971, %v8971
      %v9756 = vpack.c.b16 %v8972, %v8972
      %v9757 = vpack.c.b16 %v8973, %v8973
      %v9758 = vpack.c.b16 %v8974, %v8974
      %v9759 = vpack.c.b16 %v8975, %v8975
      %v9760 = vpack.c.b16 %v8976, %v8976
      %v9761 = vpack.c.b16 %v8977, %v8977
      %v9762 = vpack.c.b16 %v8978, %v8978
      %v9763 = vpack.c.b16 %v8979, %v8979
      %v9764 = vpack.c.b16 %v8980, %v8980
      %v9765 = vpack.c.b16 %v8981, %v8981
      %v9766 = vpack.c.b16 %v8982, %v8982
      %v9767 = vpack.c.b16 %v8983, %v8983
      %v9768 = vpack.c.b16 %v8984, %v8984
      %v9769 = vpack.c.b16 %v8985, %v8985
      %v9770 = vpack.c.b16 %v8986, %v8986
      %v9771 = vpack.c.b16 %v8987, %v8987
      %v9772 = vpack.c.b16 %v8988, %v8988
      %v9773 = vpack.c.b16 %v8989, %v8989
      %v9774 = vpack.c.b16 %v8990, %v8990
      %v9775 = vpack.c.b16 %v8991, %v8991
      %v9776 = vpack.c.b16 %v8992, %v8992
      %v9777 = vpack.c.b16 %v8993, %v8993
      %v9778 = vpack.c.b16 %v8994, %v8994
      %v9779 = vpack.c.b16 %v8995, %v8995
      %v9780 = vpack.c.b16 %v8996, %v8996
      %v9781 = vpack.c.b16 %v8997, %v8997
      %v9782 = vpack.c.b16 %v8998, %v8998
      %v9783 = vpack.c.b16 %v8999, %v8999
      %v9784 = vpack.c.b16 %v9000, %v9000
      %v9785 = vpack.c.b16 %v9001, %v9001
      %v9786 = vpack.c.b16 %v9002, %v9002
      %v9787 = vpack.c.b16 %v9003, %v9003
      %v9788 = vpack.c.b16 %v9004, %v9004
      %v9789 = vpack.c.b16 %v9005, %v9005
      %v9790 = vpack.c.b16 %v9006, %v9006
      %v9791 = vpack.c.b16 %v9007, %v9007
      %v9792 = vpack.c.b16 %v9008, %v9008
      %v9793 = vpack.c.b16 %v9009, %v9009
      %v9794 = vpack.c.b16 %v9010, %v9010
      %v9795 = vpack.c.b16 %v9011, %v9011
      %v9796 = vpack.c.b16 %v9012, %v9012
      %v9797 = vpack.c.b16 %v9013, %v9013
      %v9798 = vpack.c.b16 %v9014, %v9014
      %v9799 = vpack.c.b16 %v9015, %v9015
      %v9800 = vpack.c.b16 %v9016, %v9016
      %v9801 = vpack.c.b16 %v9017, %v9017
      %v9802 = vpack.c.b16 %v9018, %v9018
      %v9803 = vpack.c.b16 %v9019, %v9019
      %v9804 = vpack.c.b16 %v9020, %v9020
      %v9805 = vpack.c.b16 %v9021, %v9021
      %v9806 = vpack.c.b16 %v9022, %v9022
      %v9807 = vpack.c.b16 %v9023, %v9023
      %v9808 = vpack.c.b16 %v9024, %v9024
      %v9809 = vpack.c.b16 %v9025, %v9025
      %v9810 = vpack.c.b16 %v9026, %v9026
      %v9811 = vpack.c.b16 %v9027, %v9027
      %v9812 = vpack.c.b16 %v9028, %v9028
      %v9813 = vpack.c.b16 %v9029, %v9029
      %v9814 = vpack.c.b16 %v9030, %v9030
      %v9815 = vpack.c.b16 %v9031, %v9031
      %v9816 = vpack.c.b16 %v9032, %v9032
      %v9817 = vpack.c.b16 %v9033, %v9033
      %v9818 = vpack.c.b16 %v9034, %v9034
      %v9819 = vpack.c.b16 %v9035, %v9035
      %v9820 = vpack.c.b16 %v9036, %v9036
      %v9821 = vpack.c.b16 %v9037, %v9037
      %v9822 = vpack.c.b16 %v9038, %v9038
      %v9823 = vpack.c.b16 %v9039, %v9039
      %v9824 = vpack.c.b16 %v9040, %v9040
      %v9825 = vpack.c.b16 %v9041, %v9041
      %v9826 = vpack.c.b16 %v9042, %v9042
      %v9827 = vpack.c.b16 %v9043, %v9043
      %v9828 = vpack.c.b16 %v9044, %v9044
      %v9829 = vpack.c.b16 %v9045, %v9045
      %v9830 = vpack.c.b16 %v9046, %v9046
      %v9831 = vpack.c.b16 %v9047, %v9047
      %v9832 = vpack.c.b16 %v9048, %v9048
      %v9833 = vpack.c.b16 %v9049, %v9049
      %v9834 = vpack.c.b16 %v9050, %v9050
      %v9835 = vpack.c.b16 %v9051, %v9051
      %v9836 = vpack.c.b16 %v9052, %v9052
      %v9837 = vpack.c.b16 %v9053, %v9053
      %v9838 = vpack.c.b16 %v9054, %v9054
      %v9839 = vpack.c.b16 %v9055, %v9055
      %v9840 = vpack.c.b16 %v9056, %v9056
      %v9841 = vpack.c.b16 %v9057, %v9057
      %v9842 = vpack.c.b16 %v9058, %v9058
      %v9843 = vpack.c.b16 %v9059, %v9059
      %v9844 = vpack.c.b16 %v9060, %v9060
      %v9845 = vpack.c.b16 %v9061, %v9061
      %v9846 = vpack.c.b16 %v9062, %v9062
      %v9847 = vpack.c.b16 %v9063, %v9063
      %v9848 = vpack.c.b16 %v9064, %v9064
      %v9849 = vpack.c.b16 %v9065, %v9065
      %v9850 = vpack.c.b16 %v9066, %v9066
      %v9851 = vpack.c.b16 %v9067, %v9067
      %v9852 = vpack.c.b16 %v9068, %v9068
      %v9853 = vpack.c.b16 %v9069, %v9069
      %v9854 = vpack.c.b16 %v9070, %v9070
      %v9855 = vpack.c.b16 %v9071, %v9071
      %v9856 = vpack.c.b16 %v9072, %v9072
      %v9857 = vpack.c.b16 %v9073, %v9073
      %v9858 = vpack.c.b16 %v9074, %v9074
      %v9859 = vpack.c.b16 %v9075, %v9075
      %v9860 = vpack.c.b16 %v9076, %v9076
      %v9861 = vpack.c.b16 %v9077, %v9077
      %v9862 = vpack.c.b16 %v9078, %v9078
      %v9863 = vpack.c.b16 %v9079, %v9079
      %v9864 = vpack.c.b16 %v9080, %v9080
      %v9865 = vpack.c.b16 %v9081, %v9081
      %v9866 = vpack.c.b16 %v9082, %v9082
      %v9867 = vpack.c.b16 %v9083, %v9083
      %v9868 = vpack.c.b16 %v9084, %v9084
      %v9869 = vpack.c.b16 %v9085, %v9085
      %v9870 = vpack.c.b16 %v9086, %v9086
      %v9871 = vpack.c.b16 %v9087, %v9087
      %v9872 = vpack.c.b16 %v9088, %v9088
      %v9873 = vpack.c.b16 %v9089, %v9089
      %v9874 = vpack.c.b16 %v9090, %v9090
      %v9875 = vpack.c.b16 %v9091, %v9091
      %v9876 = vpack.c.b16 %v9092, %v9092
      %v9877 = vpack.c.b16 %v9093, %v9093
      %v9878 = vpack.c.b16 %v9094, %v9094
      %v9879 = vpack.c.b16 %v9095, %v9095
      %v9880 = vpack.c.b16 %v9096, %v9096
      %v9881 = vpack.c.b16 %v9097, %v9097
      %v9882 = vpack.c.b16 %v9098, %v9098
      %v9883 = vpack.c.b16 %v9099, %v9099
      %v9884 = vpack.c.b16 %v9100, %v9100
      %v9885 = vpack.c.b16 %v9101, %v9101
      %v9886 = vpack.c.b16 %v9102, %v9102
      %v9887 = vpack.c.b16 %v9103, %v9103
      %v9888 = vpack.c.b16 %v9104, %v9104
      %v9889 = vpack.c.b16 %v9105, %v9105
      %v9890 = vpack.c.b16 %v9106, %v9106
      %v9891 = vpack.c.b16 %v9107, %v9107
      %v9892 = vpack.c.b16 %v9108, %v9108
      %v9893 = vpack.c.b16 %v9109, %v9109
      %v9894 = vpack.c.b16 %v9110, %v9110
      %v9895 = vpack.c.b16 %v9111, %v9111
      %v9896 = vpack.c.b16 %v9112, %v9112
      %v9897 = vpack.c.b16 %v9113, %v9113
      %v9898 = vpack.c.b16 %v9114, %v9114
      %v9899 = vpack.c.b16 %v9115, %v9115
      %v9900 = vpack.c.b16 %v9116, %v9116
      %v9901 = vpack.c.b16 %v9117, %v9117
      %v9902 = vpack.c.b16 %v9118, %v9118
      %v9903 = vpack.c.b16 %v9119, %v9119
      %v9904 = vpack.c.b16 %v9120, %v9120
      %v9905 = vpack.c.b16 %v9121, %v9121
      %v9906 = vpack.c.b16 %v9122, %v9122
      %v9907 = vpack.c.b16 %v9123, %v9123
      %v9908 = vpack.c.b16 %v9124, %v9124
      %v9909 = vpack.c.b16 %v9125, %v9125
      %v9910 = vpack.c.b16 %v9126, %v9126
      %v9911 = vpack.c.b16 %v9127, %v9127
      %v9912 = vpack.c.b16 %v9128, %v9128
      %v9913 = vpack.c.b16 %v9129, %v9129
      %v9914 = vpack.c.b16 %v9130, %v9130
      %v9915 = vpack.c.b16 %v9131, %v9131
      %v9916 = vpack.c.b16 %v9132, %v9132
      %v9917 = vpack.c.b16 %v9133, %v9133
      %v9918 = vpack.c.b16 %v9134, %v9134
      %v9919 = vpack.c.b16 %v9135, %v9135
      %v9920 = vpack.c.b16 %v9136, %v9136
      %v9921 = vpack.c.b16 %v9137, %v9137
      %v9922 = vpack.c.b16 %v9138, %v9138
      %v9923 = vpack.c.b16 %v9139, %v9139
      %v9924 = vpack.c.b16 %v9140, %v9140
      %v9925 = vpack.c.b16 %v9141, %v9141
      %v9926 = vpack.c.b16 %v9142, %v9142
      %v9927 = vpack.c.b16 %v9143, %v9143
      %v9928 = vpack.c.b16 %v9144, %v9144
      %v9929 = vpack.c.b16 %v9145, %v9145
      %v9930 = vpack.c.b16 %v9146, %v9146
      %v9931 = vpack.c.b16 %v9147, %v9147
      %v9932 = vpack.c.b16 %v9148, %v9148
      %v9933 = vpack.c.b16 %v9149, %v9149
      %v9934 = vpack.c.b16 %v9150, %v9150
      %v9935 = vpack.c.b16 %v9151, %v9151
      %v9936 = vpack.c.b16 %v9152, %v9152
      %v9937 = vpack.c.b16 %v9153, %v9153
      %v9938 = vpack.c.b16 %v9154, %v9154
      %v9939 = vpack.c.b16 %v9155, %v9155
      %v9940 = vpack.c.b16 %v9156, %v9156
      %v9941 = vpack.c.b16 %v9157, %v9157
      %v9942 = vpack.c.b16 %v9158, %v9158
      %v9943 = vpack.c.b16 %v9159, %v9159
      %v9944 = vpack.c.b16 %v9160, %v9160
      %v9945 = vpack.c.b16 %v9161, %v9161
      %v9946 = vpack.c.b16 %v9162, %v9162
      %v9947 = vpack.c.b16 %v9163, %v9163
      %v9948 = vpack.c.b16 %v9164, %v9164
      %v9949 = vpack.c.b16 %v9165, %v9165
      %v9950 = vpack.c.b16 %v9166, %v9166
      %v9951 = vpack.c.b16 %v9167, %v9167
      %v9952 = vpack.c.b16 %v9168, %v9168
      %v9953 = vpack.c.b16 %v9169, %v9169
      %v9954 = vpack.c.b16 %v9170, %v9170
      %v9955 = vpack.c.b16 %v9171, %v9171
      %v9956 = vpack.c.b16 %v9172, %v9172
      %v9957 = vpack.c.b16 %v9173, %v9173
      %v9958 = vpack.c.b16 %v9174, %v9174
      %v9959 = vpack.c.b16 %v9175, %v9175
      %v9960 = vpack.c.b16 %v9176, %v9176
      %v9961 = vpack.c.b16 %v9177, %v9177
      %v9962 = vpack.c.b16 %v9178, %v9178
      %v9963 = vpack.c.b16 %v9179, %v9179
      %v9964 = vpack.c.b16 %v9180, %v9180
      %v9965 = vpack.c.b16 %v9181, %v9181
      %v9966 = vpack.c.b16 %v9182, %v9182
      %v9967 = vpack.c.b16 %v9183, %v9183
      %v9968 = vpack.c.b16 %v9184, %v9184
      %v9969 = vpack.c.b16 %v9185, %v9185
      %v9970 = vpack.c.b16 %v9186, %v9186
      %v9971 = vpack.c.b16 %v9187, %v9187
      %v9972 = vpack.c.b16 %v9188, %v9188
      %v9973 = vpack.c.b16 %v9189, %v9189
      %v9974 = vpack.c.b16 %v9190, %v9190
      %v9975 = vpack.c.b16 %v9191, %v9191
      %v9976 = vpack.c.b16 %v9192, %v9192
      %v9977 = vpack.c.b16 %v9193, %v9193
      %v9978 = vpack.c.b16 %v9194, %v9194
      %v9979 = vpack.c.b16 %v9195, %v9195
      %v9980 = vpack.c.b16 %v9196, %v9196
      %v9981 = vpack.c.b16 %v9197, %v9197
      %v9982 = vpack.c.b16 %v9198, %v9198
      %v9983 = vpack.c.b16 %v9199, %v9199
      %v9984 = vpack.c.b16 %v9200, %v9200
      %v9985 = vpack.c.b16 %v9201, %v9201
      %v9986 = vpack.c.b16 %v9202, %v9202
      %v9987 = vpack.c.b16 %v9203, %v9203
      %v9988 = vpack.c.b16 %v9204, %v9204
      %v9989 = vpack.c.b16 %v9205, %v9205
      %v9990 = vpack.c.b16 %v9206, %v9206
      %v9991 = vpack.c.b16 %v9207, %v9207
      %v9992 = vpack.c.b16 %v9208, %v9208
      %v9993 = vpack.c.b16 %v9209, %v9209
      %v9994 = vpack.c.b16 %v9210, %v9210
      %v9995 = vpack.c.b16 %v9211, %v9211
      %v9996 = vpack.c.b16 %v9212, %v9212
      %v9997 = vpack.c.b16 %v9213, %v9213
      %v9998 = vpack.c.b16 %v9214, %v9214
      %v9999 = vpack.c.b16 %v9215, %v9215
      %v10000 = vpack.c.b16 %v9216, %v9216
      %v10001 = vpack.c.b16 %v9217, %v9217
      %v10002 = vpack.c.b16 %v9218, %v9218
      %v10003 = vpack.c.b16 %v9219, %v9219
      %v10004 = vpack.c.b16 %v9220, %v9220
      %v10005 = vpack.c.b16 %v9221, %v9221
      %v10006 = vpack.c.b16 %v9222, %v9222
      %v10007 = vpack.c.b16 %v9223, %v9223
      %v10008 = vpack.c.b16 %v9224, %v9224
      %v10009 = vpack.c.b16 %v9225, %v9225
      %v10010 = vpack.c.b16 %v9226, %v9226
      %v10011 = vpack.c.b16 %v9227, %v9227
      %v10012 = vpack.c.b16 %v9228, %v9228
      %v10013 = vpack.c.b16 %v9229, %v9229
      %v10014 = vpack.c.b16 %v9230, %v9230
      %v10015 = vpack.c.b16 %v9231, %v9231
      %v10016 = vpack.c.b16 %v9232, %v9232
      %v10017 = vpack.c.b16 %v9233, %v9233
      %v10018 = vpack.c.b16 %v9234, %v9234
      %v10019 = vpack.c.b16 %v9235, %v9235
      %v10020 = vpack.c.b16 %v9236, %v9236
      %v10021 = vpack.c.b16 %v9237, %v9237
      %v10022 = vpack.c.b16 %v9238, %v9238
      %v10023 = vpack.c.b16 %v9239, %v9239
      %v10024 = vpack.c.b16 %v9240, %v9240
      %v10025 = vpack.c.b16 %v9241, %v9241
      %v10026 = vpack.c.b16 %v9242, %v9242
      %v10027 = vpack.c.b16 %v9243, %v9243
      %v10028 = vpack.c.b16 %v9244, %v9244
      %v10029 = vpack.c.b16 %v9245, %v9245
      %v10030 = vpack.c.b16 %v9246, %v9246
      %v10031 = vpack.c.b16 %v9247, %v9247
      %v10032 = vpack.c.b16 %v9248, %v9248
      %v10033 = vpack.c.b16 %v9249, %v9249
      %v10034 = vpack.c.b16 %v9250, %v9250
      %v10035 = vpack.c.b16 %v9251, %v9251
      %v10036 = vpack.c.b16 %v9252, %v9252
      %v10037 = vpack.c.b16 %v9253, %v9253
      %v10038 = vpack.c.b16 %v9254, %v9254
      %v10039 = vpack.c.b16 %v9255, %v9255
      %v10040 = vpack.c.b16 %v9256, %v9256
      %v10041 = vpack.c.b16 %v9257, %v9257
      %v10042 = vpack.c.b16 %v9258, %v9258
      %v10043 = vpack.c.b16 %v9259, %v9259
      %v10044 = vpack.c.b16 %v9260, %v9260
      %v10045 = vpack.c.b16 %v9261, %v9261
      %v10046 = vpack.c.b16 %v9262, %v9262
      %v10047 = vpack.c.b16 %v9263, %v9263
      %v10048 = vpack.c.b16 %v9264, %v9264
      %v10049 = vpack.c.b16 %v9265, %v9265
      %v10050 = vpack.c.b16 %v9266, %v9266
      %v10051 = vpack.c.b16 %v9267, %v9267
      %v10052 = vpack.c.b16 %v9268, %v9268
      %v10053 = vpack.c.b16 %v9269, %v9269
      %v10054 = vpack.c.b16 %v9270, %v9270
      %v10055 = vpack.c.b16 %v9271, %v9271
      %v10056 = vpack.c.b16 %v9272, %v9272
      %v10057 = vpack.c.b16 %v9273, %v9273
      %v10058 = vpack.c.b16 %v9274, %v9274
      %v10059 = vpack.c.b16 %v9275, %v9275
      %v10060 = vpack.c.b16 %v9276, %v9276
      %v10061 = vpack.c.b16 %v9277, %v9277
      %v10062 = vpack.c.b16 %v9278, %v9278
      %v10063 = vpack.c.b16 %v9279, %v9279
      %v10064 = vpack.c.b16 %v9280, %v9280
      %v10065 = vpack.c.b16 %v9281, %v9281
      %v10066 = vpack.c.b16 %v9282, %v9282
      %v10067 = vpack.c.b16 %v9283, %v9283
      %v10068 = vpack.c.b16 %v9284, %v9284
      %v10069 = vpack.c.b16 %v9285, %v9285
      %v10070 = vpack.c.b16 %v9286, %v9286
      %v10071 = vpack.c.b16 %v9287, %v9287
      %v10072 = vpack.c.b16 %v9288, %v9288
      %v10073 = vpack.c.b16 %v9289, %v9289
      %v10074 = vpack.c.b16 %v9290, %v9290
      %v10075 = vpack.c.b16 %v9291, %v9291
      %v10076 = vpack.c.b16 %v9292, %v9292
      %v10077 = vpack.c.b16 %v9293, %v9293
      %v10078 = vpack.c.b16 %v9294, %v9294
      %v10079 = vpack.c.b16 %v9295, %v9295
      %v10080 = vpack.c.b16 %v9296, %v9296
      %v10081 = vpack.c.b16 %v9297, %v9297
      %v10082 = vpack.c.b16 %v9298, %v9298
      %v10083 = vpack.c.b16 %v9299, %v9299
      %v10084 = vpack.c.b16 %v9300, %v9300
      %v10085 = vpack.c.b16 %v9301, %v9301
      %v10086 = vpack.c.b16 %v9302, %v9302
      %v10087 = vpack.c.b16 %v9303, %v9303
      %v10088 = vpack.c.b16 %v9304, %v9304
      %v10089 = vpack.c.b16 %v9305, %v9305
      %v10090 = vpack.c.b16 %v9306, %v9306
      %v10091 = vpack.c.b16 %v9307, %v9307
      %v10092 = vpack.c.b16 %v9308, %v9308
      %v10093 = vpack.c.b16 %v9309, %v9309
      %v10094 = vpack.c.b16 %v9310, %v9310
      %v10095 = vpack.c.b16 %v9311, %v9311
      %v10096 = vpack.c.b16 %v9312, %v9312
      %v10097 = vpack.c.b16 %v9313, %v9313
      %v10098 = vpack.c.b16 %v9314, %v9314
      %v10099 = vpack.c.b16 %v9315, %v9315
      %v10100 = vpack.c.b16 %v9316, %v9316
      %v10101 = vpack.c.b16 %v9317, %v9317
      %v10102 = vpack.c.b16 %v9318, %v9318
      %v10103 = vpack.c.b16 %v9319, %v9319
      %v10104 = vpack.c.b16 %v9320, %v9320
      %v10105 = vpack.c.b16 %v9321, %v9321
      %v10106 = vpack.c.b16 %v9322, %v9322
      %v10107 = vpack.c.b16 %v9323, %v9323
      %v10108 = vpack.c.b16 %v9324, %v9324
      %v10109 = vpack.c.b16 %v9325, %v9325
      %v10110 = vpack.c.b16 %v9326, %v9326
      %v10111 = vpack.c.b16 %v9327, %v9327
      %v10112 = vpack.c.b16 %v9328, %v9328
      %v10113 = vpack.c.b16 %v9329, %v9329
      %v10114 = vpack.c.b16 %v9330, %v9330
      %v10115 = vpack.c.b16 %v9331, %v9331
      %v10116 = vpack.c.b16 %v9332, %v9332
      %v10117 = vpack.c.b16 %v9333, %v9333
      %v10118 = vpack.c.b16 %v9334, %v9334
      %v10119 = vpack.c.b16 %v9335, %v9335
      %v10120 = vpack.c.b16 %v9336, %v9336
      %v10121 = vpack.c.b16 %v9337, %v9337
      %v10122 = vpack.c.b16 %v9338, %v9338
      %v10123 = vpack.c.b16 %v9339, %v9339
      %v10124 = vpack.c.b16 %v9340, %v9340
      %v10125 = vpack.c.b16 %v9341, %v9341
      %v10126 = vpack.c.b16 %v9342, %v9342
      %v10127 = vpack.c.b16 %v9343, %v9343
      %v10128 = vpack.c.b16 %v9344, %v9344
      %v10129 = vpack.c.b16 %v9345, %v9345
      %v10130 = vpack.c.b16 %v9346, %v9346
      %v10131 = vpack.c.b16 %v9347, %v9347
      %v10132 = vpack.c.b16 %v9348, %v9348
      %v10133 = vpack.c.b16 %v9349, %v9349
      %v10134 = vpack.c.b16 %v9350, %v9350
      %v10135 = vpack.c.b16 %v9351, %v9351
      %v10136 = vpack.c.b16 %v9352, %v9352
      %v10137 = vpack.c.b16 %v9353, %v9353
      %v10138 = vpack.c.b16 %v9354, %v9354
      %v10139 = vpack.c.b16 %v9355, %v9355
      %v10140 = vpack.c.b16 %v9356, %v9356
      %v10141 = vpack.c.b16 %v9357, %v9357
      %v10142 = vpack.c.b16 %v9358, %v9358
      %v10143 = vpack.c.b16 %v9359, %v9359
      %v10144 = vpack.c.b16 %v9360, %v9360
      %v10145 = vpack.c.b16 %v9361, %v9361
      %v10146 = vpack.c.b16 %v9362, %v9362
      %v10147 = vpack.c.b16 %v9363, %v9363
      %v10148 = vpack.c.b16 %v9364, %v9364
      %v10149 = vpack.c.b16 %v9365, %v9365
      %v10150 = vpack.c.b16 %v9366, %v9366
      %v10151 = vpack.c.b16 %v9367, %v9367
      %v10152 = vpack.c.b16 %v9368, %v9368
      %v10153 = vpack.c.b16 %v9369, %v9369
      %v10154 = vpack.c.b16 %v9370, %v9370
      %v10155 = vpack.c.b16 %v9371, %v9371
      %v10156 = vpack.c.b16 %v9372, %v9372
      %v10157 = vpack.c.b16 %v9373, %v9373
      %v10158 = vpack.c.b16 %v9374, %v9374
      %v10159 = vpack.c.b16 %v9375, %v9375
      %v10160 = vpack.c.b16 %v9376, %v9376
      %v10161 = vpack.c.b16 %v9377, %v9377
      %v10162 = vpack.c.b16 %v9378, %v9378
      %v10163 = vpack.c.b16 %v9379, %v9379
      %v10164 = vpack.c.b16 %v9380, %v9380
      %v10165 = vpack.c.b16 %v9381, %v9381
      %v10166 = vpack.c.b16 %v9382, %v9382
      %v10167 = vpack.c.b16 %v9383, %v9383
      %v10168 = vpack.c.b16 %v9384, %v9384
      %v10169 = vpack.c.b16 %v9385, %v9385
      %v10170 = vpack.c.b16 %v9386, %v9386
      %v10171 = vpack.c.b16 %v9387, %v9387
      %v10172 = vpack.c.b16 %v9388, %v9388
      %v10173 = vpack.c.b16 %v9389, %v9389
      %v10174 = vpack.c.b16 %v9390, %v9390
      %v10175 = vpack.c.b16 %v9391, %v9391
      %v10176 = vpack.c.b16 %v9392, %v9392
      %v10177 = vpack.c.b16 %v9393, %v9393
      %v10178 = vpack.c.b16 %v9394, %v9394
      %v10179 = vpack.c.b16 %v9395, %v9395
      %v10180 = vpack.c.b16 %v9396, %v9396
      %v10181 = vpack.c.b16 %v9397, %v9397
      %v10182 = vpack.c.b16 %v9398, %v9398
      %v10183 = vpack.c.b16 %v9399, %v9399
      %v10184 = vpack.c.b16 %v9400, %v9400
      %v10185 = vpack.c.b16 %v9401, %v9401
      %v10186 = vpack.c.b16 %v9402, %v9402
      %v10187 = vpack.c.b16 %v9403, %v9403
      %v10188 = vpack.c.b16 %v9404, %v9404
      %v10189 = vpack.c.b16 %v9405, %v9405
      %v10190 = vpack.c.b16 %v9406, %v9406
      %v10191 = vpack.c.b16 %v9407, %v9407
      %v10192 = vpack.c.b16 %v9408, %v9408
      %v10193 = vpack.c.b16 %v9409, %v9409
      %v10194 = vpack.c.b16 %v9410, %v9410
      %v10195 = vpack.c.b16 %v9411, %v9411
      %v10196 = vpack.c.b16 %v9412, %v9412
      %v10197 = vpack.c.b16 %v9413, %v9413
      %v10198 = vpack.c.b16 %v9414, %v9414
      %v10199 = vpack.c.b16 %v9415, %v9415
      %v10200 = vpack.c.b16 %v9416, %v9416
      %v10201 = vpack.c.b16 %v9417, %v9417
      %v10202 = vpack.c.b16 %v9418, %v9418
      %v10203 = vpack.c.b16 %v9419, %v9419
      %v10204 = vpack.c.b16 %v9420, %v9420
      %v10205 = vpack.c.b16 %v9421, %v9421
      %v10206 = vpack.c.b16 %v9422, %v9422
      %v10207 = vpack.c.b16 %v9423, %v9423
      %v10208 = vpack.c.b16 %v9424, %v9424
      %v10209 = vpack.c.b16 %v9425, %v9425
      %v10210 = vpack.c.b16 %v9426, %v9426
      %v10211 = vpack.c.b16 %v9427, %v9427
      %v10212 = vpack.c.b16 %v9428, %v9428
      %v10213 = vpack.c.b16 %v9429, %v9429
      %v10214 = vpack.c.b16 %v9430, %v9430
      %v10215 = vpack.c.b16 %v9431, %v9431
      %v10216 = vpack.c.b16 %v9432, %v9432
      %v10217 = vpack.c.b16 %v9433, %v9433
      %v10218 = vpack.c.b16 %v9434, %v9434
      %v10219 = vpack.c.b16 %v9435, %v9435
      %v10220 = vpack.c.b16 %v9436, %v9436
      %v10221 = vpack.c.b16 %v9437, %v9437
      %v10222 = vpack.c.b16 %v9438, %v9438
      %v10223 = vpack.c.b16 %v9439, %v9439
      %v10224 = vpack.c.b16 %v9440, %v9440
      %v10225 = vpack.c.b16 %v9441, %v9441
      %v10226 = vpack.c.b16 %v9442, %v9442
      %v10227 = vpack.c.b16 %v9443, %v9443
      %v10228 = vpack.c.b16 %v9444, %v9444
      %v10229 = vpack.c.b16 %v9445, %v9445
      %v10230 = vpack.c.b16 %v9446, %v9446
      %v10231 = vpack.c.b16 %v9447, %v9447
      %v10232 = vpack.c.b16 %v9448, %v9448
      %v10233 = vpack.c.b16 %v9449, %v9449
      %v10234 = vpack.c.b16 %v9450, %v9450
      %v10235 = vpack.c.b16 %v9451, %v9451
      %v10236 = vpack.c.b16 %v9452, %v9452
      %v10237 = vpack.c.b16 %v9453, %v9453
      %v10238 = vpack.c.b16 %v9454, %v9454
      %v10239 = vpack.c.b16 %v9455, %v9455
      %v10240 = vpack.c.b16 %v9456, %v9456
      %v10241 = vpack.c.b16 %v9457, %v9457
      %v10242 = vpack.c.b16 %v9458, %v9458
      %v10243 = vpack.c.b16 %v9459, %v9459
      %v10244 = vpack.c.b16 %v9460, %v9460
      %v10245 = vpack.c.b16 %v9461, %v9461
      %v10246 = vpack.c.b16 %v9462, %v9462
      %v10247 = vpack.c.b16 %v9463, %v9463
      %v10248 = vpack.c.b16 %v9464, %v9464
      %v10249 = vpack.c.b16 %v9465, %v9465
      %v10250 = vpack.c.b16 %v9466, %v9466
      %v10251 = vpack.c.b16 %v9467, %v9467
      %v10252 = vpack.c.b16 %v9468, %v9468
      %v10253 = vpack.c.b16 %v9469, %v9469
      %v10254 = vpack.c.b16 %v9470, %v9470
      %v10255 = vpack.c.b16 %v9471, %v9471
      %v10256 = vpack.c.b16 %v9472, %v9472
      %v10257 = vpack.c.b16 %v9473, %v9473
      %v10258 = vpack.c.b16 %v9474, %v9474
      %v10259 = vpack.c.b16 %v9475, %v9475
      %v10260 = vpack.c.b16 %v9476, %v9476
      %v10261 = vpack.c.b16 %v9477, %v9477
      %v10262 = vpack.c.b16 %v9478, %v9478
      %v10263 = vpack.c.b16 %v9479, %v9479
      %v10264 = vpack.c.b16 %v9480, %v9480
      %v10265 = vpack.c.b16 %v9481, %v9481
      %v10266 = vpack.c.b16 %v9482, %v9482
      %v10267 = vpack.c.b16 %v9483, %v9483
      %v10268 = vpack.c.b16 %v9484, %v9484
      %v10269 = vpack.c.b16 %v9485, %v9485
      %v10270 = vpack.c.b16 %v9486, %v9486
      %v10271 = vpack.c.b16 %v9487, %v9487
      %v10272 = vpack.c.b16 %v9488, %v9488
      %v10273 = vpack.c.b16 %v9489, %v9489
      %v10274 = vpack.c.b16 %v9490, %v9490
      %v10275 = vpack.c.b16 %v9491, %v9491
      %v10276 = vpack.c.b16 %v9492, %v9492
      %v10277 = vpack.c.b16 %v9493, %v9493
      %v10278 = vpack.c.b16 %v9494, %v9494
      %v10279 = vpack.c.b16 %v9495, %v9495
      %v10280 = vpack.c.b16 %v9496, %v9496
      %v10281 = vpack.c.b16 %v9497, %v9497
      %v10282 = vpack.c.b16 %v9498, %v9498
      %v10283 = vpack.c.b16 %v9499, %v9499
      %v10284 = vpack.c.b16 %v9500, %v9500
      %v10285 = vpack.c.b16 %v9501, %v9501
      %v10286 = vpack.c.b16 %v9502, %v9502
      %v10287 = vpack.c.b16 %v9503, %v9503
      %v10288 = vpack.c.b16 %v9504, %v9504
      %v10289 = vpack.c.b16 %v9505, %v9505
      %v10290 = vpack.c.b16 %v9506, %v9506
      %v10291 = vpack.c.b16 %v9507, %v9507
      %v10292 = vpack.c.b16 %v9508, %v9508
      %v10293 = vpack.c.b16 %v9509, %v9509
      %v10294 = vpack.c.b16 %v9510, %v9510
      %v10295 = vpack.c.b16 %v9511, %v9511
      %v10296 = vpack.c.b16 %v9512, %v9512
      %v10297 = vpack.c.b16 %v9513, %v9513
      %v10298 = vpack.c.b16 %v9514, %v9514
      %v10299 = vpack.c.b16 %v9515, %v9515
      %v10300 = vpack.c.b16 %v9516, %v9516
      %v10301 = vpack.c.b16 %v9517, %v9517
      %v10302 = vpack.c.b16 %v9518, %v9518
      %v10303 = vpack.c.b16 %v9519, %v9519
      %v10304 = vpack.c.b16 %v9520, %v9520
      %v10305 = vpack.c.b16 %v9521, %v9521
      %v10306 = vpack.c.b16 %v9522, %v9522
      %v10307 = vpack.c.b16 %v9523, %v9523
      %v10308 = vpack.c.b16 %v9524, %v9524
      %v10309 = vpack.c.b16 %v9525, %v9525
      %v10310 = vpack.c.b16 %v9526, %v9526
      %v10311 = vpack.c.b16 %v9527, %v9527
      %v10312 = vpack.c.b16 %v9528, %v9528
      %v10313 = vpack.c.b16 %v9529, %v9529
      %v10314 = vpack.c.b16 %v9530, %v9530
      %v10315 = vpack.c.b16 %v9531, %v9531
      %v10316 = vpack.c.b16 %v9532, %v9532
      %v10317 = vpack.c.b16 %v9533, %v9533
      %v10318 = vpack.c.b16 %v9534, %v9534
      %v10319 = vpack.c.b16 %v9535, %v9535
      %v10320 = vpack.c.b16 %v9536, %v9536
      %v10321 = vpack.c.b16 %v9537, %v9537
      %v10322 = vpack.c.b16 %v9538, %v9538
      %v10323 = vpack.c.b16 %v9539, %v9539
      %v10324 = vpack.c.b16 %v9540, %v9540
      %v10325 = vpack.c.b16 %v9541, %v9541
      %v10326 = vpack.c.b16 %v9542, %v9542
      %v10327 = vpack.c.b16 %v9543, %v9543
      %v10328 = vpack.c.b16 %v9544, %v9544
      %v10329 = vpack.c.b16 %v9545, %v9545
      %v10330 = vpack.c.b16 %v9546, %v9546
      %v10331 = vpack.c.b16 %v9547, %v9547
      %v10332 = vpack.c.b16 %v9548, %v9548
      %v10333 = vpack.c.b16 %v9549, %v9549
      %v10334 = vpack.c.b16 %v9550, %v9550
      %v10335 = vpack.c.b16 %v9551, %v9551
      %v10336 = vpack.c.b16 %v9552, %v9552
      %v10337 = vpack.c.b16 %v9553, %v9553
      %v10338 = vpack.c.b16 %v9554, %v9554
      %v10339 = vpack.c.b16 %v9555, %v9555
      %v10340 = vpack.c.b16 %v9556, %v9556
      %v10341 = vpack.c.b16 %v9557, %v9557
      %v10342 = vpack.c.b16 %v9558, %v9558
      %v10343 = vpack.c.b16 %v9559, %v9559
      %v10344 = vpack.c.b16 %v9560, %v9560
      %v10345 = vpack.c.b16 %v9561, %v9561
      %v10346 = vpack.c.b16 %v9562, %v9562
      %v10347 = vpack.c.b16 %v9563, %v9563
      %v10348 = vpack.c.b16 %v9564, %v9564
      %v10349 = vpack.c.b16 %v9565, %v9565
      %v10350 = vpack.c.b16 %v9566, %v9566
      %v10351 = vpack.c.b16 %v9567, %v9567
      %v10352 = vpack.c.b16 %v9568, %v9568
      %v10353 = vpack.c.b16 %v9569, %v9569
      %v10354 = vpack.c.b16 %v9570, %v9570
      %v10355 = vpack.c.b16 %v9571, %v9571
      %v10356 = vpack.c.b16 %v9572, %v9572
      %v10357 = vpack.c.b16 %v9573, %v9573
      %v10358 = vpack.c.b16 %v9574, %v9574
      %v10359 = vpack.c.b16 %v9575, %v9575
      %v10360 = vpack.c.b16 %v9576, %v9576
      %v10361 = vpack.c.b16 %v9577, %v9577
      %v10362 = vpack.c.b16 %v9578, %v9578
      %v10363 = vpack.c.b16 %v9579, %v9579
      %v10364 = vpack.c.b16 %v9580, %v9580
      %v10365 = vpack.c.b16 %v9581, %v9581
      %v10366 = vpack.c.b16 %v9582, %v9582
      %v10367 = vpack.c.b16 %v9583, %v9583
      %v10368 = vpack.c.b16 %v9584, %v9584
      %v10369 = vpack.c.b16 %v9585, %v9585
      %v10370 = vpack.c.b16 %v9586, %v9586
      %v10371 = vpack.c.b16 %v9587, %v9587
      %v10372 = vpack.c.b16 %v9588, %v9588
      %v10373 = vpack.c.b16 %v9589, %v9589
      %v10374 = vpack.c.b16 %v9590, %v9590
      %v10375 = vpack.c.b16 %v9591, %v9591
      %v10376 = vpack.c.b16 %v9592, %v9592
      %v10377 = vpack.c.b16 %v9593, %v9593
      %v10378 = vpack.c.b16 %v9594, %v9594
      %v10379 = vpack.c.b16 %v9595, %v9595
      %v10380 = vpack.c.b16 %v9596, %v9596
      %v10381 = vpack.c.b16 %v9597, %v9597
      %v10382 = vpack.c.b16 %v9598, %v9598
      %v10383 = vpack.c.b16 %v9599, %v9599
      %v10384 = vpack.c.b16 %v9600, %v9600
      %v10385 = vpack.c.b16 %v9601, %v9601
      %v10386 = vpack.c.b16 %v9602, %v9602
      %v10387 = vpack.c.b16 %v9603, %v9603
      %v10388 = vpack.c.b16 %v9604, %v9604
      %v10389 = vpack.c.b16 %v9605, %v9605
      %v10390 = vpack.c.b16 %v9606, %v9606
      %v10391 = vpack.c.b16 %v9607, %v9607
      %v10392 = vpack.c.b16 %v9608, %v9608
      %v10393 = vpack.c.b16 %v9609, %v9609
      %v10394 = vpack.c.b16 %v9610, %v9610
      %v10395 = vpack.c.b16 %v9611, %v9611
      %v10396 = vpack.c.b16 %v9612, %v9612
      %v10397 = vpack.c.b16 %v9613, %v9613
      %v10398 = vpack.c.b16 %v9614, %v9614
      %v10399 = vpack.c.b16 %v9615, %v9615
      %v10400 = vpack.c.b16 %v9616, %v9616
      %v10401 = vpack.c.b16 %v9617, %v9617
      %v10402 = vpack.c.b16 %v9618, %v9618
      %v10403 = vpack.c.b16 %v9619, %v9619
      %v10404 = vpack.c.b16 %v9620, %v9620
      %v10405 = vpack.c.b16 %v9621, %v9621
      %v10406 = vpack.c.b16 %v9622, %v9622
      %v10407 = vpack.c.b16 %v9623, %v9623
      %v10408 = vpack.c.b16 %v9624, %v9624
      %v10409 = vpack.c.b16 %v9625, %v9625
      %v10410 = vpack.c.b16 %v9626, %v9626
      %v10411 = vpack.c.b16 %v9627, %v9627
      %v10412 = vpack.c.b16 %v9628, %v9628
      %v10413 = vpack.c.b16 %v9629, %v9629
      %v10414 = vpack.c.b16 %v9630, %v9630
      %v10415 = vpack.c.b16 %v9631, %v9631
      %v10416 = vpack.c.b16 %v9632, %v9632
      %v10417 = vpack.c.b16 %v9633, %v9633
      %v10418 = vpack.c.b16 %v9634, %v9634
      %v10419 = vpack.c.b16 %v9635, %v9635
      %v10420 = vpack.c.b16 %v9636, %v9636
      %v10421 = vpack.c.b16 %v9637, %v9637
      %v10422 = vpack.c.b16 %v9638, %v9638
      %v10423 = vpack.c.b16 %v9639, %v9639
      %v10424 = vpack.c.b16 %v9640, %v9640
      %v10425 = vpack.c.b16 %v9641, %v9641
      %v10426 = vpack.c.b16 %v9642, %v9642
      %v10427 = vpack.c.b16 %v9643, %v9643
      %v10428 = vpack.c.b16 %v9644, %v9644
      %v10429 = vpack.c.b16 %v9645, %v9645
      %v10430 = vpack.c.b16 %v9646, %v9646
      %v10431 = vpack.c.b16 %v9647, %v9647
      %v10432 = vpack.c.b16 %v9648, %v9648
      %v10433 = vpack.c.b16 %v9649, %v9649
      %v10434 = vpack.c.b16 %v9650, %v9650
      %v10435 = vpack.c.b16 %v9651, %v9651
      %v10436 = vpack.c.b16 %v9652, %v9652
      %v10437 = vpack.c.b16 %v9653, %v9653
      %v10438 = vpack.c.b16 %v9654, %v9654
      %v10439 = vpack.c.b16 %v9655, %v9655
      %v10440 = vpack.c.b16 %v9656, %v9656
      %v10441 = vpack.c.b16 %v9657, %v9657
      %v10442 = vpack.c.b16 %v9658, %v9658
      %v10443 = vpack.c.b16 %v9659, %v9659
      %v10444 = vpack.c.b16 %v9660, %v9660
      %v10445 = vpack.c.b16 %v9661, %v9661
      %v10446 = vpack.c.b16 %v9662, %v9662
      %v10447 = vpack.c.b16 %v9663, %v9663
      %v10448 = vpack.c.b16 %v9664, %v9664
      %v10449 = vpack.c.b16 %v9665, %v9665
      %v10450 = vpack.c.b16 %v9666, %v9666
      %v10451 = vpack.c.b16 %v9667, %v9667
      %v10452 = vpack.c.b16 %v9668, %v9668
      %v10453 = vpack.c.b16 %v9669, %v9669
      %vm11238 = vcmask 125952
      %11239 = vst.msk [vmem:[%s172] sm:$0xf] %vm11238, %v9670
      %11240 = vst.msk [vmem:[%s172 + $0x4] sm:$0xf] %vm11238, %v9671
      %11241 = vst.msk [vmem:[%s172 + $0x8] sm:$0xf] %vm11238, %v9672
      %11242 = vst.msk [vmem:[%s172 + $0xc] sm:$0xf] %vm11238, %v9673
      %11243 = vst.msk [vmem:[%s172 + $0x10] sm:$0xf] %vm11238, %v9674
      %11244 = vst.msk [vmem:[%s172 + $0x14] sm:$0xf] %vm11238, %v9675
      %11245 = vst.msk [vmem:[%s172 + $0x18] sm:$0xf] %vm11238, %v9676
      %11246 = vst.msk [vmem:[%s172 + $0x1c] sm:$0xf] %vm11238, %v9677
      %11247 = vst.msk [vmem:[%s172 + $0x20] sm:$0xf] %vm11238, %v9678
      %11248 = vst.msk [vmem:[%s172 + $0x24] sm:$0xf] %vm11238, %v9679
      %11249 = vst.msk [vmem:[%s172 + $0x28] sm:$0xf] %vm11238, %v9680
      %11250 = vst.msk [vmem:[%s172 + $0x2c] sm:$0xf] %vm11238, %v9681
      %11251 = vst.msk [vmem:[%s172 + $0x30] sm:$0xf] %vm11238, %v9682
      %11252 = vst.msk [vmem:[%s172 + $0x34] sm:$0xf] %vm11238, %v9683
      %11253 = vst.msk [vmem:[%s172 + $0x38] sm:$0xf] %vm11238, %v9684
      %11254 = vst.msk [vmem:[%s172 + $0x3c] sm:$0xf] %vm11238, %v9685
      %11255 = vst.msk [vmem:[%s172 + $0x40] sm:$0xf] %vm11238, %v9686
      %11256 = vst.msk [vmem:[%s172 + $0x44] sm:$0xf] %vm11238, %v9687
      %11257 = vst.msk [vmem:[%s172 + $0x48] sm:$0xf] %vm11238, %v9688
      %11258 = vst.msk [vmem:[%s172 + $0x4c] sm:$0xf] %vm11238, %v9689
      %11259 = vst.msk [vmem:[%s172 + $0x50] sm:$0xf] %vm11238, %v9690
      %11260 = vst.msk [vmem:[%s172 + $0x54] sm:$0xf] %vm11238, %v9691
      %11261 = vst.msk [vmem:[%s172 + $0x58] sm:$0xf] %vm11238, %v9692
      %11262 = vst.msk [vmem:[%s172 + $0x5c] sm:$0xf] %vm11238, %v9693
      %11263 = vst.msk [vmem:[%s172 + $0x60] sm:$0xf] %vm11238, %v9694
      %11264 = vst.msk [vmem:[%s172 + $0x64] sm:$0xf] %vm11238, %v9695
      %11265 = vst.msk [vmem:[%s172 + $0x68] sm:$0xf] %vm11238, %v9696
      %11266 = vst.msk [vmem:[%s172 + $0x6c] sm:$0xf] %vm11238, %v9697
      %11267 = vst.msk [vmem:[%s172 + $0x70] sm:$0xf] %vm11238, %v9698
      %11268 = vst.msk [vmem:[%s172 + $0x74] sm:$0xf] %vm11238, %v9699
      %11269 = vst.msk [vmem:[%s172 + $0x78] sm:$0xf] %vm11238, %v9700
      %11270 = vst.msk [vmem:[%s172 + $0x7c] sm:$0xf] %vm11238, %v9701
      %11271 = vst.msk [vmem:[%s172 + $0x80] sm:$0xf] %vm11238, %v9702
      %11272 = vst.msk [vmem:[%s172 + $0x84] sm:$0xf] %vm11238, %v9703
      %11273 = vst.msk [vmem:[%s172 + $0x88] sm:$0xf] %vm11238, %v9704
      %11274 = vst.msk [vmem:[%s172 + $0x8c] sm:$0xf] %vm11238, %v9705
      %11275 = vst.msk [vmem:[%s172 + $0x90] sm:$0xf] %vm11238, %v9706
      %11276 = vst.msk [vmem:[%s172 + $0x94] sm:$0xf] %vm11238, %v9707
      %11277 = vst.msk [vmem:[%s172 + $0x98] sm:$0xf] %vm11238, %v9708
      %11278 = vst.msk [vmem:[%s172 + $0x9c] sm:$0xf] %vm11238, %v9709
      %11279 = vst.msk [vmem:[%s172 + $0xa0] sm:$0xf] %vm11238, %v9710
      %11280 = vst.msk [vmem:[%s172 + $0xa4] sm:$0xf] %vm11238, %v9711
      %11281 = vst.msk [vmem:[%s172 + $0xa8] sm:$0xf] %vm11238, %v9712
      %11282 = vst.msk [vmem:[%s172 + $0xac] sm:$0xf] %vm11238, %v9713
      %11283 = vst.msk [vmem:[%s172 + $0xb0] sm:$0xf] %vm11238, %v9714
      %11284 = vst.msk [vmem:[%s172 + $0xb4] sm:$0xf] %vm11238, %v9715
      %11285 = vst.msk [vmem:[%s172 + $0xb8] sm:$0xf] %vm11238, %v9716
      %11286 = vst.msk [vmem:[%s172 + $0xbc] sm:$0xf] %vm11238, %v9717
      %11287 = vst.msk [vmem:[%s172 + $0xc0] sm:$0xf] %vm11238, %v9718
      %11288 = vst.msk [vmem:[%s172 + $0xc4] sm:$0xf] %vm11238, %v9719
      %11289 = vst.msk [vmem:[%s172 + $0xc8] sm:$0xf] %vm11238, %v9720
      %11290 = vst.msk [vmem:[%s172 + $0xcc] sm:$0xf] %vm11238, %v9721
      %11291 = vst.msk [vmem:[%s172 + $0xd0] sm:$0xf] %vm11238, %v9722
      %11292 = vst.msk [vmem:[%s172 + $0xd4] sm:$0xf] %vm11238, %v9723
      %11293 = vst.msk [vmem:[%s172 + $0xd8] sm:$0xf] %vm11238, %v9724
      %11294 = vst.msk [vmem:[%s172 + $0xdc] sm:$0xf] %vm11238, %v9725
      %11295 = vst.msk [vmem:[%s172 + $0xe0] sm:$0xf] %vm11238, %v9726
      %11296 = vst.msk [vmem:[%s172 + $0xe4] sm:$0xf] %vm11238, %v9727
      %11297 = vst.msk [vmem:[%s172 + $0xe8] sm:$0xf] %vm11238, %v9728
      %11298 = vst.msk [vmem:[%s172 + $0xec] sm:$0xf] %vm11238, %v9729
      %11299 = vst.msk [vmem:[%s172 + $0xf0] sm:$0xf] %vm11238, %v9730
      %11300 = vst.msk [vmem:[%s172 + $0xf4] sm:$0xf] %vm11238, %v9731
      %11301 = vst.msk [vmem:[%s172 + $0xf8] sm:$0xf] %vm11238, %v9732
      %11302 = vst.msk [vmem:[%s172 + $0xfc] sm:$0xf] %vm11238, %v9733
      %11303 = vst.msk [vmem:[%s172 + $0x100] sm:$0xf] %vm11238, %v9734
      %11304 = vst.msk [vmem:[%s172 + $0x104] sm:$0xf] %vm11238, %v9735
      %11305 = vst.msk [vmem:[%s172 + $0x108] sm:$0xf] %vm11238, %v9736
      %11306 = vst.msk [vmem:[%s172 + $0x10c] sm:$0xf] %vm11238, %v9737
      %11307 = vst.msk [vmem:[%s172 + $0x110] sm:$0xf] %vm11238, %v9738
      %11308 = vst.msk [vmem:[%s172 + $0x114] sm:$0xf] %vm11238, %v9739
      %11309 = vst.msk [vmem:[%s172 + $0x118] sm:$0xf] %vm11238, %v9740
      %11310 = vst.msk [vmem:[%s172 + $0x11c] sm:$0xf] %vm11238, %v9741
      %11311 = vst.msk [vmem:[%s172 + $0x120] sm:$0xf] %vm11238, %v9742
      %11312 = vst.msk [vmem:[%s172 + $0x124] sm:$0xf] %vm11238, %v9743
      %11313 = vst.msk [vmem:[%s172 + $0x128] sm:$0xf] %vm11238, %v9744
      %11314 = vst.msk [vmem:[%s172 + $0x12c] sm:$0xf] %vm11238, %v9745
      %11315 = vst.msk [vmem:[%s172 + $0x130] sm:$0xf] %vm11238, %v9746
      %11316 = vst.msk [vmem:[%s172 + $0x134] sm:$0xf] %vm11238, %v9747
      %11317 = vst.msk [vmem:[%s172 + $0x138] sm:$0xf] %vm11238, %v9748
      %11318 = vst.msk [vmem:[%s172 + $0x13c] sm:$0xf] %vm11238, %v9749
      %11319 = vst.msk [vmem:[%s172 + $0x140] sm:$0xf] %vm11238, %v9750
      %11320 = vst.msk [vmem:[%s172 + $0x144] sm:$0xf] %vm11238, %v9751
      %11321 = vst.msk [vmem:[%s172 + $0x148] sm:$0xf] %vm11238, %v9752
      %11322 = vst.msk [vmem:[%s172 + $0x14c] sm:$0xf] %vm11238, %v9753
      %11323 = vst.msk [vmem:[%s172 + $0x150] sm:$0xf] %vm11238, %v9754
      %11324 = vst.msk [vmem:[%s172 + $0x154] sm:$0xf] %vm11238, %v9755
      %11325 = vst.msk [vmem:[%s172 + $0x158] sm:$0xf] %vm11238, %v9756
      %11326 = vst.msk [vmem:[%s172 + $0x15c] sm:$0xf] %vm11238, %v9757
      %11327 = vst.msk [vmem:[%s172 + $0x160] sm:$0xf] %vm11238, %v9758
      %11328 = vst.msk [vmem:[%s172 + $0x164] sm:$0xf] %vm11238, %v9759
      %11329 = vst.msk [vmem:[%s172 + $0x168] sm:$0xf] %vm11238, %v9760
      %11330 = vst.msk [vmem:[%s172 + $0x16c] sm:$0xf] %vm11238, %v9761
      %11331 = vst.msk [vmem:[%s172 + $0x170] sm:$0xf] %vm11238, %v9762
      %11332 = vst.msk [vmem:[%s172 + $0x174] sm:$0xf] %vm11238, %v9763
      %11333 = vst.msk [vmem:[%s172 + $0x178] sm:$0xf] %vm11238, %v9764
      %11334 = vst.msk [vmem:[%s172 + $0x17c] sm:$0xf] %vm11238, %v9765
      %11335 = vst.msk [vmem:[%s172 + $0x180] sm:$0xf] %vm11238, %v9766
      %11336 = vst.msk [vmem:[%s172 + $0x184] sm:$0xf] %vm11238, %v9767
      %11337 = vst.msk [vmem:[%s172 + $0x188] sm:$0xf] %vm11238, %v9768
      %11338 = vst.msk [vmem:[%s172 + $0x18c] sm:$0xf] %vm11238, %v9769
      %11339 = vst.msk [vmem:[%s172 + $0x190] sm:$0xf] %vm11238, %v9770
      %11340 = vst.msk [vmem:[%s172 + $0x194] sm:$0xf] %vm11238, %v9771
      %11341 = vst.msk [vmem:[%s172 + $0x198] sm:$0xf] %vm11238, %v9772
      %11342 = vst.msk [vmem:[%s172 + $0x19c] sm:$0xf] %vm11238, %v9773
      %11343 = vst.msk [vmem:[%s172 + $0x1a0] sm:$0xf] %vm11238, %v9774
      %11344 = vst.msk [vmem:[%s172 + $0x1a4] sm:$0xf] %vm11238, %v9775
      %11345 = vst.msk [vmem:[%s172 + $0x1a8] sm:$0xf] %vm11238, %v9776
      %11346 = vst.msk [vmem:[%s172 + $0x1ac] sm:$0xf] %vm11238, %v9777
      %11347 = vst.msk [vmem:[%s172 + $0x1b0] sm:$0xf] %vm11238, %v9778
      %11348 = vst.msk [vmem:[%s172 + $0x1b4] sm:$0xf] %vm11238, %v9779
      %11349 = vst.msk [vmem:[%s172 + $0x1b8] sm:$0xf] %vm11238, %v9780
      %11350 = vst.msk [vmem:[%s172 + $0x1bc] sm:$0xf] %vm11238, %v9781
      %11351 = vst.msk [vmem:[%s172 + $0x1c0] sm:$0xf] %vm11238, %v9782
      %11352 = vst.msk [vmem:[%s172 + $0x1c4] sm:$0xf] %vm11238, %v9783
      %11353 = vst.msk [vmem:[%s172 + $0x1c8] sm:$0xf] %vm11238, %v9784
      %11354 = vst.msk [vmem:[%s172 + $0x1cc] sm:$0xf] %vm11238, %v9785
      %11355 = vst.msk [vmem:[%s172 + $0x1d0] sm:$0xf] %vm11238, %v9786
      %11356 = vst.msk [vmem:[%s172 + $0x1d4] sm:$0xf] %vm11238, %v9787
      %11357 = vst.msk [vmem:[%s172 + $0x1d8] sm:$0xf] %vm11238, %v9788
      %11358 = vst.msk [vmem:[%s172 + $0x1dc] sm:$0xf] %vm11238, %v9789
      %11359 = vst.msk [vmem:[%s172 + $0x1e0] sm:$0xf] %vm11238, %v9790
      %11360 = vst.msk [vmem:[%s172 + $0x1e4] sm:$0xf] %vm11238, %v9791
      %11361 = vst.msk [vmem:[%s172 + $0x1e8] sm:$0xf] %vm11238, %v9792
      %11362 = vst.msk [vmem:[%s172 + $0x1ec] sm:$0xf] %vm11238, %v9793
      %11363 = vst.msk [vmem:[%s172 + $0x1f0] sm:$0xf] %vm11238, %v9794
      %11364 = vst.msk [vmem:[%s172 + $0x1f4] sm:$0xf] %vm11238, %v9795
      %11365 = vst.msk [vmem:[%s172 + $0x1f8] sm:$0xf] %vm11238, %v9796
      %11366 = vst.msk [vmem:[%s172 + $0x1fc] sm:$0xf] %vm11238, %v9797
      %11367 = vst.msk [vmem:[%s172 + $0x200] sm:$0xf] %vm11238, %v9798
      %11368 = vst.msk [vmem:[%s172 + $0x204] sm:$0xf] %vm11238, %v9799
      %11369 = vst.msk [vmem:[%s172 + $0x208] sm:$0xf] %vm11238, %v9800
      %11370 = vst.msk [vmem:[%s172 + $0x20c] sm:$0xf] %vm11238, %v9801
      %11371 = vst.msk [vmem:[%s172 + $0x210] sm:$0xf] %vm11238, %v9802
      %11372 = vst.msk [vmem:[%s172 + $0x214] sm:$0xf] %vm11238, %v9803
      %11373 = vst.msk [vmem:[%s172 + $0x218] sm:$0xf] %vm11238, %v9804
      %11374 = vst.msk [vmem:[%s172 + $0x21c] sm:$0xf] %vm11238, %v9805
      %11375 = vst.msk [vmem:[%s172 + $0x220] sm:$0xf] %vm11238, %v9806
      %11376 = vst.msk [vmem:[%s172 + $0x224] sm:$0xf] %vm11238, %v9807
      %11377 = vst.msk [vmem:[%s172 + $0x228] sm:$0xf] %vm11238, %v9808
      %11378 = vst.msk [vmem:[%s172 + $0x22c] sm:$0xf] %vm11238, %v9809
      %11379 = vst.msk [vmem:[%s172 + $0x230] sm:$0xf] %vm11238, %v9810
      %11380 = vst.msk [vmem:[%s172 + $0x234] sm:$0xf] %vm11238, %v9811
      %11381 = vst.msk [vmem:[%s172 + $0x238] sm:$0xf] %vm11238, %v9812
      %11382 = vst.msk [vmem:[%s172 + $0x23c] sm:$0xf] %vm11238, %v9813
      %11383 = vst.msk [vmem:[%s172 + $0x240] sm:$0xf] %vm11238, %v9814
      %11384 = vst.msk [vmem:[%s172 + $0x244] sm:$0xf] %vm11238, %v9815
      %11385 = vst.msk [vmem:[%s172 + $0x248] sm:$0xf] %vm11238, %v9816
      %11386 = vst.msk [vmem:[%s172 + $0x24c] sm:$0xf] %vm11238, %v9817
      %11387 = vst.msk [vmem:[%s172 + $0x250] sm:$0xf] %vm11238, %v9818
      %11388 = vst.msk [vmem:[%s172 + $0x254] sm:$0xf] %vm11238, %v9819
      %11389 = vst.msk [vmem:[%s172 + $0x258] sm:$0xf] %vm11238, %v9820
      %11390 = vst.msk [vmem:[%s172 + $0x25c] sm:$0xf] %vm11238, %v9821
      %11391 = vst.msk [vmem:[%s172 + $0x260] sm:$0xf] %vm11238, %v9822
      %11392 = vst.msk [vmem:[%s172 + $0x264] sm:$0xf] %vm11238, %v9823
      %11393 = vst.msk [vmem:[%s172 + $0x268] sm:$0xf] %vm11238, %v9824
      %11394 = vst.msk [vmem:[%s172 + $0x26c] sm:$0xf] %vm11238, %v9825
      %11395 = vst.msk [vmem:[%s172 + $0x270] sm:$0xf] %vm11238, %v9826
      %11396 = vst.msk [vmem:[%s172 + $0x274] sm:$0xf] %vm11238, %v9827
      %11397 = vst.msk [vmem:[%s172 + $0x278] sm:$0xf] %vm11238, %v9828
      %11398 = vst.msk [vmem:[%s172 + $0x27c] sm:$0xf] %vm11238, %v9829
      %11399 = vst.msk [vmem:[%s172 + $0x280] sm:$0xf] %vm11238, %v9830
      %11400 = vst.msk [vmem:[%s172 + $0x284] sm:$0xf] %vm11238, %v9831
      %11401 = vst.msk [vmem:[%s172 + $0x288] sm:$0xf] %vm11238, %v9832
      %11402 = vst.msk [vmem:[%s172 + $0x28c] sm:$0xf] %vm11238, %v9833
      %11403 = vst.msk [vmem:[%s172 + $0x290] sm:$0xf] %vm11238, %v9834
      %11404 = vst.msk [vmem:[%s172 + $0x294] sm:$0xf] %vm11238, %v9835
      %11405 = vst.msk [vmem:[%s172 + $0x298] sm:$0xf] %vm11238, %v9836
      %11406 = vst.msk [vmem:[%s172 + $0x29c] sm:$0xf] %vm11238, %v9837
      %11407 = vst.msk [vmem:[%s172 + $0x2a0] sm:$0xf] %vm11238, %v9838
      %11408 = vst.msk [vmem:[%s172 + $0x2a4] sm:$0xf] %vm11238, %v9839
      %11409 = vst.msk [vmem:[%s172 + $0x2a8] sm:$0xf] %vm11238, %v9840
      %11410 = vst.msk [vmem:[%s172 + $0x2ac] sm:$0xf] %vm11238, %v9841
      %11411 = vst.msk [vmem:[%s172 + $0x2b0] sm:$0xf] %vm11238, %v9842
      %11412 = vst.msk [vmem:[%s172 + $0x2b4] sm:$0xf] %vm11238, %v9843
      %11413 = vst.msk [vmem:[%s172 + $0x2b8] sm:$0xf] %vm11238, %v9844
      %11414 = vst.msk [vmem:[%s172 + $0x2bc] sm:$0xf] %vm11238, %v9845
      %11415 = vst.msk [vmem:[%s172 + $0x2c0] sm:$0xf] %vm11238, %v9846
      %11416 = vst.msk [vmem:[%s172 + $0x2c4] sm:$0xf] %vm11238, %v9847
      %11417 = vst.msk [vmem:[%s172 + $0x2c8] sm:$0xf] %vm11238, %v9848
      %11418 = vst.msk [vmem:[%s172 + $0x2cc] sm:$0xf] %vm11238, %v9849
      %11419 = vst.msk [vmem:[%s172 + $0x2d0] sm:$0xf] %vm11238, %v9850
      %11420 = vst.msk [vmem:[%s172 + $0x2d4] sm:$0xf] %vm11238, %v9851
      %11421 = vst.msk [vmem:[%s172 + $0x2d8] sm:$0xf] %vm11238, %v9852
      %11422 = vst.msk [vmem:[%s172 + $0x2dc] sm:$0xf] %vm11238, %v9853
      %11423 = vst.msk [vmem:[%s172 + $0x2e0] sm:$0xf] %vm11238, %v9854
      %11424 = vst.msk [vmem:[%s172 + $0x2e4] sm:$0xf] %vm11238, %v9855
      %11425 = vst.msk [vmem:[%s172 + $0x2e8] sm:$0xf] %vm11238, %v9856
      %11426 = vst.msk [vmem:[%s172 + $0x2ec] sm:$0xf] %vm11238, %v9857
      %11427 = vst.msk [vmem:[%s172 + $0x2f0] sm:$0xf] %vm11238, %v9858
      %11428 = vst.msk [vmem:[%s172 + $0x2f4] sm:$0xf] %vm11238, %v9859
      %11429 = vst.msk [vmem:[%s172 + $0x2f8] sm:$0xf] %vm11238, %v9860
      %11430 = vst.msk [vmem:[%s172 + $0x2fc] sm:$0xf] %vm11238, %v9861
      %11431 = vst.msk [vmem:[%s172 + $0x300] sm:$0xf] %vm11238, %v9862
      %11432 = vst.msk [vmem:[%s172 + $0x304] sm:$0xf] %vm11238, %v9863
      %11433 = vst.msk [vmem:[%s172 + $0x308] sm:$0xf] %vm11238, %v9864
      %11434 = vst.msk [vmem:[%s172 + $0x30c] sm:$0xf] %vm11238, %v9865
      %11435 = vst.msk [vmem:[%s172 + $0x310] sm:$0xf] %vm11238, %v9866
      %11436 = vst.msk [vmem:[%s172 + $0x314] sm:$0xf] %vm11238, %v9867
      %11437 = vst.msk [vmem:[%s172 + $0x318] sm:$0xf] %vm11238, %v9868
      %11438 = vst.msk [vmem:[%s172 + $0x31c] sm:$0xf] %vm11238, %v9869
      %11439 = vst.msk [vmem:[%s172 + $0x320] sm:$0xf] %vm11238, %v9870
      %11440 = vst.msk [vmem:[%s172 + $0x324] sm:$0xf] %vm11238, %v9871
      %11441 = vst.msk [vmem:[%s172 + $0x328] sm:$0xf] %vm11238, %v9872
      %11442 = vst.msk [vmem:[%s172 + $0x32c] sm:$0xf] %vm11238, %v9873
      %11443 = vst.msk [vmem:[%s172 + $0x330] sm:$0xf] %vm11238, %v9874
      %11444 = vst.msk [vmem:[%s172 + $0x334] sm:$0xf] %vm11238, %v9875
      %11445 = vst.msk [vmem:[%s172 + $0x338] sm:$0xf] %vm11238, %v9876
      %11446 = vst.msk [vmem:[%s172 + $0x33c] sm:$0xf] %vm11238, %v9877
      %11447 = vst.msk [vmem:[%s172 + $0x340] sm:$0xf] %vm11238, %v9878
      %11448 = vst.msk [vmem:[%s172 + $0x344] sm:$0xf] %vm11238, %v9879
      %11449 = vst.msk [vmem:[%s172 + $0x348] sm:$0xf] %vm11238, %v9880
      %11450 = vst.msk [vmem:[%s172 + $0x34c] sm:$0xf] %vm11238, %v9881
      %11451 = vst.msk [vmem:[%s172 + $0x350] sm:$0xf] %vm11238, %v9882
      %11452 = vst.msk [vmem:[%s172 + $0x354] sm:$0xf] %vm11238, %v9883
      %11453 = vst.msk [vmem:[%s172 + $0x358] sm:$0xf] %vm11238, %v9884
      %11454 = vst.msk [vmem:[%s172 + $0x35c] sm:$0xf] %vm11238, %v9885
      %11455 = vst.msk [vmem:[%s172 + $0x360] sm:$0xf] %vm11238, %v9886
      %11456 = vst.msk [vmem:[%s172 + $0x364] sm:$0xf] %vm11238, %v9887
      %11457 = vst.msk [vmem:[%s172 + $0x368] sm:$0xf] %vm11238, %v9888
      %11458 = vst.msk [vmem:[%s172 + $0x36c] sm:$0xf] %vm11238, %v9889
      %11459 = vst.msk [vmem:[%s172 + $0x370] sm:$0xf] %vm11238, %v9890
      %11460 = vst.msk [vmem:[%s172 + $0x374] sm:$0xf] %vm11238, %v9891
      %11461 = vst.msk [vmem:[%s172 + $0x378] sm:$0xf] %vm11238, %v9892
      %11462 = vst.msk [vmem:[%s172 + $0x37c] sm:$0xf] %vm11238, %v9893
      %11463 = vst.msk [vmem:[%s172 + $0x380] sm:$0xf] %vm11238, %v9894
      %11464 = vst.msk [vmem:[%s172 + $0x384] sm:$0xf] %vm11238, %v9895
      %11465 = vst.msk [vmem:[%s172 + $0x388] sm:$0xf] %vm11238, %v9896
      %11466 = vst.msk [vmem:[%s172 + $0x38c] sm:$0xf] %vm11238, %v9897
      %11467 = vst.msk [vmem:[%s172 + $0x390] sm:$0xf] %vm11238, %v9898
      %11468 = vst.msk [vmem:[%s172 + $0x394] sm:$0xf] %vm11238, %v9899
      %11469 = vst.msk [vmem:[%s172 + $0x398] sm:$0xf] %vm11238, %v9900
      %11470 = vst.msk [vmem:[%s172 + $0x39c] sm:$0xf] %vm11238, %v9901
      %11471 = vst.msk [vmem:[%s172 + $0x3a0] sm:$0xf] %vm11238, %v9902
      %11472 = vst.msk [vmem:[%s172 + $0x3a4] sm:$0xf] %vm11238, %v9903
      %11473 = vst.msk [vmem:[%s172 + $0x3a8] sm:$0xf] %vm11238, %v9904
      %11474 = vst.msk [vmem:[%s172 + $0x3ac] sm:$0xf] %vm11238, %v9905
      %11475 = vst.msk [vmem:[%s172 + $0x3b0] sm:$0xf] %vm11238, %v9906
      %11476 = vst.msk [vmem:[%s172 + $0x3b4] sm:$0xf] %vm11238, %v9907
      %11477 = vst.msk [vmem:[%s172 + $0x3b8] sm:$0xf] %vm11238, %v9908
      %11478 = vst.msk [vmem:[%s172 + $0x3bc] sm:$0xf] %vm11238, %v9909
      %11479 = vst.msk [vmem:[%s172 + $0x3c0] sm:$0xf] %vm11238, %v9910
      %11480 = vst.msk [vmem:[%s172 + $0x3c4] sm:$0xf] %vm11238, %v9911
      %11481 = vst.msk [vmem:[%s172 + $0x3c8] sm:$0xf] %vm11238, %v9912
      %11482 = vst.msk [vmem:[%s172 + $0x3cc] sm:$0xf] %vm11238, %v9913
      %11483 = vst.msk [vmem:[%s172 + $0x3d0] sm:$0xf] %vm11238, %v9914
      %11484 = vst.msk [vmem:[%s172 + $0x3d4] sm:$0xf] %vm11238, %v9915
      %11485 = vst.msk [vmem:[%s172 + $0x3d8] sm:$0xf] %vm11238, %v9916
      %11486 = vst.msk [vmem:[%s172 + $0x3dc] sm:$0xf] %vm11238, %v9917
      %11487 = vst.msk [vmem:[%s172 + $0x3e0] sm:$0xf] %vm11238, %v9918
      %11488 = vst.msk [vmem:[%s172 + $0x3e4] sm:$0xf] %vm11238, %v9919
      %11489 = vst.msk [vmem:[%s172 + $0x3e8] sm:$0xf] %vm11238, %v9920
      %11490 = vst.msk [vmem:[%s172 + $0x3ec] sm:$0xf] %vm11238, %v9921
      %11491 = vst.msk [vmem:[%s172 + $0x3f0] sm:$0xf] %vm11238, %v9922
      %11492 = vst.msk [vmem:[%s172 + $0x3f4] sm:$0xf] %vm11238, %v9923
      %11493 = vst.msk [vmem:[%s172 + $0x3f8] sm:$0xf] %vm11238, %v9924
      %11494 = vst.msk [vmem:[%s172 + $0x3fc] sm:$0xf] %vm11238, %v9925
      %11495 = vst.msk [vmem:[%s172 + $0x400] sm:$0xf] %vm11238, %v9926
      %11496 = vst.msk [vmem:[%s172 + $0x404] sm:$0xf] %vm11238, %v9927
      %11497 = vst.msk [vmem:[%s172 + $0x408] sm:$0xf] %vm11238, %v9928
      %11498 = vst.msk [vmem:[%s172 + $0x40c] sm:$0xf] %vm11238, %v9929
      %11499 = vst.msk [vmem:[%s172 + $0x410] sm:$0xf] %vm11238, %v9930
      %11500 = vst.msk [vmem:[%s172 + $0x414] sm:$0xf] %vm11238, %v9931
      %11501 = vst.msk [vmem:[%s172 + $0x418] sm:$0xf] %vm11238, %v9932
      %11502 = vst.msk [vmem:[%s172 + $0x41c] sm:$0xf] %vm11238, %v9933
      %11503 = vst.msk [vmem:[%s172 + $0x420] sm:$0xf] %vm11238, %v9934
      %11504 = vst.msk [vmem:[%s172 + $0x424] sm:$0xf] %vm11238, %v9935
      %11505 = vst.msk [vmem:[%s172 + $0x428] sm:$0xf] %vm11238, %v9936
      %11506 = vst.msk [vmem:[%s172 + $0x42c] sm:$0xf] %vm11238, %v9937
      %11507 = vst.msk [vmem:[%s172 + $0x430] sm:$0xf] %vm11238, %v9938
      %11508 = vst.msk [vmem:[%s172 + $0x434] sm:$0xf] %vm11238, %v9939
      %11509 = vst.msk [vmem:[%s172 + $0x438] sm:$0xf] %vm11238, %v9940
      %11510 = vst.msk [vmem:[%s172 + $0x43c] sm:$0xf] %vm11238, %v9941
      %11511 = vst.msk [vmem:[%s172 + $0x440] sm:$0xf] %vm11238, %v9942
      %11512 = vst.msk [vmem:[%s172 + $0x444] sm:$0xf] %vm11238, %v9943
      %11513 = vst.msk [vmem:[%s172 + $0x448] sm:$0xf] %vm11238, %v9944
      %11514 = vst.msk [vmem:[%s172 + $0x44c] sm:$0xf] %vm11238, %v9945
      %11515 = vst.msk [vmem:[%s172 + $0x450] sm:$0xf] %vm11238, %v9946
      %11516 = vst.msk [vmem:[%s172 + $0x454] sm:$0xf] %vm11238, %v9947
      %11517 = vst.msk [vmem:[%s172 + $0x458] sm:$0xf] %vm11238, %v9948
      %11518 = vst.msk [vmem:[%s172 + $0x45c] sm:$0xf] %vm11238, %v9949
      %11519 = vst.msk [vmem:[%s172 + $0x460] sm:$0xf] %vm11238, %v9950
      %11520 = vst.msk [vmem:[%s172 + $0x464] sm:$0xf] %vm11238, %v9951
      %11521 = vst.msk [vmem:[%s172 + $0x468] sm:$0xf] %vm11238, %v9952
      %11522 = vst.msk [vmem:[%s172 + $0x46c] sm:$0xf] %vm11238, %v9953
      %11523 = vst.msk [vmem:[%s172 + $0x470] sm:$0xf] %vm11238, %v9954
      %11524 = vst.msk [vmem:[%s172 + $0x474] sm:$0xf] %vm11238, %v9955
      %11525 = vst.msk [vmem:[%s172 + $0x478] sm:$0xf] %vm11238, %v9956
      %11526 = vst.msk [vmem:[%s172 + $0x47c] sm:$0xf] %vm11238, %v9957
      %11527 = vst.msk [vmem:[%s172 + $0x480] sm:$0xf] %vm11238, %v9958
      %11528 = vst.msk [vmem:[%s172 + $0x484] sm:$0xf] %vm11238, %v9959
      %11529 = vst.msk [vmem:[%s172 + $0x488] sm:$0xf] %vm11238, %v9960
      %11530 = vst.msk [vmem:[%s172 + $0x48c] sm:$0xf] %vm11238, %v9961
      %11531 = vst.msk [vmem:[%s172 + $0x490] sm:$0xf] %vm11238, %v9962
      %11532 = vst.msk [vmem:[%s172 + $0x494] sm:$0xf] %vm11238, %v9963
      %11533 = vst.msk [vmem:[%s172 + $0x498] sm:$0xf] %vm11238, %v9964
      %11534 = vst.msk [vmem:[%s172 + $0x49c] sm:$0xf] %vm11238, %v9965
      %11535 = vst.msk [vmem:[%s172 + $0x4a0] sm:$0xf] %vm11238, %v9966
      %11536 = vst.msk [vmem:[%s172 + $0x4a4] sm:$0xf] %vm11238, %v9967
      %11537 = vst.msk [vmem:[%s172 + $0x4a8] sm:$0xf] %vm11238, %v9968
      %11538 = vst.msk [vmem:[%s172 + $0x4ac] sm:$0xf] %vm11238, %v9969
      %11539 = vst.msk [vmem:[%s172 + $0x4b0] sm:$0xf] %vm11238, %v9970
      %11540 = vst.msk [vmem:[%s172 + $0x4b4] sm:$0xf] %vm11238, %v9971
      %11541 = vst.msk [vmem:[%s172 + $0x4b8] sm:$0xf] %vm11238, %v9972
      %11542 = vst.msk [vmem:[%s172 + $0x4bc] sm:$0xf] %vm11238, %v9973
      %11543 = vst.msk [vmem:[%s172 + $0x4c0] sm:$0xf] %vm11238, %v9974
      %11544 = vst.msk [vmem:[%s172 + $0x4c4] sm:$0xf] %vm11238, %v9975
      %11545 = vst.msk [vmem:[%s172 + $0x4c8] sm:$0xf] %vm11238, %v9976
      %11546 = vst.msk [vmem:[%s172 + $0x4cc] sm:$0xf] %vm11238, %v9977
      %11547 = vst.msk [vmem:[%s172 + $0x4d0] sm:$0xf] %vm11238, %v9978
      %11548 = vst.msk [vmem:[%s172 + $0x4d4] sm:$0xf] %vm11238, %v9979
      %11549 = vst.msk [vmem:[%s172 + $0x4d8] sm:$0xf] %vm11238, %v9980
      %11550 = vst.msk [vmem:[%s172 + $0x4dc] sm:$0xf] %vm11238, %v9981
      %11551 = vst.msk [vmem:[%s172 + $0x4e0] sm:$0xf] %vm11238, %v9982
      %11552 = vst.msk [vmem:[%s172 + $0x4e4] sm:$0xf] %vm11238, %v9983
      %11553 = vst.msk [vmem:[%s172 + $0x4e8] sm:$0xf] %vm11238, %v9984
      %11554 = vst.msk [vmem:[%s172 + $0x4ec] sm:$0xf] %vm11238, %v9985
      %11555 = vst.msk [vmem:[%s172 + $0x4f0] sm:$0xf] %vm11238, %v9986
      %11556 = vst.msk [vmem:[%s172 + $0x4f4] sm:$0xf] %vm11238, %v9987
      %11557 = vst.msk [vmem:[%s172 + $0x4f8] sm:$0xf] %vm11238, %v9988
      %11558 = vst.msk [vmem:[%s172 + $0x4fc] sm:$0xf] %vm11238, %v9989
      %11559 = vst.msk [vmem:[%s172 + $0x500] sm:$0xf] %vm11238, %v9990
      %11560 = vst.msk [vmem:[%s172 + $0x504] sm:$0xf] %vm11238, %v9991
      %11561 = vst.msk [vmem:[%s172 + $0x508] sm:$0xf] %vm11238, %v9992
      %11562 = vst.msk [vmem:[%s172 + $0x50c] sm:$0xf] %vm11238, %v9993
      %11563 = vst.msk [vmem:[%s172 + $0x510] sm:$0xf] %vm11238, %v9994
      %11564 = vst.msk [vmem:[%s172 + $0x514] sm:$0xf] %vm11238, %v9995
      %11565 = vst.msk [vmem:[%s172 + $0x518] sm:$0xf] %vm11238, %v9996
      %11566 = vst.msk [vmem:[%s172 + $0x51c] sm:$0xf] %vm11238, %v9997
      %11567 = vst.msk [vmem:[%s172 + $0x520] sm:$0xf] %vm11238, %v9998
      %11568 = vst.msk [vmem:[%s172 + $0x524] sm:$0xf] %vm11238, %v9999
      %11569 = vst.msk [vmem:[%s172 + $0x528] sm:$0xf] %vm11238, %v10000
      %11570 = vst.msk [vmem:[%s172 + $0x52c] sm:$0xf] %vm11238, %v10001
      %11571 = vst.msk [vmem:[%s172 + $0x530] sm:$0xf] %vm11238, %v10002
      %11572 = vst.msk [vmem:[%s172 + $0x534] sm:$0xf] %vm11238, %v10003
      %11573 = vst.msk [vmem:[%s172 + $0x538] sm:$0xf] %vm11238, %v10004
      %11574 = vst.msk [vmem:[%s172 + $0x53c] sm:$0xf] %vm11238, %v10005
      %11575 = vst.msk [vmem:[%s172 + $0x540] sm:$0xf] %vm11238, %v10006
      %11576 = vst.msk [vmem:[%s172 + $0x544] sm:$0xf] %vm11238, %v10007
      %11577 = vst.msk [vmem:[%s172 + $0x548] sm:$0xf] %vm11238, %v10008
      %11578 = vst.msk [vmem:[%s172 + $0x54c] sm:$0xf] %vm11238, %v10009
      %11579 = vst.msk [vmem:[%s172 + $0x550] sm:$0xf] %vm11238, %v10010
      %11580 = vst.msk [vmem:[%s172 + $0x554] sm:$0xf] %vm11238, %v10011
      %11581 = vst.msk [vmem:[%s172 + $0x558] sm:$0xf] %vm11238, %v10012
      %11582 = vst.msk [vmem:[%s172 + $0x55c] sm:$0xf] %vm11238, %v10013
      %11583 = vst.msk [vmem:[%s172 + $0x560] sm:$0xf] %vm11238, %v10014
      %11584 = vst.msk [vmem:[%s172 + $0x564] sm:$0xf] %vm11238, %v10015
      %11585 = vst.msk [vmem:[%s172 + $0x568] sm:$0xf] %vm11238, %v10016
      %11586 = vst.msk [vmem:[%s172 + $0x56c] sm:$0xf] %vm11238, %v10017
      %11587 = vst.msk [vmem:[%s172 + $0x570] sm:$0xf] %vm11238, %v10018
      %11588 = vst.msk [vmem:[%s172 + $0x574] sm:$0xf] %vm11238, %v10019
      %11589 = vst.msk [vmem:[%s172 + $0x578] sm:$0xf] %vm11238, %v10020
      %11590 = vst.msk [vmem:[%s172 + $0x57c] sm:$0xf] %vm11238, %v10021
      %11591 = vst.msk [vmem:[%s172 + $0x580] sm:$0xf] %vm11238, %v10022
      %11592 = vst.msk [vmem:[%s172 + $0x584] sm:$0xf] %vm11238, %v10023
      %11593 = vst.msk [vmem:[%s172 + $0x588] sm:$0xf] %vm11238, %v10024
      %11594 = vst.msk [vmem:[%s172 + $0x58c] sm:$0xf] %vm11238, %v10025
      %11595 = vst.msk [vmem:[%s172 + $0x590] sm:$0xf] %vm11238, %v10026
      %11596 = vst.msk [vmem:[%s172 + $0x594] sm:$0xf] %vm11238, %v10027
      %11597 = vst.msk [vmem:[%s172 + $0x598] sm:$0xf] %vm11238, %v10028
      %11598 = vst.msk [vmem:[%s172 + $0x59c] sm:$0xf] %vm11238, %v10029
      %11599 = vst.msk [vmem:[%s172 + $0x5a0] sm:$0xf] %vm11238, %v10030
      %11600 = vst.msk [vmem:[%s172 + $0x5a4] sm:$0xf] %vm11238, %v10031
      %11601 = vst.msk [vmem:[%s172 + $0x5a8] sm:$0xf] %vm11238, %v10032
      %11602 = vst.msk [vmem:[%s172 + $0x5ac] sm:$0xf] %vm11238, %v10033
      %11603 = vst.msk [vmem:[%s172 + $0x5b0] sm:$0xf] %vm11238, %v10034
      %11604 = vst.msk [vmem:[%s172 + $0x5b4] sm:$0xf] %vm11238, %v10035
      %11605 = vst.msk [vmem:[%s172 + $0x5b8] sm:$0xf] %vm11238, %v10036
      %11606 = vst.msk [vmem:[%s172 + $0x5bc] sm:$0xf] %vm11238, %v10037
      %11607 = vst.msk [vmem:[%s172 + $0x5c0] sm:$0xf] %vm11238, %v10038
      %11608 = vst.msk [vmem:[%s172 + $0x5c4] sm:$0xf] %vm11238, %v10039
      %11609 = vst.msk [vmem:[%s172 + $0x5c8] sm:$0xf] %vm11238, %v10040
      %11610 = vst.msk [vmem:[%s172 + $0x5cc] sm:$0xf] %vm11238, %v10041
      %11611 = vst.msk [vmem:[%s172 + $0x5d0] sm:$0xf] %vm11238, %v10042
      %11612 = vst.msk [vmem:[%s172 + $0x5d4] sm:$0xf] %vm11238, %v10043
      %11613 = vst.msk [vmem:[%s172 + $0x5d8] sm:$0xf] %vm11238, %v10044
      %11614 = vst.msk [vmem:[%s172 + $0x5dc] sm:$0xf] %vm11238, %v10045
      %11615 = vst.msk [vmem:[%s172 + $0x5e0] sm:$0xf] %vm11238, %v10046
      %11616 = vst.msk [vmem:[%s172 + $0x5e4] sm:$0xf] %vm11238, %v10047
      %11617 = vst.msk [vmem:[%s172 + $0x5e8] sm:$0xf] %vm11238, %v10048
      %11618 = vst.msk [vmem:[%s172 + $0x5ec] sm:$0xf] %vm11238, %v10049
      %11619 = vst.msk [vmem:[%s172 + $0x5f0] sm:$0xf] %vm11238, %v10050
      %11620 = vst.msk [vmem:[%s172 + $0x5f4] sm:$0xf] %vm11238, %v10051
      %11621 = vst.msk [vmem:[%s172 + $0x5f8] sm:$0xf] %vm11238, %v10052
      %11622 = vst.msk [vmem:[%s172 + $0x5fc] sm:$0xf] %vm11238, %v10053
      %11623 = vst.msk [vmem:[%s172 + $0x600] sm:$0xf] %vm11238, %v10054
      %11624 = vst.msk [vmem:[%s172 + $0x604] sm:$0xf] %vm11238, %v10055
      %11625 = vst.msk [vmem:[%s172 + $0x608] sm:$0xf] %vm11238, %v10056
      %11626 = vst.msk [vmem:[%s172 + $0x60c] sm:$0xf] %vm11238, %v10057
      %11627 = vst.msk [vmem:[%s172 + $0x610] sm:$0xf] %vm11238, %v10058
      %11628 = vst.msk [vmem:[%s172 + $0x614] sm:$0xf] %vm11238, %v10059
      %11629 = vst.msk [vmem:[%s172 + $0x618] sm:$0xf] %vm11238, %v10060
      %11630 = vst.msk [vmem:[%s172 + $0x61c] sm:$0xf] %vm11238, %v10061
      %11631 = vst.msk [vmem:[%s172 + $0x620] sm:$0xf] %vm11238, %v10062
      %11632 = vst.msk [vmem:[%s172 + $0x624] sm:$0xf] %vm11238, %v10063
      %11633 = vst.msk [vmem:[%s172 + $0x628] sm:$0xf] %vm11238, %v10064
      %11634 = vst.msk [vmem:[%s172 + $0x62c] sm:$0xf] %vm11238, %v10065
      %11635 = vst.msk [vmem:[%s172 + $0x630] sm:$0xf] %vm11238, %v10066
      %11636 = vst.msk [vmem:[%s172 + $0x634] sm:$0xf] %vm11238, %v10067
      %11637 = vst.msk [vmem:[%s172 + $0x638] sm:$0xf] %vm11238, %v10068
      %11638 = vst.msk [vmem:[%s172 + $0x63c] sm:$0xf] %vm11238, %v10069
      %11639 = vst.msk [vmem:[%s172 + $0x640] sm:$0xf] %vm11238, %v10070
      %11640 = vst.msk [vmem:[%s172 + $0x644] sm:$0xf] %vm11238, %v10071
      %11641 = vst.msk [vmem:[%s172 + $0x648] sm:$0xf] %vm11238, %v10072
      %11642 = vst.msk [vmem:[%s172 + $0x64c] sm:$0xf] %vm11238, %v10073
      %11643 = vst.msk [vmem:[%s172 + $0x650] sm:$0xf] %vm11238, %v10074
      %11644 = vst.msk [vmem:[%s172 + $0x654] sm:$0xf] %vm11238, %v10075
      %11645 = vst.msk [vmem:[%s172 + $0x658] sm:$0xf] %vm11238, %v10076
      %11646 = vst.msk [vmem:[%s172 + $0x65c] sm:$0xf] %vm11238, %v10077
      %11647 = vst.msk [vmem:[%s172 + $0x660] sm:$0xf] %vm11238, %v10078
      %11648 = vst.msk [vmem:[%s172 + $0x664] sm:$0xf] %vm11238, %v10079
      %11649 = vst.msk [vmem:[%s172 + $0x668] sm:$0xf] %vm11238, %v10080
      %11650 = vst.msk [vmem:[%s172 + $0x66c] sm:$0xf] %vm11238, %v10081
      %11651 = vst.msk [vmem:[%s172 + $0x670] sm:$0xf] %vm11238, %v10082
      %11652 = vst.msk [vmem:[%s172 + $0x674] sm:$0xf] %vm11238, %v10083
      %11653 = vst.msk [vmem:[%s172 + $0x678] sm:$0xf] %vm11238, %v10084
      %11654 = vst.msk [vmem:[%s172 + $0x67c] sm:$0xf] %vm11238, %v10085
      %11655 = vst.msk [vmem:[%s172 + $0x680] sm:$0xf] %vm11238, %v10086
      %11656 = vst.msk [vmem:[%s172 + $0x684] sm:$0xf] %vm11238, %v10087
      %11657 = vst.msk [vmem:[%s172 + $0x688] sm:$0xf] %vm11238, %v10088
      %11658 = vst.msk [vmem:[%s172 + $0x68c] sm:$0xf] %vm11238, %v10089
      %11659 = vst.msk [vmem:[%s172 + $0x690] sm:$0xf] %vm11238, %v10090
      %11660 = vst.msk [vmem:[%s172 + $0x694] sm:$0xf] %vm11238, %v10091
      %11661 = vst.msk [vmem:[%s172 + $0x698] sm:$0xf] %vm11238, %v10092
      %11662 = vst.msk [vmem:[%s172 + $0x69c] sm:$0xf] %vm11238, %v10093
      %11663 = vst.msk [vmem:[%s172 + $0x6a0] sm:$0xf] %vm11238, %v10094
      %11664 = vst.msk [vmem:[%s172 + $0x6a4] sm:$0xf] %vm11238, %v10095
      %11665 = vst.msk [vmem:[%s172 + $0x6a8] sm:$0xf] %vm11238, %v10096
      %11666 = vst.msk [vmem:[%s172 + $0x6ac] sm:$0xf] %vm11238, %v10097
      %11667 = vst.msk [vmem:[%s172 + $0x6b0] sm:$0xf] %vm11238, %v10098
      %11668 = vst.msk [vmem:[%s172 + $0x6b4] sm:$0xf] %vm11238, %v10099
      %11669 = vst.msk [vmem:[%s172 + $0x6b8] sm:$0xf] %vm11238, %v10100
      %11670 = vst.msk [vmem:[%s172 + $0x6bc] sm:$0xf] %vm11238, %v10101
      %11671 = vst.msk [vmem:[%s172 + $0x6c0] sm:$0xf] %vm11238, %v10102
      %11672 = vst.msk [vmem:[%s172 + $0x6c4] sm:$0xf] %vm11238, %v10103
      %11673 = vst.msk [vmem:[%s172 + $0x6c8] sm:$0xf] %vm11238, %v10104
      %11674 = vst.msk [vmem:[%s172 + $0x6cc] sm:$0xf] %vm11238, %v10105
      %11675 = vst.msk [vmem:[%s172 + $0x6d0] sm:$0xf] %vm11238, %v10106
      %11676 = vst.msk [vmem:[%s172 + $0x6d4] sm:$0xf] %vm11238, %v10107
      %11677 = vst.msk [vmem:[%s172 + $0x6d8] sm:$0xf] %vm11238, %v10108
      %11678 = vst.msk [vmem:[%s172 + $0x6dc] sm:$0xf] %vm11238, %v10109
      %11679 = vst.msk [vmem:[%s172 + $0x6e0] sm:$0xf] %vm11238, %v10110
      %11680 = vst.msk [vmem:[%s172 + $0x6e4] sm:$0xf] %vm11238, %v10111
      %11681 = vst.msk [vmem:[%s172 + $0x6e8] sm:$0xf] %vm11238, %v10112
      %11682 = vst.msk [vmem:[%s172 + $0x6ec] sm:$0xf] %vm11238, %v10113
      %11683 = vst.msk [vmem:[%s172 + $0x6f0] sm:$0xf] %vm11238, %v10114
      %11684 = vst.msk [vmem:[%s172 + $0x6f4] sm:$0xf] %vm11238, %v10115
      %11685 = vst.msk [vmem:[%s172 + $0x6f8] sm:$0xf] %vm11238, %v10116
      %11686 = vst.msk [vmem:[%s172 + $0x6fc] sm:$0xf] %vm11238, %v10117
      %11687 = vst.msk [vmem:[%s172 + $0x700] sm:$0xf] %vm11238, %v10118
      %11688 = vst.msk [vmem:[%s172 + $0x704] sm:$0xf] %vm11238, %v10119
      %11689 = vst.msk [vmem:[%s172 + $0x708] sm:$0xf] %vm11238, %v10120
      %11690 = vst.msk [vmem:[%s172 + $0x70c] sm:$0xf] %vm11238, %v10121
      %11691 = vst.msk [vmem:[%s172 + $0x710] sm:$0xf] %vm11238, %v10122
      %11692 = vst.msk [vmem:[%s172 + $0x714] sm:$0xf] %vm11238, %v10123
      %11693 = vst.msk [vmem:[%s172 + $0x718] sm:$0xf] %vm11238, %v10124
      %11694 = vst.msk [vmem:[%s172 + $0x71c] sm:$0xf] %vm11238, %v10125
      %11695 = vst.msk [vmem:[%s172 + $0x720] sm:$0xf] %vm11238, %v10126
      %11696 = vst.msk [vmem:[%s172 + $0x724] sm:$0xf] %vm11238, %v10127
      %11697 = vst.msk [vmem:[%s172 + $0x728] sm:$0xf] %vm11238, %v10128
      %11698 = vst.msk [vmem:[%s172 + $0x72c] sm:$0xf] %vm11238, %v10129
      %11699 = vst.msk [vmem:[%s172 + $0x730] sm:$0xf] %vm11238, %v10130
      %11700 = vst.msk [vmem:[%s172 + $0x734] sm:$0xf] %vm11238, %v10131
      %11701 = vst.msk [vmem:[%s172 + $0x738] sm:$0xf] %vm11238, %v10132
      %11702 = vst.msk [vmem:[%s172 + $0x73c] sm:$0xf] %vm11238, %v10133
      %11703 = vst.msk [vmem:[%s172 + $0x740] sm:$0xf] %vm11238, %v10134
      %11704 = vst.msk [vmem:[%s172 + $0x744] sm:$0xf] %vm11238, %v10135
      %11705 = vst.msk [vmem:[%s172 + $0x748] sm:$0xf] %vm11238, %v10136
      %11706 = vst.msk [vmem:[%s172 + $0x74c] sm:$0xf] %vm11238, %v10137
      %11707 = vst.msk [vmem:[%s172 + $0x750] sm:$0xf] %vm11238, %v10138
      %11708 = vst.msk [vmem:[%s172 + $0x754] sm:$0xf] %vm11238, %v10139
      %11709 = vst.msk [vmem:[%s172 + $0x758] sm:$0xf] %vm11238, %v10140
      %11710 = vst.msk [vmem:[%s172 + $0x75c] sm:$0xf] %vm11238, %v10141
      %11711 = vst.msk [vmem:[%s172 + $0x760] sm:$0xf] %vm11238, %v10142
      %11712 = vst.msk [vmem:[%s172 + $0x764] sm:$0xf] %vm11238, %v10143
      %11713 = vst.msk [vmem:[%s172 + $0x768] sm:$0xf] %vm11238, %v10144
      %11714 = vst.msk [vmem:[%s172 + $0x76c] sm:$0xf] %vm11238, %v10145
      %11715 = vst.msk [vmem:[%s172 + $0x770] sm:$0xf] %vm11238, %v10146
      %11716 = vst.msk [vmem:[%s172 + $0x774] sm:$0xf] %vm11238, %v10147
      %11717 = vst.msk [vmem:[%s172 + $0x778] sm:$0xf] %vm11238, %v10148
      %11718 = vst.msk [vmem:[%s172 + $0x77c] sm:$0xf] %vm11238, %v10149
      %11719 = vst.msk [vmem:[%s172 + $0x780] sm:$0xf] %vm11238, %v10150
      %11720 = vst.msk [vmem:[%s172 + $0x784] sm:$0xf] %vm11238, %v10151
      %11721 = vst.msk [vmem:[%s172 + $0x788] sm:$0xf] %vm11238, %v10152
      %11722 = vst.msk [vmem:[%s172 + $0x78c] sm:$0xf] %vm11238, %v10153
      %11723 = vst.msk [vmem:[%s172 + $0x790] sm:$0xf] %vm11238, %v10154
      %11724 = vst.msk [vmem:[%s172 + $0x794] sm:$0xf] %vm11238, %v10155
      %11725 = vst.msk [vmem:[%s172 + $0x798] sm:$0xf] %vm11238, %v10156
      %11726 = vst.msk [vmem:[%s172 + $0x79c] sm:$0xf] %vm11238, %v10157
      %11727 = vst.msk [vmem:[%s172 + $0x7a0] sm:$0xf] %vm11238, %v10158
      %11728 = vst.msk [vmem:[%s172 + $0x7a4] sm:$0xf] %vm11238, %v10159
      %11729 = vst.msk [vmem:[%s172 + $0x7a8] sm:$0xf] %vm11238, %v10160
      %11730 = vst.msk [vmem:[%s172 + $0x7ac] sm:$0xf] %vm11238, %v10161
      %11731 = vst.msk [vmem:[%s172 + $0x7b0] sm:$0xf] %vm11238, %v10162
      %11732 = vst.msk [vmem:[%s172 + $0x7b4] sm:$0xf] %vm11238, %v10163
      %11733 = vst.msk [vmem:[%s172 + $0x7b8] sm:$0xf] %vm11238, %v10164
      %11734 = vst.msk [vmem:[%s172 + $0x7bc] sm:$0xf] %vm11238, %v10165
      %11735 = vst.msk [vmem:[%s172 + $0x7c0] sm:$0xf] %vm11238, %v10166
      %11736 = vst.msk [vmem:[%s172 + $0x7c4] sm:$0xf] %vm11238, %v10167
      %11737 = vst.msk [vmem:[%s172 + $0x7c8] sm:$0xf] %vm11238, %v10168
      %11738 = vst.msk [vmem:[%s172 + $0x7cc] sm:$0xf] %vm11238, %v10169
      %11739 = vst.msk [vmem:[%s172 + $0x7d0] sm:$0xf] %vm11238, %v10170
      %11740 = vst.msk [vmem:[%s172 + $0x7d4] sm:$0xf] %vm11238, %v10171
      %11741 = vst.msk [vmem:[%s172 + $0x7d8] sm:$0xf] %vm11238, %v10172
      %11742 = vst.msk [vmem:[%s172 + $0x7dc] sm:$0xf] %vm11238, %v10173
      %11743 = vst.msk [vmem:[%s172 + $0x7e0] sm:$0xf] %vm11238, %v10174
      %11744 = vst.msk [vmem:[%s172 + $0x7e4] sm:$0xf] %vm11238, %v10175
      %11745 = vst.msk [vmem:[%s172 + $0x7e8] sm:$0xf] %vm11238, %v10176
      %11746 = vst.msk [vmem:[%s172 + $0x7ec] sm:$0xf] %vm11238, %v10177
      %11747 = vst.msk [vmem:[%s172 + $0x7f0] sm:$0xf] %vm11238, %v10178
      %11748 = vst.msk [vmem:[%s172 + $0x7f4] sm:$0xf] %vm11238, %v10179
      %11749 = vst.msk [vmem:[%s172 + $0x7f8] sm:$0xf] %vm11238, %v10180
      %11750 = vst.msk [vmem:[%s172 + $0x7fc] sm:$0xf] %vm11238, %v10181
      %11751 = vst.msk [vmem:[%s172 + $0x800] sm:$0xf] %vm11238, %v10182
      %11752 = vst.msk [vmem:[%s172 + $0x804] sm:$0xf] %vm11238, %v10183
      %11753 = vst.msk [vmem:[%s172 + $0x808] sm:$0xf] %vm11238, %v10184
      %11754 = vst.msk [vmem:[%s172 + $0x80c] sm:$0xf] %vm11238, %v10185
      %11755 = vst.msk [vmem:[%s172 + $0x810] sm:$0xf] %vm11238, %v10186
      %11756 = vst.msk [vmem:[%s172 + $0x814] sm:$0xf] %vm11238, %v10187
      %11757 = vst.msk [vmem:[%s172 + $0x818] sm:$0xf] %vm11238, %v10188
      %11758 = vst.msk [vmem:[%s172 + $0x81c] sm:$0xf] %vm11238, %v10189
      %11759 = vst.msk [vmem:[%s172 + $0x820] sm:$0xf] %vm11238, %v10190
      %11760 = vst.msk [vmem:[%s172 + $0x824] sm:$0xf] %vm11238, %v10191
      %11761 = vst.msk [vmem:[%s172 + $0x828] sm:$0xf] %vm11238, %v10192
      %11762 = vst.msk [vmem:[%s172 + $0x82c] sm:$0xf] %vm11238, %v10193
      %11763 = vst.msk [vmem:[%s172 + $0x830] sm:$0xf] %vm11238, %v10194
      %11764 = vst.msk [vmem:[%s172 + $0x834] sm:$0xf] %vm11238, %v10195
      %11765 = vst.msk [vmem:[%s172 + $0x838] sm:$0xf] %vm11238, %v10196
      %11766 = vst.msk [vmem:[%s172 + $0x83c] sm:$0xf] %vm11238, %v10197
      %11767 = vst.msk [vmem:[%s172 + $0x840] sm:$0xf] %vm11238, %v10198
      %11768 = vst.msk [vmem:[%s172 + $0x844] sm:$0xf] %vm11238, %v10199
      %11769 = vst.msk [vmem:[%s172 + $0x848] sm:$0xf] %vm11238, %v10200
      %11770 = vst.msk [vmem:[%s172 + $0x84c] sm:$0xf] %vm11238, %v10201
      %11771 = vst.msk [vmem:[%s172 + $0x850] sm:$0xf] %vm11238, %v10202
      %11772 = vst.msk [vmem:[%s172 + $0x854] sm:$0xf] %vm11238, %v10203
      %11773 = vst.msk [vmem:[%s172 + $0x858] sm:$0xf] %vm11238, %v10204
      %11774 = vst.msk [vmem:[%s172 + $0x85c] sm:$0xf] %vm11238, %v10205
      %11775 = vst.msk [vmem:[%s172 + $0x860] sm:$0xf] %vm11238, %v10206
      %11776 = vst.msk [vmem:[%s172 + $0x864] sm:$0xf] %vm11238, %v10207
      %11777 = vst.msk [vmem:[%s172 + $0x868] sm:$0xf] %vm11238, %v10208
      %11778 = vst.msk [vmem:[%s172 + $0x86c] sm:$0xf] %vm11238, %v10209
      %11779 = vst.msk [vmem:[%s172 + $0x870] sm:$0xf] %vm11238, %v10210
      %11780 = vst.msk [vmem:[%s172 + $0x874] sm:$0xf] %vm11238, %v10211
      %11781 = vst.msk [vmem:[%s172 + $0x878] sm:$0xf] %vm11238, %v10212
      %11782 = vst.msk [vmem:[%s172 + $0x87c] sm:$0xf] %vm11238, %v10213
      %11783 = vst.msk [vmem:[%s172 + $0x880] sm:$0xf] %vm11238, %v10214
      %11784 = vst.msk [vmem:[%s172 + $0x884] sm:$0xf] %vm11238, %v10215
      %11785 = vst.msk [vmem:[%s172 + $0x888] sm:$0xf] %vm11238, %v10216
      %11786 = vst.msk [vmem:[%s172 + $0x88c] sm:$0xf] %vm11238, %v10217
      %11787 = vst.msk [vmem:[%s172 + $0x890] sm:$0xf] %vm11238, %v10218
      %11788 = vst.msk [vmem:[%s172 + $0x894] sm:$0xf] %vm11238, %v10219
      %11789 = vst.msk [vmem:[%s172 + $0x898] sm:$0xf] %vm11238, %v10220
      %11790 = vst.msk [vmem:[%s172 + $0x89c] sm:$0xf] %vm11238, %v10221
      %11791 = vst.msk [vmem:[%s172 + $0x8a0] sm:$0xf] %vm11238, %v10222
      %11792 = vst.msk [vmem:[%s172 + $0x8a4] sm:$0xf] %vm11238, %v10223
      %11793 = vst.msk [vmem:[%s172 + $0x8a8] sm:$0xf] %vm11238, %v10224
      %11794 = vst.msk [vmem:[%s172 + $0x8ac] sm:$0xf] %vm11238, %v10225
      %11795 = vst.msk [vmem:[%s172 + $0x8b0] sm:$0xf] %vm11238, %v10226
      %11796 = vst.msk [vmem:[%s172 + $0x8b4] sm:$0xf] %vm11238, %v10227
      %11797 = vst.msk [vmem:[%s172 + $0x8b8] sm:$0xf] %vm11238, %v10228
      %11798 = vst.msk [vmem:[%s172 + $0x8bc] sm:$0xf] %vm11238, %v10229
      %11799 = vst.msk [vmem:[%s172 + $0x8c0] sm:$0xf] %vm11238, %v10230
      %11800 = vst.msk [vmem:[%s172 + $0x8c4] sm:$0xf] %vm11238, %v10231
      %11801 = vst.msk [vmem:[%s172 + $0x8c8] sm:$0xf] %vm11238, %v10232
      %11802 = vst.msk [vmem:[%s172 + $0x8cc] sm:$0xf] %vm11238, %v10233
      %11803 = vst.msk [vmem:[%s172 + $0x8d0] sm:$0xf] %vm11238, %v10234
      %11804 = vst.msk [vmem:[%s172 + $0x8d4] sm:$0xf] %vm11238, %v10235
      %11805 = vst.msk [vmem:[%s172 + $0x8d8] sm:$0xf] %vm11238, %v10236
      %11806 = vst.msk [vmem:[%s172 + $0x8dc] sm:$0xf] %vm11238, %v10237
      %11807 = vst.msk [vmem:[%s172 + $0x8e0] sm:$0xf] %vm11238, %v10238
      %11808 = vst.msk [vmem:[%s172 + $0x8e4] sm:$0xf] %vm11238, %v10239
      %11809 = vst.msk [vmem:[%s172 + $0x8e8] sm:$0xf] %vm11238, %v10240
      %11810 = vst.msk [vmem:[%s172 + $0x8ec] sm:$0xf] %vm11238, %v10241
      %11811 = vst.msk [vmem:[%s172 + $0x8f0] sm:$0xf] %vm11238, %v10242
      %11812 = vst.msk [vmem:[%s172 + $0x8f4] sm:$0xf] %vm11238, %v10243
      %11813 = vst.msk [vmem:[%s172 + $0x8f8] sm:$0xf] %vm11238, %v10244
      %11814 = vst.msk [vmem:[%s172 + $0x8fc] sm:$0xf] %vm11238, %v10245
      %11815 = vst.msk [vmem:[%s172 + $0x900] sm:$0xf] %vm11238, %v10246
      %11816 = vst.msk [vmem:[%s172 + $0x904] sm:$0xf] %vm11238, %v10247
      %11817 = vst.msk [vmem:[%s172 + $0x908] sm:$0xf] %vm11238, %v10248
      %11818 = vst.msk [vmem:[%s172 + $0x90c] sm:$0xf] %vm11238, %v10249
      %11819 = vst.msk [vmem:[%s172 + $0x910] sm:$0xf] %vm11238, %v10250
      %11820 = vst.msk [vmem:[%s172 + $0x914] sm:$0xf] %vm11238, %v10251
      %11821 = vst.msk [vmem:[%s172 + $0x918] sm:$0xf] %vm11238, %v10252
      %11822 = vst.msk [vmem:[%s172 + $0x91c] sm:$0xf] %vm11238, %v10253
      %11823 = vst.msk [vmem:[%s172 + $0x920] sm:$0xf] %vm11238, %v10254
      %11824 = vst.msk [vmem:[%s172 + $0x924] sm:$0xf] %vm11238, %v10255
      %11825 = vst.msk [vmem:[%s172 + $0x928] sm:$0xf] %vm11238, %v10256
      %11826 = vst.msk [vmem:[%s172 + $0x92c] sm:$0xf] %vm11238, %v10257
      %11827 = vst.msk [vmem:[%s172 + $0x930] sm:$0xf] %vm11238, %v10258
      %11828 = vst.msk [vmem:[%s172 + $0x934] sm:$0xf] %vm11238, %v10259
      %11829 = vst.msk [vmem:[%s172 + $0x938] sm:$0xf] %vm11238, %v10260
      %11830 = vst.msk [vmem:[%s172 + $0x93c] sm:$0xf] %vm11238, %v10261
      %11831 = vst.msk [vmem:[%s172 + $0x940] sm:$0xf] %vm11238, %v10262
      %11832 = vst.msk [vmem:[%s172 + $0x944] sm:$0xf] %vm11238, %v10263
      %11833 = vst.msk [vmem:[%s172 + $0x948] sm:$0xf] %vm11238, %v10264
      %11834 = vst.msk [vmem:[%s172 + $0x94c] sm:$0xf] %vm11238, %v10265
      %11835 = vst.msk [vmem:[%s172 + $0x950] sm:$0xf] %vm11238, %v10266
      %11836 = vst.msk [vmem:[%s172 + $0x954] sm:$0xf] %vm11238, %v10267
      %11837 = vst.msk [vmem:[%s172 + $0x958] sm:$0xf] %vm11238, %v10268
      %11838 = vst.msk [vmem:[%s172 + $0x95c] sm:$0xf] %vm11238, %v10269
      %11839 = vst.msk [vmem:[%s172 + $0x960] sm:$0xf] %vm11238, %v10270
      %11840 = vst.msk [vmem:[%s172 + $0x964] sm:$0xf] %vm11238, %v10271
      %11841 = vst.msk [vmem:[%s172 + $0x968] sm:$0xf] %vm11238, %v10272
      %11842 = vst.msk [vmem:[%s172 + $0x96c] sm:$0xf] %vm11238, %v10273
      %11843 = vst.msk [vmem:[%s172 + $0x970] sm:$0xf] %vm11238, %v10274
      %11844 = vst.msk [vmem:[%s172 + $0x974] sm:$0xf] %vm11238, %v10275
      %11845 = vst.msk [vmem:[%s172 + $0x978] sm:$0xf] %vm11238, %v10276
      %11846 = vst.msk [vmem:[%s172 + $0x97c] sm:$0xf] %vm11238, %v10277
      %11847 = vst.msk [vmem:[%s172 + $0x980] sm:$0xf] %vm11238, %v10278
      %11848 = vst.msk [vmem:[%s172 + $0x984] sm:$0xf] %vm11238, %v10279
      %11849 = vst.msk [vmem:[%s172 + $0x988] sm:$0xf] %vm11238, %v10280
      %11850 = vst.msk [vmem:[%s172 + $0x98c] sm:$0xf] %vm11238, %v10281
      %11851 = vst.msk [vmem:[%s172 + $0x990] sm:$0xf] %vm11238, %v10282
      %11852 = vst.msk [vmem:[%s172 + $0x994] sm:$0xf] %vm11238, %v10283
      %11853 = vst.msk [vmem:[%s172 + $0x998] sm:$0xf] %vm11238, %v10284
      %11854 = vst.msk [vmem:[%s172 + $0x99c] sm:$0xf] %vm11238, %v10285
      %11855 = vst.msk [vmem:[%s172 + $0x9a0] sm:$0xf] %vm11238, %v10286
      %11856 = vst.msk [vmem:[%s172 + $0x9a4] sm:$0xf] %vm11238, %v10287
      %11857 = vst.msk [vmem:[%s172 + $0x9a8] sm:$0xf] %vm11238, %v10288
      %11858 = vst.msk [vmem:[%s172 + $0x9ac] sm:$0xf] %vm11238, %v10289
      %11859 = vst.msk [vmem:[%s172 + $0x9b0] sm:$0xf] %vm11238, %v10290
      %11860 = vst.msk [vmem:[%s172 + $0x9b4] sm:$0xf] %vm11238, %v10291
      %11861 = vst.msk [vmem:[%s172 + $0x9b8] sm:$0xf] %vm11238, %v10292
      %11862 = vst.msk [vmem:[%s172 + $0x9bc] sm:$0xf] %vm11238, %v10293
      %11863 = vst.msk [vmem:[%s172 + $0x9c0] sm:$0xf] %vm11238, %v10294
      %11864 = vst.msk [vmem:[%s172 + $0x9c4] sm:$0xf] %vm11238, %v10295
      %11865 = vst.msk [vmem:[%s172 + $0x9c8] sm:$0xf] %vm11238, %v10296
      %11866 = vst.msk [vmem:[%s172 + $0x9cc] sm:$0xf] %vm11238, %v10297
      %11867 = vst.msk [vmem:[%s172 + $0x9d0] sm:$0xf] %vm11238, %v10298
      %11868 = vst.msk [vmem:[%s172 + $0x9d4] sm:$0xf] %vm11238, %v10299
      %11869 = vst.msk [vmem:[%s172 + $0x9d8] sm:$0xf] %vm11238, %v10300
      %11870 = vst.msk [vmem:[%s172 + $0x9dc] sm:$0xf] %vm11238, %v10301
      %11871 = vst.msk [vmem:[%s172 + $0x9e0] sm:$0xf] %vm11238, %v10302
      %11872 = vst.msk [vmem:[%s172 + $0x9e4] sm:$0xf] %vm11238, %v10303
      %11873 = vst.msk [vmem:[%s172 + $0x9e8] sm:$0xf] %vm11238, %v10304
      %11874 = vst.msk [vmem:[%s172 + $0x9ec] sm:$0xf] %vm11238, %v10305
      %11875 = vst.msk [vmem:[%s172 + $0x9f0] sm:$0xf] %vm11238, %v10306
      %11876 = vst.msk [vmem:[%s172 + $0x9f4] sm:$0xf] %vm11238, %v10307
      %11877 = vst.msk [vmem:[%s172 + $0x9f8] sm:$0xf] %vm11238, %v10308
      %11878 = vst.msk [vmem:[%s172 + $0x9fc] sm:$0xf] %vm11238, %v10309
      %11879 = vst.msk [vmem:[%s172 + $0xa00] sm:$0xf] %vm11238, %v10310
      %11880 = vst.msk [vmem:[%s172 + $0xa04] sm:$0xf] %vm11238, %v10311
      %11881 = vst.msk [vmem:[%s172 + $0xa08] sm:$0xf] %vm11238, %v10312
      %11882 = vst.msk [vmem:[%s172 + $0xa0c] sm:$0xf] %vm11238, %v10313
      %11883 = vst.msk [vmem:[%s172 + $0xa10] sm:$0xf] %vm11238, %v10314
      %11884 = vst.msk [vmem:[%s172 + $0xa14] sm:$0xf] %vm11238, %v10315
      %11885 = vst.msk [vmem:[%s172 + $0xa18] sm:$0xf] %vm11238, %v10316
      %11886 = vst.msk [vmem:[%s172 + $0xa1c] sm:$0xf] %vm11238, %v10317
      %11887 = vst.msk [vmem:[%s172 + $0xa20] sm:$0xf] %vm11238, %v10318
      %11888 = vst.msk [vmem:[%s172 + $0xa24] sm:$0xf] %vm11238, %v10319
      %11889 = vst.msk [vmem:[%s172 + $0xa28] sm:$0xf] %vm11238, %v10320
      %11890 = vst.msk [vmem:[%s172 + $0xa2c] sm:$0xf] %vm11238, %v10321
      %11891 = vst.msk [vmem:[%s172 + $0xa30] sm:$0xf] %vm11238, %v10322
      %11892 = vst.msk [vmem:[%s172 + $0xa34] sm:$0xf] %vm11238, %v10323
      %11893 = vst.msk [vmem:[%s172 + $0xa38] sm:$0xf] %vm11238, %v10324
      %11894 = vst.msk [vmem:[%s172 + $0xa3c] sm:$0xf] %vm11238, %v10325
      %11895 = vst.msk [vmem:[%s172 + $0xa40] sm:$0xf] %vm11238, %v10326
      %11896 = vst.msk [vmem:[%s172 + $0xa44] sm:$0xf] %vm11238, %v10327
      %11897 = vst.msk [vmem:[%s172 + $0xa48] sm:$0xf] %vm11238, %v10328
      %11898 = vst.msk [vmem:[%s172 + $0xa4c] sm:$0xf] %vm11238, %v10329
      %11899 = vst.msk [vmem:[%s172 + $0xa50] sm:$0xf] %vm11238, %v10330
      %11900 = vst.msk [vmem:[%s172 + $0xa54] sm:$0xf] %vm11238, %v10331
      %11901 = vst.msk [vmem:[%s172 + $0xa58] sm:$0xf] %vm11238, %v10332
      %11902 = vst.msk [vmem:[%s172 + $0xa5c] sm:$0xf] %vm11238, %v10333
      %11903 = vst.msk [vmem:[%s172 + $0xa60] sm:$0xf] %vm11238, %v10334
      %11904 = vst.msk [vmem:[%s172 + $0xa64] sm:$0xf] %vm11238, %v10335
      %11905 = vst.msk [vmem:[%s172 + $0xa68] sm:$0xf] %vm11238, %v10336
      %11906 = vst.msk [vmem:[%s172 + $0xa6c] sm:$0xf] %vm11238, %v10337
      %11907 = vst.msk [vmem:[%s172 + $0xa70] sm:$0xf] %vm11238, %v10338
      %11908 = vst.msk [vmem:[%s172 + $0xa74] sm:$0xf] %vm11238, %v10339
      %11909 = vst.msk [vmem:[%s172 + $0xa78] sm:$0xf] %vm11238, %v10340
      %11910 = vst.msk [vmem:[%s172 + $0xa7c] sm:$0xf] %vm11238, %v10341
      %11911 = vst.msk [vmem:[%s172 + $0xa80] sm:$0xf] %vm11238, %v10342
      %11912 = vst.msk [vmem:[%s172 + $0xa84] sm:$0xf] %vm11238, %v10343
      %11913 = vst.msk [vmem:[%s172 + $0xa88] sm:$0xf] %vm11238, %v10344
      %11914 = vst.msk [vmem:[%s172 + $0xa8c] sm:$0xf] %vm11238, %v10345
      %11915 = vst.msk [vmem:[%s172 + $0xa90] sm:$0xf] %vm11238, %v10346
      %11916 = vst.msk [vmem:[%s172 + $0xa94] sm:$0xf] %vm11238, %v10347
      %11917 = vst.msk [vmem:[%s172 + $0xa98] sm:$0xf] %vm11238, %v10348
      %11918 = vst.msk [vmem:[%s172 + $0xa9c] sm:$0xf] %vm11238, %v10349
      %11919 = vst.msk [vmem:[%s172 + $0xaa0] sm:$0xf] %vm11238, %v10350
      %11920 = vst.msk [vmem:[%s172 + $0xaa4] sm:$0xf] %vm11238, %v10351
      %11921 = vst.msk [vmem:[%s172 + $0xaa8] sm:$0xf] %vm11238, %v10352
      %11922 = vst.msk [vmem:[%s172 + $0xaac] sm:$0xf] %vm11238, %v10353
      %11923 = vst.msk [vmem:[%s172 + $0xab0] sm:$0xf] %vm11238, %v10354
      %11924 = vst.msk [vmem:[%s172 + $0xab4] sm:$0xf] %vm11238, %v10355
      %11925 = vst.msk [vmem:[%s172 + $0xab8] sm:$0xf] %vm11238, %v10356
      %11926 = vst.msk [vmem:[%s172 + $0xabc] sm:$0xf] %vm11238, %v10357
      %11927 = vst.msk [vmem:[%s172 + $0xac0] sm:$0xf] %vm11238, %v10358
      %11928 = vst.msk [vmem:[%s172 + $0xac4] sm:$0xf] %vm11238, %v10359
      %11929 = vst.msk [vmem:[%s172 + $0xac8] sm:$0xf] %vm11238, %v10360
      %11930 = vst.msk [vmem:[%s172 + $0xacc] sm:$0xf] %vm11238, %v10361
      %11931 = vst.msk [vmem:[%s172 + $0xad0] sm:$0xf] %vm11238, %v10362
      %11932 = vst.msk [vmem:[%s172 + $0xad4] sm:$0xf] %vm11238, %v10363
      %11933 = vst.msk [vmem:[%s172 + $0xad8] sm:$0xf] %vm11238, %v10364
      %11934 = vst.msk [vmem:[%s172 + $0xadc] sm:$0xf] %vm11238, %v10365
      %11935 = vst.msk [vmem:[%s172 + $0xae0] sm:$0xf] %vm11238, %v10366
      %11936 = vst.msk [vmem:[%s172 + $0xae4] sm:$0xf] %vm11238, %v10367
      %11937 = vst.msk [vmem:[%s172 + $0xae8] sm:$0xf] %vm11238, %v10368
      %11938 = vst.msk [vmem:[%s172 + $0xaec] sm:$0xf] %vm11238, %v10369
      %11939 = vst.msk [vmem:[%s172 + $0xaf0] sm:$0xf] %vm11238, %v10370
      %11940 = vst.msk [vmem:[%s172 + $0xaf4] sm:$0xf] %vm11238, %v10371
      %11941 = vst.msk [vmem:[%s172 + $0xaf8] sm:$0xf] %vm11238, %v10372
      %11942 = vst.msk [vmem:[%s172 + $0xafc] sm:$0xf] %vm11238, %v10373
      %11943 = vst.msk [vmem:[%s172 + $0xb00] sm:$0xf] %vm11238, %v10374
      %11944 = vst.msk [vmem:[%s172 + $0xb04] sm:$0xf] %vm11238, %v10375
      %11945 = vst.msk [vmem:[%s172 + $0xb08] sm:$0xf] %vm11238, %v10376
      %11946 = vst.msk [vmem:[%s172 + $0xb0c] sm:$0xf] %vm11238, %v10377
      %11947 = vst.msk [vmem:[%s172 + $0xb10] sm:$0xf] %vm11238, %v10378
      %11948 = vst.msk [vmem:[%s172 + $0xb14] sm:$0xf] %vm11238, %v10379
      %11949 = vst.msk [vmem:[%s172 + $0xb18] sm:$0xf] %vm11238, %v10380
      %11950 = vst.msk [vmem:[%s172 + $0xb1c] sm:$0xf] %vm11238, %v10381
      %11951 = vst.msk [vmem:[%s172 + $0xb20] sm:$0xf] %vm11238, %v10382
      %11952 = vst.msk [vmem:[%s172 + $0xb24] sm:$0xf] %vm11238, %v10383
      %11953 = vst.msk [vmem:[%s172 + $0xb28] sm:$0xf] %vm11238, %v10384
      %11954 = vst.msk [vmem:[%s172 + $0xb2c] sm:$0xf] %vm11238, %v10385
      %11955 = vst.msk [vmem:[%s172 + $0xb30] sm:$0xf] %vm11238, %v10386
      %11956 = vst.msk [vmem:[%s172 + $0xb34] sm:$0xf] %vm11238, %v10387
      %11957 = vst.msk [vmem:[%s172 + $0xb38] sm:$0xf] %vm11238, %v10388
      %11958 = vst.msk [vmem:[%s172 + $0xb3c] sm:$0xf] %vm11238, %v10389
      %11959 = vst.msk [vmem:[%s172 + $0xb40] sm:$0xf] %vm11238, %v10390
      %11960 = vst.msk [vmem:[%s172 + $0xb44] sm:$0xf] %vm11238, %v10391
      %11961 = vst.msk [vmem:[%s172 + $0xb48] sm:$0xf] %vm11238, %v10392
      %11962 = vst.msk [vmem:[%s172 + $0xb4c] sm:$0xf] %vm11238, %v10393
      %11963 = vst.msk [vmem:[%s172 + $0xb50] sm:$0xf] %vm11238, %v10394
      %11964 = vst.msk [vmem:[%s172 + $0xb54] sm:$0xf] %vm11238, %v10395
      %11965 = vst.msk [vmem:[%s172 + $0xb58] sm:$0xf] %vm11238, %v10396
      %11966 = vst.msk [vmem:[%s172 + $0xb5c] sm:$0xf] %vm11238, %v10397
      %11967 = vst.msk [vmem:[%s172 + $0xb60] sm:$0xf] %vm11238, %v10398
      %11968 = vst.msk [vmem:[%s172 + $0xb64] sm:$0xf] %vm11238, %v10399
      %11969 = vst.msk [vmem:[%s172 + $0xb68] sm:$0xf] %vm11238, %v10400
      %11970 = vst.msk [vmem:[%s172 + $0xb6c] sm:$0xf] %vm11238, %v10401
      %11971 = vst.msk [vmem:[%s172 + $0xb70] sm:$0xf] %vm11238, %v10402
      %11972 = vst.msk [vmem:[%s172 + $0xb74] sm:$0xf] %vm11238, %v10403
      %11973 = vst.msk [vmem:[%s172 + $0xb78] sm:$0xf] %vm11238, %v10404
      %11974 = vst.msk [vmem:[%s172 + $0xb7c] sm:$0xf] %vm11238, %v10405
      %11975 = vst.msk [vmem:[%s172 + $0xb80] sm:$0xf] %vm11238, %v10406
      %11976 = vst.msk [vmem:[%s172 + $0xb84] sm:$0xf] %vm11238, %v10407
      %11977 = vst.msk [vmem:[%s172 + $0xb88] sm:$0xf] %vm11238, %v10408
      %11978 = vst.msk [vmem:[%s172 + $0xb8c] sm:$0xf] %vm11238, %v10409
      %11979 = vst.msk [vmem:[%s172 + $0xb90] sm:$0xf] %vm11238, %v10410
      %11980 = vst.msk [vmem:[%s172 + $0xb94] sm:$0xf] %vm11238, %v10411
      %11981 = vst.msk [vmem:[%s172 + $0xb98] sm:$0xf] %vm11238, %v10412
      %11982 = vst.msk [vmem:[%s172 + $0xb9c] sm:$0xf] %vm11238, %v10413
      %11983 = vst.msk [vmem:[%s172 + $0xba0] sm:$0xf] %vm11238, %v10414
      %11984 = vst.msk [vmem:[%s172 + $0xba4] sm:$0xf] %vm11238, %v10415
      %11985 = vst.msk [vmem:[%s172 + $0xba8] sm:$0xf] %vm11238, %v10416
      %11986 = vst.msk [vmem:[%s172 + $0xbac] sm:$0xf] %vm11238, %v10417
      %11987 = vst.msk [vmem:[%s172 + $0xbb0] sm:$0xf] %vm11238, %v10418
      %11988 = vst.msk [vmem:[%s172 + $0xbb4] sm:$0xf] %vm11238, %v10419
      %11989 = vst.msk [vmem:[%s172 + $0xbb8] sm:$0xf] %vm11238, %v10420
      %11990 = vst.msk [vmem:[%s172 + $0xbbc] sm:$0xf] %vm11238, %v10421
      %11991 = vst.msk [vmem:[%s172 + $0xbc0] sm:$0xf] %vm11238, %v10422
      %11992 = vst.msk [vmem:[%s172 + $0xbc4] sm:$0xf] %vm11238, %v10423
      %11993 = vst.msk [vmem:[%s172 + $0xbc8] sm:$0xf] %vm11238, %v10424
      %11994 = vst.msk [vmem:[%s172 + $0xbcc] sm:$0xf] %vm11238, %v10425
      %11995 = vst.msk [vmem:[%s172 + $0xbd0] sm:$0xf] %vm11238, %v10426
      %11996 = vst.msk [vmem:[%s172 + $0xbd4] sm:$0xf] %vm11238, %v10427
      %11997 = vst.msk [vmem:[%s172 + $0xbd8] sm:$0xf] %vm11238, %v10428
      %11998 = vst.msk [vmem:[%s172 + $0xbdc] sm:$0xf] %vm11238, %v10429
      %11999 = vst.msk [vmem:[%s172 + $0xbe0] sm:$0xf] %vm11238, %v10430
      %12000 = vst.msk [vmem:[%s172 + $0xbe4] sm:$0xf] %vm11238, %v10431
      %12001 = vst.msk [vmem:[%s172 + $0xbe8] sm:$0xf] %vm11238, %v10432
      %12002 = vst.msk [vmem:[%s172 + $0xbec] sm:$0xf] %vm11238, %v10433
      %12003 = vst.msk [vmem:[%s172 + $0xbf0] sm:$0xf] %vm11238, %v10434
      %12004 = vst.msk [vmem:[%s172 + $0xbf4] sm:$0xf] %vm11238, %v10435
      %12005 = vst.msk [vmem:[%s172 + $0xbf8] sm:$0xf] %vm11238, %v10436
      %12006 = vst.msk [vmem:[%s172 + $0xbfc] sm:$0xf] %vm11238, %v10437
      %12007 = vst.msk [vmem:[%s172 + $0xc00] sm:$0xf] %vm11238, %v10438
      %12008 = vst.msk [vmem:[%s172 + $0xc04] sm:$0xf] %vm11238, %v10439
      %12009 = vst.msk [vmem:[%s172 + $0xc08] sm:$0xf] %vm11238, %v10440
      %12010 = vst.msk [vmem:[%s172 + $0xc0c] sm:$0xf] %vm11238, %v10441
      %12011 = vst.msk [vmem:[%s172 + $0xc10] sm:$0xf] %vm11238, %v10442
      %12012 = vst.msk [vmem:[%s172 + $0xc14] sm:$0xf] %vm11238, %v10443
      %12013 = vst.msk [vmem:[%s172 + $0xc18] sm:$0xf] %vm11238, %v10444
      %12014 = vst.msk [vmem:[%s172 + $0xc1c] sm:$0xf] %vm11238, %v10445
      %12015 = vst.msk [vmem:[%s172 + $0xc20] sm:$0xf] %vm11238, %v10446
      %12016 = vst.msk [vmem:[%s172 + $0xc24] sm:$0xf] %vm11238, %v10447
      %12017 = vst.msk [vmem:[%s172 + $0xc28] sm:$0xf] %vm11238, %v10448
      %12018 = vst.msk [vmem:[%s172 + $0xc2c] sm:$0xf] %vm11238, %v10449
      %12019 = vst.msk [vmem:[%s172 + $0xc30] sm:$0xf] %vm11238, %v10450
      %12020 = vst.msk [vmem:[%s172 + $0xc34] sm:$0xf] %vm11238, %v10451
      %12021 = vst.msk [vmem:[%s172 + $0xc38] sm:$0xf] %vm11238, %v10452
      %12022 = vst.msk [vmem:[%s172 + $0xc3c] sm:$0xf] %vm11238, %v10453
      %s12023 = smul.u32 784, %s14
      %p12024 = scmp.lt.s32.totalorder %s12023, 3135
      %s12025 = scalar_select %p12024, %s12023, 3135
      %s12026 = smul.addr %s12025, 4
      %s12027 = scalar_lea.vmem %s3, %s12026
      // Predicated region
      $region33: #{tpu_custom_call.1} parent=31 // pred_check
        %p12028 = pneg %p100
      $region34: #{tpu_custom_call.1} parent=31 // pred_check_branch
        %12030 = sbr.rel (%p12028) target = $region36
      $region35: #{tpu_custom_call.1} parent=31 // pred_region
        %s12031 = smul.u32 784, %s14
      $region36: #{tpu_custom_call.1} parent=31 // pred_fallthru
        _
    $region32: #{tpu_custom_call.1} parent=5 // pred_fallthru
      _
    %p12032 = scmp.le.s32.totalorder 2, %s9
    // Predicated region
    $region37: #{tpu_custom_call.1} parent=5 // pred_check
      %p12033 = pneg %p12032
    $region38: #{tpu_custom_call.1} parent=5 // pred_check_branch
      %12035 = sbr.rel (%p12033) target = $region40
    $region39: #{tpu_custom_call.1} parent=5 // pred_region
      %s12036 = ssub.s32 %s9, 2
      // Predicated region
      $region41: #{tpu_custom_call.1} parent=39 // pred_check
        %p12037 = pneg %p106
      $region42: #{tpu_custom_call.1} parent=39 // pred_check_branch
        %12039 = sbr.rel (%p12037) target = $region44
      $region43: #{tpu_custom_call.1} parent=39 // pred_region
        %s12040 = smul.u32 784, %s15
        %p12041 = scmp.lt.s32.totalorder %s12040, 3135
        %s12042 = scalar_select %p12041, %s12040, 3135
        %s12043 = smul.addr %s12042, 4
        %s12044 = scalar_lea.vmem %s3, %s12043
      $region44: #{tpu_custom_call.1} parent=39 // pred_fallthru
        _
    $region40: #{tpu_custom_call.1} parent=5 // pred_fallthru
      _
  $region6: #{tpu_custom_call.1} parent=0 // loop_footer
    %s13 = sadd.s32 1, %s9
  $region7: #{tpu_custom_call.1} parent=0 // loop_footer_branch
    %8 = sbr.rel target = $region3
  $region8: #{tpu_custom_call.1} parent=0 // loop_exit
    _

</llo_original>
